<compile_context>
chip_gen: v7x
topology: tpu7x:2x2x1
jax: 0.10.0
libtpu: 0.0.40
codegen_flags: <defaults>
</compile_context>

<pallas_src>
import functools

import numpy as np
import jax
import jax.numpy as jnp
from jax.experimental import pallas as pl
from jax.experimental.pallas import tpu as pltpu


LANES = 128                      # packed-output lane width (unmasked stores)
NUM_ANCHORS = 3
SCALES = ((13, 32), (26, 16), (52, 8))       # (grid size, stride)


# ----------------------------------------------------------------------------
# Fused Pallas kernel: 1x1-conv head + YOLO box decode, one M-tile per step.
# All three scales share this kernel; per-scale params come from SMEM.
# ----------------------------------------------------------------------------
def _head_decode_kernel(sid_ref, tp_ref, feat_ref, w_ref, b_ref, out_ref, *,
                        D, num_classes, cin):
    del sid_ref                               # only used by the index_maps
    i = pl.program_id(0)
    tile_m = out_ref.shape[0]

    # ---- per-scale scalars (SMEM) ------------------------------------------
    base = tp_ref[i, 0]                       # first row of this tile in scale
    w_grid = tp_ref[i, 1]                     # grid width  (f32)
    h_grid = tp_ref[i, 2]                     # grid height (f32)
    scale = tp_ref[i, 3]                      # stride / case
    aw0, ah0 = tp_ref[i, 4], tp_ref[i, 5]     # anchors / case
    aw1, ah1 = tp_ref[i, 6], tp_ref[i, 7]
    aw2, ah2 = tp_ref[i, 8], tp_ref[i, 9]

    # ---- 1x1-conv head -------------------------------------------------------
    # cin is tiny for the stand-in backbone -> a few full-width VPU
    # broadcast-FMAs beat a <4%-utilized MXU matmul; real heads use the MXU.
    if cin >= 64:
        head = jnp.dot(feat_ref[...], w_ref[...],
                       preferred_element_type=jnp.float32) + b_ref[...]
    else:
        feat = feat_ref[...]                  # (TM, cin) f32
        head = b_ref[...]                     # (1, LANES) f32
        for k in range(cin):
            head = head + feat[:, k:k + 1] * w_ref[k:k + 1, :]
    # head: (TM, LANES); lanes >= 3*D are zero (zero-padded weights/bias).

    # ---- per-lane field masks from one lane iota (all (1, LANES) ops) --------
    lane = jax.lax.broadcasted_iota(jnp.int32, (1, LANES), 1)
    grp = (lane >= D).astype(jnp.int32) + (lane >= 2 * D).astype(jnp.int32)
    fld = lane - grp * D                      # field within the anchor group
    active = lane < NUM_ANCHORS * D

    def fmask(cond):
        return (cond & active).astype(jnp.float32)

    m_sig = fmask(fld == 0)                   # objectness lanes
    m_tx = fmask(fld == 1)
    m_ty = fmask(fld == 2)
    m_txty = m_tx + m_ty
    m_exp = fmask((fld == 3) | (fld == 4))    # box w/h lanes
    m_f5 = fmask(fld == 5)                    # class-index output lane

    # per-lane anchor/case coefficient for the exp lanes
    aw = jnp.where(grp == 0, aw0, jnp.where(grp == 1, aw1, aw2))
    ah = jnp.where(grp == 0, ah0, jnp.where(grp == 1, ah1, ah2))
    c_exp = fmask(fld == 3) * aw + fmask(fld == 4) * ah

    # ---- grid-cell coordinates (in-kernel, no gxy side stream) ---------------
    r = base + jax.lax.broadcasted_iota(
        jnp.int32, (tile_m, 1), 0).astype(jnp.float32)      # row within scale
    q = jnp.floor(r / w_grid)
    wi = r - q * w_grid                       # cell x (index[:, 2])
    hi = q - jnp.floor(q / h_grid) * h_grid   # cell y (index[:, 1])

    # ---- full-width decode on the whole (TM, 128) slab -----------------------
    sig = jax.nn.sigmoid(head)                                # EUP, full width
    exw = jnp.exp(head * m_exp)               # masked so only w/h lanes see
                                              # real exponents (no inf * 0)
    lin = (m_tx * wi + m_ty * hi + m_txty * head) * scale
    body = m_sig * sig + c_exp * exw + lin    # cls / pad lanes are exactly 0

    # ---- class argmax for all anchors at once via lane rotations -------------
    # class lanes are contiguous within each anchor group; rolling the slab by
    # s lanes lines class s up with class 0, so a running strict-> compare /
    # select yields the first-max argmax at every field-5 lane.
    best_v = head
    best_i = jnp.zeros_like(head)
    for s in range(1, num_classes):
        cand = pltpu.roll(head, shift=LANES - s, axis=1)
        gt = cand > best_v
        best_v = jnp.where(gt, cand, best_v)
        best_i = jnp.where(gt, jnp.float32(s), best_i)

    out_ref[...] = body + m_f5 * best_i       # single lane-dense 128-wide store


# ----------------------------------------------------------------------------
# Stand-in backbone (deterministic): avg-pool NHWC input to each grid size.
# ----------------------------------------------------------------------------
def _avg_pool_nhwc(x, k):
    if k == 1:
        return x
    n, h, w, c = x.shape
    return x.reshape(n, h // k, k, w // k, k, c).mean(axis=(2, 4))


# ----------------------------------------------------------------------------
# Device path: one fused pallas_call for all three scales.
# ----------------------------------------------------------------------------
@functools.partial(jax.jit, static_argnames=("anchors_cfg", "case",
                                             "num_classes", "tile_m"))
def _detector_device(x_nhwc, w13, b13, w26, b26, w52, b52, *,
                     anchors_cfg, case, num_classes, tile_m):
    n_batch, s_in, _, cin = x_nhwc.shape
    D = 5 + num_classes
    c3 = NUM_ANCHORS * D
    assert c3 <= LANES and tile_m % 8 == 0

    per_scale_wb = ((w13, b13), (w26, b26), (w52, b52))

    feat_blocks, segments, sid_rows, tp_rows = [], [], [], []
    w_pads, b_pads = [], []
    pstart = 0
    for si, (g, stride, anc) in enumerate(anchors_cfg):
        w, b = per_scale_wb[si]
        w_pads.append(jnp.pad(w.astype(jnp.float32),
                              ((0, 0), (0, LANES - c3))))
        b_pads.append(jnp.pad(b.astype(jnp.float32),
                              ((0, 0), (0, LANES - c3))))

        feat = _avg_pool_nhwc(x_nhwc, s_in // g)             # (N, g, g, cin)
        m_rows = n_batch * g * g
        m_pad = pl.cdiv(m_rows, tile_m) * tile_m
        feat_blocks.append(jnp.pad(feat.reshape(m_rows, cin),
                                   ((0, m_pad - m_rows), (0, 0))))
        for t in range(m_pad // tile_m):
            sid_rows.append(si)
            tp_rows.append([float(t * tile_m), float(g), float(g),
                            float(stride) / case,
                            anc[0][0] / case, anc[0][1] / case,
                            anc[1][0] / case, anc[1][1] / case,
                            anc[2][0] / case, anc[2][1] / case])
        segments.append((pstart, m_rows))
        pstart += m_pad

    feat_all = jnp.concatenate(feat_blocks, axis=0)          # (Mtot, cin) f32
    w_all = jnp.stack(w_pads)                                # (3, cin, 128)
    b_all = jnp.stack(b_pads)                                # (3, 1, 128)
    sid = jnp.asarray(sid_rows, jnp.int32)                   # (T,)
    tp = jnp.asarray(tp_rows, jnp.float32)                   # (T, 10)
    num_tiles = len(sid_rows)
    m_tot = pstart

    kernel = functools.partial(_head_decode_kernel, D=D,
                               num_classes=num_classes, cin=cin)

    # double-buffered per-step footprint (+ headroom) for the scoped-VMEM cap
    bytes_per_step = (tile_m * cin * 4 + cin * LANES * 4 + LANES * 4
                      + tile_m * LANES * 4)
    vmem_limit = min(64 * 1024 * 1024,
                     max(16 * 1024 * 1024, 4 * bytes_per_step))

    packed = pl.pallas_call(
        kernel,
        out_shape=jax.ShapeDtypeStruct((m_tot, LANES), jnp.float32),
        grid_spec=pltpu.PrefetchScalarGridSpec(
            num_scalar_prefetch=2,
            grid=(num_tiles,),
            in_specs=[
                pl.BlockSpec((tile_m, cin), lambda i, sid, tp: (i, 0)),
                pl.BlockSpec((None, cin, LANES),
                             lambda i, sid, tp: (sid[i], 0, 0)),
                pl.BlockSpec((None, 1, LANES),
                             lambda i, sid, tp: (sid[i], 0, 0)),
            ],
            out_specs=pl.BlockSpec((tile_m, LANES), lambda i, sid, tp: (i, 0)),
        ),
        compiler_params=pltpu.CompilerParams(
            dimension_semantics=("parallel",),
            vmem_limit_bytes=vmem_limit),
    )(sid, tp, feat_all, w_all, b_all)

    # device-side trim: drop padded rows and the 128 - 3*D zero lanes so the
    # D2H transfer only moves useful bytes.
    return tuple(packed[p0:p0 + m, :c3] for (p0, m) in segments)


# ----------------------------------------------------------------------------
# Detector.forward
# ----------------------------------------------------------------------------
def detector_forward(x_nchw, thresh, anchors, case, params, num_classes,
                     tile_m=1024, return_dense=False):
    x_nhwc = jnp.transpose(x_nchw, (0, 2, 3, 1)).astype(jnp.float32)
    anchors_cfg = tuple(
        (g, s, tuple(tuple(float(v) for v in a) for a in anchors[g]))
        for g, s in SCALES)
    w13, b13 = params[13]
    w26, b26 = params[26]
    w52, b52 = params[52]

    dense = _detector_device(x_nhwc, w13, b13, w26, b26, w52, b52,
                             anchors_cfg=anchors_cfg, case=float(case),
                             num_classes=num_classes, tile_m=tile_m)
    jax.block_until_ready(dense)
    dense_np = jax.device_get(dense)            # one fetch for all scales

    # TODO(synk): dynamic-shape compaction (nonzero()/boolean mask) on host.
    D = 5 + num_classes
    boxes = []
    for out_s in dense_np:
        rows = out_s.reshape(-1, D)             # (M*3, D), (n, h, w, a) order
        keep = rows[:, 0] > thresh              # sigmoid(p) > thresh
        boxes.append(rows[keep, :6])
    all_boxes = np.concatenate(boxes, axis=0)   # torch.cat(dim=0)
    if return_dense:
        return all_boxes, dense_np
    return all_boxes


# ----------------------------------------------------------------------------
# Pure-NumPy reference of the dense decode (for the in-script check).
# ----------------------------------------------------------------------------
def _reference_packed_scale(x_nhwc_np, w_np, b_np, g, stride, anchors_s, case,
                            num_classes):
    n, s_in, _, cin = x_nhwc_np.shape
    k = s_in // g
    xs = x_nhwc_np.reshape(n, g, k, g, k, cin).mean(axis=(2, 4))
    D = 5 + num_classes
    m_rows = n * g * g
    head = xs.reshape(m_rows, cin) @ w_np + b_np
    head = head.reshape(m_rows, NUM_ANCHORS, D)
    rows = np.arange(m_rows)
    wi = (rows % g).astype(np.float32)[:, None]
    hi = ((rows // g) % g).astype(np.float32)[:, None]
    p = 1.0 / (1.0 + np.exp(-head[..., 0]))
    cx = (wi + head[..., 1]) * stride / case
    cy = (hi + head[..., 2]) * stride / case
    anc = np.asarray(anchors_s, np.float32)
    bw = anc[None, :, 0] * np.exp(head[..., 3]) / case
    bh = anc[None, :, 1] * np.exp(head[..., 4]) / case
    cls_logits = head[..., 5:]
    cls_idx = np.argmax(cls_logits, axis=-1).astype(np.float32)
    ref = np.stack([p, cx, cy, bw, bh, cls_idx], axis=-1)     # (M, 3, 6)
    if num_classes > 1:
        srt = np.sort(cls_logits, axis=-1)
        gap = srt[..., -1] - srt[..., -2]
    else:
        gap = np.full(p.shape, 1e9, np.float32)
    return ref, gap


# ----------------------------------------------------------------------------
# Main
# ----------------------------------------------------------------------------
if __name__ == "__main__":
    key = jax.random.PRNGKey(0)
    N, Cin, S = 2, 4, 52          # small NCHW input; scales 13/26/52 preserved
    num_classes = 3
    D = 5 + num_classes
    Cout = NUM_ANCHORS * D

    kx, kw = jax.random.split(key)
    wk = jax.random.split(kw, 6)
    params = {
        13: (0.2 * jax.random.normal(wk[0], (Cin, Cout), jnp.float32),
             0.05 * jax.random.normal(wk[1], (1, Cout), jnp.float32)),
        26: (0.2 * jax.random.normal(wk[2], (Cin, Cout), jnp.float32),
             0.05 * jax.random.normal(wk[3], (1, Cout), jnp.float32)),
        52: (0.2 * jax.random.normal(wk[4], (Cin, Cout), jnp.float32),
             0.05 * jax.random.normal(wk[5], (1, Cout), jnp.float32)),
    }
    x = jax.random.normal(kx, (N, Cin, S, S), jnp.float32)   # NCHW like torch

    anchors = {
        13: ((116.0, 90.0), (156.0, 198.0), (373.0, 326.0)),
        26: ((30.0, 61.0), (62.0, 45.0), (59.0, 119.0)),
        52: ((10.0, 13.0), (16.0, 30.0), (33.0, 23.0)),
    }
    thresh = 0.5
    case = 416.0

    boxes, dense = detector_forward(x, thresh, anchors, case, params,
                                    num_classes, return_dense=True)
    assert boxes.ndim == 2 and boxes.shape[1] == 6

    # ---- verify the dense packed decode against a NumPy reference ----------
    x_nhwc_np = np.asarray(jnp.transpose(x, (0, 2, 3, 1)), np.float32)
    for out_s, (g, stride) in zip(dense, SCALES):
        w_np = np.asarray(params[g][0], np.float32)
        b_np = np.asarray(params[g][1], np.float32)
        ref, gap = _reference_packed_scale(x_nhwc_np, w_np, b_np, g, stride,
                                           anchors[g], case, num_classes)
        got = np.asarray(out_s).reshape(-1, NUM_ANCHORS, D)[..., :6]
        np.testing.assert_allclose(got[..., :5], ref[..., :5],
                                   rtol=2e-3, atol=2e-3)
        clear = gap > 1e-2                     # skip near-tie class logits
        assert np.array_equal(got[..., 5][clear], ref[..., 5][clear])

    print("KERNEL_OK")
</pallas_src>

<mosaic_0001>
module attributes {stable_mosaic.version = 11 : i64} {
  func.func @_head_decode_kernel(%arg0: i32, %arg1: memref<9xi32, #tpu.memory_space<smem>>, %arg2: memref<9x10xf32, #tpu.memory_space<smem>>, %arg3: memref<1024x4xf32, #tpu.memory_space<vmem>>, %arg4: memref<1x4x128xf32, #tpu.memory_space<vmem>>, %arg5: memref<1x1x128xf32, #tpu.memory_space<vmem>>, %arg6: memref<1024x128xf32, #tpu.memory_space<vmem>>) attributes {dimension_semantics = [#tpu.dimension_semantics<parallel>], iteration_bounds = array<i64: 9>, scalar_prefetch = 2 : i64, scratch_operands = 0 : i64, tpu.core_type = #tpu.core_type<tc>, window_params = [{transform_indices = @transform_0, window_bounds = array<i64: 1024, 4>}, {transform_indices = @transform_1, window_bounds = array<i64: 1, 4, 128>}, {transform_indices = @transform_2, window_bounds = array<i64: 1, 1, 128>}, {transform_indices = @transform_3, window_bounds = array<i64: 1024, 128>}]} {
    %0 = arith.index_cast %arg0 : i32 to index
    %c0 = arith.constant 0 : index
    %1 = memref.load %arg2[%0, %c0] : memref<9x10xf32, #tpu.memory_space<smem>>
    %2 = arith.index_cast %arg0 : i32 to index
    %c1 = arith.constant 1 : index
    %3 = memref.load %arg2[%2, %c1] : memref<9x10xf32, #tpu.memory_space<smem>>
    %4 = arith.index_cast %arg0 : i32 to index
    %c2 = arith.constant 2 : index
    %5 = memref.load %arg2[%4, %c2] : memref<9x10xf32, #tpu.memory_space<smem>>
    %6 = arith.index_cast %arg0 : i32 to index
    %c3 = arith.constant 3 : index
    %7 = memref.load %arg2[%6, %c3] : memref<9x10xf32, #tpu.memory_space<smem>>
    %8 = arith.index_cast %arg0 : i32 to index
    %c4 = arith.constant 4 : index
    %9 = memref.load %arg2[%8, %c4] : memref<9x10xf32, #tpu.memory_space<smem>>
    %10 = arith.index_cast %arg0 : i32 to index
    %c5 = arith.constant 5 : index
    %11 = memref.load %arg2[%10, %c5] : memref<9x10xf32, #tpu.memory_space<smem>>
    %12 = arith.index_cast %arg0 : i32 to index
    %c6 = arith.constant 6 : index
    %13 = memref.load %arg2[%12, %c6] : memref<9x10xf32, #tpu.memory_space<smem>>
    %14 = arith.index_cast %arg0 : i32 to index
    %c7 = arith.constant 7 : index
    %15 = memref.load %arg2[%14, %c7] : memref<9x10xf32, #tpu.memory_space<smem>>
    %16 = arith.index_cast %arg0 : i32 to index
    %c8 = arith.constant 8 : index
    %17 = memref.load %arg2[%16, %c8] : memref<9x10xf32, #tpu.memory_space<smem>>
    %18 = arith.index_cast %arg0 : i32 to index
    %c9 = arith.constant 9 : index
    %19 = memref.load %arg2[%18, %c9] : memref<9x10xf32, #tpu.memory_space<smem>>
    %c0_0 = arith.constant 0 : index
    %c0_1 = arith.constant 0 : index
    %20 = vector.load %arg3[%c0_0, %c0_1] : memref<1024x4xf32, #tpu.memory_space<vmem>>, vector<1024x4xf32>
    %c0_2 = arith.constant 0 : index
    %c0_3 = arith.constant 0 : index
    %c0_4 = arith.constant 0 : index
    %21 = vector.load %arg5[%c0_2, %c0_3, %c0_4] : memref<1x1x128xf32, #tpu.memory_space<vmem>>, vector<1x1x128xf32>
    %22 = vector.shape_cast %21 : vector<1x1x128xf32> to vector<1x128xf32>
    %23 = vector.extract_strided_slice %20 {offsets = [0, 0], sizes = [1024, 1], strides = [1, 1]} : vector<1024x4xf32> to vector<1024x1xf32>
    %c0_5 = arith.constant 0 : index
    %c0_6 = arith.constant 0 : index
    %c0_7 = arith.constant 0 : index
    %24 = vector.load %arg4[%c0_5, %c0_6, %c0_7] : memref<1x4x128xf32, #tpu.memory_space<vmem>>, vector<1x1x128xf32>
    %25 = vector.shape_cast %24 : vector<1x1x128xf32> to vector<1x128xf32>
    %26 = vector.broadcast %23 : vector<1024x1xf32> to vector<1024x128xf32>
    %27 = vector.broadcast %25 : vector<1x128xf32> to vector<1024x128xf32>
    %28 = arith.mulf %26, %27 : vector<1024x128xf32>
    %29 = vector.broadcast %22 : vector<1x128xf32> to vector<1024x128xf32>
    %30 = arith.addf %29, %28 : vector<1024x128xf32>
    %31 = vector.extract_strided_slice %20 {offsets = [0, 1], sizes = [1024, 1], strides = [1, 1]} : vector<1024x4xf32> to vector<1024x1xf32>
    %c0_8 = arith.constant 0 : index
    %c1_9 = arith.constant 1 : index
    %c0_10 = arith.constant 0 : index
    %32 = vector.load %arg4[%c0_8, %c1_9, %c0_10] : memref<1x4x128xf32, #tpu.memory_space<vmem>>, vector<1x1x128xf32>
    %33 = vector.shape_cast %32 : vector<1x1x128xf32> to vector<1x128xf32>
    %34 = vector.broadcast %31 : vector<1024x1xf32> to vector<1024x128xf32>
    %35 = vector.broadcast %33 : vector<1x128xf32> to vector<1024x128xf32>
    %36 = arith.mulf %34, %35 : vector<1024x128xf32>
    %37 = arith.addf %30, %36 : vector<1024x128xf32>
    %38 = vector.extract_strided_slice %20 {offsets = [0, 2], sizes = [1024, 1], strides = [1, 1]} : vector<1024x4xf32> to vector<1024x1xf32>
    %c0_11 = arith.constant 0 : index
    %c2_12 = arith.constant 2 : index
    %c0_13 = arith.constant 0 : index
    %39 = vector.load %arg4[%c0_11, %c2_12, %c0_13] : memref<1x4x128xf32, #tpu.memory_space<vmem>>, vector<1x1x128xf32>
    %40 = vector.shape_cast %39 : vector<1x1x128xf32> to vector<1x128xf32>
    %41 = vector.broadcast %38 : vector<1024x1xf32> to vector<1024x128xf32>
    %42 = vector.broadcast %40 : vector<1x128xf32> to vector<1024x128xf32>
    %43 = arith.mulf %41, %42 : vector<1024x128xf32>
    %44 = arith.addf %37, %43 : vector<1024x128xf32>
    %45 = vector.extract_strided_slice %20 {offsets = [0, 3], sizes = [1024, 1], strides = [1, 1]} : vector<1024x4xf32> to vector<1024x1xf32>
    %c0_14 = arith.constant 0 : index
    %c3_15 = arith.constant 3 : index
    %c0_16 = arith.constant 0 : index
    %46 = vector.load %arg4[%c0_14, %c3_15, %c0_16] : memref<1x4x128xf32, #tpu.memory_space<vmem>>, vector<1x1x128xf32>
    %47 = vector.shape_cast %46 : vector<1x1x128xf32> to vector<1x128xf32>
    %48 = vector.broadcast %45 : vector<1024x1xf32> to vector<1024x128xf32>
    %49 = vector.broadcast %47 : vector<1x128xf32> to vector<1024x128xf32>
    %50 = arith.mulf %48, %49 : vector<1024x128xf32>
    %51 = arith.addf %44, %50 : vector<1024x128xf32>
    %52 = tpu.iota {dimensions = array<i32: 1>} : vector<1x128xi32>
    %c8_i32 = arith.constant 8 : i32
    %53 = vector.broadcast %c8_i32 : i32 to vector<1x128xi32>
    %54 = arith.cmpi sge, %52, %53 : vector<1x128xi32>
    %55 = arith.extui %54 : vector<1x128xi1> to vector<1x128xi32>
    %c16_i32 = arith.constant 16 : i32
    %56 = vector.broadcast %c16_i32 : i32 to vector<1x128xi32>
    %57 = arith.cmpi sge, %52, %56 : vector<1x128xi32>
    %58 = arith.extui %57 : vector<1x128xi1> to vector<1x128xi32>
    %59 = arith.addi %55, %58 : vector<1x128xi32>
    %c8_i32_17 = arith.constant 8 : i32
    %60 = vector.broadcast %c8_i32_17 : i32 to vector<1x128xi32>
    %61 = arith.muli %59, %60 : vector<1x128xi32>
    %62 = arith.subi %52, %61 : vector<1x128xi32>
    %c24_i32 = arith.constant 24 : i32
    %63 = vector.broadcast %c24_i32 : i32 to vector<1x128xi32>
    %64 = arith.cmpi slt, %52, %63 : vector<1x128xi32>
    %c0_i32 = arith.constant 0 : i32
    %65 = vector.broadcast %c0_i32 : i32 to vector<1x128xi32>
    %66 = arith.cmpi eq, %62, %65 : vector<1x128xi32>
    %67 = arith.andi %66, %64 : vector<1x128xi1>
    %68 = arith.extui %67 : vector<1x128xi1> to vector<1x128xi32>
    %69 = arith.sitofp %68 : vector<1x128xi32> to vector<1x128xf32>
    %c1_i32 = arith.constant 1 : i32
    %70 = vector.broadcast %c1_i32 : i32 to vector<1x128xi32>
    %71 = arith.cmpi eq, %62, %70 : vector<1x128xi32>
    %72 = arith.andi %71, %64 : vector<1x128xi1>
    %73 = arith.extui %72 : vector<1x128xi1> to vector<1x128xi32>
    %74 = arith.sitofp %73 : vector<1x128xi32> to vector<1x128xf32>
    %c2_i32 = arith.constant 2 : i32
    %75 = vector.broadcast %c2_i32 : i32 to vector<1x128xi32>
    %76 = arith.cmpi eq, %62, %75 : vector<1x128xi32>
    %77 = arith.andi %76, %64 : vector<1x128xi1>
    %78 = arith.extui %77 : vector<1x128xi1> to vector<1x128xi32>
    %79 = arith.sitofp %78 : vector<1x128xi32> to vector<1x128xf32>
    %80 = arith.addf %74, %79 : vector<1x128xf32>
    %c3_i32 = arith.constant 3 : i32
    %81 = vector.broadcast %c3_i32 : i32 to vector<1x128xi32>
    %82 = arith.cmpi eq, %62, %81 : vector<1x128xi32>
    %c4_i32 = arith.constant 4 : i32
    %83 = vector.broadcast %c4_i32 : i32 to vector<1x128xi32>
    %84 = arith.cmpi eq, %62, %83 : vector<1x128xi32>
    %85 = arith.ori %82, %84 : vector<1x128xi1>
    %86 = arith.andi %85, %64 : vector<1x128xi1>
    %87 = arith.extui %86 : vector<1x128xi1> to vector<1x128xi32>
    %88 = arith.sitofp %87 : vector<1x128xi32> to vector<1x128xf32>
    %c5_i32 = arith.constant 5 : i32
    %89 = vector.broadcast %c5_i32 : i32 to vector<1x128xi32>
    %90 = arith.cmpi eq, %62, %89 : vector<1x128xi32>
    %91 = arith.andi %90, %64 : vector<1x128xi1>
    %92 = arith.extui %91 : vector<1x128xi1> to vector<1x128xi32>
    %93 = arith.sitofp %92 : vector<1x128xi32> to vector<1x128xf32>
    %c0_i32_18 = arith.constant 0 : i32
    %94 = vector.broadcast %c0_i32_18 : i32 to vector<1x128xi32>
    %95 = arith.cmpi eq, %59, %94 : vector<1x128xi32>
    %c1_i32_19 = arith.constant 1 : i32
    %96 = vector.broadcast %c1_i32_19 : i32 to vector<1x128xi32>
    %97 = arith.cmpi eq, %59, %96 : vector<1x128xi32>
    %98 = vector.broadcast %13 : f32 to vector<1x128xf32>
    %99 = vector.broadcast %17 : f32 to vector<1x128xf32>
    %100 = arith.select %97, %98, %99 : vector<1x128xi1>, vector<1x128xf32>
    %101 = vector.broadcast %9 : f32 to vector<1x128xf32>
    %102 = arith.select %95, %101, %100 : vector<1x128xi1>, vector<1x128xf32>
    %c0_i32_20 = arith.constant 0 : i32
    %103 = vector.broadcast %c0_i32_20 : i32 to vector<1x128xi32>
    %104 = arith.cmpi eq, %59, %103 : vector<1x128xi32>
    %c1_i32_21 = arith.constant 1 : i32
    %105 = vector.broadcast %c1_i32_21 : i32 to vector<1x128xi32>
    %106 = arith.cmpi eq, %59, %105 : vector<1x128xi32>
    %107 = vector.broadcast %15 : f32 to vector<1x128xf32>
    %108 = vector.broadcast %19 : f32 to vector<1x128xf32>
    %109 = arith.select %106, %107, %108 : vector<1x128xi1>, vector<1x128xf32>
    %110 = vector.broadcast %11 : f32 to vector<1x128xf32>
    %111 = arith.select %104, %110, %109 : vector<1x128xi1>, vector<1x128xf32>
    %c3_i32_22 = arith.constant 3 : i32
    %112 = vector.broadcast %c3_i32_22 : i32 to vector<1x128xi32>
    %113 = arith.cmpi eq, %62, %112 : vector<1x128xi32>
    %114 = arith.andi %113, %64 : vector<1x128xi1>
    %115 = arith.extui %114 : vector<1x128xi1> to vector<1x128xi32>
    %116 = arith.sitofp %115 : vector<1x128xi32> to vector<1x128xf32>
    %117 = arith.mulf %116, %102 : vector<1x128xf32>
    %c4_i32_23 = arith.constant 4 : i32
    %118 = vector.broadcast %c4_i32_23 : i32 to vector<1x128xi32>
    %119 = arith.cmpi eq, %62, %118 : vector<1x128xi32>
    %120 = arith.andi %119, %64 : vector<1x128xi1>
    %121 = arith.extui %120 : vector<1x128xi1> to vector<1x128xi32>
    %122 = arith.sitofp %121 : vector<1x128xi32> to vector<1x128xf32>
    %123 = arith.mulf %122, %111 : vector<1x128xf32>
    %124 = arith.addf %117, %123 : vector<1x128xf32>
    %125 = tpu.iota {dimensions = array<i32: 0>} : vector<1024x1xi32>
    %126 = arith.sitofp %125 : vector<1024x1xi32> to vector<1024x1xf32>
    %127 = vector.broadcast %1 : f32 to vector<1024x1xf32>
    %128 = arith.addf %127, %126 : vector<1024x1xf32>
    %129 = vector.broadcast %3 : f32 to vector<1024x1xf32>
    %130 = arith.divf %128, %129 : vector<1024x1xf32>
    %131 = math.floor %130 : vector<1024x1xf32>
    %132 = vector.broadcast %3 : f32 to vector<1024x1xf32>
    %133 = arith.mulf %131, %132 : vector<1024x1xf32>
    %134 = arith.subf %128, %133 : vector<1024x1xf32>
    %135 = vector.broadcast %5 : f32 to vector<1024x1xf32>
    %136 = arith.divf %131, %135 : vector<1024x1xf32>
    %137 = math.floor %136 : vector<1024x1xf32>
    %138 = vector.broadcast %5 : f32 to vector<1024x1xf32>
    %139 = arith.mulf %137, %138 : vector<1024x1xf32>
    %140 = arith.subf %131, %139 : vector<1024x1xf32>
    %141 = arith.negf %51 : vector<1024x128xf32>
    %142 = math.exp %141 : vector<1024x128xf32>
    %cst = arith.constant 1.000000e+00 : f32
    %143 = vector.broadcast %cst : f32 to vector<1024x128xf32>
    %144 = arith.addf %143, %142 : vector<1024x128xf32>
    %145 = arith.divf %143, %144 : vector<1024x128xf32>
    %146 = vector.broadcast %88 : vector<1x128xf32> to vector<1024x128xf32>
    %147 = arith.mulf %51, %146 : vector<1024x128xf32>
    %148 = math.exp %147 : vector<1024x128xf32>
    %149 = vector.broadcast %74 : vector<1x128xf32> to vector<1024x128xf32>
    %150 = vector.broadcast %134 : vector<1024x1xf32> to vector<1024x128xf32>
    %151 = arith.mulf %149, %150 : vector<1024x128xf32>
    %152 = vector.broadcast %79 : vector<1x128xf32> to vector<1024x128xf32>
    %153 = vector.broadcast %140 : vector<1024x1xf32> to vector<1024x128xf32>
    %154 = arith.mulf %152, %153 : vector<1024x128xf32>
    %155 = arith.addf %151, %154 : vector<1024x128xf32>
    %156 = vector.broadcast %80 : vector<1x128xf32> to vector<1024x128xf32>
    %157 = arith.mulf %156, %51 : vector<1024x128xf32>
    %158 = arith.addf %155, %157 : vector<1024x128xf32>
    %159 = vector.broadcast %7 : f32 to vector<1024x128xf32>
    %160 = arith.mulf %158, %159 : vector<1024x128xf32>
    %161 = vector.broadcast %69 : vector<1x128xf32> to vector<1024x128xf32>
    %162 = arith.mulf %161, %145 : vector<1024x128xf32>
    %163 = vector.broadcast %124 : vector<1x128xf32> to vector<1024x128xf32>
    %164 = arith.mulf %163, %148 : vector<1024x128xf32>
    %165 = arith.addf %162, %164 : vector<1024x128xf32>
    %166 = arith.addf %165, %160 : vector<1024x128xf32>
    %cst_24 = arith.constant 0.000000e+00 : f32
    %167 = vector.broadcast %cst_24 : f32 to vector<1024x128xf32>
    %c127_i32 = arith.constant 127 : i32
    %168 = tpu.dynamic_rotate %51 by %c127_i32 dim 1 : vector<1024x128xf32>, i32 -> vector<1024x128xf32>
    %169 = arith.cmpf ogt, %168, %51 : vector<1024x128xf32>
    %170 = arith.select %169, %168, %51 : vector<1024x128xi1>, vector<1024x128xf32>
    %cst_25 = arith.constant 1.000000e+00 : f32
    %171 = vector.broadcast %cst_25 : f32 to vector<1024x128xf32>
    %172 = arith.select %169, %171, %167 : vector<1024x128xi1>, vector<1024x128xf32>
    %c126_i32 = arith.constant 126 : i32
    %173 = tpu.dynamic_rotate %51 by %c126_i32 dim 1 : vector<1024x128xf32>, i32 -> vector<1024x128xf32>
    %174 = arith.cmpf ogt, %173, %170 : vector<1024x128xf32>
    %cst_26 = arith.constant 2.000000e+00 : f32
    %175 = vector.broadcast %cst_26 : f32 to vector<1024x128xf32>
    %176 = arith.select %174, %175, %172 : vector<1024x128xi1>, vector<1024x128xf32>
    %177 = vector.broadcast %93 : vector<1x128xf32> to vector<1024x128xf32>
    %178 = arith.mulf %177, %176 : vector<1024x128xf32>
    %179 = arith.addf %166, %178 : vector<1024x128xf32>
    %c0_27 = arith.constant 0 : index
    %c0_28 = arith.constant 0 : index
    %180 = vector.load %arg6[%c0_27, %c0_28] : memref<1024x128xf32, #tpu.memory_space<vmem>>, vector<1024x128xf32>
    tpu.vector_store %arg6[%c0_27, %c0_28], %179 {strides = array<i32>} : memref<1024x128xf32, #tpu.memory_space<vmem>>, vector<1024x128xf32>,
    return
  }
  func.func @transform_0(%arg0: i32, %arg1: memref<9xi32, #tpu.memory_space<smem>>, %arg2: memref<9x10xf32, #tpu.memory_space<smem>>) -> (i32, i32) {
    %c0_i32 = arith.constant 0 : i32
    %c0_i32_0 = arith.constant 0 : i32
    return %arg0, %c0_i32 : i32, i32
  }
  func.func @transform_1(%arg0: i32, %arg1: memref<9xi32, #tpu.memory_space<smem>>, %arg2: memref<9x10xf32, #tpu.memory_space<smem>>) -> (i32, i32, i32) {
    %0 = arith.index_cast %arg0 : i32 to index
    %1 = memref.load %arg1[%0] : memref<9xi32, #tpu.memory_space<smem>>
    %c0_i32 = arith.constant 0 : i32
    %c0_i32_0 = arith.constant 0 : i32
    %c0_i32_1 = arith.constant 0 : i32
    return %1, %c0_i32, %c0_i32_0 : i32, i32, i32
  }
  func.func @transform_2(%arg0: i32, %arg1: memref<9xi32, #tpu.memory_space<smem>>, %arg2: memref<9x10xf32, #tpu.memory_space<smem>>) -> (i32, i32, i32) {
    %0 = arith.index_cast %arg0 : i32 to index
    %1 = memref.load %arg1[%0] : memref<9xi32, #tpu.memory_space<smem>>
    %c0_i32 = arith.constant 0 : i32
    %c0_i32_0 = arith.constant 0 : i32
    %c0_i32_1 = arith.constant 0 : i32
    return %1, %c0_i32, %c0_i32_0 : i32, i32, i32
  }
  func.func @transform_3(%arg0: i32, %arg1: memref<9xi32, #tpu.memory_space<smem>>, %arg2: memref<9x10xf32, #tpu.memory_space<smem>>) -> (i32, i32) {
    %c0_i32 = arith.constant 0 : i32
    %c0_i32_0 = arith.constant 0 : i32
    return %arg0, %c0_i32 : i32, i32
  }
}

</mosaic_0001>

<llo_original>
// kernel: _detector_device.1
$region0: #{_detector_device.1}
  #allocation0 [shape = 'u32[]', space=smem, size = 0x4, offset = 0x4, fixed_abs, tag = 'smem constant byte address 0x4 - core index']
  #allocation1 [shape = 'u32[144,128]{1,0:T(1,128)}', space=vmem, size = 0x12000, scoped, tag = 'internal scratch']
  #allocation2 [shape = 's32[1]{0}', space=sflag, size = 0x4, scoped, tag = 'scoped memory for _detector_device.1']
  #allocation3 [shape = 'u8[512]{0}', space=smem, size = 0x200, scoped, tag = 'prefetched SMEM operand 0']
  #allocation4 [shape = 'u8[8192]{0}', space=smem, size = 0x2000, scoped, tag = 'prefetched SMEM operand 1']
  %s0 = inlined_call_operand.vmem [shape: s32[9], index: 0, kind: input, shape index: {}]
  %s1 = inlined_call_operand.vmem [shape: f32[9,10], index: 1, kind: input, shape index: {}]
  %s2 = inlined_call_operand.vmem [shape: f32[9216,4], index: 2, kind: input, shape index: {}]
  %s3 = inlined_call_operand.vmem [shape: f32[3,4,128], index: 3, kind: input, shape index: {}]
  %s4 = inlined_call_operand.vmem [shape: f32[3,1,128], index: 4, kind: input, shape index: {}]
  %s5 = inlined_call_operand.vmem [shape: f32[9216,128], index: 5, kind: output, shape index: {}]
  %s6 = sld [smem:[#allocation0]]
  $region45: #{_detector_device.1} parent=0
    _
  %s8 = ssub.s32 1, %s6
  %s9 = scalar_select 0, %s8, %s6
  %s10 = sshll.u32 %s0, 4
  %s11 = int_to_ptr.vmem [resolvable:$true] %s10
  %13 = dma.vmem_to_smem %s11, 16, [#allocation3], [#allocation2]
  %s14 = sshll.u32 %s1, 4
  %s15 = int_to_ptr.vmem [resolvable:$true] %s14
  %17 = dma.vmem_to_smem %s15, 256, [#allocation4], [#allocation2]
  %18 = dma.done [#allocation2], 272
  %19 = sfence
  loop: start=0, step=1, limit=11
  $region2: #{_detector_device.1} parent=0 // loop_pre_header
    _
  $region3: #{_detector_device.1} parent=0 // loop_header
    %s21 = sphi 0, %s25
    %p22 = scmp.ge.s32.totalorder %s21, 11
    %s31 = sphi 0, %s33
    %s34 = sphi 0, %s31
    %s35 = sphi 0, %s34
    %s51 = sphi 0, %s35
    %s59 = sphi 0, %s61
    %s62 = sphi 0, %s59
    %s63 = sphi 0, %s62
    %s79 = sphi 0, %s63
    %s87 = sphi 0, %s89
    %s90 = sphi 0, %s87
    %s91 = sphi 0, %s90
    %s107 = sphi 0, %s91
    %s113 = sphi 0, %s115
    %s116 = sphi 0, %s113
    %s117 = sphi 0, %s116
    %s133 = sphi 0, %s117
  $region4: #{_detector_device.1} parent=0 // loop_header_branch
    %24 = sbr.rel (%p22) target = $region8
  $region5: #{_detector_device.1} parent=0 // loop_body
    %s26 = ssub.s32 %s21, 1
    %s27 = ssub.s32 %s21, 2
    %s28 = sadd.s32 %s21, 1
    %s29 = ssub.s32 %s21, %s28
    %p30 = scmp.eq.s32.totalorder %s29, 0
    %s32 = sadd.s32 %s31, 1
    %s33 = scalar_select %p30, %s31, %s32
    %p36 = pneg %p30
    %p37 = scmp.eq.s32.totalorder %s21, 8
    %p38 = por %p36, %p37
    %p39 = scmp.ne.s32.totalorder %s31, %s34
    %p40 = scmp.eq.s32.totalorder %s21, 0
    %p41 = por %p39, %p40
    %p42 = scmp.ne.s32.totalorder %s31, %s34
    %p43 = scmp.eq.s32.totalorder %s26, 8
    %p44 = por %p42, %p43
    %p45 = scmp.ne.s32.totalorder %s34, %s35
    %p46 = scmp.eq.s32.totalorder %s26, 0
    %p47 = por %p45, %p46
    %p48 = scmp.ne.s32.totalorder %s34, %s35
    %p49 = scmp.eq.s32.totalorder %s27, 8
    %p50 = por %p48, %p49
    %p52 = scmp.ne.s32.totalorder %s35, %s51
    %p53 = scmp.eq.s32.totalorder %s27, 0
    %p54 = por %p52, %p53
    %s55 = sld [smem:[#allocation3 + %s21]]
    %s56 = sld [smem:[#allocation3 + %s28]]
    %s57 = ssub.s32 %s55, %s56
    %p58 = scmp.eq.s32.totalorder %s57, 0
    %s60 = sadd.s32 %s59, 1
    %s61 = scalar_select %p58, %s59, %s60
    %p64 = pneg %p58
    %p65 = scmp.eq.s32.totalorder %s21, 8
    %p66 = por %p64, %p65
    %p67 = scmp.ne.s32.totalorder %s59, %s62
    %p68 = scmp.eq.s32.totalorder %s21, 0
    %p69 = por %p67, %p68
    %p70 = scmp.ne.s32.totalorder %s59, %s62
    %p71 = scmp.eq.s32.totalorder %s26, 8
    %p72 = por %p70, %p71
    %p73 = scmp.ne.s32.totalorder %s62, %s63
    %p74 = scmp.eq.s32.totalorder %s26, 0
    %p75 = por %p73, %p74
    %p76 = scmp.ne.s32.totalorder %s62, %s63
    %p77 = scmp.eq.s32.totalorder %s27, 8
    %p78 = por %p76, %p77
    %p80 = scmp.ne.s32.totalorder %s63, %s79
    %p81 = scmp.eq.s32.totalorder %s27, 0
    %p82 = por %p80, %p81
    %s83 = sld [smem:[#allocation3 + %s21]]
    %s84 = sld [smem:[#allocation3 + %s28]]
    %s85 = ssub.s32 %s83, %s84
    %p86 = scmp.eq.s32.totalorder %s85, 0
    %s88 = sadd.s32 %s87, 1
    %s89 = scalar_select %p86, %s87, %s88
    %p92 = pneg %p86
    %p93 = scmp.eq.s32.totalorder %s21, 8
    %p94 = por %p92, %p93
    %p95 = scmp.ne.s32.totalorder %s87, %s90
    %p96 = scmp.eq.s32.totalorder %s21, 0
    %p97 = por %p95, %p96
    %p98 = scmp.ne.s32.totalorder %s87, %s90
    %p99 = scmp.eq.s32.totalorder %s26, 8
    %p100 = por %p98, %p99
    %p101 = scmp.ne.s32.totalorder %s90, %s91
    %p102 = scmp.eq.s32.totalorder %s26, 0
    %p103 = por %p101, %p102
    %p104 = scmp.ne.s32.totalorder %s90, %s91
    %p105 = scmp.eq.s32.totalorder %s27, 8
    %p106 = por %p104, %p105
    %p108 = scmp.ne.s32.totalorder %s91, %s107
    %p109 = scmp.eq.s32.totalorder %s27, 0
    %p110 = por %p108, %p109
    %s111 = ssub.s32 %s21, %s28
    %p112 = scmp.eq.s32.totalorder %s111, 0
    %s114 = sadd.s32 %s113, 1
    %s115 = scalar_select %p112, %s113, %s114
    %p118 = pneg %p112
    %p119 = scmp.eq.s32.totalorder %s21, 8
    %p120 = por %p118, %p119
    %p121 = scmp.ne.s32.totalorder %s113, %s116
    %p122 = scmp.eq.s32.totalorder %s21, 0
    %p123 = por %p121, %p122
    %p124 = scmp.ne.s32.totalorder %s113, %s116
    %p125 = scmp.eq.s32.totalorder %s26, 8
    %p126 = por %p124, %p125
    %p127 = scmp.ne.s32.totalorder %s116, %s117
    %p128 = scmp.eq.s32.totalorder %s26, 0
    %p129 = por %p127, %p128
    %p130 = scmp.ne.s32.totalorder %s116, %s117
    %p131 = scmp.eq.s32.totalorder %s27, 8
    %p132 = por %p130, %p131
    %p134 = scmp.ne.s32.totalorder %s117, %s133
    %p135 = scmp.eq.s32.totalorder %s27, 0
    %p136 = por %p134, %p135
    %p137 = scmp.le.s32.totalorder 1, %s21
    %p138 = scmp.lt.s32.totalorder %s21, 10
    %p139 = pnand %p137, %p138
    %p140 = pneg %p139
    // Predicated region
    $region9: #{_detector_device.1} parent=5 // pred_check
      _
    $region10: #{_detector_device.1} parent=5 // pred_check_branch
      %142 = sbr.rel (%p139) target = $region12
    $region11: #{_detector_device.1} parent=5 // pred_region
      %s143 = ssub.s32 %s21, 1
    $region12: #{_detector_device.1} parent=5 // pred_fallthru
      _
    %p144 = scmp.lt.s32.totalorder %s21, 9
    // Predicated region
    $region13: #{_detector_device.1} parent=5 // pred_check
      %p145 = pneg %p144
    $region14: #{_detector_device.1} parent=5 // pred_check_branch
      %147 = sbr.rel (%p145) target = $region16
    $region15: #{_detector_device.1} parent=5 // pred_region
      // Predicated region
      $region17: #{_detector_device.1} parent=15 // pred_check
        %p148 = pneg %p41
      $region18: #{_detector_device.1} parent=15 // pred_check_branch
        %150 = sbr.rel (%p148) target = $region20
      $region19: #{_detector_device.1} parent=15 // pred_region
        %s151 = smul.u32 128, %s21
        %p152 = scmp.lt.s32.totalorder %s151, 1151
        %s153 = scalar_select %p152, %s151, 1151
        %s154 = smul.addr %s153, 8
        %s155 = scalar_lea.vmem %s2, %s154
        %s156 = smul.u32 128, %s21
      $region20: #{_detector_device.1} parent=15 // pred_fallthru
        _
      // Predicated region
      $region21: #{_detector_device.1} parent=15 // pred_check
        %p157 = pneg %p69
      $region22: #{_detector_device.1} parent=15 // pred_check_branch
        %159 = sbr.rel (%p157) target = $region24
      $region23: #{_detector_device.1} parent=15 // pred_region
        %s160 = sld [smem:[#allocation3 + %s21]]
        %p161 = scmp.lt.s32.totalorder %s160, 2
        %s162 = scalar_select %p161, %s160, 2
        %s163 = smul.addr %s162, 4
        %s164 = scalar_lea.vmem %s3, %s163
        %s165 = sld [smem:[#allocation3 + %s21]]
      $region24: #{_detector_device.1} parent=15 // pred_fallthru
        _
      // Predicated region
      $region25: #{_detector_device.1} parent=15 // pred_check
        %p166 = pneg %p97
      $region26: #{_detector_device.1} parent=15 // pred_check_branch
        %168 = sbr.rel (%p166) target = $region28
      $region27: #{_detector_device.1} parent=15 // pred_region
        %s169 = sld [smem:[#allocation3 + %s21]]
        %p170 = scmp.lt.s32.totalorder %s169, 2
        %s171 = scalar_select %p170, %s169, 2
        %s172 = scalar_lea.vmem %s4, %s171
        %s173 = sld [smem:[#allocation3 + %s21]]
      $region28: #{_detector_device.1} parent=15 // pred_fallthru
        _
    $region16: #{_detector_device.1} parent=5 // pred_fallthru
      _
    %p174 = scmp.le.s32.totalorder 1, %s21
    %p175 = scmp.lt.s32.totalorder %s21, 10
    %p176 = pnand %p174, %p175
    %p177 = pneg %p176
    // Predicated region
    $region29: #{_detector_device.1} parent=5 // pred_check
      _
    $region30: #{_detector_device.1} parent=5 // pred_check_branch
      %179 = sbr.rel (%p176) target = $region32
    $region31: #{_detector_device.1} parent=5 // pred_region
      %s180 = ssub.s32 %s21, 1
      %s181 = smul.u32 128, %s26
      %p182 = scmp.lt.s32.totalorder %s181, 1151
      %s183 = scalar_select %p182, %s181, 1151
      %s184 = smul.addr %s183, 8
      %s185 = scalar_lea.vmem %s2, %s184
      %p186 = pneg %p47
      %p187 = pneg %p44
      %s188 = sld [smem:[#allocation3 + %s26]]
      %p189 = scmp.lt.s32.totalorder %s188, 2
      %s190 = scalar_select %p189, %s188, 2
      %s191 = smul.addr %s190, 4
      %s192 = scalar_lea.vmem %s3, %s191
      %p193 = pneg %p75
      %p194 = pneg %p72
      %s195 = sld [smem:[#allocation3 + %s26]]
      %p196 = scmp.lt.s32.totalorder %s195, 2
      %s197 = scalar_select %p196, %s195, 2
      %s198 = scalar_lea.vmem %s4, %s197
      %p199 = pneg %p103
      %p200 = pneg %p100
      %p201 = pneg %p129
      %p202 = pneg %p126
      %s203 = smul.u32 128, %s26
      %p204 = scmp.lt.s32.totalorder %s203, 1151
      %s205 = scalar_select %p204, %s203, 1151
      %s206 = smul.addr %s205, 8
      %s207 = scalar_lea.vmem %s5, %s206
      %s208 = smul.u32 128, %s26
      %p209 = scmp.lt.s32.totalorder %s208, 1151
      %s210 = scalar_select %p209, %s208, 1151
      %s211 = smul.addr %s210, 8
      %s212 = scalar_lea.vmem %s2, %s211
      %s213 = smul.u32 128, %s26
      %s214 = sld [smem:[#allocation3 + %s26]]
      %p215 = scmp.lt.s32.totalorder %s214, 2
      %s216 = scalar_select %p215, %s214, 2
      %s217 = smul.addr %s216, 4
      %s218 = scalar_lea.vmem %s3, %s217
      %s219 = sld [smem:[#allocation3 + %s26]]
      %s220 = sld [smem:[#allocation3 + %s26]]
      %p221 = scmp.lt.s32.totalorder %s220, 2
      %s222 = scalar_select %p221, %s220, 2
      %s223 = scalar_lea.vmem %s4, %s222
      %s224 = sld [smem:[#allocation3 + %s26]]
      %s225 = smul.u32 128, %s26
      %p226 = scmp.lt.s32.totalorder %s225, 1151
      %s227 = scalar_select %p226, %s225, 1151
      %s228 = smul.addr %s227, 8
      %s229 = scalar_lea.vmem %s5, %s228
      %s230 = smul.u32 128, %s26
      %s231 = smul.u32 %s26, 128
      %s232 = sld [smem:[#allocation4 + %s231]]
      %s233 = sadd.s32 %s231, 1
      %s234 = sld [smem:[#allocation4 + %s233]]
      %s235 = sadd.s32 %s231, 2
      %s236 = sld [smem:[#allocation4 + %s235]]
      %s237 = sadd.s32 %s231, 3
      %s238 = sld [smem:[#allocation4 + %s237]]
      %s239 = sadd.s32 %s231, 4
      %s240 = sld [smem:[#allocation4 + %s239]]
      %s241 = sadd.s32 %s231, 5
      %s242 = sld [smem:[#allocation4 + %s241]]
      %s243 = sadd.s32 %s231, 6
      %s244 = sld [smem:[#allocation4 + %s243]]
      %s245 = sadd.s32 %s231, 7
      %s246 = sld [smem:[#allocation4 + %s245]]
      %s247 = sadd.s32 %s231, 8
      %s248 = sld [smem:[#allocation4 + %s247]]
      %s249 = sadd.s32 %s231, 9
      %s250 = sld [smem:[#allocation4 + %s249]]
      %v251 = vld [vmem:[%s212] sm:$0xff]
      %v252 = vld [vmem:[%s212 + $0x8] sm:$0xff]
      %v253 = vld [vmem:[%s212 + $0x10] sm:$0xff]
      %v254 = vld [vmem:[%s212 + $0x18] sm:$0xff]
      %v255 = vld [vmem:[%s212 + $0x20] sm:$0xff]
      %v256 = vld [vmem:[%s212 + $0x28] sm:$0xff]
      %v257 = vld [vmem:[%s212 + $0x30] sm:$0xff]
      %v258 = vld [vmem:[%s212 + $0x38] sm:$0xff]
      %v259 = vld [vmem:[%s212 + $0x40] sm:$0xff]
      %v260 = vld [vmem:[%s212 + $0x48] sm:$0xff]
      %v261 = vld [vmem:[%s212 + $0x50] sm:$0xff]
      %v262 = vld [vmem:[%s212 + $0x58] sm:$0xff]
      %v263 = vld [vmem:[%s212 + $0x60] sm:$0xff]
      %v264 = vld [vmem:[%s212 + $0x68] sm:$0xff]
      %v265 = vld [vmem:[%s212 + $0x70] sm:$0xff]
      %v266 = vld [vmem:[%s212 + $0x78] sm:$0xff]
      %v267 = vld [vmem:[%s212 + $0x80] sm:$0xff]
      %v268 = vld [vmem:[%s212 + $0x88] sm:$0xff]
      %v269 = vld [vmem:[%s212 + $0x90] sm:$0xff]
      %v270 = vld [vmem:[%s212 + $0x98] sm:$0xff]
      %v271 = vld [vmem:[%s212 + $0xa0] sm:$0xff]
      %v272 = vld [vmem:[%s212 + $0xa8] sm:$0xff]
      %v273 = vld [vmem:[%s212 + $0xb0] sm:$0xff]
      %v274 = vld [vmem:[%s212 + $0xb8] sm:$0xff]
      %v275 = vld [vmem:[%s212 + $0xc0] sm:$0xff]
      %v276 = vld [vmem:[%s212 + $0xc8] sm:$0xff]
      %v277 = vld [vmem:[%s212 + $0xd0] sm:$0xff]
      %v278 = vld [vmem:[%s212 + $0xd8] sm:$0xff]
      %v279 = vld [vmem:[%s212 + $0xe0] sm:$0xff]
      %v280 = vld [vmem:[%s212 + $0xe8] sm:$0xff]
      %v281 = vld [vmem:[%s212 + $0xf0] sm:$0xff]
      %v282 = vld [vmem:[%s212 + $0xf8] sm:$0xff]
      %v283 = vld [vmem:[%s212 + $0x100] sm:$0xff]
      %v284 = vld [vmem:[%s212 + $0x108] sm:$0xff]
      %v285 = vld [vmem:[%s212 + $0x110] sm:$0xff]
      %v286 = vld [vmem:[%s212 + $0x118] sm:$0xff]
      %v287 = vld [vmem:[%s212 + $0x120] sm:$0xff]
      %v288 = vld [vmem:[%s212 + $0x128] sm:$0xff]
      %v289 = vld [vmem:[%s212 + $0x130] sm:$0xff]
      %v290 = vld [vmem:[%s212 + $0x138] sm:$0xff]
      %v291 = vld [vmem:[%s212 + $0x140] sm:$0xff]
      %v292 = vld [vmem:[%s212 + $0x148] sm:$0xff]
      %v293 = vld [vmem:[%s212 + $0x150] sm:$0xff]
      %v294 = vld [vmem:[%s212 + $0x158] sm:$0xff]
      %v295 = vld [vmem:[%s212 + $0x160] sm:$0xff]
      %v296 = vld [vmem:[%s212 + $0x168] sm:$0xff]
      %v297 = vld [vmem:[%s212 + $0x170] sm:$0xff]
      %v298 = vld [vmem:[%s212 + $0x178] sm:$0xff]
      %v299 = vld [vmem:[%s212 + $0x180] sm:$0xff]
      %v300 = vld [vmem:[%s212 + $0x188] sm:$0xff]
      %v301 = vld [vmem:[%s212 + $0x190] sm:$0xff]
      %v302 = vld [vmem:[%s212 + $0x198] sm:$0xff]
      %v303 = vld [vmem:[%s212 + $0x1a0] sm:$0xff]
      %v304 = vld [vmem:[%s212 + $0x1a8] sm:$0xff]
      %v305 = vld [vmem:[%s212 + $0x1b0] sm:$0xff]
      %v306 = vld [vmem:[%s212 + $0x1b8] sm:$0xff]
      %v307 = vld [vmem:[%s212 + $0x1c0] sm:$0xff]
      %v308 = vld [vmem:[%s212 + $0x1c8] sm:$0xff]
      %v309 = vld [vmem:[%s212 + $0x1d0] sm:$0xff]
      %v310 = vld [vmem:[%s212 + $0x1d8] sm:$0xff]
      %v311 = vld [vmem:[%s212 + $0x1e0] sm:$0xff]
      %v312 = vld [vmem:[%s212 + $0x1e8] sm:$0xff]
      %v313 = vld [vmem:[%s212 + $0x1f0] sm:$0xff]
      %v314 = vld [vmem:[%s212 + $0x1f8] sm:$0xff]
      %v315 = vld [vmem:[%s212 + $0x200] sm:$0xff]
      %v316 = vld [vmem:[%s212 + $0x208] sm:$0xff]
      %v317 = vld [vmem:[%s212 + $0x210] sm:$0xff]
      %v318 = vld [vmem:[%s212 + $0x218] sm:$0xff]
      %v319 = vld [vmem:[%s212 + $0x220] sm:$0xff]
      %v320 = vld [vmem:[%s212 + $0x228] sm:$0xff]
      %v321 = vld [vmem:[%s212 + $0x230] sm:$0xff]
      %v322 = vld [vmem:[%s212 + $0x238] sm:$0xff]
      %v323 = vld [vmem:[%s212 + $0x240] sm:$0xff]
      %v324 = vld [vmem:[%s212 + $0x248] sm:$0xff]
      %v325 = vld [vmem:[%s212 + $0x250] sm:$0xff]
      %v326 = vld [vmem:[%s212 + $0x258] sm:$0xff]
      %v327 = vld [vmem:[%s212 + $0x260] sm:$0xff]
      %v328 = vld [vmem:[%s212 + $0x268] sm:$0xff]
      %v329 = vld [vmem:[%s212 + $0x270] sm:$0xff]
      %v330 = vld [vmem:[%s212 + $0x278] sm:$0xff]
      %v331 = vld [vmem:[%s212 + $0x280] sm:$0xff]
      %v332 = vld [vmem:[%s212 + $0x288] sm:$0xff]
      %v333 = vld [vmem:[%s212 + $0x290] sm:$0xff]
      %v334 = vld [vmem:[%s212 + $0x298] sm:$0xff]
      %v335 = vld [vmem:[%s212 + $0x2a0] sm:$0xff]
      %v336 = vld [vmem:[%s212 + $0x2a8] sm:$0xff]
      %v337 = vld [vmem:[%s212 + $0x2b0] sm:$0xff]
      %v338 = vld [vmem:[%s212 + $0x2b8] sm:$0xff]
      %v339 = vld [vmem:[%s212 + $0x2c0] sm:$0xff]
      %v340 = vld [vmem:[%s212 + $0x2c8] sm:$0xff]
      %v341 = vld [vmem:[%s212 + $0x2d0] sm:$0xff]
      %v342 = vld [vmem:[%s212 + $0x2d8] sm:$0xff]
      %v343 = vld [vmem:[%s212 + $0x2e0] sm:$0xff]
      %v344 = vld [vmem:[%s212 + $0x2e8] sm:$0xff]
      %v345 = vld [vmem:[%s212 + $0x2f0] sm:$0xff]
      %v346 = vld [vmem:[%s212 + $0x2f8] sm:$0xff]
      %v347 = vld [vmem:[%s212 + $0x300] sm:$0xff]
      %v348 = vld [vmem:[%s212 + $0x308] sm:$0xff]
      %v349 = vld [vmem:[%s212 + $0x310] sm:$0xff]
      %v350 = vld [vmem:[%s212 + $0x318] sm:$0xff]
      %v351 = vld [vmem:[%s212 + $0x320] sm:$0xff]
      %v352 = vld [vmem:[%s212 + $0x328] sm:$0xff]
      %v353 = vld [vmem:[%s212 + $0x330] sm:$0xff]
      %v354 = vld [vmem:[%s212 + $0x338] sm:$0xff]
      %v355 = vld [vmem:[%s212 + $0x340] sm:$0xff]
      %v356 = vld [vmem:[%s212 + $0x348] sm:$0xff]
      %v357 = vld [vmem:[%s212 + $0x350] sm:$0xff]
      %v358 = vld [vmem:[%s212 + $0x358] sm:$0xff]
      %v359 = vld [vmem:[%s212 + $0x360] sm:$0xff]
      %v360 = vld [vmem:[%s212 + $0x368] sm:$0xff]
      %v361 = vld [vmem:[%s212 + $0x370] sm:$0xff]
      %v362 = vld [vmem:[%s212 + $0x378] sm:$0xff]
      %v363 = vld [vmem:[%s212 + $0x380] sm:$0xff]
      %v364 = vld [vmem:[%s212 + $0x388] sm:$0xff]
      %v365 = vld [vmem:[%s212 + $0x390] sm:$0xff]
      %v366 = vld [vmem:[%s212 + $0x398] sm:$0xff]
      %v367 = vld [vmem:[%s212 + $0x3a0] sm:$0xff]
      %v368 = vld [vmem:[%s212 + $0x3a8] sm:$0xff]
      %v369 = vld [vmem:[%s212 + $0x3b0] sm:$0xff]
      %v370 = vld [vmem:[%s212 + $0x3b8] sm:$0xff]
      %v371 = vld [vmem:[%s212 + $0x3c0] sm:$0xff]
      %v372 = vld [vmem:[%s212 + $0x3c8] sm:$0xff]
      %v373 = vld [vmem:[%s212 + $0x3d0] sm:$0xff]
      %v374 = vld [vmem:[%s212 + $0x3d8] sm:$0xff]
      %v375 = vld [vmem:[%s212 + $0x3e0] sm:$0xff]
      %v376 = vld [vmem:[%s212 + $0x3e8] sm:$0xff]
      %v377 = vld [vmem:[%s212 + $0x3f0] sm:$0xff]
      %v378 = vld [vmem:[%s212 + $0x3f8] sm:$0xff]
      %v379 = vld [vmem:[%s223] sm:$0x1]
      %v380 = vld [vmem:[%s218] sm:$0x1]
      %382 = vset.pattern.permute.xlu0 0
      %383 = vperm.xlu0 %382, %v251
      %v384 = vpop.permute.xlu0 %383
      %387 = vset.pattern.permute.xlu0 0
      %388 = vperm.xlu0 %387, %v252
      %v389 = vpop.permute.xlu0 %388
      %392 = vset.pattern.permute.xlu0 0
      %393 = vperm.xlu0 %392, %v253
      %v394 = vpop.permute.xlu0 %393
      %397 = vset.pattern.permute.xlu0 0
      %398 = vperm.xlu0 %397, %v254
      %v399 = vpop.permute.xlu0 %398
      %402 = vset.pattern.permute.xlu0 0
      %403 = vperm.xlu0 %402, %v255
      %v404 = vpop.permute.xlu0 %403
      %407 = vset.pattern.permute.xlu0 0
      %408 = vperm.xlu0 %407, %v256
      %v409 = vpop.permute.xlu0 %408
      %412 = vset.pattern.permute.xlu0 0
      %413 = vperm.xlu0 %412, %v257
      %v414 = vpop.permute.xlu0 %413
      %417 = vset.pattern.permute.xlu0 0
      %418 = vperm.xlu0 %417, %v258
      %v419 = vpop.permute.xlu0 %418
      %422 = vset.pattern.permute.xlu0 0
      %423 = vperm.xlu0 %422, %v259
      %v424 = vpop.permute.xlu0 %423
      %427 = vset.pattern.permute.xlu0 0
      %428 = vperm.xlu0 %427, %v260
      %v429 = vpop.permute.xlu0 %428
      %432 = vset.pattern.permute.xlu0 0
      %433 = vperm.xlu0 %432, %v261
      %v434 = vpop.permute.xlu0 %433
      %437 = vset.pattern.permute.xlu0 0
      %438 = vperm.xlu0 %437, %v262
      %v439 = vpop.permute.xlu0 %438
      %442 = vset.pattern.permute.xlu0 0
      %443 = vperm.xlu0 %442, %v263
      %v444 = vpop.permute.xlu0 %443
      %447 = vset.pattern.permute.xlu0 0
      %448 = vperm.xlu0 %447, %v264
      %v449 = vpop.permute.xlu0 %448
      %452 = vset.pattern.permute.xlu0 0
      %453 = vperm.xlu0 %452, %v265
      %v454 = vpop.permute.xlu0 %453
      %457 = vset.pattern.permute.xlu0 0
      %458 = vperm.xlu0 %457, %v266
      %v459 = vpop.permute.xlu0 %458
      %462 = vset.pattern.permute.xlu0 0
      %463 = vperm.xlu0 %462, %v267
      %v464 = vpop.permute.xlu0 %463
      %467 = vset.pattern.permute.xlu0 0
      %468 = vperm.xlu0 %467, %v268
      %v469 = vpop.permute.xlu0 %468
      %472 = vset.pattern.permute.xlu0 0
      %473 = vperm.xlu0 %472, %v269
      %v474 = vpop.permute.xlu0 %473
      %477 = vset.pattern.permute.xlu0 0
      %478 = vperm.xlu0 %477, %v270
      %v479 = vpop.permute.xlu0 %478
      %482 = vset.pattern.permute.xlu0 0
      %483 = vperm.xlu0 %482, %v271
      %v484 = vpop.permute.xlu0 %483
      %487 = vset.pattern.permute.xlu0 0
      %488 = vperm.xlu0 %487, %v272
      %v489 = vpop.permute.xlu0 %488
      %492 = vset.pattern.permute.xlu0 0
      %493 = vperm.xlu0 %492, %v273
      %v494 = vpop.permute.xlu0 %493
      %497 = vset.pattern.permute.xlu0 0
      %498 = vperm.xlu0 %497, %v274
      %v499 = vpop.permute.xlu0 %498
      %502 = vset.pattern.permute.xlu0 0
      %503 = vperm.xlu0 %502, %v275
      %v504 = vpop.permute.xlu0 %503
      %507 = vset.pattern.permute.xlu0 0
      %508 = vperm.xlu0 %507, %v276
      %v509 = vpop.permute.xlu0 %508
      %512 = vset.pattern.permute.xlu0 0
      %513 = vperm.xlu0 %512, %v277
      %v514 = vpop.permute.xlu0 %513
      %517 = vset.pattern.permute.xlu0 0
      %518 = vperm.xlu0 %517, %v278
      %v519 = vpop.permute.xlu0 %518
      %522 = vset.pattern.permute.xlu0 0
      %523 = vperm.xlu0 %522, %v279
      %v524 = vpop.permute.xlu0 %523
      %527 = vset.pattern.permute.xlu0 0
      %528 = vperm.xlu0 %527, %v280
      %v529 = vpop.permute.xlu0 %528
      %532 = vset.pattern.permute.xlu0 0
      %533 = vperm.xlu0 %532, %v281
      %v534 = vpop.permute.xlu0 %533
      %537 = vset.pattern.permute.xlu0 0
      %538 = vperm.xlu0 %537, %v282
      %v539 = vpop.permute.xlu0 %538
      %542 = vset.pattern.permute.xlu0 0
      %543 = vperm.xlu0 %542, %v283
      %v544 = vpop.permute.xlu0 %543
      %547 = vset.pattern.permute.xlu0 0
      %548 = vperm.xlu0 %547, %v284
      %v549 = vpop.permute.xlu0 %548
      %552 = vset.pattern.permute.xlu0 0
      %553 = vperm.xlu0 %552, %v285
      %v554 = vpop.permute.xlu0 %553
      %557 = vset.pattern.permute.xlu0 0
      %558 = vperm.xlu0 %557, %v286
      %v559 = vpop.permute.xlu0 %558
      %562 = vset.pattern.permute.xlu0 0
      %563 = vperm.xlu0 %562, %v287
      %v564 = vpop.permute.xlu0 %563
      %567 = vset.pattern.permute.xlu0 0
      %568 = vperm.xlu0 %567, %v288
      %v569 = vpop.permute.xlu0 %568
      %572 = vset.pattern.permute.xlu0 0
      %573 = vperm.xlu0 %572, %v289
      %v574 = vpop.permute.xlu0 %573
      %577 = vset.pattern.permute.xlu0 0
      %578 = vperm.xlu0 %577, %v290
      %v579 = vpop.permute.xlu0 %578
      %582 = vset.pattern.permute.xlu0 0
      %583 = vperm.xlu0 %582, %v291
      %v584 = vpop.permute.xlu0 %583
      %587 = vset.pattern.permute.xlu0 0
      %588 = vperm.xlu0 %587, %v292
      %v589 = vpop.permute.xlu0 %588
      %592 = vset.pattern.permute.xlu0 0
      %593 = vperm.xlu0 %592, %v293
      %v594 = vpop.permute.xlu0 %593
      %597 = vset.pattern.permute.xlu0 0
      %598 = vperm.xlu0 %597, %v294
      %v599 = vpop.permute.xlu0 %598
      %602 = vset.pattern.permute.xlu0 0
      %603 = vperm.xlu0 %602, %v295
      %v604 = vpop.permute.xlu0 %603
      %607 = vset.pattern.permute.xlu0 0
      %608 = vperm.xlu0 %607, %v296
      %v609 = vpop.permute.xlu0 %608
      %612 = vset.pattern.permute.xlu0 0
      %613 = vperm.xlu0 %612, %v297
      %v614 = vpop.permute.xlu0 %613
      %617 = vset.pattern.permute.xlu0 0
      %618 = vperm.xlu0 %617, %v298
      %v619 = vpop.permute.xlu0 %618
      %622 = vset.pattern.permute.xlu0 0
      %623 = vperm.xlu0 %622, %v299
      %v624 = vpop.permute.xlu0 %623
      %627 = vset.pattern.permute.xlu0 0
      %628 = vperm.xlu0 %627, %v300
      %v629 = vpop.permute.xlu0 %628
      %632 = vset.pattern.permute.xlu0 0
      %633 = vperm.xlu0 %632, %v301
      %v634 = vpop.permute.xlu0 %633
      %637 = vset.pattern.permute.xlu0 0
      %638 = vperm.xlu0 %637, %v302
      %v639 = vpop.permute.xlu0 %638
      %642 = vset.pattern.permute.xlu0 0
      %643 = vperm.xlu0 %642, %v303
      %v644 = vpop.permute.xlu0 %643
      %647 = vset.pattern.permute.xlu0 0
      %648 = vperm.xlu0 %647, %v304
      %v649 = vpop.permute.xlu0 %648
      %652 = vset.pattern.permute.xlu0 0
      %653 = vperm.xlu0 %652, %v305
      %v654 = vpop.permute.xlu0 %653
      %657 = vset.pattern.permute.xlu0 0
      %658 = vperm.xlu0 %657, %v306
      %v659 = vpop.permute.xlu0 %658
      %662 = vset.pattern.permute.xlu0 0
      %663 = vperm.xlu0 %662, %v307
      %v664 = vpop.permute.xlu0 %663
      %667 = vset.pattern.permute.xlu0 0
      %668 = vperm.xlu0 %667, %v308
      %v669 = vpop.permute.xlu0 %668
      %672 = vset.pattern.permute.xlu0 0
      %673 = vperm.xlu0 %672, %v309
      %v674 = vpop.permute.xlu0 %673
      %677 = vset.pattern.permute.xlu0 0
      %678 = vperm.xlu0 %677, %v310
      %v679 = vpop.permute.xlu0 %678
      %682 = vset.pattern.permute.xlu0 0
      %683 = vperm.xlu0 %682, %v311
      %v684 = vpop.permute.xlu0 %683
      %687 = vset.pattern.permute.xlu0 0
      %688 = vperm.xlu0 %687, %v312
      %v689 = vpop.permute.xlu0 %688
      %692 = vset.pattern.permute.xlu0 0
      %693 = vperm.xlu0 %692, %v313
      %v694 = vpop.permute.xlu0 %693
      %697 = vset.pattern.permute.xlu0 0
      %698 = vperm.xlu0 %697, %v314
      %v699 = vpop.permute.xlu0 %698
      %702 = vset.pattern.permute.xlu0 0
      %703 = vperm.xlu0 %702, %v315
      %v704 = vpop.permute.xlu0 %703
      %707 = vset.pattern.permute.xlu0 0
      %708 = vperm.xlu0 %707, %v316
      %v709 = vpop.permute.xlu0 %708
      %712 = vset.pattern.permute.xlu0 0
      %713 = vperm.xlu0 %712, %v317
      %v714 = vpop.permute.xlu0 %713
      %717 = vset.pattern.permute.xlu0 0
      %718 = vperm.xlu0 %717, %v318
      %v719 = vpop.permute.xlu0 %718
      %722 = vset.pattern.permute.xlu0 0
      %723 = vperm.xlu0 %722, %v319
      %v724 = vpop.permute.xlu0 %723
      %727 = vset.pattern.permute.xlu0 0
      %728 = vperm.xlu0 %727, %v320
      %v729 = vpop.permute.xlu0 %728
      %732 = vset.pattern.permute.xlu0 0
      %733 = vperm.xlu0 %732, %v321
      %v734 = vpop.permute.xlu0 %733
      %737 = vset.pattern.permute.xlu0 0
      %738 = vperm.xlu0 %737, %v322
      %v739 = vpop.permute.xlu0 %738
      %742 = vset.pattern.permute.xlu0 0
      %743 = vperm.xlu0 %742, %v323
      %v744 = vpop.permute.xlu0 %743
      %747 = vset.pattern.permute.xlu0 0
      %748 = vperm.xlu0 %747, %v324
      %v749 = vpop.permute.xlu0 %748
      %752 = vset.pattern.permute.xlu0 0
      %753 = vperm.xlu0 %752, %v325
      %v754 = vpop.permute.xlu0 %753
      %757 = vset.pattern.permute.xlu0 0
      %758 = vperm.xlu0 %757, %v326
      %v759 = vpop.permute.xlu0 %758
      %762 = vset.pattern.permute.xlu0 0
      %763 = vperm.xlu0 %762, %v327
      %v764 = vpop.permute.xlu0 %763
      %767 = vset.pattern.permute.xlu0 0
      %768 = vperm.xlu0 %767, %v328
      %v769 = vpop.permute.xlu0 %768
      %772 = vset.pattern.permute.xlu0 0
      %773 = vperm.xlu0 %772, %v329
      %v774 = vpop.permute.xlu0 %773
      %777 = vset.pattern.permute.xlu0 0
      %778 = vperm.xlu0 %777, %v330
      %v779 = vpop.permute.xlu0 %778
      %782 = vset.pattern.permute.xlu0 0
      %783 = vperm.xlu0 %782, %v331
      %v784 = vpop.permute.xlu0 %783
      %787 = vset.pattern.permute.xlu0 0
      %788 = vperm.xlu0 %787, %v332
      %v789 = vpop.permute.xlu0 %788
      %792 = vset.pattern.permute.xlu0 0
      %793 = vperm.xlu0 %792, %v333
      %v794 = vpop.permute.xlu0 %793
      %797 = vset.pattern.permute.xlu0 0
      %798 = vperm.xlu0 %797, %v334
      %v799 = vpop.permute.xlu0 %798
      %802 = vset.pattern.permute.xlu0 0
      %803 = vperm.xlu0 %802, %v335
      %v804 = vpop.permute.xlu0 %803
      %807 = vset.pattern.permute.xlu0 0
      %808 = vperm.xlu0 %807, %v336
      %v809 = vpop.permute.xlu0 %808
      %812 = vset.pattern.permute.xlu0 0
      %813 = vperm.xlu0 %812, %v337
      %v814 = vpop.permute.xlu0 %813
      %817 = vset.pattern.permute.xlu0 0
      %818 = vperm.xlu0 %817, %v338
      %v819 = vpop.permute.xlu0 %818
      %822 = vset.pattern.permute.xlu0 0
      %823 = vperm.xlu0 %822, %v339
      %v824 = vpop.permute.xlu0 %823
      %827 = vset.pattern.permute.xlu0 0
      %828 = vperm.xlu0 %827, %v340
      %v829 = vpop.permute.xlu0 %828
      %832 = vset.pattern.permute.xlu0 0
      %833 = vperm.xlu0 %832, %v341
      %v834 = vpop.permute.xlu0 %833
      %837 = vset.pattern.permute.xlu0 0
      %838 = vperm.xlu0 %837, %v342
      %v839 = vpop.permute.xlu0 %838
      %842 = vset.pattern.permute.xlu0 0
      %843 = vperm.xlu0 %842, %v343
      %v844 = vpop.permute.xlu0 %843
      %847 = vset.pattern.permute.xlu0 0
      %848 = vperm.xlu0 %847, %v344
      %v849 = vpop.permute.xlu0 %848
      %852 = vset.pattern.permute.xlu0 0
      %853 = vperm.xlu0 %852, %v345
      %v854 = vpop.permute.xlu0 %853
      %857 = vset.pattern.permute.xlu0 0
      %858 = vperm.xlu0 %857, %v346
      %v859 = vpop.permute.xlu0 %858
      %862 = vset.pattern.permute.xlu0 0
      %863 = vperm.xlu0 %862, %v347
      %v864 = vpop.permute.xlu0 %863
      %867 = vset.pattern.permute.xlu0 0
      %868 = vperm.xlu0 %867, %v348
      %v869 = vpop.permute.xlu0 %868
      %872 = vset.pattern.permute.xlu0 0
      %873 = vperm.xlu0 %872, %v349
      %v874 = vpop.permute.xlu0 %873
      %877 = vset.pattern.permute.xlu0 0
      %878 = vperm.xlu0 %877, %v350
      %v879 = vpop.permute.xlu0 %878
      %882 = vset.pattern.permute.xlu0 0
      %883 = vperm.xlu0 %882, %v351
      %v884 = vpop.permute.xlu0 %883
      %887 = vset.pattern.permute.xlu0 0
      %888 = vperm.xlu0 %887, %v352
      %v889 = vpop.permute.xlu0 %888
      %892 = vset.pattern.permute.xlu0 0
      %893 = vperm.xlu0 %892, %v353
      %v894 = vpop.permute.xlu0 %893
      %897 = vset.pattern.permute.xlu0 0
      %898 = vperm.xlu0 %897, %v354
      %v899 = vpop.permute.xlu0 %898
      %902 = vset.pattern.permute.xlu0 0
      %903 = vperm.xlu0 %902, %v355
      %v904 = vpop.permute.xlu0 %903
      %907 = vset.pattern.permute.xlu0 0
      %908 = vperm.xlu0 %907, %v356
      %v909 = vpop.permute.xlu0 %908
      %912 = vset.pattern.permute.xlu0 0
      %913 = vperm.xlu0 %912, %v357
      %v914 = vpop.permute.xlu0 %913
      %917 = vset.pattern.permute.xlu0 0
      %918 = vperm.xlu0 %917, %v358
      %v919 = vpop.permute.xlu0 %918
      %922 = vset.pattern.permute.xlu0 0
      %923 = vperm.xlu0 %922, %v359
      %v924 = vpop.permute.xlu0 %923
      %927 = vset.pattern.permute.xlu0 0
      %928 = vperm.xlu0 %927, %v360
      %v929 = vpop.permute.xlu0 %928
      %932 = vset.pattern.permute.xlu0 0
      %933 = vperm.xlu0 %932, %v361
      %v934 = vpop.permute.xlu0 %933
      %937 = vset.pattern.permute.xlu0 0
      %938 = vperm.xlu0 %937, %v362
      %v939 = vpop.permute.xlu0 %938
      %942 = vset.pattern.permute.xlu0 0
      %943 = vperm.xlu0 %942, %v363
      %v944 = vpop.permute.xlu0 %943
      %947 = vset.pattern.permute.xlu0 0
      %948 = vperm.xlu0 %947, %v364
      %v949 = vpop.permute.xlu0 %948
      %952 = vset.pattern.permute.xlu0 0
      %953 = vperm.xlu0 %952, %v365
      %v954 = vpop.permute.xlu0 %953
      %957 = vset.pattern.permute.xlu0 0
      %958 = vperm.xlu0 %957, %v366
      %v959 = vpop.permute.xlu0 %958
      %962 = vset.pattern.permute.xlu0 0
      %963 = vperm.xlu0 %962, %v367
      %v964 = vpop.permute.xlu0 %963
      %967 = vset.pattern.permute.xlu0 0
      %968 = vperm.xlu0 %967, %v368
      %v969 = vpop.permute.xlu0 %968
      %972 = vset.pattern.permute.xlu0 0
      %973 = vperm.xlu0 %972, %v369
      %v974 = vpop.permute.xlu0 %973
      %977 = vset.pattern.permute.xlu0 0
      %978 = vperm.xlu0 %977, %v370
      %v979 = vpop.permute.xlu0 %978
      %982 = vset.pattern.permute.xlu0 0
      %983 = vperm.xlu0 %982, %v371
      %v984 = vpop.permute.xlu0 %983
      %987 = vset.pattern.permute.xlu0 0
      %988 = vperm.xlu0 %987, %v372
      %v989 = vpop.permute.xlu0 %988
      %992 = vset.pattern.permute.xlu0 0
      %993 = vperm.xlu0 %992, %v373
      %v994 = vpop.permute.xlu0 %993
      %997 = vset.pattern.permute.xlu0 0
      %998 = vperm.xlu0 %997, %v374
      %v999 = vpop.permute.xlu0 %998
      %1002 = vset.pattern.permute.xlu0 0
      %1003 = vperm.xlu0 %1002, %v375
      %v1004 = vpop.permute.xlu0 %1003
      %1007 = vset.pattern.permute.xlu0 0
      %1008 = vperm.xlu0 %1007, %v376
      %v1009 = vpop.permute.xlu0 %1008
      %1012 = vset.pattern.permute.xlu0 0
      %1013 = vperm.xlu0 %1012, %v377
      %v1014 = vpop.permute.xlu0 %1013
      %1017 = vset.pattern.permute.xlu0 0
      %1018 = vperm.xlu0 %1017, %v378
      %v1019 = vpop.permute.xlu0 %1018
      %v1021 = vlaneseq
      %v1022 = vshrl.u32 %v1021, 7
      %v1023 = vsub.s32 0, %v1022
      %v1024 = vrot.slane %v380, %v1023
      %v1025 = vmul.f32 %v384, %v1024
      %v1026 = vmul.f32 %v389, %v1024
      %v1027 = vmul.f32 %v394, %v1024
      %v1028 = vmul.f32 %v399, %v1024
      %v1029 = vmul.f32 %v404, %v1024
      %v1030 = vmul.f32 %v409, %v1024
      %v1031 = vmul.f32 %v414, %v1024
      %v1032 = vmul.f32 %v419, %v1024
      %v1033 = vmul.f32 %v424, %v1024
      %v1034 = vmul.f32 %v429, %v1024
      %v1035 = vmul.f32 %v434, %v1024
      %v1036 = vmul.f32 %v439, %v1024
      %v1037 = vmul.f32 %v444, %v1024
      %v1038 = vmul.f32 %v449, %v1024
      %v1039 = vmul.f32 %v454, %v1024
      %v1040 = vmul.f32 %v459, %v1024
      %v1041 = vmul.f32 %v464, %v1024
      %v1042 = vmul.f32 %v469, %v1024
      %v1043 = vmul.f32 %v474, %v1024
      %v1044 = vmul.f32 %v479, %v1024
      %v1045 = vmul.f32 %v484, %v1024
      %v1046 = vmul.f32 %v489, %v1024
      %v1047 = vmul.f32 %v494, %v1024
      %v1048 = vmul.f32 %v499, %v1024
      %v1049 = vmul.f32 %v504, %v1024
      %v1050 = vmul.f32 %v509, %v1024
      %v1051 = vmul.f32 %v514, %v1024
      %v1052 = vmul.f32 %v519, %v1024
      %v1053 = vmul.f32 %v524, %v1024
      %v1054 = vmul.f32 %v529, %v1024
      %v1055 = vmul.f32 %v534, %v1024
      %v1056 = vmul.f32 %v539, %v1024
      %v1057 = vmul.f32 %v544, %v1024
      %v1058 = vmul.f32 %v549, %v1024
      %v1059 = vmul.f32 %v554, %v1024
      %v1060 = vmul.f32 %v559, %v1024
      %v1061 = vmul.f32 %v564, %v1024
      %v1062 = vmul.f32 %v569, %v1024
      %v1063 = vmul.f32 %v574, %v1024
      %v1064 = vmul.f32 %v579, %v1024
      %v1065 = vmul.f32 %v584, %v1024
      %v1066 = vmul.f32 %v589, %v1024
      %v1067 = vmul.f32 %v594, %v1024
      %v1068 = vmul.f32 %v599, %v1024
      %v1069 = vmul.f32 %v604, %v1024
      %v1070 = vmul.f32 %v609, %v1024
      %v1071 = vmul.f32 %v614, %v1024
      %v1072 = vmul.f32 %v619, %v1024
      %v1073 = vmul.f32 %v624, %v1024
      %v1074 = vmul.f32 %v629, %v1024
      %v1075 = vmul.f32 %v634, %v1024
      %v1076 = vmul.f32 %v639, %v1024
      %v1077 = vmul.f32 %v644, %v1024
      %v1078 = vmul.f32 %v649, %v1024
      %v1079 = vmul.f32 %v654, %v1024
      %v1080 = vmul.f32 %v659, %v1024
      %v1081 = vmul.f32 %v664, %v1024
      %v1082 = vmul.f32 %v669, %v1024
      %v1083 = vmul.f32 %v674, %v1024
      %v1084 = vmul.f32 %v679, %v1024
      %v1085 = vmul.f32 %v684, %v1024
      %v1086 = vmul.f32 %v689, %v1024
      %v1087 = vmul.f32 %v694, %v1024
      %v1088 = vmul.f32 %v699, %v1024
      %v1089 = vmul.f32 %v704, %v1024
      %v1090 = vmul.f32 %v709, %v1024
      %v1091 = vmul.f32 %v714, %v1024
      %v1092 = vmul.f32 %v719, %v1024
      %v1093 = vmul.f32 %v724, %v1024
      %v1094 = vmul.f32 %v729, %v1024
      %v1095 = vmul.f32 %v734, %v1024
      %v1096 = vmul.f32 %v739, %v1024
      %v1097 = vmul.f32 %v744, %v1024
      %v1098 = vmul.f32 %v749, %v1024
      %v1099 = vmul.f32 %v754, %v1024
      %v1100 = vmul.f32 %v759, %v1024
      %v1101 = vmul.f32 %v764, %v1024
      %v1102 = vmul.f32 %v769, %v1024
      %v1103 = vmul.f32 %v774, %v1024
      %v1104 = vmul.f32 %v779, %v1024
      %v1105 = vmul.f32 %v784, %v1024
      %v1106 = vmul.f32 %v789, %v1024
      %v1107 = vmul.f32 %v794, %v1024
      %v1108 = vmul.f32 %v799, %v1024
      %v1109 = vmul.f32 %v804, %v1024
      %v1110 = vmul.f32 %v809, %v1024
      %v1111 = vmul.f32 %v814, %v1024
      %v1112 = vmul.f32 %v819, %v1024
      %v1113 = vmul.f32 %v824, %v1024
      %v1114 = vmul.f32 %v829, %v1024
      %v1115 = vmul.f32 %v834, %v1024
      %v1116 = vmul.f32 %v839, %v1024
      %v1117 = vmul.f32 %v844, %v1024
      %v1118 = vmul.f32 %v849, %v1024
      %v1119 = vmul.f32 %v854, %v1024
      %v1120 = vmul.f32 %v859, %v1024
      %v1121 = vmul.f32 %v864, %v1024
      %v1122 = vmul.f32 %v869, %v1024
      %v1123 = vmul.f32 %v874, %v1024
      %v1124 = vmul.f32 %v879, %v1024
      %v1125 = vmul.f32 %v884, %v1024
      %v1126 = vmul.f32 %v889, %v1024
      %v1127 = vmul.f32 %v894, %v1024
      %v1128 = vmul.f32 %v899, %v1024
      %v1129 = vmul.f32 %v904, %v1024
      %v1130 = vmul.f32 %v909, %v1024
      %v1131 = vmul.f32 %v914, %v1024
      %v1132 = vmul.f32 %v919, %v1024
      %v1133 = vmul.f32 %v924, %v1024
      %v1134 = vmul.f32 %v929, %v1024
      %v1135 = vmul.f32 %v934, %v1024
      %v1136 = vmul.f32 %v939, %v1024
      %v1137 = vmul.f32 %v944, %v1024
      %v1138 = vmul.f32 %v949, %v1024
      %v1139 = vmul.f32 %v954, %v1024
      %v1140 = vmul.f32 %v959, %v1024
      %v1141 = vmul.f32 %v964, %v1024
      %v1142 = vmul.f32 %v969, %v1024
      %v1143 = vmul.f32 %v974, %v1024
      %v1144 = vmul.f32 %v979, %v1024
      %v1145 = vmul.f32 %v984, %v1024
      %v1146 = vmul.f32 %v989, %v1024
      %v1147 = vmul.f32 %v994, %v1024
      %v1148 = vmul.f32 %v999, %v1024
      %v1149 = vmul.f32 %v1004, %v1024
      %v1150 = vmul.f32 %v1009, %v1024
      %v1151 = vmul.f32 %v1014, %v1024
      %v1152 = vmul.f32 %v1019, %v1024
      %v1154 = vlaneseq
      %v1155 = vshrl.u32 %v1154, 7
      %v1156 = vsub.s32 0, %v1155
      %v1157 = vrot.slane %v379, %v1156
      %v1159 = vadd.f32 %v1157, %v1025
      %v1160 = vadd.f32 %v1157, %v1026
      %v1161 = vadd.f32 %v1157, %v1027
      %v1162 = vadd.f32 %v1157, %v1028
      %v1163 = vadd.f32 %v1157, %v1029
      %v1164 = vadd.f32 %v1157, %v1030
      %v1165 = vadd.f32 %v1157, %v1031
      %v1166 = vadd.f32 %v1157, %v1032
      %v1167 = vadd.f32 %v1157, %v1033
      %v1168 = vadd.f32 %v1157, %v1034
      %v1169 = vadd.f32 %v1157, %v1035
      %v1170 = vadd.f32 %v1157, %v1036
      %v1171 = vadd.f32 %v1157, %v1037
      %v1172 = vadd.f32 %v1157, %v1038
      %v1173 = vadd.f32 %v1157, %v1039
      %v1174 = vadd.f32 %v1157, %v1040
      %v1175 = vadd.f32 %v1157, %v1041
      %v1176 = vadd.f32 %v1157, %v1042
      %v1177 = vadd.f32 %v1157, %v1043
      %v1178 = vadd.f32 %v1157, %v1044
      %v1179 = vadd.f32 %v1157, %v1045
      %v1180 = vadd.f32 %v1157, %v1046
      %v1181 = vadd.f32 %v1157, %v1047
      %v1182 = vadd.f32 %v1157, %v1048
      %v1183 = vadd.f32 %v1157, %v1049
      %v1184 = vadd.f32 %v1157, %v1050
      %v1185 = vadd.f32 %v1157, %v1051
      %v1186 = vadd.f32 %v1157, %v1052
      %v1187 = vadd.f32 %v1157, %v1053
      %v1188 = vadd.f32 %v1157, %v1054
      %v1189 = vadd.f32 %v1157, %v1055
      %v1190 = vadd.f32 %v1157, %v1056
      %v1191 = vadd.f32 %v1157, %v1057
      %v1192 = vadd.f32 %v1157, %v1058
      %v1193 = vadd.f32 %v1157, %v1059
      %v1194 = vadd.f32 %v1157, %v1060
      %v1195 = vadd.f32 %v1157, %v1061
      %v1196 = vadd.f32 %v1157, %v1062
      %v1197 = vadd.f32 %v1157, %v1063
      %v1198 = vadd.f32 %v1157, %v1064
      %v1199 = vadd.f32 %v1157, %v1065
      %v1200 = vadd.f32 %v1157, %v1066
      %v1201 = vadd.f32 %v1157, %v1067
      %v1202 = vadd.f32 %v1157, %v1068
      %v1203 = vadd.f32 %v1157, %v1069
      %v1204 = vadd.f32 %v1157, %v1070
      %v1205 = vadd.f32 %v1157, %v1071
      %v1206 = vadd.f32 %v1157, %v1072
      %v1207 = vadd.f32 %v1157, %v1073
      %v1208 = vadd.f32 %v1157, %v1074
      %v1209 = vadd.f32 %v1157, %v1075
      %v1210 = vadd.f32 %v1157, %v1076
      %v1211 = vadd.f32 %v1157, %v1077
      %v1212 = vadd.f32 %v1157, %v1078
      %v1213 = vadd.f32 %v1157, %v1079
      %v1214 = vadd.f32 %v1157, %v1080
      %v1215 = vadd.f32 %v1157, %v1081
      %v1216 = vadd.f32 %v1157, %v1082
      %v1217 = vadd.f32 %v1157, %v1083
      %v1218 = vadd.f32 %v1157, %v1084
      %v1219 = vadd.f32 %v1157, %v1085
      %v1220 = vadd.f32 %v1157, %v1086
      %v1221 = vadd.f32 %v1157, %v1087
      %v1222 = vadd.f32 %v1157, %v1088
      %v1223 = vadd.f32 %v1157, %v1089
      %v1224 = vadd.f32 %v1157, %v1090
      %v1225 = vadd.f32 %v1157, %v1091
      %v1226 = vadd.f32 %v1157, %v1092
      %v1227 = vadd.f32 %v1157, %v1093
      %v1228 = vadd.f32 %v1157, %v1094
      %v1229 = vadd.f32 %v1157, %v1095
      %v1230 = vadd.f32 %v1157, %v1096
      %v1231 = vadd.f32 %v1157, %v1097
      %v1232 = vadd.f32 %v1157, %v1098
      %v1233 = vadd.f32 %v1157, %v1099
      %v1234 = vadd.f32 %v1157, %v1100
      %v1235 = vadd.f32 %v1157, %v1101
      %v1236 = vadd.f32 %v1157, %v1102
      %v1237 = vadd.f32 %v1157, %v1103
      %v1238 = vadd.f32 %v1157, %v1104
      %v1239 = vadd.f32 %v1157, %v1105
      %v1240 = vadd.f32 %v1157, %v1106
      %v1241 = vadd.f32 %v1157, %v1107
      %v1242 = vadd.f32 %v1157, %v1108
      %v1243 = vadd.f32 %v1157, %v1109
      %v1244 = vadd.f32 %v1157, %v1110
      %v1245 = vadd.f32 %v1157, %v1111
      %v1246 = vadd.f32 %v1157, %v1112
      %v1247 = vadd.f32 %v1157, %v1113
      %v1248 = vadd.f32 %v1157, %v1114
      %v1249 = vadd.f32 %v1157, %v1115
      %v1250 = vadd.f32 %v1157, %v1116
      %v1251 = vadd.f32 %v1157, %v1117
      %v1252 = vadd.f32 %v1157, %v1118
      %v1253 = vadd.f32 %v1157, %v1119
      %v1254 = vadd.f32 %v1157, %v1120
      %v1255 = vadd.f32 %v1157, %v1121
      %v1256 = vadd.f32 %v1157, %v1122
      %v1257 = vadd.f32 %v1157, %v1123
      %v1258 = vadd.f32 %v1157, %v1124
      %v1259 = vadd.f32 %v1157, %v1125
      %v1260 = vadd.f32 %v1157, %v1126
      %v1261 = vadd.f32 %v1157, %v1127
      %v1262 = vadd.f32 %v1157, %v1128
      %v1263 = vadd.f32 %v1157, %v1129
      %v1264 = vadd.f32 %v1157, %v1130
      %v1265 = vadd.f32 %v1157, %v1131
      %v1266 = vadd.f32 %v1157, %v1132
      %v1267 = vadd.f32 %v1157, %v1133
      %v1268 = vadd.f32 %v1157, %v1134
      %v1269 = vadd.f32 %v1157, %v1135
      %v1270 = vadd.f32 %v1157, %v1136
      %v1271 = vadd.f32 %v1157, %v1137
      %v1272 = vadd.f32 %v1157, %v1138
      %v1273 = vadd.f32 %v1157, %v1139
      %v1274 = vadd.f32 %v1157, %v1140
      %v1275 = vadd.f32 %v1157, %v1141
      %v1276 = vadd.f32 %v1157, %v1142
      %v1277 = vadd.f32 %v1157, %v1143
      %v1278 = vadd.f32 %v1157, %v1144
      %v1279 = vadd.f32 %v1157, %v1145
      %v1280 = vadd.f32 %v1157, %v1146
      %v1281 = vadd.f32 %v1157, %v1147
      %v1282 = vadd.f32 %v1157, %v1148
      %v1283 = vadd.f32 %v1157, %v1149
      %v1284 = vadd.f32 %v1157, %v1150
      %v1285 = vadd.f32 %v1157, %v1151
      %v1286 = vadd.f32 %v1157, %v1152
      %v1287 = vld [vmem:[%s218 + $0x1] sm:$0x1]
      %1288 = vset.pattern.permute.xlu0 1
      %1289 = vperm.xlu0 %1288, %v251
      %v1290 = vpop.permute.xlu0 %1289
      %1292 = vset.pattern.permute.xlu0 1
      %1293 = vperm.xlu0 %1292, %v252
      %v1294 = vpop.permute.xlu0 %1293
      %1296 = vset.pattern.permute.xlu0 1
      %1297 = vperm.xlu0 %1296, %v253
      %v1298 = vpop.permute.xlu0 %1297
      %1300 = vset.pattern.permute.xlu0 1
      %1301 = vperm.xlu0 %1300, %v254
      %v1302 = vpop.permute.xlu0 %1301
      %1304 = vset.pattern.permute.xlu0 1
      %1305 = vperm.xlu0 %1304, %v255
      %v1306 = vpop.permute.xlu0 %1305
      %1308 = vset.pattern.permute.xlu0 1
      %1309 = vperm.xlu0 %1308, %v256
      %v1310 = vpop.permute.xlu0 %1309
      %1312 = vset.pattern.permute.xlu0 1
      %1313 = vperm.xlu0 %1312, %v257
      %v1314 = vpop.permute.xlu0 %1313
      %1316 = vset.pattern.permute.xlu0 1
      %1317 = vperm.xlu0 %1316, %v258
      %v1318 = vpop.permute.xlu0 %1317
      %1320 = vset.pattern.permute.xlu0 1
      %1321 = vperm.xlu0 %1320, %v259
      %v1322 = vpop.permute.xlu0 %1321
      %1324 = vset.pattern.permute.xlu0 1
      %1325 = vperm.xlu0 %1324, %v260
      %v1326 = vpop.permute.xlu0 %1325
      %1328 = vset.pattern.permute.xlu0 1
      %1329 = vperm.xlu0 %1328, %v261
      %v1330 = vpop.permute.xlu0 %1329
      %1332 = vset.pattern.permute.xlu0 1
      %1333 = vperm.xlu0 %1332, %v262
      %v1334 = vpop.permute.xlu0 %1333
      %1336 = vset.pattern.permute.xlu0 1
      %1337 = vperm.xlu0 %1336, %v263
      %v1338 = vpop.permute.xlu0 %1337
      %1340 = vset.pattern.permute.xlu0 1
      %1341 = vperm.xlu0 %1340, %v264
      %v1342 = vpop.permute.xlu0 %1341
      %1344 = vset.pattern.permute.xlu0 1
      %1345 = vperm.xlu0 %1344, %v265
      %v1346 = vpop.permute.xlu0 %1345
      %1348 = vset.pattern.permute.xlu0 1
      %1349 = vperm.xlu0 %1348, %v266
      %v1350 = vpop.permute.xlu0 %1349
      %1352 = vset.pattern.permute.xlu0 1
      %1353 = vperm.xlu0 %1352, %v267
      %v1354 = vpop.permute.xlu0 %1353
      %1356 = vset.pattern.permute.xlu0 1
      %1357 = vperm.xlu0 %1356, %v268
      %v1358 = vpop.permute.xlu0 %1357
      %1360 = vset.pattern.permute.xlu0 1
      %1361 = vperm.xlu0 %1360, %v269
      %v1362 = vpop.permute.xlu0 %1361
      %1364 = vset.pattern.permute.xlu0 1
      %1365 = vperm.xlu0 %1364, %v270
      %v1366 = vpop.permute.xlu0 %1365
      %1368 = vset.pattern.permute.xlu0 1
      %1369 = vperm.xlu0 %1368, %v271
      %v1370 = vpop.permute.xlu0 %1369
      %1372 = vset.pattern.permute.xlu0 1
      %1373 = vperm.xlu0 %1372, %v272
      %v1374 = vpop.permute.xlu0 %1373
      %1376 = vset.pattern.permute.xlu0 1
      %1377 = vperm.xlu0 %1376, %v273
      %v1378 = vpop.permute.xlu0 %1377
      %1380 = vset.pattern.permute.xlu0 1
      %1381 = vperm.xlu0 %1380, %v274
      %v1382 = vpop.permute.xlu0 %1381
      %1384 = vset.pattern.permute.xlu0 1
      %1385 = vperm.xlu0 %1384, %v275
      %v1386 = vpop.permute.xlu0 %1385
      %1388 = vset.pattern.permute.xlu0 1
      %1389 = vperm.xlu0 %1388, %v276
      %v1390 = vpop.permute.xlu0 %1389
      %1392 = vset.pattern.permute.xlu0 1
      %1393 = vperm.xlu0 %1392, %v277
      %v1394 = vpop.permute.xlu0 %1393
      %1396 = vset.pattern.permute.xlu0 1
      %1397 = vperm.xlu0 %1396, %v278
      %v1398 = vpop.permute.xlu0 %1397
      %1400 = vset.pattern.permute.xlu0 1
      %1401 = vperm.xlu0 %1400, %v279
      %v1402 = vpop.permute.xlu0 %1401
      %1404 = vset.pattern.permute.xlu0 1
      %1405 = vperm.xlu0 %1404, %v280
      %v1406 = vpop.permute.xlu0 %1405
      %1408 = vset.pattern.permute.xlu0 1
      %1409 = vperm.xlu0 %1408, %v281
      %v1410 = vpop.permute.xlu0 %1409
      %1412 = vset.pattern.permute.xlu0 1
      %1413 = vperm.xlu0 %1412, %v282
      %v1414 = vpop.permute.xlu0 %1413
      %1416 = vset.pattern.permute.xlu0 1
      %1417 = vperm.xlu0 %1416, %v283
      %v1418 = vpop.permute.xlu0 %1417
      %1420 = vset.pattern.permute.xlu0 1
      %1421 = vperm.xlu0 %1420, %v284
      %v1422 = vpop.permute.xlu0 %1421
      %1424 = vset.pattern.permute.xlu0 1
      %1425 = vperm.xlu0 %1424, %v285
      %v1426 = vpop.permute.xlu0 %1425
      %1428 = vset.pattern.permute.xlu0 1
      %1429 = vperm.xlu0 %1428, %v286
      %v1430 = vpop.permute.xlu0 %1429
      %1432 = vset.pattern.permute.xlu0 1
      %1433 = vperm.xlu0 %1432, %v287
      %v1434 = vpop.permute.xlu0 %1433
      %1436 = vset.pattern.permute.xlu0 1
      %1437 = vperm.xlu0 %1436, %v288
      %v1438 = vpop.permute.xlu0 %1437
      %1440 = vset.pattern.permute.xlu0 1
      %1441 = vperm.xlu0 %1440, %v289
      %v1442 = vpop.permute.xlu0 %1441
      %1444 = vset.pattern.permute.xlu0 1
      %1445 = vperm.xlu0 %1444, %v290
      %v1446 = vpop.permute.xlu0 %1445
      %1448 = vset.pattern.permute.xlu0 1
      %1449 = vperm.xlu0 %1448, %v291
      %v1450 = vpop.permute.xlu0 %1449
      %1452 = vset.pattern.permute.xlu0 1
      %1453 = vperm.xlu0 %1452, %v292
      %v1454 = vpop.permute.xlu0 %1453
      %1456 = vset.pattern.permute.xlu0 1
      %1457 = vperm.xlu0 %1456, %v293
      %v1458 = vpop.permute.xlu0 %1457
      %1460 = vset.pattern.permute.xlu0 1
      %1461 = vperm.xlu0 %1460, %v294
      %v1462 = vpop.permute.xlu0 %1461
      %1464 = vset.pattern.permute.xlu0 1
      %1465 = vperm.xlu0 %1464, %v295
      %v1466 = vpop.permute.xlu0 %1465
      %1468 = vset.pattern.permute.xlu0 1
      %1469 = vperm.xlu0 %1468, %v296
      %v1470 = vpop.permute.xlu0 %1469
      %1472 = vset.pattern.permute.xlu0 1
      %1473 = vperm.xlu0 %1472, %v297
      %v1474 = vpop.permute.xlu0 %1473
      %1476 = vset.pattern.permute.xlu0 1
      %1477 = vperm.xlu0 %1476, %v298
      %v1478 = vpop.permute.xlu0 %1477
      %1480 = vset.pattern.permute.xlu0 1
      %1481 = vperm.xlu0 %1480, %v299
      %v1482 = vpop.permute.xlu0 %1481
      %1484 = vset.pattern.permute.xlu0 1
      %1485 = vperm.xlu0 %1484, %v300
      %v1486 = vpop.permute.xlu0 %1485
      %1488 = vset.pattern.permute.xlu0 1
      %1489 = vperm.xlu0 %1488, %v301
      %v1490 = vpop.permute.xlu0 %1489
      %1492 = vset.pattern.permute.xlu0 1
      %1493 = vperm.xlu0 %1492, %v302
      %v1494 = vpop.permute.xlu0 %1493
      %1496 = vset.pattern.permute.xlu0 1
      %1497 = vperm.xlu0 %1496, %v303
      %v1498 = vpop.permute.xlu0 %1497
      %1500 = vset.pattern.permute.xlu0 1
      %1501 = vperm.xlu0 %1500, %v304
      %v1502 = vpop.permute.xlu0 %1501
      %1504 = vset.pattern.permute.xlu0 1
      %1505 = vperm.xlu0 %1504, %v305
      %v1506 = vpop.permute.xlu0 %1505
      %1508 = vset.pattern.permute.xlu0 1
      %1509 = vperm.xlu0 %1508, %v306
      %v1510 = vpop.permute.xlu0 %1509
      %1512 = vset.pattern.permute.xlu0 1
      %1513 = vperm.xlu0 %1512, %v307
      %v1514 = vpop.permute.xlu0 %1513
      %1516 = vset.pattern.permute.xlu0 1
      %1517 = vperm.xlu0 %1516, %v308
      %v1518 = vpop.permute.xlu0 %1517
      %1520 = vset.pattern.permute.xlu0 1
      %1521 = vperm.xlu0 %1520, %v309
      %v1522 = vpop.permute.xlu0 %1521
      %1524 = vset.pattern.permute.xlu0 1
      %1525 = vperm.xlu0 %1524, %v310
      %v1526 = vpop.permute.xlu0 %1525
      %1528 = vset.pattern.permute.xlu0 1
      %1529 = vperm.xlu0 %1528, %v311
      %v1530 = vpop.permute.xlu0 %1529
      %1532 = vset.pattern.permute.xlu0 1
      %1533 = vperm.xlu0 %1532, %v312
      %v1534 = vpop.permute.xlu0 %1533
      %1536 = vset.pattern.permute.xlu0 1
      %1537 = vperm.xlu0 %1536, %v313
      %v1538 = vpop.permute.xlu0 %1537
      %1540 = vset.pattern.permute.xlu0 1
      %1541 = vperm.xlu0 %1540, %v314
      %v1542 = vpop.permute.xlu0 %1541
      %1544 = vset.pattern.permute.xlu0 1
      %1545 = vperm.xlu0 %1544, %v315
      %v1546 = vpop.permute.xlu0 %1545
      %1548 = vset.pattern.permute.xlu0 1
      %1549 = vperm.xlu0 %1548, %v316
      %v1550 = vpop.permute.xlu0 %1549
      %1552 = vset.pattern.permute.xlu0 1
      %1553 = vperm.xlu0 %1552, %v317
      %v1554 = vpop.permute.xlu0 %1553
      %1556 = vset.pattern.permute.xlu0 1
      %1557 = vperm.xlu0 %1556, %v318
      %v1558 = vpop.permute.xlu0 %1557
      %1560 = vset.pattern.permute.xlu0 1
      %1561 = vperm.xlu0 %1560, %v319
      %v1562 = vpop.permute.xlu0 %1561
      %1564 = vset.pattern.permute.xlu0 1
      %1565 = vperm.xlu0 %1564, %v320
      %v1566 = vpop.permute.xlu0 %1565
      %1568 = vset.pattern.permute.xlu0 1
      %1569 = vperm.xlu0 %1568, %v321
      %v1570 = vpop.permute.xlu0 %1569
      %1572 = vset.pattern.permute.xlu0 1
      %1573 = vperm.xlu0 %1572, %v322
      %v1574 = vpop.permute.xlu0 %1573
      %1576 = vset.pattern.permute.xlu0 1
      %1577 = vperm.xlu0 %1576, %v323
      %v1578 = vpop.permute.xlu0 %1577
      %1580 = vset.pattern.permute.xlu0 1
      %1581 = vperm.xlu0 %1580, %v324
      %v1582 = vpop.permute.xlu0 %1581
      %1584 = vset.pattern.permute.xlu0 1
      %1585 = vperm.xlu0 %1584, %v325
      %v1586 = vpop.permute.xlu0 %1585
      %1588 = vset.pattern.permute.xlu0 1
      %1589 = vperm.xlu0 %1588, %v326
      %v1590 = vpop.permute.xlu0 %1589
      %1592 = vset.pattern.permute.xlu0 1
      %1593 = vperm.xlu0 %1592, %v327
      %v1594 = vpop.permute.xlu0 %1593
      %1596 = vset.pattern.permute.xlu0 1
      %1597 = vperm.xlu0 %1596, %v328
      %v1598 = vpop.permute.xlu0 %1597
      %1600 = vset.pattern.permute.xlu0 1
      %1601 = vperm.xlu0 %1600, %v329
      %v1602 = vpop.permute.xlu0 %1601
      %1604 = vset.pattern.permute.xlu0 1
      %1605 = vperm.xlu0 %1604, %v330
      %v1606 = vpop.permute.xlu0 %1605
      %1608 = vset.pattern.permute.xlu0 1
      %1609 = vperm.xlu0 %1608, %v331
      %v1610 = vpop.permute.xlu0 %1609
      %1612 = vset.pattern.permute.xlu0 1
      %1613 = vperm.xlu0 %1612, %v332
      %v1614 = vpop.permute.xlu0 %1613
      %1616 = vset.pattern.permute.xlu0 1
      %1617 = vperm.xlu0 %1616, %v333
      %v1618 = vpop.permute.xlu0 %1617
      %1620 = vset.pattern.permute.xlu0 1
      %1621 = vperm.xlu0 %1620, %v334
      %v1622 = vpop.permute.xlu0 %1621
      %1624 = vset.pattern.permute.xlu0 1
      %1625 = vperm.xlu0 %1624, %v335
      %v1626 = vpop.permute.xlu0 %1625
      %1628 = vset.pattern.permute.xlu0 1
      %1629 = vperm.xlu0 %1628, %v336
      %v1630 = vpop.permute.xlu0 %1629
      %1632 = vset.pattern.permute.xlu0 1
      %1633 = vperm.xlu0 %1632, %v337
      %v1634 = vpop.permute.xlu0 %1633
      %1636 = vset.pattern.permute.xlu0 1
      %1637 = vperm.xlu0 %1636, %v338
      %v1638 = vpop.permute.xlu0 %1637
      %1640 = vset.pattern.permute.xlu0 1
      %1641 = vperm.xlu0 %1640, %v339
      %v1642 = vpop.permute.xlu0 %1641
      %1644 = vset.pattern.permute.xlu0 1
      %1645 = vperm.xlu0 %1644, %v340
      %v1646 = vpop.permute.xlu0 %1645
      %1648 = vset.pattern.permute.xlu0 1
      %1649 = vperm.xlu0 %1648, %v341
      %v1650 = vpop.permute.xlu0 %1649
      %1652 = vset.pattern.permute.xlu0 1
      %1653 = vperm.xlu0 %1652, %v342
      %v1654 = vpop.permute.xlu0 %1653
      %1656 = vset.pattern.permute.xlu0 1
      %1657 = vperm.xlu0 %1656, %v343
      %v1658 = vpop.permute.xlu0 %1657
      %1660 = vset.pattern.permute.xlu0 1
      %1661 = vperm.xlu0 %1660, %v344
      %v1662 = vpop.permute.xlu0 %1661
      %1664 = vset.pattern.permute.xlu0 1
      %1665 = vperm.xlu0 %1664, %v345
      %v1666 = vpop.permute.xlu0 %1665
      %1668 = vset.pattern.permute.xlu0 1
      %1669 = vperm.xlu0 %1668, %v346
      %v1670 = vpop.permute.xlu0 %1669
      %1672 = vset.pattern.permute.xlu0 1
      %1673 = vperm.xlu0 %1672, %v347
      %v1674 = vpop.permute.xlu0 %1673
      %1676 = vset.pattern.permute.xlu0 1
      %1677 = vperm.xlu0 %1676, %v348
      %v1678 = vpop.permute.xlu0 %1677
      %1680 = vset.pattern.permute.xlu0 1
      %1681 = vperm.xlu0 %1680, %v349
      %v1682 = vpop.permute.xlu0 %1681
      %1684 = vset.pattern.permute.xlu0 1
      %1685 = vperm.xlu0 %1684, %v350
      %v1686 = vpop.permute.xlu0 %1685
      %1688 = vset.pattern.permute.xlu0 1
      %1689 = vperm.xlu0 %1688, %v351
      %v1690 = vpop.permute.xlu0 %1689
      %1692 = vset.pattern.permute.xlu0 1
      %1693 = vperm.xlu0 %1692, %v352
      %v1694 = vpop.permute.xlu0 %1693
      %1696 = vset.pattern.permute.xlu0 1
      %1697 = vperm.xlu0 %1696, %v353
      %v1698 = vpop.permute.xlu0 %1697
      %1700 = vset.pattern.permute.xlu0 1
      %1701 = vperm.xlu0 %1700, %v354
      %v1702 = vpop.permute.xlu0 %1701
      %1704 = vset.pattern.permute.xlu0 1
      %1705 = vperm.xlu0 %1704, %v355
      %v1706 = vpop.permute.xlu0 %1705
      %1708 = vset.pattern.permute.xlu0 1
      %1709 = vperm.xlu0 %1708, %v356
      %v1710 = vpop.permute.xlu0 %1709
      %1712 = vset.pattern.permute.xlu0 1
      %1713 = vperm.xlu0 %1712, %v357
      %v1714 = vpop.permute.xlu0 %1713
      %1716 = vset.pattern.permute.xlu0 1
      %1717 = vperm.xlu0 %1716, %v358
      %v1718 = vpop.permute.xlu0 %1717
      %1720 = vset.pattern.permute.xlu0 1
      %1721 = vperm.xlu0 %1720, %v359
      %v1722 = vpop.permute.xlu0 %1721
      %1724 = vset.pattern.permute.xlu0 1
      %1725 = vperm.xlu0 %1724, %v360
      %v1726 = vpop.permute.xlu0 %1725
      %1728 = vset.pattern.permute.xlu0 1
      %1729 = vperm.xlu0 %1728, %v361
      %v1730 = vpop.permute.xlu0 %1729
      %1732 = vset.pattern.permute.xlu0 1
      %1733 = vperm.xlu0 %1732, %v362
      %v1734 = vpop.permute.xlu0 %1733
      %1736 = vset.pattern.permute.xlu0 1
      %1737 = vperm.xlu0 %1736, %v363
      %v1738 = vpop.permute.xlu0 %1737
      %1740 = vset.pattern.permute.xlu0 1
      %1741 = vperm.xlu0 %1740, %v364
      %v1742 = vpop.permute.xlu0 %1741
      %1744 = vset.pattern.permute.xlu0 1
      %1745 = vperm.xlu0 %1744, %v365
      %v1746 = vpop.permute.xlu0 %1745
      %1748 = vset.pattern.permute.xlu0 1
      %1749 = vperm.xlu0 %1748, %v366
      %v1750 = vpop.permute.xlu0 %1749
      %1752 = vset.pattern.permute.xlu0 1
      %1753 = vperm.xlu0 %1752, %v367
      %v1754 = vpop.permute.xlu0 %1753
      %1756 = vset.pattern.permute.xlu0 1
      %1757 = vperm.xlu0 %1756, %v368
      %v1758 = vpop.permute.xlu0 %1757
      %1760 = vset.pattern.permute.xlu0 1
      %1761 = vperm.xlu0 %1760, %v369
      %v1762 = vpop.permute.xlu0 %1761
      %1764 = vset.pattern.permute.xlu0 1
      %1765 = vperm.xlu0 %1764, %v370
      %v1766 = vpop.permute.xlu0 %1765
      %1768 = vset.pattern.permute.xlu0 1
      %1769 = vperm.xlu0 %1768, %v371
      %v1770 = vpop.permute.xlu0 %1769
      %1772 = vset.pattern.permute.xlu0 1
      %1773 = vperm.xlu0 %1772, %v372
      %v1774 = vpop.permute.xlu0 %1773
      %1776 = vset.pattern.permute.xlu0 1
      %1777 = vperm.xlu0 %1776, %v373
      %v1778 = vpop.permute.xlu0 %1777
      %1780 = vset.pattern.permute.xlu0 1
      %1781 = vperm.xlu0 %1780, %v374
      %v1782 = vpop.permute.xlu0 %1781
      %1784 = vset.pattern.permute.xlu0 1
      %1785 = vperm.xlu0 %1784, %v375
      %v1786 = vpop.permute.xlu0 %1785
      %1788 = vset.pattern.permute.xlu0 1
      %1789 = vperm.xlu0 %1788, %v376
      %v1790 = vpop.permute.xlu0 %1789
      %1792 = vset.pattern.permute.xlu0 1
      %1793 = vperm.xlu0 %1792, %v377
      %v1794 = vpop.permute.xlu0 %1793
      %1796 = vset.pattern.permute.xlu0 1
      %1797 = vperm.xlu0 %1796, %v378
      %v1798 = vpop.permute.xlu0 %1797
      %v1800 = vlaneseq
      %v1801 = vshrl.u32 %v1800, 7
      %v1802 = vsub.s32 0, %v1801
      %v1803 = vrot.slane %v1287, %v1802
      %v1804 = vmul.f32 %v1290, %v1803
      %v1805 = vmul.f32 %v1294, %v1803
      %v1806 = vmul.f32 %v1298, %v1803
      %v1807 = vmul.f32 %v1302, %v1803
      %v1808 = vmul.f32 %v1306, %v1803
      %v1809 = vmul.f32 %v1310, %v1803
      %v1810 = vmul.f32 %v1314, %v1803
      %v1811 = vmul.f32 %v1318, %v1803
      %v1812 = vmul.f32 %v1322, %v1803
      %v1813 = vmul.f32 %v1326, %v1803
      %v1814 = vmul.f32 %v1330, %v1803
      %v1815 = vmul.f32 %v1334, %v1803
      %v1816 = vmul.f32 %v1338, %v1803
      %v1817 = vmul.f32 %v1342, %v1803
      %v1818 = vmul.f32 %v1346, %v1803
      %v1819 = vmul.f32 %v1350, %v1803
      %v1820 = vmul.f32 %v1354, %v1803
      %v1821 = vmul.f32 %v1358, %v1803
      %v1822 = vmul.f32 %v1362, %v1803
      %v1823 = vmul.f32 %v1366, %v1803
      %v1824 = vmul.f32 %v1370, %v1803
      %v1825 = vmul.f32 %v1374, %v1803
      %v1826 = vmul.f32 %v1378, %v1803
      %v1827 = vmul.f32 %v1382, %v1803
      %v1828 = vmul.f32 %v1386, %v1803
      %v1829 = vmul.f32 %v1390, %v1803
      %v1830 = vmul.f32 %v1394, %v1803
      %v1831 = vmul.f32 %v1398, %v1803
      %v1832 = vmul.f32 %v1402, %v1803
      %v1833 = vmul.f32 %v1406, %v1803
      %v1834 = vmul.f32 %v1410, %v1803
      %v1835 = vmul.f32 %v1414, %v1803
      %v1836 = vmul.f32 %v1418, %v1803
      %v1837 = vmul.f32 %v1422, %v1803
      %v1838 = vmul.f32 %v1426, %v1803
      %v1839 = vmul.f32 %v1430, %v1803
      %v1840 = vmul.f32 %v1434, %v1803
      %v1841 = vmul.f32 %v1438, %v1803
      %v1842 = vmul.f32 %v1442, %v1803
      %v1843 = vmul.f32 %v1446, %v1803
      %v1844 = vmul.f32 %v1450, %v1803
      %v1845 = vmul.f32 %v1454, %v1803
      %v1846 = vmul.f32 %v1458, %v1803
      %v1847 = vmul.f32 %v1462, %v1803
      %v1848 = vmul.f32 %v1466, %v1803
      %v1849 = vmul.f32 %v1470, %v1803
      %v1850 = vmul.f32 %v1474, %v1803
      %v1851 = vmul.f32 %v1478, %v1803
      %v1852 = vmul.f32 %v1482, %v1803
      %v1853 = vmul.f32 %v1486, %v1803
      %v1854 = vmul.f32 %v1490, %v1803
      %v1855 = vmul.f32 %v1494, %v1803
      %v1856 = vmul.f32 %v1498, %v1803
      %v1857 = vmul.f32 %v1502, %v1803
      %v1858 = vmul.f32 %v1506, %v1803
      %v1859 = vmul.f32 %v1510, %v1803
      %v1860 = vmul.f32 %v1514, %v1803
      %v1861 = vmul.f32 %v1518, %v1803
      %v1862 = vmul.f32 %v1522, %v1803
      %v1863 = vmul.f32 %v1526, %v1803
      %v1864 = vmul.f32 %v1530, %v1803
      %v1865 = vmul.f32 %v1534, %v1803
      %v1866 = vmul.f32 %v1538, %v1803
      %v1867 = vmul.f32 %v1542, %v1803
      %v1868 = vmul.f32 %v1546, %v1803
      %v1869 = vmul.f32 %v1550, %v1803
      %v1870 = vmul.f32 %v1554, %v1803
      %v1871 = vmul.f32 %v1558, %v1803
      %v1872 = vmul.f32 %v1562, %v1803
      %v1873 = vmul.f32 %v1566, %v1803
      %v1874 = vmul.f32 %v1570, %v1803
      %v1875 = vmul.f32 %v1574, %v1803
      %v1876 = vmul.f32 %v1578, %v1803
      %v1877 = vmul.f32 %v1582, %v1803
      %v1878 = vmul.f32 %v1586, %v1803
      %v1879 = vmul.f32 %v1590, %v1803
      %v1880 = vmul.f32 %v1594, %v1803
      %v1881 = vmul.f32 %v1598, %v1803
      %v1882 = vmul.f32 %v1602, %v1803
      %v1883 = vmul.f32 %v1606, %v1803
      %v1884 = vmul.f32 %v1610, %v1803
      %v1885 = vmul.f32 %v1614, %v1803
      %v1886 = vmul.f32 %v1618, %v1803
      %v1887 = vmul.f32 %v1622, %v1803
      %v1888 = vmul.f32 %v1626, %v1803
      %v1889 = vmul.f32 %v1630, %v1803
      %v1890 = vmul.f32 %v1634, %v1803
      %v1891 = vmul.f32 %v1638, %v1803
      %v1892 = vmul.f32 %v1642, %v1803
      %v1893 = vmul.f32 %v1646, %v1803
      %v1894 = vmul.f32 %v1650, %v1803
      %v1895 = vmul.f32 %v1654, %v1803
      %v1896 = vmul.f32 %v1658, %v1803
      %v1897 = vmul.f32 %v1662, %v1803
      %v1898 = vmul.f32 %v1666, %v1803
      %v1899 = vmul.f32 %v1670, %v1803
      %v1900 = vmul.f32 %v1674, %v1803
      %v1901 = vmul.f32 %v1678, %v1803
      %v1902 = vmul.f32 %v1682, %v1803
      %v1903 = vmul.f32 %v1686, %v1803
      %v1904 = vmul.f32 %v1690, %v1803
      %v1905 = vmul.f32 %v1694, %v1803
      %v1906 = vmul.f32 %v1698, %v1803
      %v1907 = vmul.f32 %v1702, %v1803
      %v1908 = vmul.f32 %v1706, %v1803
      %v1909 = vmul.f32 %v1710, %v1803
      %v1910 = vmul.f32 %v1714, %v1803
      %v1911 = vmul.f32 %v1718, %v1803
      %v1912 = vmul.f32 %v1722, %v1803
      %v1913 = vmul.f32 %v1726, %v1803
      %v1914 = vmul.f32 %v1730, %v1803
      %v1915 = vmul.f32 %v1734, %v1803
      %v1916 = vmul.f32 %v1738, %v1803
      %v1917 = vmul.f32 %v1742, %v1803
      %v1918 = vmul.f32 %v1746, %v1803
      %v1919 = vmul.f32 %v1750, %v1803
      %v1920 = vmul.f32 %v1754, %v1803
      %v1921 = vmul.f32 %v1758, %v1803
      %v1922 = vmul.f32 %v1762, %v1803
      %v1923 = vmul.f32 %v1766, %v1803
      %v1924 = vmul.f32 %v1770, %v1803
      %v1925 = vmul.f32 %v1774, %v1803
      %v1926 = vmul.f32 %v1778, %v1803
      %v1927 = vmul.f32 %v1782, %v1803
      %v1928 = vmul.f32 %v1786, %v1803
      %v1929 = vmul.f32 %v1790, %v1803
      %v1930 = vmul.f32 %v1794, %v1803
      %v1931 = vmul.f32 %v1798, %v1803
      %v1932 = vadd.f32 %v1159, %v1804
      %v1933 = vadd.f32 %v1160, %v1805
      %v1934 = vadd.f32 %v1161, %v1806
      %v1935 = vadd.f32 %v1162, %v1807
      %v1936 = vadd.f32 %v1163, %v1808
      %v1937 = vadd.f32 %v1164, %v1809
      %v1938 = vadd.f32 %v1165, %v1810
      %v1939 = vadd.f32 %v1166, %v1811
      %v1940 = vadd.f32 %v1167, %v1812
      %v1941 = vadd.f32 %v1168, %v1813
      %v1942 = vadd.f32 %v1169, %v1814
      %v1943 = vadd.f32 %v1170, %v1815
      %v1944 = vadd.f32 %v1171, %v1816
      %v1945 = vadd.f32 %v1172, %v1817
      %v1946 = vadd.f32 %v1173, %v1818
      %v1947 = vadd.f32 %v1174, %v1819
      %v1948 = vadd.f32 %v1175, %v1820
      %v1949 = vadd.f32 %v1176, %v1821
      %v1950 = vadd.f32 %v1177, %v1822
      %v1951 = vadd.f32 %v1178, %v1823
      %v1952 = vadd.f32 %v1179, %v1824
      %v1953 = vadd.f32 %v1180, %v1825
      %v1954 = vadd.f32 %v1181, %v1826
      %v1955 = vadd.f32 %v1182, %v1827
      %v1956 = vadd.f32 %v1183, %v1828
      %v1957 = vadd.f32 %v1184, %v1829
      %v1958 = vadd.f32 %v1185, %v1830
      %v1959 = vadd.f32 %v1186, %v1831
      %v1960 = vadd.f32 %v1187, %v1832
      %v1961 = vadd.f32 %v1188, %v1833
      %v1962 = vadd.f32 %v1189, %v1834
      %v1963 = vadd.f32 %v1190, %v1835
      %v1964 = vadd.f32 %v1191, %v1836
      %v1965 = vadd.f32 %v1192, %v1837
      %v1966 = vadd.f32 %v1193, %v1838
      %v1967 = vadd.f32 %v1194, %v1839
      %v1968 = vadd.f32 %v1195, %v1840
      %v1969 = vadd.f32 %v1196, %v1841
      %v1970 = vadd.f32 %v1197, %v1842
      %v1971 = vadd.f32 %v1198, %v1843
      %v1972 = vadd.f32 %v1199, %v1844
      %v1973 = vadd.f32 %v1200, %v1845
      %v1974 = vadd.f32 %v1201, %v1846
      %v1975 = vadd.f32 %v1202, %v1847
      %v1976 = vadd.f32 %v1203, %v1848
      %v1977 = vadd.f32 %v1204, %v1849
      %v1978 = vadd.f32 %v1205, %v1850
      %v1979 = vadd.f32 %v1206, %v1851
      %v1980 = vadd.f32 %v1207, %v1852
      %v1981 = vadd.f32 %v1208, %v1853
      %v1982 = vadd.f32 %v1209, %v1854
      %v1983 = vadd.f32 %v1210, %v1855
      %v1984 = vadd.f32 %v1211, %v1856
      %v1985 = vadd.f32 %v1212, %v1857
      %v1986 = vadd.f32 %v1213, %v1858
      %v1987 = vadd.f32 %v1214, %v1859
      %v1988 = vadd.f32 %v1215, %v1860
      %v1989 = vadd.f32 %v1216, %v1861
      %v1990 = vadd.f32 %v1217, %v1862
      %v1991 = vadd.f32 %v1218, %v1863
      %v1992 = vadd.f32 %v1219, %v1864
      %v1993 = vadd.f32 %v1220, %v1865
      %v1994 = vadd.f32 %v1221, %v1866
      %v1995 = vadd.f32 %v1222, %v1867
      %v1996 = vadd.f32 %v1223, %v1868
      %v1997 = vadd.f32 %v1224, %v1869
      %v1998 = vadd.f32 %v1225, %v1870
      %v1999 = vadd.f32 %v1226, %v1871
      %v2000 = vadd.f32 %v1227, %v1872
      %v2001 = vadd.f32 %v1228, %v1873
      %v2002 = vadd.f32 %v1229, %v1874
      %v2003 = vadd.f32 %v1230, %v1875
      %v2004 = vadd.f32 %v1231, %v1876
      %v2005 = vadd.f32 %v1232, %v1877
      %v2006 = vadd.f32 %v1233, %v1878
      %v2007 = vadd.f32 %v1234, %v1879
      %v2008 = vadd.f32 %v1235, %v1880
      %v2009 = vadd.f32 %v1236, %v1881
      %v2010 = vadd.f32 %v1237, %v1882
      %v2011 = vadd.f32 %v1238, %v1883
      %v2012 = vadd.f32 %v1239, %v1884
      %v2013 = vadd.f32 %v1240, %v1885
      %v2014 = vadd.f32 %v1241, %v1886
      %v2015 = vadd.f32 %v1242, %v1887
      %v2016 = vadd.f32 %v1243, %v1888
      %v2017 = vadd.f32 %v1244, %v1889
      %v2018 = vadd.f32 %v1245, %v1890
      %v2019 = vadd.f32 %v1246, %v1891
      %v2020 = vadd.f32 %v1247, %v1892
      %v2021 = vadd.f32 %v1248, %v1893
      %v2022 = vadd.f32 %v1249, %v1894
      %v2023 = vadd.f32 %v1250, %v1895
      %v2024 = vadd.f32 %v1251, %v1896
      %v2025 = vadd.f32 %v1252, %v1897
      %v2026 = vadd.f32 %v1253, %v1898
      %v2027 = vadd.f32 %v1254, %v1899
      %v2028 = vadd.f32 %v1255, %v1900
      %v2029 = vadd.f32 %v1256, %v1901
      %v2030 = vadd.f32 %v1257, %v1902
      %v2031 = vadd.f32 %v1258, %v1903
      %v2032 = vadd.f32 %v1259, %v1904
      %v2033 = vadd.f32 %v1260, %v1905
      %v2034 = vadd.f32 %v1261, %v1906
      %v2035 = vadd.f32 %v1262, %v1907
      %v2036 = vadd.f32 %v1263, %v1908
      %v2037 = vadd.f32 %v1264, %v1909
      %v2038 = vadd.f32 %v1265, %v1910
      %v2039 = vadd.f32 %v1266, %v1911
      %v2040 = vadd.f32 %v1267, %v1912
      %v2041 = vadd.f32 %v1268, %v1913
      %v2042 = vadd.f32 %v1269, %v1914
      %v2043 = vadd.f32 %v1270, %v1915
      %v2044 = vadd.f32 %v1271, %v1916
      %v2045 = vadd.f32 %v1272, %v1917
      %v2046 = vadd.f32 %v1273, %v1918
      %v2047 = vadd.f32 %v1274, %v1919
      %v2048 = vadd.f32 %v1275, %v1920
      %v2049 = vadd.f32 %v1276, %v1921
      %v2050 = vadd.f32 %v1277, %v1922
      %v2051 = vadd.f32 %v1278, %v1923
      %v2052 = vadd.f32 %v1279, %v1924
      %v2053 = vadd.f32 %v1280, %v1925
      %v2054 = vadd.f32 %v1281, %v1926
      %v2055 = vadd.f32 %v1282, %v1927
      %v2056 = vadd.f32 %v1283, %v1928
      %v2057 = vadd.f32 %v1284, %v1929
      %v2058 = vadd.f32 %v1285, %v1930
      %v2059 = vadd.f32 %v1286, %v1931
      %v2060 = vld [vmem:[%s218 + $0x2] sm:$0x1]
      %2061 = vset.pattern.permute.xlu0 2
      %2062 = vperm.xlu0 %2061, %v251
      %v2063 = vpop.permute.xlu0 %2062
      %2065 = vset.pattern.permute.xlu0 2
      %2066 = vperm.xlu0 %2065, %v252
      %v2067 = vpop.permute.xlu0 %2066
      %2069 = vset.pattern.permute.xlu0 2
      %2070 = vperm.xlu0 %2069, %v253
      %v2071 = vpop.permute.xlu0 %2070
      %2073 = vset.pattern.permute.xlu0 2
      %2074 = vperm.xlu0 %2073, %v254
      %v2075 = vpop.permute.xlu0 %2074
      %2077 = vset.pattern.permute.xlu0 2
      %2078 = vperm.xlu0 %2077, %v255
      %v2079 = vpop.permute.xlu0 %2078
      %2081 = vset.pattern.permute.xlu0 2
      %2082 = vperm.xlu0 %2081, %v256
      %v2083 = vpop.permute.xlu0 %2082
      %2085 = vset.pattern.permute.xlu0 2
      %2086 = vperm.xlu0 %2085, %v257
      %v2087 = vpop.permute.xlu0 %2086
      %2089 = vset.pattern.permute.xlu0 2
      %2090 = vperm.xlu0 %2089, %v258
      %v2091 = vpop.permute.xlu0 %2090
      %2093 = vset.pattern.permute.xlu0 2
      %2094 = vperm.xlu0 %2093, %v259
      %v2095 = vpop.permute.xlu0 %2094
      %2097 = vset.pattern.permute.xlu0 2
      %2098 = vperm.xlu0 %2097, %v260
      %v2099 = vpop.permute.xlu0 %2098
      %2101 = vset.pattern.permute.xlu0 2
      %2102 = vperm.xlu0 %2101, %v261
      %v2103 = vpop.permute.xlu0 %2102
      %2105 = vset.pattern.permute.xlu0 2
      %2106 = vperm.xlu0 %2105, %v262
      %v2107 = vpop.permute.xlu0 %2106
      %2109 = vset.pattern.permute.xlu0 2
      %2110 = vperm.xlu0 %2109, %v263
      %v2111 = vpop.permute.xlu0 %2110
      %2113 = vset.pattern.permute.xlu0 2
      %2114 = vperm.xlu0 %2113, %v264
      %v2115 = vpop.permute.xlu0 %2114
      %2117 = vset.pattern.permute.xlu0 2
      %2118 = vperm.xlu0 %2117, %v265
      %v2119 = vpop.permute.xlu0 %2118
      %2121 = vset.pattern.permute.xlu0 2
      %2122 = vperm.xlu0 %2121, %v266
      %v2123 = vpop.permute.xlu0 %2122
      %2125 = vset.pattern.permute.xlu0 2
      %2126 = vperm.xlu0 %2125, %v267
      %v2127 = vpop.permute.xlu0 %2126
      %2129 = vset.pattern.permute.xlu0 2
      %2130 = vperm.xlu0 %2129, %v268
      %v2131 = vpop.permute.xlu0 %2130
      %2133 = vset.pattern.permute.xlu0 2
      %2134 = vperm.xlu0 %2133, %v269
      %v2135 = vpop.permute.xlu0 %2134
      %2137 = vset.pattern.permute.xlu0 2
      %2138 = vperm.xlu0 %2137, %v270
      %v2139 = vpop.permute.xlu0 %2138
      %2141 = vset.pattern.permute.xlu0 2
      %2142 = vperm.xlu0 %2141, %v271
      %v2143 = vpop.permute.xlu0 %2142
      %2145 = vset.pattern.permute.xlu0 2
      %2146 = vperm.xlu0 %2145, %v272
      %v2147 = vpop.permute.xlu0 %2146
      %2149 = vset.pattern.permute.xlu0 2
      %2150 = vperm.xlu0 %2149, %v273
      %v2151 = vpop.permute.xlu0 %2150
      %2153 = vset.pattern.permute.xlu0 2
      %2154 = vperm.xlu0 %2153, %v274
      %v2155 = vpop.permute.xlu0 %2154
      %2157 = vset.pattern.permute.xlu0 2
      %2158 = vperm.xlu0 %2157, %v275
      %v2159 = vpop.permute.xlu0 %2158
      %2161 = vset.pattern.permute.xlu0 2
      %2162 = vperm.xlu0 %2161, %v276
      %v2163 = vpop.permute.xlu0 %2162
      %2165 = vset.pattern.permute.xlu0 2
      %2166 = vperm.xlu0 %2165, %v277
      %v2167 = vpop.permute.xlu0 %2166
      %2169 = vset.pattern.permute.xlu0 2
      %2170 = vperm.xlu0 %2169, %v278
      %v2171 = vpop.permute.xlu0 %2170
      %2173 = vset.pattern.permute.xlu0 2
      %2174 = vperm.xlu0 %2173, %v279
      %v2175 = vpop.permute.xlu0 %2174
      %2177 = vset.pattern.permute.xlu0 2
      %2178 = vperm.xlu0 %2177, %v280
      %v2179 = vpop.permute.xlu0 %2178
      %2181 = vset.pattern.permute.xlu0 2
      %2182 = vperm.xlu0 %2181, %v281
      %v2183 = vpop.permute.xlu0 %2182
      %2185 = vset.pattern.permute.xlu0 2
      %2186 = vperm.xlu0 %2185, %v282
      %v2187 = vpop.permute.xlu0 %2186
      %2189 = vset.pattern.permute.xlu0 2
      %2190 = vperm.xlu0 %2189, %v283
      %v2191 = vpop.permute.xlu0 %2190
      %2193 = vset.pattern.permute.xlu0 2
      %2194 = vperm.xlu0 %2193, %v284
      %v2195 = vpop.permute.xlu0 %2194
      %2197 = vset.pattern.permute.xlu0 2
      %2198 = vperm.xlu0 %2197, %v285
      %v2199 = vpop.permute.xlu0 %2198
      %2201 = vset.pattern.permute.xlu0 2
      %2202 = vperm.xlu0 %2201, %v286
      %v2203 = vpop.permute.xlu0 %2202
      %2205 = vset.pattern.permute.xlu0 2
      %2206 = vperm.xlu0 %2205, %v287
      %v2207 = vpop.permute.xlu0 %2206
      %2209 = vset.pattern.permute.xlu0 2
      %2210 = vperm.xlu0 %2209, %v288
      %v2211 = vpop.permute.xlu0 %2210
      %2213 = vset.pattern.permute.xlu0 2
      %2214 = vperm.xlu0 %2213, %v289
      %v2215 = vpop.permute.xlu0 %2214
      %2217 = vset.pattern.permute.xlu0 2
      %2218 = vperm.xlu0 %2217, %v290
      %v2219 = vpop.permute.xlu0 %2218
      %2221 = vset.pattern.permute.xlu0 2
      %2222 = vperm.xlu0 %2221, %v291
      %v2223 = vpop.permute.xlu0 %2222
      %2225 = vset.pattern.permute.xlu0 2
      %2226 = vperm.xlu0 %2225, %v292
      %v2227 = vpop.permute.xlu0 %2226
      %2229 = vset.pattern.permute.xlu0 2
      %2230 = vperm.xlu0 %2229, %v293
      %v2231 = vpop.permute.xlu0 %2230
      %2233 = vset.pattern.permute.xlu0 2
      %2234 = vperm.xlu0 %2233, %v294
      %v2235 = vpop.permute.xlu0 %2234
      %2237 = vset.pattern.permute.xlu0 2
      %2238 = vperm.xlu0 %2237, %v295
      %v2239 = vpop.permute.xlu0 %2238
      %2241 = vset.pattern.permute.xlu0 2
      %2242 = vperm.xlu0 %2241, %v296
      %v2243 = vpop.permute.xlu0 %2242
      %2245 = vset.pattern.permute.xlu0 2
      %2246 = vperm.xlu0 %2245, %v297
      %v2247 = vpop.permute.xlu0 %2246
      %2249 = vset.pattern.permute.xlu0 2
      %2250 = vperm.xlu0 %2249, %v298
      %v2251 = vpop.permute.xlu0 %2250
      %2253 = vset.pattern.permute.xlu0 2
      %2254 = vperm.xlu0 %2253, %v299
      %v2255 = vpop.permute.xlu0 %2254
      %2257 = vset.pattern.permute.xlu0 2
      %2258 = vperm.xlu0 %2257, %v300
      %v2259 = vpop.permute.xlu0 %2258
      %2261 = vset.pattern.permute.xlu0 2
      %2262 = vperm.xlu0 %2261, %v301
      %v2263 = vpop.permute.xlu0 %2262
      %2265 = vset.pattern.permute.xlu0 2
      %2266 = vperm.xlu0 %2265, %v302
      %v2267 = vpop.permute.xlu0 %2266
      %2269 = vset.pattern.permute.xlu0 2
      %2270 = vperm.xlu0 %2269, %v303
      %v2271 = vpop.permute.xlu0 %2270
      %2273 = vset.pattern.permute.xlu0 2
      %2274 = vperm.xlu0 %2273, %v304
      %v2275 = vpop.permute.xlu0 %2274
      %2277 = vset.pattern.permute.xlu0 2
      %2278 = vperm.xlu0 %2277, %v305
      %v2279 = vpop.permute.xlu0 %2278
      %2281 = vset.pattern.permute.xlu0 2
      %2282 = vperm.xlu0 %2281, %v306
      %v2283 = vpop.permute.xlu0 %2282
      %2285 = vset.pattern.permute.xlu0 2
      %2286 = vperm.xlu0 %2285, %v307
      %v2287 = vpop.permute.xlu0 %2286
      %2289 = vset.pattern.permute.xlu0 2
      %2290 = vperm.xlu0 %2289, %v308
      %v2291 = vpop.permute.xlu0 %2290
      %2293 = vset.pattern.permute.xlu0 2
      %2294 = vperm.xlu0 %2293, %v309
      %v2295 = vpop.permute.xlu0 %2294
      %2297 = vset.pattern.permute.xlu0 2
      %2298 = vperm.xlu0 %2297, %v310
      %v2299 = vpop.permute.xlu0 %2298
      %2301 = vset.pattern.permute.xlu0 2
      %2302 = vperm.xlu0 %2301, %v311
      %v2303 = vpop.permute.xlu0 %2302
      %2305 = vset.pattern.permute.xlu0 2
      %2306 = vperm.xlu0 %2305, %v312
      %v2307 = vpop.permute.xlu0 %2306
      %2309 = vset.pattern.permute.xlu0 2
      %2310 = vperm.xlu0 %2309, %v313
      %v2311 = vpop.permute.xlu0 %2310
      %2313 = vset.pattern.permute.xlu0 2
      %2314 = vperm.xlu0 %2313, %v314
      %v2315 = vpop.permute.xlu0 %2314
      %2317 = vset.pattern.permute.xlu0 2
      %2318 = vperm.xlu0 %2317, %v315
      %v2319 = vpop.permute.xlu0 %2318
      %2321 = vset.pattern.permute.xlu0 2
      %2322 = vperm.xlu0 %2321, %v316
      %v2323 = vpop.permute.xlu0 %2322
      %2325 = vset.pattern.permute.xlu0 2
      %2326 = vperm.xlu0 %2325, %v317
      %v2327 = vpop.permute.xlu0 %2326
      %2329 = vset.pattern.permute.xlu0 2
      %2330 = vperm.xlu0 %2329, %v318
      %v2331 = vpop.permute.xlu0 %2330
      %2333 = vset.pattern.permute.xlu0 2
      %2334 = vperm.xlu0 %2333, %v319
      %v2335 = vpop.permute.xlu0 %2334
      %2337 = vset.pattern.permute.xlu0 2
      %2338 = vperm.xlu0 %2337, %v320
      %v2339 = vpop.permute.xlu0 %2338
      %2341 = vset.pattern.permute.xlu0 2
      %2342 = vperm.xlu0 %2341, %v321
      %v2343 = vpop.permute.xlu0 %2342
      %2345 = vset.pattern.permute.xlu0 2
      %2346 = vperm.xlu0 %2345, %v322
      %v2347 = vpop.permute.xlu0 %2346
      %2349 = vset.pattern.permute.xlu0 2
      %2350 = vperm.xlu0 %2349, %v323
      %v2351 = vpop.permute.xlu0 %2350
      %2353 = vset.pattern.permute.xlu0 2
      %2354 = vperm.xlu0 %2353, %v324
      %v2355 = vpop.permute.xlu0 %2354
      %2357 = vset.pattern.permute.xlu0 2
      %2358 = vperm.xlu0 %2357, %v325
      %v2359 = vpop.permute.xlu0 %2358
      %2361 = vset.pattern.permute.xlu0 2
      %2362 = vperm.xlu0 %2361, %v326
      %v2363 = vpop.permute.xlu0 %2362
      %2365 = vset.pattern.permute.xlu0 2
      %2366 = vperm.xlu0 %2365, %v327
      %v2367 = vpop.permute.xlu0 %2366
      %2369 = vset.pattern.permute.xlu0 2
      %2370 = vperm.xlu0 %2369, %v328
      %v2371 = vpop.permute.xlu0 %2370
      %2373 = vset.pattern.permute.xlu0 2
      %2374 = vperm.xlu0 %2373, %v329
      %v2375 = vpop.permute.xlu0 %2374
      %2377 = vset.pattern.permute.xlu0 2
      %2378 = vperm.xlu0 %2377, %v330
      %v2379 = vpop.permute.xlu0 %2378
      %2381 = vset.pattern.permute.xlu0 2
      %2382 = vperm.xlu0 %2381, %v331
      %v2383 = vpop.permute.xlu0 %2382
      %2385 = vset.pattern.permute.xlu0 2
      %2386 = vperm.xlu0 %2385, %v332
      %v2387 = vpop.permute.xlu0 %2386
      %2389 = vset.pattern.permute.xlu0 2
      %2390 = vperm.xlu0 %2389, %v333
      %v2391 = vpop.permute.xlu0 %2390
      %2393 = vset.pattern.permute.xlu0 2
      %2394 = vperm.xlu0 %2393, %v334
      %v2395 = vpop.permute.xlu0 %2394
      %2397 = vset.pattern.permute.xlu0 2
      %2398 = vperm.xlu0 %2397, %v335
      %v2399 = vpop.permute.xlu0 %2398
      %2401 = vset.pattern.permute.xlu0 2
      %2402 = vperm.xlu0 %2401, %v336
      %v2403 = vpop.permute.xlu0 %2402
      %2405 = vset.pattern.permute.xlu0 2
      %2406 = vperm.xlu0 %2405, %v337
      %v2407 = vpop.permute.xlu0 %2406
      %2409 = vset.pattern.permute.xlu0 2
      %2410 = vperm.xlu0 %2409, %v338
      %v2411 = vpop.permute.xlu0 %2410
      %2413 = vset.pattern.permute.xlu0 2
      %2414 = vperm.xlu0 %2413, %v339
      %v2415 = vpop.permute.xlu0 %2414
      %2417 = vset.pattern.permute.xlu0 2
      %2418 = vperm.xlu0 %2417, %v340
      %v2419 = vpop.permute.xlu0 %2418
      %2421 = vset.pattern.permute.xlu0 2
      %2422 = vperm.xlu0 %2421, %v341
      %v2423 = vpop.permute.xlu0 %2422
      %2425 = vset.pattern.permute.xlu0 2
      %2426 = vperm.xlu0 %2425, %v342
      %v2427 = vpop.permute.xlu0 %2426
      %2429 = vset.pattern.permute.xlu0 2
      %2430 = vperm.xlu0 %2429, %v343
      %v2431 = vpop.permute.xlu0 %2430
      %2433 = vset.pattern.permute.xlu0 2
      %2434 = vperm.xlu0 %2433, %v344
      %v2435 = vpop.permute.xlu0 %2434
      %2437 = vset.pattern.permute.xlu0 2
      %2438 = vperm.xlu0 %2437, %v345
      %v2439 = vpop.permute.xlu0 %2438
      %2441 = vset.pattern.permute.xlu0 2
      %2442 = vperm.xlu0 %2441, %v346
      %v2443 = vpop.permute.xlu0 %2442
      %2445 = vset.pattern.permute.xlu0 2
      %2446 = vperm.xlu0 %2445, %v347
      %v2447 = vpop.permute.xlu0 %2446
      %2449 = vset.pattern.permute.xlu0 2
      %2450 = vperm.xlu0 %2449, %v348
      %v2451 = vpop.permute.xlu0 %2450
      %2453 = vset.pattern.permute.xlu0 2
      %2454 = vperm.xlu0 %2453, %v349
      %v2455 = vpop.permute.xlu0 %2454
      %2457 = vset.pattern.permute.xlu0 2
      %2458 = vperm.xlu0 %2457, %v350
      %v2459 = vpop.permute.xlu0 %2458
      %2461 = vset.pattern.permute.xlu0 2
      %2462 = vperm.xlu0 %2461, %v351
      %v2463 = vpop.permute.xlu0 %2462
      %2465 = vset.pattern.permute.xlu0 2
      %2466 = vperm.xlu0 %2465, %v352
      %v2467 = vpop.permute.xlu0 %2466
      %2469 = vset.pattern.permute.xlu0 2
      %2470 = vperm.xlu0 %2469, %v353
      %v2471 = vpop.permute.xlu0 %2470
      %2473 = vset.pattern.permute.xlu0 2
      %2474 = vperm.xlu0 %2473, %v354
      %v2475 = vpop.permute.xlu0 %2474
      %2477 = vset.pattern.permute.xlu0 2
      %2478 = vperm.xlu0 %2477, %v355
      %v2479 = vpop.permute.xlu0 %2478
      %2481 = vset.pattern.permute.xlu0 2
      %2482 = vperm.xlu0 %2481, %v356
      %v2483 = vpop.permute.xlu0 %2482
      %2485 = vset.pattern.permute.xlu0 2
      %2486 = vperm.xlu0 %2485, %v357
      %v2487 = vpop.permute.xlu0 %2486
      %2489 = vset.pattern.permute.xlu0 2
      %2490 = vperm.xlu0 %2489, %v358
      %v2491 = vpop.permute.xlu0 %2490
      %2493 = vset.pattern.permute.xlu0 2
      %2494 = vperm.xlu0 %2493, %v359
      %v2495 = vpop.permute.xlu0 %2494
      %2497 = vset.pattern.permute.xlu0 2
      %2498 = vperm.xlu0 %2497, %v360
      %v2499 = vpop.permute.xlu0 %2498
      %2501 = vset.pattern.permute.xlu0 2
      %2502 = vperm.xlu0 %2501, %v361
      %v2503 = vpop.permute.xlu0 %2502
      %2505 = vset.pattern.permute.xlu0 2
      %2506 = vperm.xlu0 %2505, %v362
      %v2507 = vpop.permute.xlu0 %2506
      %2509 = vset.pattern.permute.xlu0 2
      %2510 = vperm.xlu0 %2509, %v363
      %v2511 = vpop.permute.xlu0 %2510
      %2513 = vset.pattern.permute.xlu0 2
      %2514 = vperm.xlu0 %2513, %v364
      %v2515 = vpop.permute.xlu0 %2514
      %2517 = vset.pattern.permute.xlu0 2
      %2518 = vperm.xlu0 %2517, %v365
      %v2519 = vpop.permute.xlu0 %2518
      %2521 = vset.pattern.permute.xlu0 2
      %2522 = vperm.xlu0 %2521, %v366
      %v2523 = vpop.permute.xlu0 %2522
      %2525 = vset.pattern.permute.xlu0 2
      %2526 = vperm.xlu0 %2525, %v367
      %v2527 = vpop.permute.xlu0 %2526
      %2529 = vset.pattern.permute.xlu0 2
      %2530 = vperm.xlu0 %2529, %v368
      %v2531 = vpop.permute.xlu0 %2530
      %2533 = vset.pattern.permute.xlu0 2
      %2534 = vperm.xlu0 %2533, %v369
      %v2535 = vpop.permute.xlu0 %2534
      %2537 = vset.pattern.permute.xlu0 2
      %2538 = vperm.xlu0 %2537, %v370
      %v2539 = vpop.permute.xlu0 %2538
      %2541 = vset.pattern.permute.xlu0 2
      %2542 = vperm.xlu0 %2541, %v371
      %v2543 = vpop.permute.xlu0 %2542
      %2545 = vset.pattern.permute.xlu0 2
      %2546 = vperm.xlu0 %2545, %v372
      %v2547 = vpop.permute.xlu0 %2546
      %2549 = vset.pattern.permute.xlu0 2
      %2550 = vperm.xlu0 %2549, %v373
      %v2551 = vpop.permute.xlu0 %2550
      %2553 = vset.pattern.permute.xlu0 2
      %2554 = vperm.xlu0 %2553, %v374
      %v2555 = vpop.permute.xlu0 %2554
      %2557 = vset.pattern.permute.xlu0 2
      %2558 = vperm.xlu0 %2557, %v375
      %v2559 = vpop.permute.xlu0 %2558
      %2561 = vset.pattern.permute.xlu0 2
      %2562 = vperm.xlu0 %2561, %v376
      %v2563 = vpop.permute.xlu0 %2562
      %2565 = vset.pattern.permute.xlu0 2
      %2566 = vperm.xlu0 %2565, %v377
      %v2567 = vpop.permute.xlu0 %2566
      %2569 = vset.pattern.permute.xlu0 2
      %2570 = vperm.xlu0 %2569, %v378
      %v2571 = vpop.permute.xlu0 %2570
      %v2573 = vlaneseq
      %v2574 = vshrl.u32 %v2573, 7
      %v2575 = vsub.s32 0, %v2574
      %v2576 = vrot.slane %v2060, %v2575
      %v2577 = vmul.f32 %v2063, %v2576
      %v2578 = vmul.f32 %v2067, %v2576
      %v2579 = vmul.f32 %v2071, %v2576
      %v2580 = vmul.f32 %v2075, %v2576
      %v2581 = vmul.f32 %v2079, %v2576
      %v2582 = vmul.f32 %v2083, %v2576
      %v2583 = vmul.f32 %v2087, %v2576
      %v2584 = vmul.f32 %v2091, %v2576
      %v2585 = vmul.f32 %v2095, %v2576
      %v2586 = vmul.f32 %v2099, %v2576
      %v2587 = vmul.f32 %v2103, %v2576
      %v2588 = vmul.f32 %v2107, %v2576
      %v2589 = vmul.f32 %v2111, %v2576
      %v2590 = vmul.f32 %v2115, %v2576
      %v2591 = vmul.f32 %v2119, %v2576
      %v2592 = vmul.f32 %v2123, %v2576
      %v2593 = vmul.f32 %v2127, %v2576
      %v2594 = vmul.f32 %v2131, %v2576
      %v2595 = vmul.f32 %v2135, %v2576
      %v2596 = vmul.f32 %v2139, %v2576
      %v2597 = vmul.f32 %v2143, %v2576
      %v2598 = vmul.f32 %v2147, %v2576
      %v2599 = vmul.f32 %v2151, %v2576
      %v2600 = vmul.f32 %v2155, %v2576
      %v2601 = vmul.f32 %v2159, %v2576
      %v2602 = vmul.f32 %v2163, %v2576
      %v2603 = vmul.f32 %v2167, %v2576
      %v2604 = vmul.f32 %v2171, %v2576
      %v2605 = vmul.f32 %v2175, %v2576
      %v2606 = vmul.f32 %v2179, %v2576
      %v2607 = vmul.f32 %v2183, %v2576
      %v2608 = vmul.f32 %v2187, %v2576
      %v2609 = vmul.f32 %v2191, %v2576
      %v2610 = vmul.f32 %v2195, %v2576
      %v2611 = vmul.f32 %v2199, %v2576
      %v2612 = vmul.f32 %v2203, %v2576
      %v2613 = vmul.f32 %v2207, %v2576
      %v2614 = vmul.f32 %v2211, %v2576
      %v2615 = vmul.f32 %v2215, %v2576
      %v2616 = vmul.f32 %v2219, %v2576
      %v2617 = vmul.f32 %v2223, %v2576
      %v2618 = vmul.f32 %v2227, %v2576
      %v2619 = vmul.f32 %v2231, %v2576
      %v2620 = vmul.f32 %v2235, %v2576
      %v2621 = vmul.f32 %v2239, %v2576
      %v2622 = vmul.f32 %v2243, %v2576
      %v2623 = vmul.f32 %v2247, %v2576
      %v2624 = vmul.f32 %v2251, %v2576
      %v2625 = vmul.f32 %v2255, %v2576
      %v2626 = vmul.f32 %v2259, %v2576
      %v2627 = vmul.f32 %v2263, %v2576
      %v2628 = vmul.f32 %v2267, %v2576
      %v2629 = vmul.f32 %v2271, %v2576
      %v2630 = vmul.f32 %v2275, %v2576
      %v2631 = vmul.f32 %v2279, %v2576
      %v2632 = vmul.f32 %v2283, %v2576
      %v2633 = vmul.f32 %v2287, %v2576
      %v2634 = vmul.f32 %v2291, %v2576
      %v2635 = vmul.f32 %v2295, %v2576
      %v2636 = vmul.f32 %v2299, %v2576
      %v2637 = vmul.f32 %v2303, %v2576
      %v2638 = vmul.f32 %v2307, %v2576
      %v2639 = vmul.f32 %v2311, %v2576
      %v2640 = vmul.f32 %v2315, %v2576
      %v2641 = vmul.f32 %v2319, %v2576
      %v2642 = vmul.f32 %v2323, %v2576
      %v2643 = vmul.f32 %v2327, %v2576
      %v2644 = vmul.f32 %v2331, %v2576
      %v2645 = vmul.f32 %v2335, %v2576
      %v2646 = vmul.f32 %v2339, %v2576
      %v2647 = vmul.f32 %v2343, %v2576
      %v2648 = vmul.f32 %v2347, %v2576
      %v2649 = vmul.f32 %v2351, %v2576
      %v2650 = vmul.f32 %v2355, %v2576
      %v2651 = vmul.f32 %v2359, %v2576
      %v2652 = vmul.f32 %v2363, %v2576
      %v2653 = vmul.f32 %v2367, %v2576
      %v2654 = vmul.f32 %v2371, %v2576
      %v2655 = vmul.f32 %v2375, %v2576
      %v2656 = vmul.f32 %v2379, %v2576
      %v2657 = vmul.f32 %v2383, %v2576
      %v2658 = vmul.f32 %v2387, %v2576
      %v2659 = vmul.f32 %v2391, %v2576
      %v2660 = vmul.f32 %v2395, %v2576
      %v2661 = vmul.f32 %v2399, %v2576
      %v2662 = vmul.f32 %v2403, %v2576
      %v2663 = vmul.f32 %v2407, %v2576
      %v2664 = vmul.f32 %v2411, %v2576
      %v2665 = vmul.f32 %v2415, %v2576
      %v2666 = vmul.f32 %v2419, %v2576
      %v2667 = vmul.f32 %v2423, %v2576
      %v2668 = vmul.f32 %v2427, %v2576
      %v2669 = vmul.f32 %v2431, %v2576
      %v2670 = vmul.f32 %v2435, %v2576
      %v2671 = vmul.f32 %v2439, %v2576
      %v2672 = vmul.f32 %v2443, %v2576
      %v2673 = vmul.f32 %v2447, %v2576
      %v2674 = vmul.f32 %v2451, %v2576
      %v2675 = vmul.f32 %v2455, %v2576
      %v2676 = vmul.f32 %v2459, %v2576
      %v2677 = vmul.f32 %v2463, %v2576
      %v2678 = vmul.f32 %v2467, %v2576
      %v2679 = vmul.f32 %v2471, %v2576
      %v2680 = vmul.f32 %v2475, %v2576
      %v2681 = vmul.f32 %v2479, %v2576
      %v2682 = vmul.f32 %v2483, %v2576
      %v2683 = vmul.f32 %v2487, %v2576
      %v2684 = vmul.f32 %v2491, %v2576
      %v2685 = vmul.f32 %v2495, %v2576
      %v2686 = vmul.f32 %v2499, %v2576
      %v2687 = vmul.f32 %v2503, %v2576
      %v2688 = vmul.f32 %v2507, %v2576
      %v2689 = vmul.f32 %v2511, %v2576
      %v2690 = vmul.f32 %v2515, %v2576
      %v2691 = vmul.f32 %v2519, %v2576
      %v2692 = vmul.f32 %v2523, %v2576
      %v2693 = vmul.f32 %v2527, %v2576
      %v2694 = vmul.f32 %v2531, %v2576
      %v2695 = vmul.f32 %v2535, %v2576
      %v2696 = vmul.f32 %v2539, %v2576
      %v2697 = vmul.f32 %v2543, %v2576
      %v2698 = vmul.f32 %v2547, %v2576
      %v2699 = vmul.f32 %v2551, %v2576
      %v2700 = vmul.f32 %v2555, %v2576
      %v2701 = vmul.f32 %v2559, %v2576
      %v2702 = vmul.f32 %v2563, %v2576
      %v2703 = vmul.f32 %v2567, %v2576
      %v2704 = vmul.f32 %v2571, %v2576
      %v2705 = vadd.f32 %v1932, %v2577
      %v2706 = vadd.f32 %v1933, %v2578
      %v2707 = vadd.f32 %v1934, %v2579
      %v2708 = vadd.f32 %v1935, %v2580
      %v2709 = vadd.f32 %v1936, %v2581
      %v2710 = vadd.f32 %v1937, %v2582
      %v2711 = vadd.f32 %v1938, %v2583
      %v2712 = vadd.f32 %v1939, %v2584
      %v2713 = vadd.f32 %v1940, %v2585
      %v2714 = vadd.f32 %v1941, %v2586
      %v2715 = vadd.f32 %v1942, %v2587
      %v2716 = vadd.f32 %v1943, %v2588
      %v2717 = vadd.f32 %v1944, %v2589
      %v2718 = vadd.f32 %v1945, %v2590
      %v2719 = vadd.f32 %v1946, %v2591
      %v2720 = vadd.f32 %v1947, %v2592
      %v2721 = vadd.f32 %v1948, %v2593
      %v2722 = vadd.f32 %v1949, %v2594
      %v2723 = vadd.f32 %v1950, %v2595
      %v2724 = vadd.f32 %v1951, %v2596
      %v2725 = vadd.f32 %v1952, %v2597
      %v2726 = vadd.f32 %v1953, %v2598
      %v2727 = vadd.f32 %v1954, %v2599
      %v2728 = vadd.f32 %v1955, %v2600
      %v2729 = vadd.f32 %v1956, %v2601
      %v2730 = vadd.f32 %v1957, %v2602
      %v2731 = vadd.f32 %v1958, %v2603
      %v2732 = vadd.f32 %v1959, %v2604
      %v2733 = vadd.f32 %v1960, %v2605
      %v2734 = vadd.f32 %v1961, %v2606
      %v2735 = vadd.f32 %v1962, %v2607
      %v2736 = vadd.f32 %v1963, %v2608
      %v2737 = vadd.f32 %v1964, %v2609
      %v2738 = vadd.f32 %v1965, %v2610
      %v2739 = vadd.f32 %v1966, %v2611
      %v2740 = vadd.f32 %v1967, %v2612
      %v2741 = vadd.f32 %v1968, %v2613
      %v2742 = vadd.f32 %v1969, %v2614
      %v2743 = vadd.f32 %v1970, %v2615
      %v2744 = vadd.f32 %v1971, %v2616
      %v2745 = vadd.f32 %v1972, %v2617
      %v2746 = vadd.f32 %v1973, %v2618
      %v2747 = vadd.f32 %v1974, %v2619
      %v2748 = vadd.f32 %v1975, %v2620
      %v2749 = vadd.f32 %v1976, %v2621
      %v2750 = vadd.f32 %v1977, %v2622
      %v2751 = vadd.f32 %v1978, %v2623
      %v2752 = vadd.f32 %v1979, %v2624
      %v2753 = vadd.f32 %v1980, %v2625
      %v2754 = vadd.f32 %v1981, %v2626
      %v2755 = vadd.f32 %v1982, %v2627
      %v2756 = vadd.f32 %v1983, %v2628
      %v2757 = vadd.f32 %v1984, %v2629
      %v2758 = vadd.f32 %v1985, %v2630
      %v2759 = vadd.f32 %v1986, %v2631
      %v2760 = vadd.f32 %v1987, %v2632
      %v2761 = vadd.f32 %v1988, %v2633
      %v2762 = vadd.f32 %v1989, %v2634
      %v2763 = vadd.f32 %v1990, %v2635
      %v2764 = vadd.f32 %v1991, %v2636
      %v2765 = vadd.f32 %v1992, %v2637
      %v2766 = vadd.f32 %v1993, %v2638
      %v2767 = vadd.f32 %v1994, %v2639
      %v2768 = vadd.f32 %v1995, %v2640
      %v2769 = vadd.f32 %v1996, %v2641
      %v2770 = vadd.f32 %v1997, %v2642
      %v2771 = vadd.f32 %v1998, %v2643
      %v2772 = vadd.f32 %v1999, %v2644
      %v2773 = vadd.f32 %v2000, %v2645
      %v2774 = vadd.f32 %v2001, %v2646
      %v2775 = vadd.f32 %v2002, %v2647
      %v2776 = vadd.f32 %v2003, %v2648
      %v2777 = vadd.f32 %v2004, %v2649
      %v2778 = vadd.f32 %v2005, %v2650
      %v2779 = vadd.f32 %v2006, %v2651
      %v2780 = vadd.f32 %v2007, %v2652
      %v2781 = vadd.f32 %v2008, %v2653
      %v2782 = vadd.f32 %v2009, %v2654
      %v2783 = vadd.f32 %v2010, %v2655
      %v2784 = vadd.f32 %v2011, %v2656
      %v2785 = vadd.f32 %v2012, %v2657
      %v2786 = vadd.f32 %v2013, %v2658
      %v2787 = vadd.f32 %v2014, %v2659
      %v2788 = vadd.f32 %v2015, %v2660
      %v2789 = vadd.f32 %v2016, %v2661
      %v2790 = vadd.f32 %v2017, %v2662
      %v2791 = vadd.f32 %v2018, %v2663
      %v2792 = vadd.f32 %v2019, %v2664
      %v2793 = vadd.f32 %v2020, %v2665
      %v2794 = vadd.f32 %v2021, %v2666
      %v2795 = vadd.f32 %v2022, %v2667
      %v2796 = vadd.f32 %v2023, %v2668
      %v2797 = vadd.f32 %v2024, %v2669
      %v2798 = vadd.f32 %v2025, %v2670
      %v2799 = vadd.f32 %v2026, %v2671
      %v2800 = vadd.f32 %v2027, %v2672
      %v2801 = vadd.f32 %v2028, %v2673
      %v2802 = vadd.f32 %v2029, %v2674
      %v2803 = vadd.f32 %v2030, %v2675
      %v2804 = vadd.f32 %v2031, %v2676
      %v2805 = vadd.f32 %v2032, %v2677
      %v2806 = vadd.f32 %v2033, %v2678
      %v2807 = vadd.f32 %v2034, %v2679
      %v2808 = vadd.f32 %v2035, %v2680
      %v2809 = vadd.f32 %v2036, %v2681
      %v2810 = vadd.f32 %v2037, %v2682
      %v2811 = vadd.f32 %v2038, %v2683
      %v2812 = vadd.f32 %v2039, %v2684
      %v2813 = vadd.f32 %v2040, %v2685
      %v2814 = vadd.f32 %v2041, %v2686
      %v2815 = vadd.f32 %v2042, %v2687
      %v2816 = vadd.f32 %v2043, %v2688
      %v2817 = vadd.f32 %v2044, %v2689
      %v2818 = vadd.f32 %v2045, %v2690
      %v2819 = vadd.f32 %v2046, %v2691
      %v2820 = vadd.f32 %v2047, %v2692
      %v2821 = vadd.f32 %v2048, %v2693
      %v2822 = vadd.f32 %v2049, %v2694
      %v2823 = vadd.f32 %v2050, %v2695
      %v2824 = vadd.f32 %v2051, %v2696
      %v2825 = vadd.f32 %v2052, %v2697
      %v2826 = vadd.f32 %v2053, %v2698
      %v2827 = vadd.f32 %v2054, %v2699
      %v2828 = vadd.f32 %v2055, %v2700
      %v2829 = vadd.f32 %v2056, %v2701
      %v2830 = vadd.f32 %v2057, %v2702
      %v2831 = vadd.f32 %v2058, %v2703
      %v2832 = vadd.f32 %v2059, %v2704
      %v2833 = vld [vmem:[%s218 + $0x3] sm:$0x1]
      %2834 = vset.pattern.permute.xlu0 3
      %2835 = vperm.xlu0 %2834, %v251
      %v2836 = vpop.permute.xlu0 %2835
      %2838 = vset.pattern.permute.xlu0 3
      %2839 = vperm.xlu0 %2838, %v252
      %v2840 = vpop.permute.xlu0 %2839
      %2842 = vset.pattern.permute.xlu0 3
      %2843 = vperm.xlu0 %2842, %v253
      %v2844 = vpop.permute.xlu0 %2843
      %2846 = vset.pattern.permute.xlu0 3
      %2847 = vperm.xlu0 %2846, %v254
      %v2848 = vpop.permute.xlu0 %2847
      %2850 = vset.pattern.permute.xlu0 3
      %2851 = vperm.xlu0 %2850, %v255
      %v2852 = vpop.permute.xlu0 %2851
      %2854 = vset.pattern.permute.xlu0 3
      %2855 = vperm.xlu0 %2854, %v256
      %v2856 = vpop.permute.xlu0 %2855
      %2858 = vset.pattern.permute.xlu0 3
      %2859 = vperm.xlu0 %2858, %v257
      %v2860 = vpop.permute.xlu0 %2859
      %2862 = vset.pattern.permute.xlu0 3
      %2863 = vperm.xlu0 %2862, %v258
      %v2864 = vpop.permute.xlu0 %2863
      %2866 = vset.pattern.permute.xlu0 3
      %2867 = vperm.xlu0 %2866, %v259
      %v2868 = vpop.permute.xlu0 %2867
      %2870 = vset.pattern.permute.xlu0 3
      %2871 = vperm.xlu0 %2870, %v260
      %v2872 = vpop.permute.xlu0 %2871
      %2874 = vset.pattern.permute.xlu0 3
      %2875 = vperm.xlu0 %2874, %v261
      %v2876 = vpop.permute.xlu0 %2875
      %2878 = vset.pattern.permute.xlu0 3
      %2879 = vperm.xlu0 %2878, %v262
      %v2880 = vpop.permute.xlu0 %2879
      %2882 = vset.pattern.permute.xlu0 3
      %2883 = vperm.xlu0 %2882, %v263
      %v2884 = vpop.permute.xlu0 %2883
      %2886 = vset.pattern.permute.xlu0 3
      %2887 = vperm.xlu0 %2886, %v264
      %v2888 = vpop.permute.xlu0 %2887
      %2890 = vset.pattern.permute.xlu0 3
      %2891 = vperm.xlu0 %2890, %v265
      %v2892 = vpop.permute.xlu0 %2891
      %2894 = vset.pattern.permute.xlu0 3
      %2895 = vperm.xlu0 %2894, %v266
      %v2896 = vpop.permute.xlu0 %2895
      %2898 = vset.pattern.permute.xlu0 3
      %2899 = vperm.xlu0 %2898, %v267
      %v2900 = vpop.permute.xlu0 %2899
      %2902 = vset.pattern.permute.xlu0 3
      %2903 = vperm.xlu0 %2902, %v268
      %v2904 = vpop.permute.xlu0 %2903
      %2906 = vset.pattern.permute.xlu0 3
      %2907 = vperm.xlu0 %2906, %v269
      %v2908 = vpop.permute.xlu0 %2907
      %2910 = vset.pattern.permute.xlu0 3
      %2911 = vperm.xlu0 %2910, %v270
      %v2912 = vpop.permute.xlu0 %2911
      %2914 = vset.pattern.permute.xlu0 3
      %2915 = vperm.xlu0 %2914, %v271
      %v2916 = vpop.permute.xlu0 %2915
      %2918 = vset.pattern.permute.xlu0 3
      %2919 = vperm.xlu0 %2918, %v272
      %v2920 = vpop.permute.xlu0 %2919
      %2922 = vset.pattern.permute.xlu0 3
      %2923 = vperm.xlu0 %2922, %v273
      %v2924 = vpop.permute.xlu0 %2923
      %2926 = vset.pattern.permute.xlu0 3
      %2927 = vperm.xlu0 %2926, %v274
      %v2928 = vpop.permute.xlu0 %2927
      %2930 = vset.pattern.permute.xlu0 3
      %2931 = vperm.xlu0 %2930, %v275
      %v2932 = vpop.permute.xlu0 %2931
      %2934 = vset.pattern.permute.xlu0 3
      %2935 = vperm.xlu0 %2934, %v276
      %v2936 = vpop.permute.xlu0 %2935
      %2938 = vset.pattern.permute.xlu0 3
      %2939 = vperm.xlu0 %2938, %v277
      %v2940 = vpop.permute.xlu0 %2939
      %2942 = vset.pattern.permute.xlu0 3
      %2943 = vperm.xlu0 %2942, %v278
      %v2944 = vpop.permute.xlu0 %2943
      %2946 = vset.pattern.permute.xlu0 3
      %2947 = vperm.xlu0 %2946, %v279
      %v2948 = vpop.permute.xlu0 %2947
      %2950 = vset.pattern.permute.xlu0 3
      %2951 = vperm.xlu0 %2950, %v280
      %v2952 = vpop.permute.xlu0 %2951
      %2954 = vset.pattern.permute.xlu0 3
      %2955 = vperm.xlu0 %2954, %v281
      %v2956 = vpop.permute.xlu0 %2955
      %2958 = vset.pattern.permute.xlu0 3
      %2959 = vperm.xlu0 %2958, %v282
      %v2960 = vpop.permute.xlu0 %2959
      %2962 = vset.pattern.permute.xlu0 3
      %2963 = vperm.xlu0 %2962, %v283
      %v2964 = vpop.permute.xlu0 %2963
      %2966 = vset.pattern.permute.xlu0 3
      %2967 = vperm.xlu0 %2966, %v284
      %v2968 = vpop.permute.xlu0 %2967
      %2970 = vset.pattern.permute.xlu0 3
      %2971 = vperm.xlu0 %2970, %v285
      %v2972 = vpop.permute.xlu0 %2971
      %2974 = vset.pattern.permute.xlu0 3
      %2975 = vperm.xlu0 %2974, %v286
      %v2976 = vpop.permute.xlu0 %2975
      %2978 = vset.pattern.permute.xlu0 3
      %2979 = vperm.xlu0 %2978, %v287
      %v2980 = vpop.permute.xlu0 %2979
      %2982 = vset.pattern.permute.xlu0 3
      %2983 = vperm.xlu0 %2982, %v288
      %v2984 = vpop.permute.xlu0 %2983
      %2986 = vset.pattern.permute.xlu0 3
      %2987 = vperm.xlu0 %2986, %v289
      %v2988 = vpop.permute.xlu0 %2987
      %2990 = vset.pattern.permute.xlu0 3
      %2991 = vperm.xlu0 %2990, %v290
      %v2992 = vpop.permute.xlu0 %2991
      %2994 = vset.pattern.permute.xlu0 3
      %2995 = vperm.xlu0 %2994, %v291
      %v2996 = vpop.permute.xlu0 %2995
      %2998 = vset.pattern.permute.xlu0 3
      %2999 = vperm.xlu0 %2998, %v292
      %v3000 = vpop.permute.xlu0 %2999
      %3002 = vset.pattern.permute.xlu0 3
      %3003 = vperm.xlu0 %3002, %v293
      %v3004 = vpop.permute.xlu0 %3003
      %3006 = vset.pattern.permute.xlu0 3
      %3007 = vperm.xlu0 %3006, %v294
      %v3008 = vpop.permute.xlu0 %3007
      %3010 = vset.pattern.permute.xlu0 3
      %3011 = vperm.xlu0 %3010, %v295
      %v3012 = vpop.permute.xlu0 %3011
      %3014 = vset.pattern.permute.xlu0 3
      %3015 = vperm.xlu0 %3014, %v296
      %v3016 = vpop.permute.xlu0 %3015
      %3018 = vset.pattern.permute.xlu0 3
      %3019 = vperm.xlu0 %3018, %v297
      %v3020 = vpop.permute.xlu0 %3019
      %3022 = vset.pattern.permute.xlu0 3
      %3023 = vperm.xlu0 %3022, %v298
      %v3024 = vpop.permute.xlu0 %3023
      %3026 = vset.pattern.permute.xlu0 3
      %3027 = vperm.xlu0 %3026, %v299
      %v3028 = vpop.permute.xlu0 %3027
      %3030 = vset.pattern.permute.xlu0 3
      %3031 = vperm.xlu0 %3030, %v300
      %v3032 = vpop.permute.xlu0 %3031
      %3034 = vset.pattern.permute.xlu0 3
      %3035 = vperm.xlu0 %3034, %v301
      %v3036 = vpop.permute.xlu0 %3035
      %3038 = vset.pattern.permute.xlu0 3
      %3039 = vperm.xlu0 %3038, %v302
      %v3040 = vpop.permute.xlu0 %3039
      %3042 = vset.pattern.permute.xlu0 3
      %3043 = vperm.xlu0 %3042, %v303
      %v3044 = vpop.permute.xlu0 %3043
      %3046 = vset.pattern.permute.xlu0 3
      %3047 = vperm.xlu0 %3046, %v304
      %v3048 = vpop.permute.xlu0 %3047
      %3050 = vset.pattern.permute.xlu0 3
      %3051 = vperm.xlu0 %3050, %v305
      %v3052 = vpop.permute.xlu0 %3051
      %3054 = vset.pattern.permute.xlu0 3
      %3055 = vperm.xlu0 %3054, %v306
      %v3056 = vpop.permute.xlu0 %3055
      %3058 = vset.pattern.permute.xlu0 3
      %3059 = vperm.xlu0 %3058, %v307
      %v3060 = vpop.permute.xlu0 %3059
      %3062 = vset.pattern.permute.xlu0 3
      %3063 = vperm.xlu0 %3062, %v308
      %v3064 = vpop.permute.xlu0 %3063
      %3066 = vset.pattern.permute.xlu0 3
      %3067 = vperm.xlu0 %3066, %v309
      %v3068 = vpop.permute.xlu0 %3067
      %3070 = vset.pattern.permute.xlu0 3
      %3071 = vperm.xlu0 %3070, %v310
      %v3072 = vpop.permute.xlu0 %3071
      %3074 = vset.pattern.permute.xlu0 3
      %3075 = vperm.xlu0 %3074, %v311
      %v3076 = vpop.permute.xlu0 %3075
      %3078 = vset.pattern.permute.xlu0 3
      %3079 = vperm.xlu0 %3078, %v312
      %v3080 = vpop.permute.xlu0 %3079
      %3082 = vset.pattern.permute.xlu0 3
      %3083 = vperm.xlu0 %3082, %v313
      %v3084 = vpop.permute.xlu0 %3083
      %3086 = vset.pattern.permute.xlu0 3
      %3087 = vperm.xlu0 %3086, %v314
      %v3088 = vpop.permute.xlu0 %3087
      %3090 = vset.pattern.permute.xlu0 3
      %3091 = vperm.xlu0 %3090, %v315
      %v3092 = vpop.permute.xlu0 %3091
      %3094 = vset.pattern.permute.xlu0 3
      %3095 = vperm.xlu0 %3094, %v316
      %v3096 = vpop.permute.xlu0 %3095
      %3098 = vset.pattern.permute.xlu0 3
      %3099 = vperm.xlu0 %3098, %v317
      %v3100 = vpop.permute.xlu0 %3099
      %3102 = vset.pattern.permute.xlu0 3
      %3103 = vperm.xlu0 %3102, %v318
      %v3104 = vpop.permute.xlu0 %3103
      %3106 = vset.pattern.permute.xlu0 3
      %3107 = vperm.xlu0 %3106, %v319
      %v3108 = vpop.permute.xlu0 %3107
      %3110 = vset.pattern.permute.xlu0 3
      %3111 = vperm.xlu0 %3110, %v320
      %v3112 = vpop.permute.xlu0 %3111
      %3114 = vset.pattern.permute.xlu0 3
      %3115 = vperm.xlu0 %3114, %v321
      %v3116 = vpop.permute.xlu0 %3115
      %3118 = vset.pattern.permute.xlu0 3
      %3119 = vperm.xlu0 %3118, %v322
      %v3120 = vpop.permute.xlu0 %3119
      %3122 = vset.pattern.permute.xlu0 3
      %3123 = vperm.xlu0 %3122, %v323
      %v3124 = vpop.permute.xlu0 %3123
      %3126 = vset.pattern.permute.xlu0 3
      %3127 = vperm.xlu0 %3126, %v324
      %v3128 = vpop.permute.xlu0 %3127
      %3130 = vset.pattern.permute.xlu0 3
      %3131 = vperm.xlu0 %3130, %v325
      %v3132 = vpop.permute.xlu0 %3131
      %3134 = vset.pattern.permute.xlu0 3
      %3135 = vperm.xlu0 %3134, %v326
      %v3136 = vpop.permute.xlu0 %3135
      %3138 = vset.pattern.permute.xlu0 3
      %3139 = vperm.xlu0 %3138, %v327
      %v3140 = vpop.permute.xlu0 %3139
      %3142 = vset.pattern.permute.xlu0 3
      %3143 = vperm.xlu0 %3142, %v328
      %v3144 = vpop.permute.xlu0 %3143
      %3146 = vset.pattern.permute.xlu0 3
      %3147 = vperm.xlu0 %3146, %v329
      %v3148 = vpop.permute.xlu0 %3147
      %3150 = vset.pattern.permute.xlu0 3
      %3151 = vperm.xlu0 %3150, %v330
      %v3152 = vpop.permute.xlu0 %3151
      %3154 = vset.pattern.permute.xlu0 3
      %3155 = vperm.xlu0 %3154, %v331
      %v3156 = vpop.permute.xlu0 %3155
      %3158 = vset.pattern.permute.xlu0 3
      %3159 = vperm.xlu0 %3158, %v332
      %v3160 = vpop.permute.xlu0 %3159
      %3162 = vset.pattern.permute.xlu0 3
      %3163 = vperm.xlu0 %3162, %v333
      %v3164 = vpop.permute.xlu0 %3163
      %3166 = vset.pattern.permute.xlu0 3
      %3167 = vperm.xlu0 %3166, %v334
      %v3168 = vpop.permute.xlu0 %3167
      %3170 = vset.pattern.permute.xlu0 3
      %3171 = vperm.xlu0 %3170, %v335
      %v3172 = vpop.permute.xlu0 %3171
      %3174 = vset.pattern.permute.xlu0 3
      %3175 = vperm.xlu0 %3174, %v336
      %v3176 = vpop.permute.xlu0 %3175
      %3178 = vset.pattern.permute.xlu0 3
      %3179 = vperm.xlu0 %3178, %v337
      %v3180 = vpop.permute.xlu0 %3179
      %3182 = vset.pattern.permute.xlu0 3
      %3183 = vperm.xlu0 %3182, %v338
      %v3184 = vpop.permute.xlu0 %3183
      %3186 = vset.pattern.permute.xlu0 3
      %3187 = vperm.xlu0 %3186, %v339
      %v3188 = vpop.permute.xlu0 %3187
      %3190 = vset.pattern.permute.xlu0 3
      %3191 = vperm.xlu0 %3190, %v340
      %v3192 = vpop.permute.xlu0 %3191
      %3194 = vset.pattern.permute.xlu0 3
      %3195 = vperm.xlu0 %3194, %v341
      %v3196 = vpop.permute.xlu0 %3195
      %3198 = vset.pattern.permute.xlu0 3
      %3199 = vperm.xlu0 %3198, %v342
      %v3200 = vpop.permute.xlu0 %3199
      %3202 = vset.pattern.permute.xlu0 3
      %3203 = vperm.xlu0 %3202, %v343
      %v3204 = vpop.permute.xlu0 %3203
      %3206 = vset.pattern.permute.xlu0 3
      %3207 = vperm.xlu0 %3206, %v344
      %v3208 = vpop.permute.xlu0 %3207
      %3210 = vset.pattern.permute.xlu0 3
      %3211 = vperm.xlu0 %3210, %v345
      %v3212 = vpop.permute.xlu0 %3211
      %3214 = vset.pattern.permute.xlu0 3
      %3215 = vperm.xlu0 %3214, %v346
      %v3216 = vpop.permute.xlu0 %3215
      %3218 = vset.pattern.permute.xlu0 3
      %3219 = vperm.xlu0 %3218, %v347
      %v3220 = vpop.permute.xlu0 %3219
      %3222 = vset.pattern.permute.xlu0 3
      %3223 = vperm.xlu0 %3222, %v348
      %v3224 = vpop.permute.xlu0 %3223
      %3226 = vset.pattern.permute.xlu0 3
      %3227 = vperm.xlu0 %3226, %v349
      %v3228 = vpop.permute.xlu0 %3227
      %3230 = vset.pattern.permute.xlu0 3
      %3231 = vperm.xlu0 %3230, %v350
      %v3232 = vpop.permute.xlu0 %3231
      %3234 = vset.pattern.permute.xlu0 3
      %3235 = vperm.xlu0 %3234, %v351
      %v3236 = vpop.permute.xlu0 %3235
      %3238 = vset.pattern.permute.xlu0 3
      %3239 = vperm.xlu0 %3238, %v352
      %v3240 = vpop.permute.xlu0 %3239
      %3242 = vset.pattern.permute.xlu0 3
      %3243 = vperm.xlu0 %3242, %v353
      %v3244 = vpop.permute.xlu0 %3243
      %3246 = vset.pattern.permute.xlu0 3
      %3247 = vperm.xlu0 %3246, %v354
      %v3248 = vpop.permute.xlu0 %3247
      %3250 = vset.pattern.permute.xlu0 3
      %3251 = vperm.xlu0 %3250, %v355
      %v3252 = vpop.permute.xlu0 %3251
      %3254 = vset.pattern.permute.xlu0 3
      %3255 = vperm.xlu0 %3254, %v356
      %v3256 = vpop.permute.xlu0 %3255
      %3258 = vset.pattern.permute.xlu0 3
      %3259 = vperm.xlu0 %3258, %v357
      %v3260 = vpop.permute.xlu0 %3259
      %3262 = vset.pattern.permute.xlu0 3
      %3263 = vperm.xlu0 %3262, %v358
      %v3264 = vpop.permute.xlu0 %3263
      %3266 = vset.pattern.permute.xlu0 3
      %3267 = vperm.xlu0 %3266, %v359
      %v3268 = vpop.permute.xlu0 %3267
      %3270 = vset.pattern.permute.xlu0 3
      %3271 = vperm.xlu0 %3270, %v360
      %v3272 = vpop.permute.xlu0 %3271
      %3274 = vset.pattern.permute.xlu0 3
      %3275 = vperm.xlu0 %3274, %v361
      %v3276 = vpop.permute.xlu0 %3275
      %3278 = vset.pattern.permute.xlu0 3
      %3279 = vperm.xlu0 %3278, %v362
      %v3280 = vpop.permute.xlu0 %3279
      %3282 = vset.pattern.permute.xlu0 3
      %3283 = vperm.xlu0 %3282, %v363
      %v3284 = vpop.permute.xlu0 %3283
      %3286 = vset.pattern.permute.xlu0 3
      %3287 = vperm.xlu0 %3286, %v364
      %v3288 = vpop.permute.xlu0 %3287
      %3290 = vset.pattern.permute.xlu0 3
      %3291 = vperm.xlu0 %3290, %v365
      %v3292 = vpop.permute.xlu0 %3291
      %3294 = vset.pattern.permute.xlu0 3
      %3295 = vperm.xlu0 %3294, %v366
      %v3296 = vpop.permute.xlu0 %3295
      %3298 = vset.pattern.permute.xlu0 3
      %3299 = vperm.xlu0 %3298, %v367
      %v3300 = vpop.permute.xlu0 %3299
      %3302 = vset.pattern.permute.xlu0 3
      %3303 = vperm.xlu0 %3302, %v368
      %v3304 = vpop.permute.xlu0 %3303
      %3306 = vset.pattern.permute.xlu0 3
      %3307 = vperm.xlu0 %3306, %v369
      %v3308 = vpop.permute.xlu0 %3307
      %3310 = vset.pattern.permute.xlu0 3
      %3311 = vperm.xlu0 %3310, %v370
      %v3312 = vpop.permute.xlu0 %3311
      %3314 = vset.pattern.permute.xlu0 3
      %3315 = vperm.xlu0 %3314, %v371
      %v3316 = vpop.permute.xlu0 %3315
      %3318 = vset.pattern.permute.xlu0 3
      %3319 = vperm.xlu0 %3318, %v372
      %v3320 = vpop.permute.xlu0 %3319
      %3322 = vset.pattern.permute.xlu0 3
      %3323 = vperm.xlu0 %3322, %v373
      %v3324 = vpop.permute.xlu0 %3323
      %3326 = vset.pattern.permute.xlu0 3
      %3327 = vperm.xlu0 %3326, %v374
      %v3328 = vpop.permute.xlu0 %3327
      %3330 = vset.pattern.permute.xlu0 3
      %3331 = vperm.xlu0 %3330, %v375
      %v3332 = vpop.permute.xlu0 %3331
      %3334 = vset.pattern.permute.xlu0 3
      %3335 = vperm.xlu0 %3334, %v376
      %v3336 = vpop.permute.xlu0 %3335
      %3338 = vset.pattern.permute.xlu0 3
      %3339 = vperm.xlu0 %3338, %v377
      %v3340 = vpop.permute.xlu0 %3339
      %3342 = vset.pattern.permute.xlu0 3
      %3343 = vperm.xlu0 %3342, %v378
      %v3344 = vpop.permute.xlu0 %3343
      %v3346 = vlaneseq
      %v3347 = vshrl.u32 %v3346, 7
      %v3348 = vsub.s32 0, %v3347
      %v3349 = vrot.slane %v2833, %v3348
      %v3350 = vmul.f32 %v2836, %v3349
      %v3351 = vmul.f32 %v2840, %v3349
      %v3352 = vmul.f32 %v2844, %v3349
      %v3353 = vmul.f32 %v2848, %v3349
      %v3354 = vmul.f32 %v2852, %v3349
      %v3355 = vmul.f32 %v2856, %v3349
      %v3356 = vmul.f32 %v2860, %v3349
      %v3357 = vmul.f32 %v2864, %v3349
      %v3358 = vmul.f32 %v2868, %v3349
      %v3359 = vmul.f32 %v2872, %v3349
      %v3360 = vmul.f32 %v2876, %v3349
      %v3361 = vmul.f32 %v2880, %v3349
      %v3362 = vmul.f32 %v2884, %v3349
      %v3363 = vmul.f32 %v2888, %v3349
      %v3364 = vmul.f32 %v2892, %v3349
      %v3365 = vmul.f32 %v2896, %v3349
      %v3366 = vmul.f32 %v2900, %v3349
      %v3367 = vmul.f32 %v2904, %v3349
      %v3368 = vmul.f32 %v2908, %v3349
      %v3369 = vmul.f32 %v2912, %v3349
      %v3370 = vmul.f32 %v2916, %v3349
      %v3371 = vmul.f32 %v2920, %v3349
      %v3372 = vmul.f32 %v2924, %v3349
      %v3373 = vmul.f32 %v2928, %v3349
      %v3374 = vmul.f32 %v2932, %v3349
      %v3375 = vmul.f32 %v2936, %v3349
      %v3376 = vmul.f32 %v2940, %v3349
      %v3377 = vmul.f32 %v2944, %v3349
      %v3378 = vmul.f32 %v2948, %v3349
      %v3379 = vmul.f32 %v2952, %v3349
      %v3380 = vmul.f32 %v2956, %v3349
      %v3381 = vmul.f32 %v2960, %v3349
      %v3382 = vmul.f32 %v2964, %v3349
      %v3383 = vmul.f32 %v2968, %v3349
      %v3384 = vmul.f32 %v2972, %v3349
      %v3385 = vmul.f32 %v2976, %v3349
      %v3386 = vmul.f32 %v2980, %v3349
      %v3387 = vmul.f32 %v2984, %v3349
      %v3388 = vmul.f32 %v2988, %v3349
      %v3389 = vmul.f32 %v2992, %v3349
      %v3390 = vmul.f32 %v2996, %v3349
      %v3391 = vmul.f32 %v3000, %v3349
      %v3392 = vmul.f32 %v3004, %v3349
      %v3393 = vmul.f32 %v3008, %v3349
      %v3394 = vmul.f32 %v3012, %v3349
      %v3395 = vmul.f32 %v3016, %v3349
      %v3396 = vmul.f32 %v3020, %v3349
      %v3397 = vmul.f32 %v3024, %v3349
      %v3398 = vmul.f32 %v3028, %v3349
      %v3399 = vmul.f32 %v3032, %v3349
      %v3400 = vmul.f32 %v3036, %v3349
      %v3401 = vmul.f32 %v3040, %v3349
      %v3402 = vmul.f32 %v3044, %v3349
      %v3403 = vmul.f32 %v3048, %v3349
      %v3404 = vmul.f32 %v3052, %v3349
      %v3405 = vmul.f32 %v3056, %v3349
      %v3406 = vmul.f32 %v3060, %v3349
      %v3407 = vmul.f32 %v3064, %v3349
      %v3408 = vmul.f32 %v3068, %v3349
      %v3409 = vmul.f32 %v3072, %v3349
      %v3410 = vmul.f32 %v3076, %v3349
      %v3411 = vmul.f32 %v3080, %v3349
      %v3412 = vmul.f32 %v3084, %v3349
      %v3413 = vmul.f32 %v3088, %v3349
      %v3414 = vmul.f32 %v3092, %v3349
      %v3415 = vmul.f32 %v3096, %v3349
      %v3416 = vmul.f32 %v3100, %v3349
      %v3417 = vmul.f32 %v3104, %v3349
      %v3418 = vmul.f32 %v3108, %v3349
      %v3419 = vmul.f32 %v3112, %v3349
      %v3420 = vmul.f32 %v3116, %v3349
      %v3421 = vmul.f32 %v3120, %v3349
      %v3422 = vmul.f32 %v3124, %v3349
      %v3423 = vmul.f32 %v3128, %v3349
      %v3424 = vmul.f32 %v3132, %v3349
      %v3425 = vmul.f32 %v3136, %v3349
      %v3426 = vmul.f32 %v3140, %v3349
      %v3427 = vmul.f32 %v3144, %v3349
      %v3428 = vmul.f32 %v3148, %v3349
      %v3429 = vmul.f32 %v3152, %v3349
      %v3430 = vmul.f32 %v3156, %v3349
      %v3431 = vmul.f32 %v3160, %v3349
      %v3432 = vmul.f32 %v3164, %v3349
      %v3433 = vmul.f32 %v3168, %v3349
      %v3434 = vmul.f32 %v3172, %v3349
      %v3435 = vmul.f32 %v3176, %v3349
      %v3436 = vmul.f32 %v3180, %v3349
      %v3437 = vmul.f32 %v3184, %v3349
      %v3438 = vmul.f32 %v3188, %v3349
      %v3439 = vmul.f32 %v3192, %v3349
      %v3440 = vmul.f32 %v3196, %v3349
      %v3441 = vmul.f32 %v3200, %v3349
      %v3442 = vmul.f32 %v3204, %v3349
      %v3443 = vmul.f32 %v3208, %v3349
      %v3444 = vmul.f32 %v3212, %v3349
      %v3445 = vmul.f32 %v3216, %v3349
      %v3446 = vmul.f32 %v3220, %v3349
      %v3447 = vmul.f32 %v3224, %v3349
      %v3448 = vmul.f32 %v3228, %v3349
      %v3449 = vmul.f32 %v3232, %v3349
      %v3450 = vmul.f32 %v3236, %v3349
      %v3451 = vmul.f32 %v3240, %v3349
      %v3452 = vmul.f32 %v3244, %v3349
      %v3453 = vmul.f32 %v3248, %v3349
      %v3454 = vmul.f32 %v3252, %v3349
      %v3455 = vmul.f32 %v3256, %v3349
      %v3456 = vmul.f32 %v3260, %v3349
      %v3457 = vmul.f32 %v3264, %v3349
      %v3458 = vmul.f32 %v3268, %v3349
      %v3459 = vmul.f32 %v3272, %v3349
      %v3460 = vmul.f32 %v3276, %v3349
      %v3461 = vmul.f32 %v3280, %v3349
      %v3462 = vmul.f32 %v3284, %v3349
      %v3463 = vmul.f32 %v3288, %v3349
      %v3464 = vmul.f32 %v3292, %v3349
      %v3465 = vmul.f32 %v3296, %v3349
      %v3466 = vmul.f32 %v3300, %v3349
      %v3467 = vmul.f32 %v3304, %v3349
      %v3468 = vmul.f32 %v3308, %v3349
      %v3469 = vmul.f32 %v3312, %v3349
      %v3470 = vmul.f32 %v3316, %v3349
      %v3471 = vmul.f32 %v3320, %v3349
      %v3472 = vmul.f32 %v3324, %v3349
      %v3473 = vmul.f32 %v3328, %v3349
      %v3474 = vmul.f32 %v3332, %v3349
      %v3475 = vmul.f32 %v3336, %v3349
      %v3476 = vmul.f32 %v3340, %v3349
      %v3477 = vmul.f32 %v3344, %v3349
      %v3478 = vadd.f32 %v2705, %v3350
      %v3479 = vadd.f32 %v2706, %v3351
      %v3480 = vadd.f32 %v2707, %v3352
      %v3481 = vadd.f32 %v2708, %v3353
      %v3482 = vadd.f32 %v2709, %v3354
      %v3483 = vadd.f32 %v2710, %v3355
      %v3484 = vadd.f32 %v2711, %v3356
      %v3485 = vadd.f32 %v2712, %v3357
      %v3486 = vadd.f32 %v2713, %v3358
      %v3487 = vadd.f32 %v2714, %v3359
      %v3488 = vadd.f32 %v2715, %v3360
      %v3489 = vadd.f32 %v2716, %v3361
      %v3490 = vadd.f32 %v2717, %v3362
      %v3491 = vadd.f32 %v2718, %v3363
      %v3492 = vadd.f32 %v2719, %v3364
      %v3493 = vadd.f32 %v2720, %v3365
      %v3494 = vadd.f32 %v2721, %v3366
      %v3495 = vadd.f32 %v2722, %v3367
      %v3496 = vadd.f32 %v2723, %v3368
      %v3497 = vadd.f32 %v2724, %v3369
      %v3498 = vadd.f32 %v2725, %v3370
      %v3499 = vadd.f32 %v2726, %v3371
      %v3500 = vadd.f32 %v2727, %v3372
      %v3501 = vadd.f32 %v2728, %v3373
      %v3502 = vadd.f32 %v2729, %v3374
      %v3503 = vadd.f32 %v2730, %v3375
      %v3504 = vadd.f32 %v2731, %v3376
      %v3505 = vadd.f32 %v2732, %v3377
      %v3506 = vadd.f32 %v2733, %v3378
      %v3507 = vadd.f32 %v2734, %v3379
      %v3508 = vadd.f32 %v2735, %v3380
      %v3509 = vadd.f32 %v2736, %v3381
      %v3510 = vadd.f32 %v2737, %v3382
      %v3511 = vadd.f32 %v2738, %v3383
      %v3512 = vadd.f32 %v2739, %v3384
      %v3513 = vadd.f32 %v2740, %v3385
      %v3514 = vadd.f32 %v2741, %v3386
      %v3515 = vadd.f32 %v2742, %v3387
      %v3516 = vadd.f32 %v2743, %v3388
      %v3517 = vadd.f32 %v2744, %v3389
      %v3518 = vadd.f32 %v2745, %v3390
      %v3519 = vadd.f32 %v2746, %v3391
      %v3520 = vadd.f32 %v2747, %v3392
      %v3521 = vadd.f32 %v2748, %v3393
      %v3522 = vadd.f32 %v2749, %v3394
      %v3523 = vadd.f32 %v2750, %v3395
      %v3524 = vadd.f32 %v2751, %v3396
      %v3525 = vadd.f32 %v2752, %v3397
      %v3526 = vadd.f32 %v2753, %v3398
      %v3527 = vadd.f32 %v2754, %v3399
      %v3528 = vadd.f32 %v2755, %v3400
      %v3529 = vadd.f32 %v2756, %v3401
      %v3530 = vadd.f32 %v2757, %v3402
      %v3531 = vadd.f32 %v2758, %v3403
      %v3532 = vadd.f32 %v2759, %v3404
      %v3533 = vadd.f32 %v2760, %v3405
      %v3534 = vadd.f32 %v2761, %v3406
      %v3535 = vadd.f32 %v2762, %v3407
      %v3536 = vadd.f32 %v2763, %v3408
      %v3537 = vadd.f32 %v2764, %v3409
      %v3538 = vadd.f32 %v2765, %v3410
      %v3539 = vadd.f32 %v2766, %v3411
      %v3540 = vadd.f32 %v2767, %v3412
      %v3541 = vadd.f32 %v2768, %v3413
      %v3542 = vadd.f32 %v2769, %v3414
      %v3543 = vadd.f32 %v2770, %v3415
      %v3544 = vadd.f32 %v2771, %v3416
      %v3545 = vadd.f32 %v2772, %v3417
      %v3546 = vadd.f32 %v2773, %v3418
      %v3547 = vadd.f32 %v2774, %v3419
      %v3548 = vadd.f32 %v2775, %v3420
      %v3549 = vadd.f32 %v2776, %v3421
      %v3550 = vadd.f32 %v2777, %v3422
      %v3551 = vadd.f32 %v2778, %v3423
      %v3552 = vadd.f32 %v2779, %v3424
      %v3553 = vadd.f32 %v2780, %v3425
      %v3554 = vadd.f32 %v2781, %v3426
      %v3555 = vadd.f32 %v2782, %v3427
      %v3556 = vadd.f32 %v2783, %v3428
      %v3557 = vadd.f32 %v2784, %v3429
      %v3558 = vadd.f32 %v2785, %v3430
      %v3559 = vadd.f32 %v2786, %v3431
      %v3560 = vadd.f32 %v2787, %v3432
      %v3561 = vadd.f32 %v2788, %v3433
      %v3562 = vadd.f32 %v2789, %v3434
      %v3563 = vadd.f32 %v2790, %v3435
      %v3564 = vadd.f32 %v2791, %v3436
      %v3565 = vadd.f32 %v2792, %v3437
      %v3566 = vadd.f32 %v2793, %v3438
      %v3567 = vadd.f32 %v2794, %v3439
      %v3568 = vadd.f32 %v2795, %v3440
      %v3569 = vadd.f32 %v2796, %v3441
      %v3570 = vadd.f32 %v2797, %v3442
      %v3571 = vadd.f32 %v2798, %v3443
      %v3572 = vadd.f32 %v2799, %v3444
      %v3573 = vadd.f32 %v2800, %v3445
      %v3574 = vadd.f32 %v2801, %v3446
      %v3575 = vadd.f32 %v2802, %v3447
      %v3576 = vadd.f32 %v2803, %v3448
      %v3577 = vadd.f32 %v2804, %v3449
      %v3578 = vadd.f32 %v2805, %v3450
      %v3579 = vadd.f32 %v2806, %v3451
      %v3580 = vadd.f32 %v2807, %v3452
      %v3581 = vadd.f32 %v2808, %v3453
      %v3582 = vadd.f32 %v2809, %v3454
      %v3583 = vadd.f32 %v2810, %v3455
      %v3584 = vadd.f32 %v2811, %v3456
      %v3585 = vadd.f32 %v2812, %v3457
      %v3586 = vadd.f32 %v2813, %v3458
      %v3587 = vadd.f32 %v2814, %v3459
      %v3588 = vadd.f32 %v2815, %v3460
      %v3589 = vadd.f32 %v2816, %v3461
      %v3590 = vadd.f32 %v2817, %v3462
      %v3591 = vadd.f32 %v2818, %v3463
      %v3592 = vadd.f32 %v2819, %v3464
      %v3593 = vadd.f32 %v2820, %v3465
      %v3594 = vadd.f32 %v2821, %v3466
      %v3595 = vadd.f32 %v2822, %v3467
      %v3596 = vadd.f32 %v2823, %v3468
      %v3597 = vadd.f32 %v2824, %v3469
      %v3598 = vadd.f32 %v2825, %v3470
      %v3599 = vadd.f32 %v2826, %v3471
      %v3600 = vadd.f32 %v2827, %v3472
      %v3601 = vadd.f32 %v2828, %v3473
      %v3602 = vadd.f32 %v2829, %v3474
      %v3603 = vadd.f32 %v2830, %v3475
      %v3604 = vadd.f32 %v2831, %v3476
      %v3605 = vadd.f32 %v2832, %v3477
      %v3606 = vlaneseq
      %v3607 = vand.u32 %v3606, 127
      %vm3608 = vcmp.ge.s32.totalorder %v3607, 8
      %v3609 = vsel %vm3608, 1, 0
      %vm3610 = vcmp.ge.s32.totalorder %v3607, 16
      %v3611 = vsel %vm3610, 1, 0
      %v3612 = vadd.s32 %v3609, %v3611
      %v3613 = vmul.u32 %v3612, 8
      %v3614 = vsub.s32 %v3607, %v3613
      %vm3615 = vcmp.lt.s32.totalorder %v3607, 24
      %vm3616 = vcmp.eq.s32.totalorder %v3614, 0
      %vm3617 = vmand %vm3616, %vm3615
      %v3618 = vsel %vm3617, 1, 0
      %v3619 = vcvt.s32.f32 %v3618
      %vm3620 = vcmp.eq.s32.totalorder %v3614, 1
      %vm3621 = vmand %vm3620, %vm3615
      %v3622 = vsel %vm3621, 1, 0
      %v3623 = vcvt.s32.f32 %v3622
      %vm3624 = vcmp.eq.s32.totalorder %v3614, 2
      %vm3625 = vmand %vm3624, %vm3615
      %v3626 = vsel %vm3625, 1, 0
      %v3627 = vcvt.s32.f32 %v3626
      %v3628 = vadd.f32 %v3623, %v3627
      %vm3629 = vcmp.eq.s32.totalorder %v3614, 3
      %vm3630 = vcmp.eq.s32.totalorder %v3614, 4
      %vm3631 = vmor %vm3629, %vm3630
      %vm3632 = vmand %vm3631, %vm3615
      %v3633 = vsel %vm3632, 1, 0
      %v3634 = vcvt.s32.f32 %v3633
      %vm3635 = vcmp.eq.s32.totalorder %v3614, 5
      %vm3636 = vmand %vm3635, %vm3615
      %v3637 = vsel %vm3636, 1, 0
      %v3638 = vcvt.s32.f32 %v3637
      %vm3639 = vcmp.eq.s32.totalorder %v3612, 0
      %vm3640 = vcmp.eq.s32.totalorder %v3612, 1
      %v3641 = vstv %s244
      %v3642 = vstv %s248
      %v3643 = vsel %vm3640, %v3641, %v3642
      %v3644 = vstv %s240
      %v3645 = vsel %vm3639, %v3644, %v3643
      %v3646 = vstv %s246
      %v3647 = vstv %s250
      %v3648 = vsel %vm3640, %v3646, %v3647
      %v3649 = vstv %s242
      %v3650 = vsel %vm3639, %v3649, %v3648
      %vm3651 = vmand %vm3629, %vm3615
      %v3652 = vsel %vm3651, 1, 0
      %v3653 = vcvt.s32.f32 %v3652
      %v3654 = vmul.f32 %v3653, %v3645
      %vm3655 = vmand %vm3630, %vm3615
      %v3656 = vsel %vm3655, 1, 0
      %v3657 = vcvt.s32.f32 %v3656
      %v3658 = vmul.f32 %v3657, %v3650
      %v3659 = vadd.f32 %v3654, %v3658
      %v3660 = vlaneseq
      %v3661 = vshrl.u32 %v3660, 7
      %v3662 = vadd.s32 %v3661, 8
      %v3663 = vadd.s32 %v3661, 16
      %v3664 = vadd.s32 %v3661, 24
      %v3665 = vadd.s32 %v3661, 32
      %v3666 = vadd.s32 %v3661, 40
      %v3667 = vadd.s32 %v3661, 48
      %v3668 = vadd.s32 %v3661, 56
      %v3669 = vadd.s32 %v3661, 64
      %v3670 = vadd.s32 %v3661, 72
      %v3671 = vadd.s32 %v3661, 80
      %v3672 = vadd.s32 %v3661, 88
      %v3673 = vadd.s32 %v3661, 96
      %v3674 = vadd.s32 %v3661, 104
      %v3675 = vadd.s32 %v3661, 112
      %v3676 = vadd.s32 %v3661, 120
      %v3677 = vadd.s32 %v3661, 128
      %v3678 = vadd.s32 %v3661, 136
      %v3679 = vadd.s32 %v3661, 144
      %v3680 = vadd.s32 %v3661, 152
      %v3681 = vadd.s32 %v3661, 160
      %v3682 = vadd.s32 %v3661, 168
      %v3683 = vadd.s32 %v3661, 176
      %v3684 = vadd.s32 %v3661, 184
      %v3685 = vadd.s32 %v3661, 192
      %v3686 = vadd.s32 %v3661, 200
      %v3687 = vadd.s32 %v3661, 208
      %v3688 = vadd.s32 %v3661, 216
      %v3689 = vadd.s32 %v3661, 224
      %v3690 = vadd.s32 %v3661, 232
      %v3691 = vadd.s32 %v3661, 240
      %v3692 = vadd.s32 %v3661, 248
      %v3693 = vadd.s32 %v3661, 256
      %v3694 = vadd.s32 %v3661, 264
      %v3695 = vadd.s32 %v3661, 272
      %v3696 = vadd.s32 %v3661, 280
      %v3697 = vadd.s32 %v3661, 288
      %v3698 = vadd.s32 %v3661, 296
      %v3699 = vadd.s32 %v3661, 304
      %v3700 = vadd.s32 %v3661, 312
      %v3701 = vadd.s32 %v3661, 320
      %v3702 = vadd.s32 %v3661, 328
      %v3703 = vadd.s32 %v3661, 336
      %v3704 = vadd.s32 %v3661, 344
      %v3705 = vadd.s32 %v3661, 352
      %v3706 = vadd.s32 %v3661, 360
      %v3707 = vadd.s32 %v3661, 368
      %v3708 = vadd.s32 %v3661, 376
      %v3709 = vadd.s32 %v3661, 384
      %v3710 = vadd.s32 %v3661, 392
      %v3711 = vadd.s32 %v3661, 400
      %v3712 = vadd.s32 %v3661, 408
      %v3713 = vadd.s32 %v3661, 416
      %v3714 = vadd.s32 %v3661, 424
      %v3715 = vadd.s32 %v3661, 432
      %v3716 = vadd.s32 %v3661, 440
      %v3717 = vadd.s32 %v3661, 448
      %v3718 = vadd.s32 %v3661, 456
      %v3719 = vadd.s32 %v3661, 464
      %v3720 = vadd.s32 %v3661, 472
      %v3721 = vadd.s32 %v3661, 480
      %v3722 = vadd.s32 %v3661, 488
      %v3723 = vadd.s32 %v3661, 496
      %v3724 = vadd.s32 %v3661, 504
      %v3725 = vadd.s32 %v3661, 512
      %v3726 = vadd.s32 %v3661, 520
      %v3727 = vadd.s32 %v3661, 528
      %v3728 = vadd.s32 %v3661, 536
      %v3729 = vadd.s32 %v3661, 544
      %v3730 = vadd.s32 %v3661, 552
      %v3731 = vadd.s32 %v3661, 560
      %v3732 = vadd.s32 %v3661, 568
      %v3733 = vadd.s32 %v3661, 576
      %v3734 = vadd.s32 %v3661, 584
      %v3735 = vadd.s32 %v3661, 592
      %v3736 = vadd.s32 %v3661, 600
      %v3737 = vadd.s32 %v3661, 608
      %v3738 = vadd.s32 %v3661, 616
      %v3739 = vadd.s32 %v3661, 624
      %v3740 = vadd.s32 %v3661, 632
      %v3741 = vadd.s32 %v3661, 640
      %v3742 = vadd.s32 %v3661, 648
      %v3743 = vadd.s32 %v3661, 656
      %v3744 = vadd.s32 %v3661, 664
      %v3745 = vadd.s32 %v3661, 672
      %v3746 = vadd.s32 %v3661, 680
      %v3747 = vadd.s32 %v3661, 688
      %v3748 = vadd.s32 %v3661, 696
      %v3749 = vadd.s32 %v3661, 704
      %v3750 = vadd.s32 %v3661, 712
      %v3751 = vadd.s32 %v3661, 720
      %v3752 = vadd.s32 %v3661, 728
      %v3753 = vadd.s32 %v3661, 736
      %v3754 = vadd.s32 %v3661, 744
      %v3755 = vadd.s32 %v3661, 752
      %v3756 = vadd.s32 %v3661, 760
      %v3757 = vadd.s32 %v3661, 768
      %v3758 = vadd.s32 %v3661, 776
      %v3759 = vadd.s32 %v3661, 784
      %v3760 = vadd.s32 %v3661, 792
      %v3761 = vadd.s32 %v3661, 800
      %v3762 = vadd.s32 %v3661, 808
      %v3763 = vadd.s32 %v3661, 816
      %v3764 = vadd.s32 %v3661, 824
      %v3765 = vadd.s32 %v3661, 832
      %v3766 = vadd.s32 %v3661, 840
      %v3767 = vadd.s32 %v3661, 848
      %v3768 = vadd.s32 %v3661, 856
      %v3769 = vadd.s32 %v3661, 864
      %v3770 = vadd.s32 %v3661, 872
      %v3771 = vadd.s32 %v3661, 880
      %v3772 = vadd.s32 %v3661, 888
      %v3773 = vadd.s32 %v3661, 896
      %v3774 = vadd.s32 %v3661, 904
      %v3775 = vadd.s32 %v3661, 912
      %v3776 = vadd.s32 %v3661, 920
      %v3777 = vadd.s32 %v3661, 928
      %v3778 = vadd.s32 %v3661, 936
      %v3779 = vadd.s32 %v3661, 944
      %v3780 = vadd.s32 %v3661, 952
      %v3781 = vadd.s32 %v3661, 960
      %v3782 = vadd.s32 %v3661, 968
      %v3783 = vadd.s32 %v3661, 976
      %v3784 = vadd.s32 %v3661, 984
      %v3785 = vadd.s32 %v3661, 992
      %v3786 = vadd.s32 %v3661, 1000
      %v3787 = vadd.s32 %v3661, 1008
      %v3788 = vadd.s32 %v3661, 1016
      %v3789 = vcvt.s32.f32 %v3661
      %v3790 = vcvt.s32.f32 %v3662
      %v3791 = vcvt.s32.f32 %v3663
      %v3792 = vcvt.s32.f32 %v3664
      %v3793 = vcvt.s32.f32 %v3665
      %v3794 = vcvt.s32.f32 %v3666
      %v3795 = vcvt.s32.f32 %v3667
      %v3796 = vcvt.s32.f32 %v3668
      %v3797 = vcvt.s32.f32 %v3669
      %v3798 = vcvt.s32.f32 %v3670
      %v3799 = vcvt.s32.f32 %v3671
      %v3800 = vcvt.s32.f32 %v3672
      %v3801 = vcvt.s32.f32 %v3673
      %v3802 = vcvt.s32.f32 %v3674
      %v3803 = vcvt.s32.f32 %v3675
      %v3804 = vcvt.s32.f32 %v3676
      %v3805 = vcvt.s32.f32 %v3677
      %v3806 = vcvt.s32.f32 %v3678
      %v3807 = vcvt.s32.f32 %v3679
      %v3808 = vcvt.s32.f32 %v3680
      %v3809 = vcvt.s32.f32 %v3681
      %v3810 = vcvt.s32.f32 %v3682
      %v3811 = vcvt.s32.f32 %v3683
      %v3812 = vcvt.s32.f32 %v3684
      %v3813 = vcvt.s32.f32 %v3685
      %v3814 = vcvt.s32.f32 %v3686
      %v3815 = vcvt.s32.f32 %v3687
      %v3816 = vcvt.s32.f32 %v3688
      %v3817 = vcvt.s32.f32 %v3689
      %v3818 = vcvt.s32.f32 %v3690
      %v3819 = vcvt.s32.f32 %v3691
      %v3820 = vcvt.s32.f32 %v3692
      %v3821 = vcvt.s32.f32 %v3693
      %v3822 = vcvt.s32.f32 %v3694
      %v3823 = vcvt.s32.f32 %v3695
      %v3824 = vcvt.s32.f32 %v3696
      %v3825 = vcvt.s32.f32 %v3697
      %v3826 = vcvt.s32.f32 %v3698
      %v3827 = vcvt.s32.f32 %v3699
      %v3828 = vcvt.s32.f32 %v3700
      %v3829 = vcvt.s32.f32 %v3701
      %v3830 = vcvt.s32.f32 %v3702
      %v3831 = vcvt.s32.f32 %v3703
      %v3832 = vcvt.s32.f32 %v3704
      %v3833 = vcvt.s32.f32 %v3705
      %v3834 = vcvt.s32.f32 %v3706
      %v3835 = vcvt.s32.f32 %v3707
      %v3836 = vcvt.s32.f32 %v3708
      %v3837 = vcvt.s32.f32 %v3709
      %v3838 = vcvt.s32.f32 %v3710
      %v3839 = vcvt.s32.f32 %v3711
      %v3840 = vcvt.s32.f32 %v3712
      %v3841 = vcvt.s32.f32 %v3713
      %v3842 = vcvt.s32.f32 %v3714
      %v3843 = vcvt.s32.f32 %v3715
      %v3844 = vcvt.s32.f32 %v3716
      %v3845 = vcvt.s32.f32 %v3717
      %v3846 = vcvt.s32.f32 %v3718
      %v3847 = vcvt.s32.f32 %v3719
      %v3848 = vcvt.s32.f32 %v3720
      %v3849 = vcvt.s32.f32 %v3721
      %v3850 = vcvt.s32.f32 %v3722
      %v3851 = vcvt.s32.f32 %v3723
      %v3852 = vcvt.s32.f32 %v3724
      %v3853 = vcvt.s32.f32 %v3725
      %v3854 = vcvt.s32.f32 %v3726
      %v3855 = vcvt.s32.f32 %v3727
      %v3856 = vcvt.s32.f32 %v3728
      %v3857 = vcvt.s32.f32 %v3729
      %v3858 = vcvt.s32.f32 %v3730
      %v3859 = vcvt.s32.f32 %v3731
      %v3860 = vcvt.s32.f32 %v3732
      %v3861 = vcvt.s32.f32 %v3733
      %v3862 = vcvt.s32.f32 %v3734
      %v3863 = vcvt.s32.f32 %v3735
      %v3864 = vcvt.s32.f32 %v3736
      %v3865 = vcvt.s32.f32 %v3737
      %v3866 = vcvt.s32.f32 %v3738
      %v3867 = vcvt.s32.f32 %v3739
      %v3868 = vcvt.s32.f32 %v3740
      %v3869 = vcvt.s32.f32 %v3741
      %v3870 = vcvt.s32.f32 %v3742
      %v3871 = vcvt.s32.f32 %v3743
      %v3872 = vcvt.s32.f32 %v3744
      %v3873 = vcvt.s32.f32 %v3745
      %v3874 = vcvt.s32.f32 %v3746
      %v3875 = vcvt.s32.f32 %v3747
      %v3876 = vcvt.s32.f32 %v3748
      %v3877 = vcvt.s32.f32 %v3749
      %v3878 = vcvt.s32.f32 %v3750
      %v3879 = vcvt.s32.f32 %v3751
      %v3880 = vcvt.s32.f32 %v3752
      %v3881 = vcvt.s32.f32 %v3753
      %v3882 = vcvt.s32.f32 %v3754
      %v3883 = vcvt.s32.f32 %v3755
      %v3884 = vcvt.s32.f32 %v3756
      %v3885 = vcvt.s32.f32 %v3757
      %v3886 = vcvt.s32.f32 %v3758
      %v3887 = vcvt.s32.f32 %v3759
      %v3888 = vcvt.s32.f32 %v3760
      %v3889 = vcvt.s32.f32 %v3761
      %v3890 = vcvt.s32.f32 %v3762
      %v3891 = vcvt.s32.f32 %v3763
      %v3892 = vcvt.s32.f32 %v3764
      %v3893 = vcvt.s32.f32 %v3765
      %v3894 = vcvt.s32.f32 %v3766
      %v3895 = vcvt.s32.f32 %v3767
      %v3896 = vcvt.s32.f32 %v3768
      %v3897 = vcvt.s32.f32 %v3769
      %v3898 = vcvt.s32.f32 %v3770
      %v3899 = vcvt.s32.f32 %v3771
      %v3900 = vcvt.s32.f32 %v3772
      %v3901 = vcvt.s32.f32 %v3773
      %v3902 = vcvt.s32.f32 %v3774
      %v3903 = vcvt.s32.f32 %v3775
      %v3904 = vcvt.s32.f32 %v3776
      %v3905 = vcvt.s32.f32 %v3777
      %v3906 = vcvt.s32.f32 %v3778
      %v3907 = vcvt.s32.f32 %v3779
      %v3908 = vcvt.s32.f32 %v3780
      %v3909 = vcvt.s32.f32 %v3781
      %v3910 = vcvt.s32.f32 %v3782
      %v3911 = vcvt.s32.f32 %v3783
      %v3912 = vcvt.s32.f32 %v3784
      %v3913 = vcvt.s32.f32 %v3785
      %v3914 = vcvt.s32.f32 %v3786
      %v3915 = vcvt.s32.f32 %v3787
      %v3916 = vcvt.s32.f32 %v3788
      %v3917 = vstv %s232
      %v3918 = vadd.f32 %v3917, %v3789
      %v3919 = vadd.f32 %v3917, %v3790
      %v3920 = vadd.f32 %v3917, %v3791
      %v3921 = vadd.f32 %v3917, %v3792
      %v3922 = vadd.f32 %v3917, %v3793
      %v3923 = vadd.f32 %v3917, %v3794
      %v3924 = vadd.f32 %v3917, %v3795
      %v3925 = vadd.f32 %v3917, %v3796
      %v3926 = vadd.f32 %v3917, %v3797
      %v3927 = vadd.f32 %v3917, %v3798
      %v3928 = vadd.f32 %v3917, %v3799
      %v3929 = vadd.f32 %v3917, %v3800
      %v3930 = vadd.f32 %v3917, %v3801
      %v3931 = vadd.f32 %v3917, %v3802
      %v3932 = vadd.f32 %v3917, %v3803
      %v3933 = vadd.f32 %v3917, %v3804
      %v3934 = vadd.f32 %v3917, %v3805
      %v3935 = vadd.f32 %v3917, %v3806
      %v3936 = vadd.f32 %v3917, %v3807
      %v3937 = vadd.f32 %v3917, %v3808
      %v3938 = vadd.f32 %v3917, %v3809
      %v3939 = vadd.f32 %v3917, %v3810
      %v3940 = vadd.f32 %v3917, %v3811
      %v3941 = vadd.f32 %v3917, %v3812
      %v3942 = vadd.f32 %v3917, %v3813
      %v3943 = vadd.f32 %v3917, %v3814
      %v3944 = vadd.f32 %v3917, %v3815
      %v3945 = vadd.f32 %v3917, %v3816
      %v3946 = vadd.f32 %v3917, %v3817
      %v3947 = vadd.f32 %v3917, %v3818
      %v3948 = vadd.f32 %v3917, %v3819
      %v3949 = vadd.f32 %v3917, %v3820
      %v3950 = vadd.f32 %v3917, %v3821
      %v3951 = vadd.f32 %v3917, %v3822
      %v3952 = vadd.f32 %v3917, %v3823
      %v3953 = vadd.f32 %v3917, %v3824
      %v3954 = vadd.f32 %v3917, %v3825
      %v3955 = vadd.f32 %v3917, %v3826
      %v3956 = vadd.f32 %v3917, %v3827
      %v3957 = vadd.f32 %v3917, %v3828
      %v3958 = vadd.f32 %v3917, %v3829
      %v3959 = vadd.f32 %v3917, %v3830
      %v3960 = vadd.f32 %v3917, %v3831
      %v3961 = vadd.f32 %v3917, %v3832
      %v3962 = vadd.f32 %v3917, %v3833
      %v3963 = vadd.f32 %v3917, %v3834
      %v3964 = vadd.f32 %v3917, %v3835
      %v3965 = vadd.f32 %v3917, %v3836
      %v3966 = vadd.f32 %v3917, %v3837
      %v3967 = vadd.f32 %v3917, %v3838
      %v3968 = vadd.f32 %v3917, %v3839
      %v3969 = vadd.f32 %v3917, %v3840
      %v3970 = vadd.f32 %v3917, %v3841
      %v3971 = vadd.f32 %v3917, %v3842
      %v3972 = vadd.f32 %v3917, %v3843
      %v3973 = vadd.f32 %v3917, %v3844
      %v3974 = vadd.f32 %v3917, %v3845
      %v3975 = vadd.f32 %v3917, %v3846
      %v3976 = vadd.f32 %v3917, %v3847
      %v3977 = vadd.f32 %v3917, %v3848
      %v3978 = vadd.f32 %v3917, %v3849
      %v3979 = vadd.f32 %v3917, %v3850
      %v3980 = vadd.f32 %v3917, %v3851
      %v3981 = vadd.f32 %v3917, %v3852
      %v3982 = vadd.f32 %v3917, %v3853
      %v3983 = vadd.f32 %v3917, %v3854
      %v3984 = vadd.f32 %v3917, %v3855
      %v3985 = vadd.f32 %v3917, %v3856
      %v3986 = vadd.f32 %v3917, %v3857
      %v3987 = vadd.f32 %v3917, %v3858
      %v3988 = vadd.f32 %v3917, %v3859
      %v3989 = vadd.f32 %v3917, %v3860
      %v3990 = vadd.f32 %v3917, %v3861
      %v3991 = vadd.f32 %v3917, %v3862
      %v3992 = vadd.f32 %v3917, %v3863
      %v3993 = vadd.f32 %v3917, %v3864
      %v3994 = vadd.f32 %v3917, %v3865
      %v3995 = vadd.f32 %v3917, %v3866
      %v3996 = vadd.f32 %v3917, %v3867
      %v3997 = vadd.f32 %v3917, %v3868
      %v3998 = vadd.f32 %v3917, %v3869
      %v3999 = vadd.f32 %v3917, %v3870
      %v4000 = vadd.f32 %v3917, %v3871
      %v4001 = vadd.f32 %v3917, %v3872
      %v4002 = vadd.f32 %v3917, %v3873
      %v4003 = vadd.f32 %v3917, %v3874
      %v4004 = vadd.f32 %v3917, %v3875
      %v4005 = vadd.f32 %v3917, %v3876
      %v4006 = vadd.f32 %v3917, %v3877
      %v4007 = vadd.f32 %v3917, %v3878
      %v4008 = vadd.f32 %v3917, %v3879
      %v4009 = vadd.f32 %v3917, %v3880
      %v4010 = vadd.f32 %v3917, %v3881
      %v4011 = vadd.f32 %v3917, %v3882
      %v4012 = vadd.f32 %v3917, %v3883
      %v4013 = vadd.f32 %v3917, %v3884
      %v4014 = vadd.f32 %v3917, %v3885
      %v4015 = vadd.f32 %v3917, %v3886
      %v4016 = vadd.f32 %v3917, %v3887
      %v4017 = vadd.f32 %v3917, %v3888
      %v4018 = vadd.f32 %v3917, %v3889
      %v4019 = vadd.f32 %v3917, %v3890
      %v4020 = vadd.f32 %v3917, %v3891
      %v4021 = vadd.f32 %v3917, %v3892
      %v4022 = vadd.f32 %v3917, %v3893
      %v4023 = vadd.f32 %v3917, %v3894
      %v4024 = vadd.f32 %v3917, %v3895
      %v4025 = vadd.f32 %v3917, %v3896
      %v4026 = vadd.f32 %v3917, %v3897
      %v4027 = vadd.f32 %v3917, %v3898
      %v4028 = vadd.f32 %v3917, %v3899
      %v4029 = vadd.f32 %v3917, %v3900
      %v4030 = vadd.f32 %v3917, %v3901
      %v4031 = vadd.f32 %v3917, %v3902
      %v4032 = vadd.f32 %v3917, %v3903
      %v4033 = vadd.f32 %v3917, %v3904
      %v4034 = vadd.f32 %v3917, %v3905
      %v4035 = vadd.f32 %v3917, %v3906
      %v4036 = vadd.f32 %v3917, %v3907
      %v4037 = vadd.f32 %v3917, %v3908
      %v4038 = vadd.f32 %v3917, %v3909
      %v4039 = vadd.f32 %v3917, %v3910
      %v4040 = vadd.f32 %v3917, %v3911
      %v4041 = vadd.f32 %v3917, %v3912
      %v4042 = vadd.f32 %v3917, %v3913
      %v4043 = vadd.f32 %v3917, %v3914
      %v4044 = vadd.f32 %v3917, %v3915
      %v4045 = vadd.f32 %v3917, %v3916
      %v4046 = vstv %s234
      %v4047 = vrcp.pop %v4046
      %v4048 = vmul.f32 %v3918, %v4047
      %v4049 = vmul.f32 %v3919, %v4047
      %v4050 = vmul.f32 %v3920, %v4047
      %v4051 = vmul.f32 %v3921, %v4047
      %v4052 = vmul.f32 %v3922, %v4047
      %v4053 = vmul.f32 %v3923, %v4047
      %v4054 = vmul.f32 %v3924, %v4047
      %v4055 = vmul.f32 %v3925, %v4047
      %v4056 = vmul.f32 %v3926, %v4047
      %v4057 = vmul.f32 %v3927, %v4047
      %v4058 = vmul.f32 %v3928, %v4047
      %v4059 = vmul.f32 %v3929, %v4047
      %v4060 = vmul.f32 %v3930, %v4047
      %v4061 = vmul.f32 %v3931, %v4047
      %v4062 = vmul.f32 %v3932, %v4047
      %v4063 = vmul.f32 %v3933, %v4047
      %v4064 = vmul.f32 %v3934, %v4047
      %v4065 = vmul.f32 %v3935, %v4047
      %v4066 = vmul.f32 %v3936, %v4047
      %v4067 = vmul.f32 %v3937, %v4047
      %v4068 = vmul.f32 %v3938, %v4047
      %v4069 = vmul.f32 %v3939, %v4047
      %v4070 = vmul.f32 %v3940, %v4047
      %v4071 = vmul.f32 %v3941, %v4047
      %v4072 = vmul.f32 %v3942, %v4047
      %v4073 = vmul.f32 %v3943, %v4047
      %v4074 = vmul.f32 %v3944, %v4047
      %v4075 = vmul.f32 %v3945, %v4047
      %v4076 = vmul.f32 %v3946, %v4047
      %v4077 = vmul.f32 %v3947, %v4047
      %v4078 = vmul.f32 %v3948, %v4047
      %v4079 = vmul.f32 %v3949, %v4047
      %v4080 = vmul.f32 %v3950, %v4047
      %v4081 = vmul.f32 %v3951, %v4047
      %v4082 = vmul.f32 %v3952, %v4047
      %v4083 = vmul.f32 %v3953, %v4047
      %v4084 = vmul.f32 %v3954, %v4047
      %v4085 = vmul.f32 %v3955, %v4047
      %v4086 = vmul.f32 %v3956, %v4047
      %v4087 = vmul.f32 %v3957, %v4047
      %v4088 = vmul.f32 %v3958, %v4047
      %v4089 = vmul.f32 %v3959, %v4047
      %v4090 = vmul.f32 %v3960, %v4047
      %v4091 = vmul.f32 %v3961, %v4047
      %v4092 = vmul.f32 %v3962, %v4047
      %v4093 = vmul.f32 %v3963, %v4047
      %v4094 = vmul.f32 %v3964, %v4047
      %v4095 = vmul.f32 %v3965, %v4047
      %v4096 = vmul.f32 %v3966, %v4047
      %v4097 = vmul.f32 %v3967, %v4047
      %v4098 = vmul.f32 %v3968, %v4047
      %v4099 = vmul.f32 %v3969, %v4047
      %v4100 = vmul.f32 %v3970, %v4047
      %v4101 = vmul.f32 %v3971, %v4047
      %v4102 = vmul.f32 %v3972, %v4047
      %v4103 = vmul.f32 %v3973, %v4047
      %v4104 = vmul.f32 %v3974, %v4047
      %v4105 = vmul.f32 %v3975, %v4047
      %v4106 = vmul.f32 %v3976, %v4047
      %v4107 = vmul.f32 %v3977, %v4047
      %v4108 = vmul.f32 %v3978, %v4047
      %v4109 = vmul.f32 %v3979, %v4047
      %v4110 = vmul.f32 %v3980, %v4047
      %v4111 = vmul.f32 %v3981, %v4047
      %v4112 = vmul.f32 %v3982, %v4047
      %v4113 = vmul.f32 %v3983, %v4047
      %v4114 = vmul.f32 %v3984, %v4047
      %v4115 = vmul.f32 %v3985, %v4047
      %v4116 = vmul.f32 %v3986, %v4047
      %v4117 = vmul.f32 %v3987, %v4047
      %v4118 = vmul.f32 %v3988, %v4047
      %v4119 = vmul.f32 %v3989, %v4047
      %v4120 = vmul.f32 %v3990, %v4047
      %v4121 = vmul.f32 %v3991, %v4047
      %v4122 = vmul.f32 %v3992, %v4047
      %v4123 = vmul.f32 %v3993, %v4047
      %v4124 = vmul.f32 %v3994, %v4047
      %v4125 = vmul.f32 %v3995, %v4047
      %v4126 = vmul.f32 %v3996, %v4047
      %v4127 = vmul.f32 %v3997, %v4047
      %v4128 = vmul.f32 %v3998, %v4047
      %v4129 = vmul.f32 %v3999, %v4047
      %v4130 = vmul.f32 %v4000, %v4047
      %v4131 = vmul.f32 %v4001, %v4047
      %v4132 = vmul.f32 %v4002, %v4047
      %v4133 = vmul.f32 %v4003, %v4047
      %v4134 = vmul.f32 %v4004, %v4047
      %v4135 = vmul.f32 %v4005, %v4047
      %v4136 = vmul.f32 %v4006, %v4047
      %v4137 = vmul.f32 %v4007, %v4047
      %v4138 = vmul.f32 %v4008, %v4047
      %v4139 = vmul.f32 %v4009, %v4047
      %v4140 = vmul.f32 %v4010, %v4047
      %v4141 = vmul.f32 %v4011, %v4047
      %v4142 = vmul.f32 %v4012, %v4047
      %v4143 = vmul.f32 %v4013, %v4047
      %v4144 = vmul.f32 %v4014, %v4047
      %v4145 = vmul.f32 %v4015, %v4047
      %v4146 = vmul.f32 %v4016, %v4047
      %v4147 = vmul.f32 %v4017, %v4047
      %v4148 = vmul.f32 %v4018, %v4047
      %v4149 = vmul.f32 %v4019, %v4047
      %v4150 = vmul.f32 %v4020, %v4047
      %v4151 = vmul.f32 %v4021, %v4047
      %v4152 = vmul.f32 %v4022, %v4047
      %v4153 = vmul.f32 %v4023, %v4047
      %v4154 = vmul.f32 %v4024, %v4047
      %v4155 = vmul.f32 %v4025, %v4047
      %v4156 = vmul.f32 %v4026, %v4047
      %v4157 = vmul.f32 %v4027, %v4047
      %v4158 = vmul.f32 %v4028, %v4047
      %v4159 = vmul.f32 %v4029, %v4047
      %v4160 = vmul.f32 %v4030, %v4047
      %v4161 = vmul.f32 %v4031, %v4047
      %v4162 = vmul.f32 %v4032, %v4047
      %v4163 = vmul.f32 %v4033, %v4047
      %v4164 = vmul.f32 %v4034, %v4047
      %v4165 = vmul.f32 %v4035, %v4047
      %v4166 = vmul.f32 %v4036, %v4047
      %v4167 = vmul.f32 %v4037, %v4047
      %v4168 = vmul.f32 %v4038, %v4047
      %v4169 = vmul.f32 %v4039, %v4047
      %v4170 = vmul.f32 %v4040, %v4047
      %v4171 = vmul.f32 %v4041, %v4047
      %v4172 = vmul.f32 %v4042, %v4047
      %v4173 = vmul.f32 %v4043, %v4047
      %v4174 = vmul.f32 %v4044, %v4047
      %v4175 = vmul.f32 %v4045, %v4047
      %v4176 = vfloor.f32 %v4048
      %v4177 = vfloor.f32 %v4049
      %v4178 = vfloor.f32 %v4050
      %v4179 = vfloor.f32 %v4051
      %v4180 = vfloor.f32 %v4052
      %v4181 = vfloor.f32 %v4053
      %v4182 = vfloor.f32 %v4054
      %v4183 = vfloor.f32 %v4055
      %v4184 = vfloor.f32 %v4056
      %v4185 = vfloor.f32 %v4057
      %v4186 = vfloor.f32 %v4058
      %v4187 = vfloor.f32 %v4059
      %v4188 = vfloor.f32 %v4060
      %v4189 = vfloor.f32 %v4061
      %v4190 = vfloor.f32 %v4062
      %v4191 = vfloor.f32 %v4063
      %v4192 = vfloor.f32 %v4064
      %v4193 = vfloor.f32 %v4065
      %v4194 = vfloor.f32 %v4066
      %v4195 = vfloor.f32 %v4067
      %v4196 = vfloor.f32 %v4068
      %v4197 = vfloor.f32 %v4069
      %v4198 = vfloor.f32 %v4070
      %v4199 = vfloor.f32 %v4071
      %v4200 = vfloor.f32 %v4072
      %v4201 = vfloor.f32 %v4073
      %v4202 = vfloor.f32 %v4074
      %v4203 = vfloor.f32 %v4075
      %v4204 = vfloor.f32 %v4076
      %v4205 = vfloor.f32 %v4077
      %v4206 = vfloor.f32 %v4078
      %v4207 = vfloor.f32 %v4079
      %v4208 = vfloor.f32 %v4080
      %v4209 = vfloor.f32 %v4081
      %v4210 = vfloor.f32 %v4082
      %v4211 = vfloor.f32 %v4083
      %v4212 = vfloor.f32 %v4084
      %v4213 = vfloor.f32 %v4085
      %v4214 = vfloor.f32 %v4086
      %v4215 = vfloor.f32 %v4087
      %v4216 = vfloor.f32 %v4088
      %v4217 = vfloor.f32 %v4089
      %v4218 = vfloor.f32 %v4090
      %v4219 = vfloor.f32 %v4091
      %v4220 = vfloor.f32 %v4092
      %v4221 = vfloor.f32 %v4093
      %v4222 = vfloor.f32 %v4094
      %v4223 = vfloor.f32 %v4095
      %v4224 = vfloor.f32 %v4096
      %v4225 = vfloor.f32 %v4097
      %v4226 = vfloor.f32 %v4098
      %v4227 = vfloor.f32 %v4099
      %v4228 = vfloor.f32 %v4100
      %v4229 = vfloor.f32 %v4101
      %v4230 = vfloor.f32 %v4102
      %v4231 = vfloor.f32 %v4103
      %v4232 = vfloor.f32 %v4104
      %v4233 = vfloor.f32 %v4105
      %v4234 = vfloor.f32 %v4106
      %v4235 = vfloor.f32 %v4107
      %v4236 = vfloor.f32 %v4108
      %v4237 = vfloor.f32 %v4109
      %v4238 = vfloor.f32 %v4110
      %v4239 = vfloor.f32 %v4111
      %v4240 = vfloor.f32 %v4112
      %v4241 = vfloor.f32 %v4113
      %v4242 = vfloor.f32 %v4114
      %v4243 = vfloor.f32 %v4115
      %v4244 = vfloor.f32 %v4116
      %v4245 = vfloor.f32 %v4117
      %v4246 = vfloor.f32 %v4118
      %v4247 = vfloor.f32 %v4119
      %v4248 = vfloor.f32 %v4120
      %v4249 = vfloor.f32 %v4121
      %v4250 = vfloor.f32 %v4122
      %v4251 = vfloor.f32 %v4123
      %v4252 = vfloor.f32 %v4124
      %v4253 = vfloor.f32 %v4125
      %v4254 = vfloor.f32 %v4126
      %v4255 = vfloor.f32 %v4127
      %v4256 = vfloor.f32 %v4128
      %v4257 = vfloor.f32 %v4129
      %v4258 = vfloor.f32 %v4130
      %v4259 = vfloor.f32 %v4131
      %v4260 = vfloor.f32 %v4132
      %v4261 = vfloor.f32 %v4133
      %v4262 = vfloor.f32 %v4134
      %v4263 = vfloor.f32 %v4135
      %v4264 = vfloor.f32 %v4136
      %v4265 = vfloor.f32 %v4137
      %v4266 = vfloor.f32 %v4138
      %v4267 = vfloor.f32 %v4139
      %v4268 = vfloor.f32 %v4140
      %v4269 = vfloor.f32 %v4141
      %v4270 = vfloor.f32 %v4142
      %v4271 = vfloor.f32 %v4143
      %v4272 = vfloor.f32 %v4144
      %v4273 = vfloor.f32 %v4145
      %v4274 = vfloor.f32 %v4146
      %v4275 = vfloor.f32 %v4147
      %v4276 = vfloor.f32 %v4148
      %v4277 = vfloor.f32 %v4149
      %v4278 = vfloor.f32 %v4150
      %v4279 = vfloor.f32 %v4151
      %v4280 = vfloor.f32 %v4152
      %v4281 = vfloor.f32 %v4153
      %v4282 = vfloor.f32 %v4154
      %v4283 = vfloor.f32 %v4155
      %v4284 = vfloor.f32 %v4156
      %v4285 = vfloor.f32 %v4157
      %v4286 = vfloor.f32 %v4158
      %v4287 = vfloor.f32 %v4159
      %v4288 = vfloor.f32 %v4160
      %v4289 = vfloor.f32 %v4161
      %v4290 = vfloor.f32 %v4162
      %v4291 = vfloor.f32 %v4163
      %v4292 = vfloor.f32 %v4164
      %v4293 = vfloor.f32 %v4165
      %v4294 = vfloor.f32 %v4166
      %v4295 = vfloor.f32 %v4167
      %v4296 = vfloor.f32 %v4168
      %v4297 = vfloor.f32 %v4169
      %v4298 = vfloor.f32 %v4170
      %v4299 = vfloor.f32 %v4171
      %v4300 = vfloor.f32 %v4172
      %v4301 = vfloor.f32 %v4173
      %v4302 = vfloor.f32 %v4174
      %v4303 = vfloor.f32 %v4175
      %v4304 = vmul.f32 %v4176, %v4046
      %v4305 = vmul.f32 %v4177, %v4046
      %v4306 = vmul.f32 %v4178, %v4046
      %v4307 = vmul.f32 %v4179, %v4046
      %v4308 = vmul.f32 %v4180, %v4046
      %v4309 = vmul.f32 %v4181, %v4046
      %v4310 = vmul.f32 %v4182, %v4046
      %v4311 = vmul.f32 %v4183, %v4046
      %v4312 = vmul.f32 %v4184, %v4046
      %v4313 = vmul.f32 %v4185, %v4046
      %v4314 = vmul.f32 %v4186, %v4046
      %v4315 = vmul.f32 %v4187, %v4046
      %v4316 = vmul.f32 %v4188, %v4046
      %v4317 = vmul.f32 %v4189, %v4046
      %v4318 = vmul.f32 %v4190, %v4046
      %v4319 = vmul.f32 %v4191, %v4046
      %v4320 = vmul.f32 %v4192, %v4046
      %v4321 = vmul.f32 %v4193, %v4046
      %v4322 = vmul.f32 %v4194, %v4046
      %v4323 = vmul.f32 %v4195, %v4046
      %v4324 = vmul.f32 %v4196, %v4046
      %v4325 = vmul.f32 %v4197, %v4046
      %v4326 = vmul.f32 %v4198, %v4046
      %v4327 = vmul.f32 %v4199, %v4046
      %v4328 = vmul.f32 %v4200, %v4046
      %v4329 = vmul.f32 %v4201, %v4046
      %v4330 = vmul.f32 %v4202, %v4046
      %v4331 = vmul.f32 %v4203, %v4046
      %v4332 = vmul.f32 %v4204, %v4046
      %v4333 = vmul.f32 %v4205, %v4046
      %v4334 = vmul.f32 %v4206, %v4046
      %v4335 = vmul.f32 %v4207, %v4046
      %v4336 = vmul.f32 %v4208, %v4046
      %v4337 = vmul.f32 %v4209, %v4046
      %v4338 = vmul.f32 %v4210, %v4046
      %v4339 = vmul.f32 %v4211, %v4046
      %v4340 = vmul.f32 %v4212, %v4046
      %v4341 = vmul.f32 %v4213, %v4046
      %v4342 = vmul.f32 %v4214, %v4046
      %v4343 = vmul.f32 %v4215, %v4046
      %v4344 = vmul.f32 %v4216, %v4046
      %v4345 = vmul.f32 %v4217, %v4046
      %v4346 = vmul.f32 %v4218, %v4046
      %v4347 = vmul.f32 %v4219, %v4046
      %v4348 = vmul.f32 %v4220, %v4046
      %v4349 = vmul.f32 %v4221, %v4046
      %v4350 = vmul.f32 %v4222, %v4046
      %v4351 = vmul.f32 %v4223, %v4046
      %v4352 = vmul.f32 %v4224, %v4046
      %v4353 = vmul.f32 %v4225, %v4046
      %v4354 = vmul.f32 %v4226, %v4046
      %v4355 = vmul.f32 %v4227, %v4046
      %v4356 = vmul.f32 %v4228, %v4046
      %v4357 = vmul.f32 %v4229, %v4046
      %v4358 = vmul.f32 %v4230, %v4046
      %v4359 = vmul.f32 %v4231, %v4046
      %v4360 = vmul.f32 %v4232, %v4046
      %v4361 = vmul.f32 %v4233, %v4046
      %v4362 = vmul.f32 %v4234, %v4046
      %v4363 = vmul.f32 %v4235, %v4046
      %v4364 = vmul.f32 %v4236, %v4046
      %v4365 = vmul.f32 %v4237, %v4046
      %v4366 = vmul.f32 %v4238, %v4046
      %v4367 = vmul.f32 %v4239, %v4046
      %v4368 = vmul.f32 %v4240, %v4046
      %v4369 = vmul.f32 %v4241, %v4046
      %v4370 = vmul.f32 %v4242, %v4046
      %v4371 = vmul.f32 %v4243, %v4046
      %v4372 = vmul.f32 %v4244, %v4046
      %v4373 = vmul.f32 %v4245, %v4046
      %v4374 = vmul.f32 %v4246, %v4046
      %v4375 = vmul.f32 %v4247, %v4046
      %v4376 = vmul.f32 %v4248, %v4046
      %v4377 = vmul.f32 %v4249, %v4046
      %v4378 = vmul.f32 %v4250, %v4046
      %v4379 = vmul.f32 %v4251, %v4046
      %v4380 = vmul.f32 %v4252, %v4046
      %v4381 = vmul.f32 %v4253, %v4046
      %v4382 = vmul.f32 %v4254, %v4046
      %v4383 = vmul.f32 %v4255, %v4046
      %v4384 = vmul.f32 %v4256, %v4046
      %v4385 = vmul.f32 %v4257, %v4046
      %v4386 = vmul.f32 %v4258, %v4046
      %v4387 = vmul.f32 %v4259, %v4046
      %v4388 = vmul.f32 %v4260, %v4046
      %v4389 = vmul.f32 %v4261, %v4046
      %v4390 = vmul.f32 %v4262, %v4046
      %v4391 = vmul.f32 %v4263, %v4046
      %v4392 = vmul.f32 %v4264, %v4046
      %v4393 = vmul.f32 %v4265, %v4046
      %v4394 = vmul.f32 %v4266, %v4046
      %v4395 = vmul.f32 %v4267, %v4046
      %v4396 = vmul.f32 %v4268, %v4046
      %v4397 = vmul.f32 %v4269, %v4046
      %v4398 = vmul.f32 %v4270, %v4046
      %v4399 = vmul.f32 %v4271, %v4046
      %v4400 = vmul.f32 %v4272, %v4046
      %v4401 = vmul.f32 %v4273, %v4046
      %v4402 = vmul.f32 %v4274, %v4046
      %v4403 = vmul.f32 %v4275, %v4046
      %v4404 = vmul.f32 %v4276, %v4046
      %v4405 = vmul.f32 %v4277, %v4046
      %v4406 = vmul.f32 %v4278, %v4046
      %v4407 = vmul.f32 %v4279, %v4046
      %v4408 = vmul.f32 %v4280, %v4046
      %v4409 = vmul.f32 %v4281, %v4046
      %v4410 = vmul.f32 %v4282, %v4046
      %v4411 = vmul.f32 %v4283, %v4046
      %v4412 = vmul.f32 %v4284, %v4046
      %v4413 = vmul.f32 %v4285, %v4046
      %v4414 = vmul.f32 %v4286, %v4046
      %v4415 = vmul.f32 %v4287, %v4046
      %v4416 = vmul.f32 %v4288, %v4046
      %v4417 = vmul.f32 %v4289, %v4046
      %v4418 = vmul.f32 %v4290, %v4046
      %v4419 = vmul.f32 %v4291, %v4046
      %v4420 = vmul.f32 %v4292, %v4046
      %v4421 = vmul.f32 %v4293, %v4046
      %v4422 = vmul.f32 %v4294, %v4046
      %v4423 = vmul.f32 %v4295, %v4046
      %v4424 = vmul.f32 %v4296, %v4046
      %v4425 = vmul.f32 %v4297, %v4046
      %v4426 = vmul.f32 %v4298, %v4046
      %v4427 = vmul.f32 %v4299, %v4046
      %v4428 = vmul.f32 %v4300, %v4046
      %v4429 = vmul.f32 %v4301, %v4046
      %v4430 = vmul.f32 %v4302, %v4046
      %v4431 = vmul.f32 %v4303, %v4046
      %v4432 = vsub.f32 %v3918, %v4304
      %v4433 = vsub.f32 %v3919, %v4305
      %v4434 = vsub.f32 %v3920, %v4306
      %v4435 = vsub.f32 %v3921, %v4307
      %v4436 = vsub.f32 %v3922, %v4308
      %v4437 = vsub.f32 %v3923, %v4309
      %v4438 = vsub.f32 %v3924, %v4310
      %v4439 = vsub.f32 %v3925, %v4311
      %v4440 = vsub.f32 %v3926, %v4312
      %v4441 = vsub.f32 %v3927, %v4313
      %v4442 = vsub.f32 %v3928, %v4314
      %v4443 = vsub.f32 %v3929, %v4315
      %v4444 = vsub.f32 %v3930, %v4316
      %v4445 = vsub.f32 %v3931, %v4317
      %v4446 = vsub.f32 %v3932, %v4318
      %v4447 = vsub.f32 %v3933, %v4319
      %v4448 = vsub.f32 %v3934, %v4320
      %v4449 = vsub.f32 %v3935, %v4321
      %v4450 = vsub.f32 %v3936, %v4322
      %v4451 = vsub.f32 %v3937, %v4323
      %v4452 = vsub.f32 %v3938, %v4324
      %v4453 = vsub.f32 %v3939, %v4325
      %v4454 = vsub.f32 %v3940, %v4326
      %v4455 = vsub.f32 %v3941, %v4327
      %v4456 = vsub.f32 %v3942, %v4328
      %v4457 = vsub.f32 %v3943, %v4329
      %v4458 = vsub.f32 %v3944, %v4330
      %v4459 = vsub.f32 %v3945, %v4331
      %v4460 = vsub.f32 %v3946, %v4332
      %v4461 = vsub.f32 %v3947, %v4333
      %v4462 = vsub.f32 %v3948, %v4334
      %v4463 = vsub.f32 %v3949, %v4335
      %v4464 = vsub.f32 %v3950, %v4336
      %v4465 = vsub.f32 %v3951, %v4337
      %v4466 = vsub.f32 %v3952, %v4338
      %v4467 = vsub.f32 %v3953, %v4339
      %v4468 = vsub.f32 %v3954, %v4340
      %v4469 = vsub.f32 %v3955, %v4341
      %v4470 = vsub.f32 %v3956, %v4342
      %v4471 = vsub.f32 %v3957, %v4343
      %v4472 = vsub.f32 %v3958, %v4344
      %v4473 = vsub.f32 %v3959, %v4345
      %v4474 = vsub.f32 %v3960, %v4346
      %v4475 = vsub.f32 %v3961, %v4347
      %v4476 = vsub.f32 %v3962, %v4348
      %v4477 = vsub.f32 %v3963, %v4349
      %v4478 = vsub.f32 %v3964, %v4350
      %v4479 = vsub.f32 %v3965, %v4351
      %v4480 = vsub.f32 %v3966, %v4352
      %v4481 = vsub.f32 %v3967, %v4353
      %v4482 = vsub.f32 %v3968, %v4354
      %v4483 = vsub.f32 %v3969, %v4355
      %v4484 = vsub.f32 %v3970, %v4356
      %v4485 = vsub.f32 %v3971, %v4357
      %v4486 = vsub.f32 %v3972, %v4358
      %v4487 = vsub.f32 %v3973, %v4359
      %v4488 = vsub.f32 %v3974, %v4360
      %v4489 = vsub.f32 %v3975, %v4361
      %v4490 = vsub.f32 %v3976, %v4362
      %v4491 = vsub.f32 %v3977, %v4363
      %v4492 = vsub.f32 %v3978, %v4364
      %v4493 = vsub.f32 %v3979, %v4365
      %v4494 = vsub.f32 %v3980, %v4366
      %v4495 = vsub.f32 %v3981, %v4367
      %v4496 = vsub.f32 %v3982, %v4368
      %v4497 = vsub.f32 %v3983, %v4369
      %v4498 = vsub.f32 %v3984, %v4370
      %v4499 = vsub.f32 %v3985, %v4371
      %v4500 = vsub.f32 %v3986, %v4372
      %v4501 = vsub.f32 %v3987, %v4373
      %v4502 = vsub.f32 %v3988, %v4374
      %v4503 = vsub.f32 %v3989, %v4375
      %v4504 = vsub.f32 %v3990, %v4376
      %v4505 = vsub.f32 %v3991, %v4377
      %v4506 = vsub.f32 %v3992, %v4378
      %v4507 = vsub.f32 %v3993, %v4379
      %v4508 = vsub.f32 %v3994, %v4380
      %v4509 = vsub.f32 %v3995, %v4381
      %v4510 = vsub.f32 %v3996, %v4382
      %v4511 = vsub.f32 %v3997, %v4383
      %v4512 = vsub.f32 %v3998, %v4384
      %v4513 = vsub.f32 %v3999, %v4385
      %v4514 = vsub.f32 %v4000, %v4386
      %v4515 = vsub.f32 %v4001, %v4387
      %v4516 = vsub.f32 %v4002, %v4388
      %v4517 = vsub.f32 %v4003, %v4389
      %v4518 = vsub.f32 %v4004, %v4390
      %v4519 = vsub.f32 %v4005, %v4391
      %v4520 = vsub.f32 %v4006, %v4392
      %v4521 = vsub.f32 %v4007, %v4393
      %v4522 = vsub.f32 %v4008, %v4394
      %v4523 = vsub.f32 %v4009, %v4395
      %v4524 = vsub.f32 %v4010, %v4396
      %v4525 = vsub.f32 %v4011, %v4397
      %v4526 = vsub.f32 %v4012, %v4398
      %v4527 = vsub.f32 %v4013, %v4399
      %v4528 = vsub.f32 %v4014, %v4400
      %v4529 = vsub.f32 %v4015, %v4401
      %v4530 = vsub.f32 %v4016, %v4402
      %v4531 = vsub.f32 %v4017, %v4403
      %v4532 = vsub.f32 %v4018, %v4404
      %v4533 = vsub.f32 %v4019, %v4405
      %v4534 = vsub.f32 %v4020, %v4406
      %v4535 = vsub.f32 %v4021, %v4407
      %v4536 = vsub.f32 %v4022, %v4408
      %v4537 = vsub.f32 %v4023, %v4409
      %v4538 = vsub.f32 %v4024, %v4410
      %v4539 = vsub.f32 %v4025, %v4411
      %v4540 = vsub.f32 %v4026, %v4412
      %v4541 = vsub.f32 %v4027, %v4413
      %v4542 = vsub.f32 %v4028, %v4414
      %v4543 = vsub.f32 %v4029, %v4415
      %v4544 = vsub.f32 %v4030, %v4416
      %v4545 = vsub.f32 %v4031, %v4417
      %v4546 = vsub.f32 %v4032, %v4418
      %v4547 = vsub.f32 %v4033, %v4419
      %v4548 = vsub.f32 %v4034, %v4420
      %v4549 = vsub.f32 %v4035, %v4421
      %v4550 = vsub.f32 %v4036, %v4422
      %v4551 = vsub.f32 %v4037, %v4423
      %v4552 = vsub.f32 %v4038, %v4424
      %v4553 = vsub.f32 %v4039, %v4425
      %v4554 = vsub.f32 %v4040, %v4426
      %v4555 = vsub.f32 %v4041, %v4427
      %v4556 = vsub.f32 %v4042, %v4428
      %v4557 = vsub.f32 %v4043, %v4429
      %v4558 = vsub.f32 %v4044, %v4430
      %v4559 = vsub.f32 %v4045, %v4431
      %v4560 = vstv %s236
      %v4561 = vrcp.pop %v4560
      %v4562 = vmul.f32 %v4176, %v4561
      %v4563 = vmul.f32 %v4177, %v4561
      %v4564 = vmul.f32 %v4178, %v4561
      %v4565 = vmul.f32 %v4179, %v4561
      %v4566 = vmul.f32 %v4180, %v4561
      %v4567 = vmul.f32 %v4181, %v4561
      %v4568 = vmul.f32 %v4182, %v4561
      %v4569 = vmul.f32 %v4183, %v4561
      %v4570 = vmul.f32 %v4184, %v4561
      %v4571 = vmul.f32 %v4185, %v4561
      %v4572 = vmul.f32 %v4186, %v4561
      %v4573 = vmul.f32 %v4187, %v4561
      %v4574 = vmul.f32 %v4188, %v4561
      %v4575 = vmul.f32 %v4189, %v4561
      %v4576 = vmul.f32 %v4190, %v4561
      %v4577 = vmul.f32 %v4191, %v4561
      %v4578 = vmul.f32 %v4192, %v4561
      %v4579 = vmul.f32 %v4193, %v4561
      %v4580 = vmul.f32 %v4194, %v4561
      %v4581 = vmul.f32 %v4195, %v4561
      %v4582 = vmul.f32 %v4196, %v4561
      %v4583 = vmul.f32 %v4197, %v4561
      %v4584 = vmul.f32 %v4198, %v4561
      %v4585 = vmul.f32 %v4199, %v4561
      %v4586 = vmul.f32 %v4200, %v4561
      %v4587 = vmul.f32 %v4201, %v4561
      %v4588 = vmul.f32 %v4202, %v4561
      %v4589 = vmul.f32 %v4203, %v4561
      %v4590 = vmul.f32 %v4204, %v4561
      %v4591 = vmul.f32 %v4205, %v4561
      %v4592 = vmul.f32 %v4206, %v4561
      %v4593 = vmul.f32 %v4207, %v4561
      %v4594 = vmul.f32 %v4208, %v4561
      %v4595 = vmul.f32 %v4209, %v4561
      %v4596 = vmul.f32 %v4210, %v4561
      %v4597 = vmul.f32 %v4211, %v4561
      %v4598 = vmul.f32 %v4212, %v4561
      %v4599 = vmul.f32 %v4213, %v4561
      %v4600 = vmul.f32 %v4214, %v4561
      %v4601 = vmul.f32 %v4215, %v4561
      %v4602 = vmul.f32 %v4216, %v4561
      %v4603 = vmul.f32 %v4217, %v4561
      %v4604 = vmul.f32 %v4218, %v4561
      %v4605 = vmul.f32 %v4219, %v4561
      %v4606 = vmul.f32 %v4220, %v4561
      %v4607 = vmul.f32 %v4221, %v4561
      %v4608 = vmul.f32 %v4222, %v4561
      %v4609 = vmul.f32 %v4223, %v4561
      %v4610 = vmul.f32 %v4224, %v4561
      %v4611 = vmul.f32 %v4225, %v4561
      %v4612 = vmul.f32 %v4226, %v4561
      %v4613 = vmul.f32 %v4227, %v4561
      %v4614 = vmul.f32 %v4228, %v4561
      %v4615 = vmul.f32 %v4229, %v4561
      %v4616 = vmul.f32 %v4230, %v4561
      %v4617 = vmul.f32 %v4231, %v4561
      %v4618 = vmul.f32 %v4232, %v4561
      %v4619 = vmul.f32 %v4233, %v4561
      %v4620 = vmul.f32 %v4234, %v4561
      %v4621 = vmul.f32 %v4235, %v4561
      %v4622 = vmul.f32 %v4236, %v4561
      %v4623 = vmul.f32 %v4237, %v4561
      %v4624 = vmul.f32 %v4238, %v4561
      %v4625 = vmul.f32 %v4239, %v4561
      %v4626 = vmul.f32 %v4240, %v4561
      %v4627 = vmul.f32 %v4241, %v4561
      %v4628 = vmul.f32 %v4242, %v4561
      %v4629 = vmul.f32 %v4243, %v4561
      %v4630 = vmul.f32 %v4244, %v4561
      %v4631 = vmul.f32 %v4245, %v4561
      %v4632 = vmul.f32 %v4246, %v4561
      %v4633 = vmul.f32 %v4247, %v4561
      %v4634 = vmul.f32 %v4248, %v4561
      %v4635 = vmul.f32 %v4249, %v4561
      %v4636 = vmul.f32 %v4250, %v4561
      %v4637 = vmul.f32 %v4251, %v4561
      %v4638 = vmul.f32 %v4252, %v4561
      %v4639 = vmul.f32 %v4253, %v4561
      %v4640 = vmul.f32 %v4254, %v4561
      %v4641 = vmul.f32 %v4255, %v4561
      %v4642 = vmul.f32 %v4256, %v4561
      %v4643 = vmul.f32 %v4257, %v4561
      %v4644 = vmul.f32 %v4258, %v4561
      %v4645 = vmul.f32 %v4259, %v4561
      %v4646 = vmul.f32 %v4260, %v4561
      %v4647 = vmul.f32 %v4261, %v4561
      %v4648 = vmul.f32 %v4262, %v4561
      %v4649 = vmul.f32 %v4263, %v4561
      %v4650 = vmul.f32 %v4264, %v4561
      %v4651 = vmul.f32 %v4265, %v4561
      %v4652 = vmul.f32 %v4266, %v4561
      %v4653 = vmul.f32 %v4267, %v4561
      %v4654 = vmul.f32 %v4268, %v4561
      %v4655 = vmul.f32 %v4269, %v4561
      %v4656 = vmul.f32 %v4270, %v4561
      %v4657 = vmul.f32 %v4271, %v4561
      %v4658 = vmul.f32 %v4272, %v4561
      %v4659 = vmul.f32 %v4273, %v4561
      %v4660 = vmul.f32 %v4274, %v4561
      %v4661 = vmul.f32 %v4275, %v4561
      %v4662 = vmul.f32 %v4276, %v4561
      %v4663 = vmul.f32 %v4277, %v4561
      %v4664 = vmul.f32 %v4278, %v4561
      %v4665 = vmul.f32 %v4279, %v4561
      %v4666 = vmul.f32 %v4280, %v4561
      %v4667 = vmul.f32 %v4281, %v4561
      %v4668 = vmul.f32 %v4282, %v4561
      %v4669 = vmul.f32 %v4283, %v4561
      %v4670 = vmul.f32 %v4284, %v4561
      %v4671 = vmul.f32 %v4285, %v4561
      %v4672 = vmul.f32 %v4286, %v4561
      %v4673 = vmul.f32 %v4287, %v4561
      %v4674 = vmul.f32 %v4288, %v4561
      %v4675 = vmul.f32 %v4289, %v4561
      %v4676 = vmul.f32 %v4290, %v4561
      %v4677 = vmul.f32 %v4291, %v4561
      %v4678 = vmul.f32 %v4292, %v4561
      %v4679 = vmul.f32 %v4293, %v4561
      %v4680 = vmul.f32 %v4294, %v4561
      %v4681 = vmul.f32 %v4295, %v4561
      %v4682 = vmul.f32 %v4296, %v4561
      %v4683 = vmul.f32 %v4297, %v4561
      %v4684 = vmul.f32 %v4298, %v4561
      %v4685 = vmul.f32 %v4299, %v4561
      %v4686 = vmul.f32 %v4300, %v4561
      %v4687 = vmul.f32 %v4301, %v4561
      %v4688 = vmul.f32 %v4302, %v4561
      %v4689 = vmul.f32 %v4303, %v4561
      %v4690 = vfloor.f32 %v4562
      %v4691 = vfloor.f32 %v4563
      %v4692 = vfloor.f32 %v4564
      %v4693 = vfloor.f32 %v4565
      %v4694 = vfloor.f32 %v4566
      %v4695 = vfloor.f32 %v4567
      %v4696 = vfloor.f32 %v4568
      %v4697 = vfloor.f32 %v4569
      %v4698 = vfloor.f32 %v4570
      %v4699 = vfloor.f32 %v4571
      %v4700 = vfloor.f32 %v4572
      %v4701 = vfloor.f32 %v4573
      %v4702 = vfloor.f32 %v4574
      %v4703 = vfloor.f32 %v4575
      %v4704 = vfloor.f32 %v4576
      %v4705 = vfloor.f32 %v4577
      %v4706 = vfloor.f32 %v4578
      %v4707 = vfloor.f32 %v4579
      %v4708 = vfloor.f32 %v4580
      %v4709 = vfloor.f32 %v4581
      %v4710 = vfloor.f32 %v4582
      %v4711 = vfloor.f32 %v4583
      %v4712 = vfloor.f32 %v4584
      %v4713 = vfloor.f32 %v4585
      %v4714 = vfloor.f32 %v4586
      %v4715 = vfloor.f32 %v4587
      %v4716 = vfloor.f32 %v4588
      %v4717 = vfloor.f32 %v4589
      %v4718 = vfloor.f32 %v4590
      %v4719 = vfloor.f32 %v4591
      %v4720 = vfloor.f32 %v4592
      %v4721 = vfloor.f32 %v4593
      %v4722 = vfloor.f32 %v4594
      %v4723 = vfloor.f32 %v4595
      %v4724 = vfloor.f32 %v4596
      %v4725 = vfloor.f32 %v4597
      %v4726 = vfloor.f32 %v4598
      %v4727 = vfloor.f32 %v4599
      %v4728 = vfloor.f32 %v4600
      %v4729 = vfloor.f32 %v4601
      %v4730 = vfloor.f32 %v4602
      %v4731 = vfloor.f32 %v4603
      %v4732 = vfloor.f32 %v4604
      %v4733 = vfloor.f32 %v4605
      %v4734 = vfloor.f32 %v4606
      %v4735 = vfloor.f32 %v4607
      %v4736 = vfloor.f32 %v4608
      %v4737 = vfloor.f32 %v4609
      %v4738 = vfloor.f32 %v4610
      %v4739 = vfloor.f32 %v4611
      %v4740 = vfloor.f32 %v4612
      %v4741 = vfloor.f32 %v4613
      %v4742 = vfloor.f32 %v4614
      %v4743 = vfloor.f32 %v4615
      %v4744 = vfloor.f32 %v4616
      %v4745 = vfloor.f32 %v4617
      %v4746 = vfloor.f32 %v4618
      %v4747 = vfloor.f32 %v4619
      %v4748 = vfloor.f32 %v4620
      %v4749 = vfloor.f32 %v4621
      %v4750 = vfloor.f32 %v4622
      %v4751 = vfloor.f32 %v4623
      %v4752 = vfloor.f32 %v4624
      %v4753 = vfloor.f32 %v4625
      %v4754 = vfloor.f32 %v4626
      %v4755 = vfloor.f32 %v4627
      %v4756 = vfloor.f32 %v4628
      %v4757 = vfloor.f32 %v4629
      %v4758 = vfloor.f32 %v4630
      %v4759 = vfloor.f32 %v4631
      %v4760 = vfloor.f32 %v4632
      %v4761 = vfloor.f32 %v4633
      %v4762 = vfloor.f32 %v4634
      %v4763 = vfloor.f32 %v4635
      %v4764 = vfloor.f32 %v4636
      %v4765 = vfloor.f32 %v4637
      %v4766 = vfloor.f32 %v4638
      %v4767 = vfloor.f32 %v4639
      %v4768 = vfloor.f32 %v4640
      %v4769 = vfloor.f32 %v4641
      %v4770 = vfloor.f32 %v4642
      %v4771 = vfloor.f32 %v4643
      %v4772 = vfloor.f32 %v4644
      %v4773 = vfloor.f32 %v4645
      %v4774 = vfloor.f32 %v4646
      %v4775 = vfloor.f32 %v4647
      %v4776 = vfloor.f32 %v4648
      %v4777 = vfloor.f32 %v4649
      %v4778 = vfloor.f32 %v4650
      %v4779 = vfloor.f32 %v4651
      %v4780 = vfloor.f32 %v4652
      %v4781 = vfloor.f32 %v4653
      %v4782 = vfloor.f32 %v4654
      %v4783 = vfloor.f32 %v4655
      %v4784 = vfloor.f32 %v4656
      %v4785 = vfloor.f32 %v4657
      %v4786 = vfloor.f32 %v4658
      %v4787 = vfloor.f32 %v4659
      %v4788 = vfloor.f32 %v4660
      %v4789 = vfloor.f32 %v4661
      %v4790 = vfloor.f32 %v4662
      %v4791 = vfloor.f32 %v4663
      %v4792 = vfloor.f32 %v4664
      %v4793 = vfloor.f32 %v4665
      %v4794 = vfloor.f32 %v4666
      %v4795 = vfloor.f32 %v4667
      %v4796 = vfloor.f32 %v4668
      %v4797 = vfloor.f32 %v4669
      %v4798 = vfloor.f32 %v4670
      %v4799 = vfloor.f32 %v4671
      %v4800 = vfloor.f32 %v4672
      %v4801 = vfloor.f32 %v4673
      %v4802 = vfloor.f32 %v4674
      %v4803 = vfloor.f32 %v4675
      %v4804 = vfloor.f32 %v4676
      %v4805 = vfloor.f32 %v4677
      %v4806 = vfloor.f32 %v4678
      %v4807 = vfloor.f32 %v4679
      %v4808 = vfloor.f32 %v4680
      %v4809 = vfloor.f32 %v4681
      %v4810 = vfloor.f32 %v4682
      %v4811 = vfloor.f32 %v4683
      %v4812 = vfloor.f32 %v4684
      %v4813 = vfloor.f32 %v4685
      %v4814 = vfloor.f32 %v4686
      %v4815 = vfloor.f32 %v4687
      %v4816 = vfloor.f32 %v4688
      %v4817 = vfloor.f32 %v4689
      %v4818 = vmul.f32 %v4690, %v4560
      %v4819 = vmul.f32 %v4691, %v4560
      %v4820 = vmul.f32 %v4692, %v4560
      %v4821 = vmul.f32 %v4693, %v4560
      %v4822 = vmul.f32 %v4694, %v4560
      %v4823 = vmul.f32 %v4695, %v4560
      %v4824 = vmul.f32 %v4696, %v4560
      %v4825 = vmul.f32 %v4697, %v4560
      %v4826 = vmul.f32 %v4698, %v4560
      %v4827 = vmul.f32 %v4699, %v4560
      %v4828 = vmul.f32 %v4700, %v4560
      %v4829 = vmul.f32 %v4701, %v4560
      %v4830 = vmul.f32 %v4702, %v4560
      %v4831 = vmul.f32 %v4703, %v4560
      %v4832 = vmul.f32 %v4704, %v4560
      %v4833 = vmul.f32 %v4705, %v4560
      %v4834 = vmul.f32 %v4706, %v4560
      %v4835 = vmul.f32 %v4707, %v4560
      %v4836 = vmul.f32 %v4708, %v4560
      %v4837 = vmul.f32 %v4709, %v4560
      %v4838 = vmul.f32 %v4710, %v4560
      %v4839 = vmul.f32 %v4711, %v4560
      %v4840 = vmul.f32 %v4712, %v4560
      %v4841 = vmul.f32 %v4713, %v4560
      %v4842 = vmul.f32 %v4714, %v4560
      %v4843 = vmul.f32 %v4715, %v4560
      %v4844 = vmul.f32 %v4716, %v4560
      %v4845 = vmul.f32 %v4717, %v4560
      %v4846 = vmul.f32 %v4718, %v4560
      %v4847 = vmul.f32 %v4719, %v4560
      %v4848 = vmul.f32 %v4720, %v4560
      %v4849 = vmul.f32 %v4721, %v4560
      %v4850 = vmul.f32 %v4722, %v4560
      %v4851 = vmul.f32 %v4723, %v4560
      %v4852 = vmul.f32 %v4724, %v4560
      %v4853 = vmul.f32 %v4725, %v4560
      %v4854 = vmul.f32 %v4726, %v4560
      %v4855 = vmul.f32 %v4727, %v4560
      %v4856 = vmul.f32 %v4728, %v4560
      %v4857 = vmul.f32 %v4729, %v4560
      %v4858 = vmul.f32 %v4730, %v4560
      %v4859 = vmul.f32 %v4731, %v4560
      %v4860 = vmul.f32 %v4732, %v4560
      %v4861 = vmul.f32 %v4733, %v4560
      %v4862 = vmul.f32 %v4734, %v4560
      %v4863 = vmul.f32 %v4735, %v4560
      %v4864 = vmul.f32 %v4736, %v4560
      %v4865 = vmul.f32 %v4737, %v4560
      %v4866 = vmul.f32 %v4738, %v4560
      %v4867 = vmul.f32 %v4739, %v4560
      %v4868 = vmul.f32 %v4740, %v4560
      %v4869 = vmul.f32 %v4741, %v4560
      %v4870 = vmul.f32 %v4742, %v4560
      %v4871 = vmul.f32 %v4743, %v4560
      %v4872 = vmul.f32 %v4744, %v4560
      %v4873 = vmul.f32 %v4745, %v4560
      %v4874 = vmul.f32 %v4746, %v4560
      %v4875 = vmul.f32 %v4747, %v4560
      %v4876 = vmul.f32 %v4748, %v4560
      %v4877 = vmul.f32 %v4749, %v4560
      %v4878 = vmul.f32 %v4750, %v4560
      %v4879 = vmul.f32 %v4751, %v4560
      %v4880 = vmul.f32 %v4752, %v4560
      %v4881 = vmul.f32 %v4753, %v4560
      %v4882 = vmul.f32 %v4754, %v4560
      %v4883 = vmul.f32 %v4755, %v4560
      %v4884 = vmul.f32 %v4756, %v4560
      %v4885 = vmul.f32 %v4757, %v4560
      %v4886 = vmul.f32 %v4758, %v4560
      %v4887 = vmul.f32 %v4759, %v4560
      %v4888 = vmul.f32 %v4760, %v4560
      %v4889 = vmul.f32 %v4761, %v4560
      %v4890 = vmul.f32 %v4762, %v4560
      %v4891 = vmul.f32 %v4763, %v4560
      %v4892 = vmul.f32 %v4764, %v4560
      %v4893 = vmul.f32 %v4765, %v4560
      %v4894 = vmul.f32 %v4766, %v4560
      %v4895 = vmul.f32 %v4767, %v4560
      %v4896 = vmul.f32 %v4768, %v4560
      %v4897 = vmul.f32 %v4769, %v4560
      %v4898 = vmul.f32 %v4770, %v4560
      %v4899 = vmul.f32 %v4771, %v4560
      %v4900 = vmul.f32 %v4772, %v4560
      %v4901 = vmul.f32 %v4773, %v4560
      %v4902 = vmul.f32 %v4774, %v4560
      %v4903 = vmul.f32 %v4775, %v4560
      %v4904 = vmul.f32 %v4776, %v4560
      %v4905 = vmul.f32 %v4777, %v4560
      %v4906 = vmul.f32 %v4778, %v4560
      %v4907 = vmul.f32 %v4779, %v4560
      %v4908 = vmul.f32 %v4780, %v4560
      %v4909 = vmul.f32 %v4781, %v4560
      %v4910 = vmul.f32 %v4782, %v4560
      %v4911 = vmul.f32 %v4783, %v4560
      %v4912 = vmul.f32 %v4784, %v4560
      %v4913 = vmul.f32 %v4785, %v4560
      %v4914 = vmul.f32 %v4786, %v4560
      %v4915 = vmul.f32 %v4787, %v4560
      %v4916 = vmul.f32 %v4788, %v4560
      %v4917 = vmul.f32 %v4789, %v4560
      %v4918 = vmul.f32 %v4790, %v4560
      %v4919 = vmul.f32 %v4791, %v4560
      %v4920 = vmul.f32 %v4792, %v4560
      %v4921 = vmul.f32 %v4793, %v4560
      %v4922 = vmul.f32 %v4794, %v4560
      %v4923 = vmul.f32 %v4795, %v4560
      %v4924 = vmul.f32 %v4796, %v4560
      %v4925 = vmul.f32 %v4797, %v4560
      %v4926 = vmul.f32 %v4798, %v4560
      %v4927 = vmul.f32 %v4799, %v4560
      %v4928 = vmul.f32 %v4800, %v4560
      %v4929 = vmul.f32 %v4801, %v4560
      %v4930 = vmul.f32 %v4802, %v4560
      %v4931 = vmul.f32 %v4803, %v4560
      %v4932 = vmul.f32 %v4804, %v4560
      %v4933 = vmul.f32 %v4805, %v4560
      %v4934 = vmul.f32 %v4806, %v4560
      %v4935 = vmul.f32 %v4807, %v4560
      %v4936 = vmul.f32 %v4808, %v4560
      %v4937 = vmul.f32 %v4809, %v4560
      %v4938 = vmul.f32 %v4810, %v4560
      %v4939 = vmul.f32 %v4811, %v4560
      %v4940 = vmul.f32 %v4812, %v4560
      %v4941 = vmul.f32 %v4813, %v4560
      %v4942 = vmul.f32 %v4814, %v4560
      %v4943 = vmul.f32 %v4815, %v4560
      %v4944 = vmul.f32 %v4816, %v4560
      %v4945 = vmul.f32 %v4817, %v4560
      %v4946 = vsub.f32 %v4176, %v4818
      %v4947 = vsub.f32 %v4177, %v4819
      %v4948 = vsub.f32 %v4178, %v4820
      %v4949 = vsub.f32 %v4179, %v4821
      %v4950 = vsub.f32 %v4180, %v4822
      %v4951 = vsub.f32 %v4181, %v4823
      %v4952 = vsub.f32 %v4182, %v4824
      %v4953 = vsub.f32 %v4183, %v4825
      %v4954 = vsub.f32 %v4184, %v4826
      %v4955 = vsub.f32 %v4185, %v4827
      %v4956 = vsub.f32 %v4186, %v4828
      %v4957 = vsub.f32 %v4187, %v4829
      %v4958 = vsub.f32 %v4188, %v4830
      %v4959 = vsub.f32 %v4189, %v4831
      %v4960 = vsub.f32 %v4190, %v4832
      %v4961 = vsub.f32 %v4191, %v4833
      %v4962 = vsub.f32 %v4192, %v4834
      %v4963 = vsub.f32 %v4193, %v4835
      %v4964 = vsub.f32 %v4194, %v4836
      %v4965 = vsub.f32 %v4195, %v4837
      %v4966 = vsub.f32 %v4196, %v4838
      %v4967 = vsub.f32 %v4197, %v4839
      %v4968 = vsub.f32 %v4198, %v4840
      %v4969 = vsub.f32 %v4199, %v4841
      %v4970 = vsub.f32 %v4200, %v4842
      %v4971 = vsub.f32 %v4201, %v4843
      %v4972 = vsub.f32 %v4202, %v4844
      %v4973 = vsub.f32 %v4203, %v4845
      %v4974 = vsub.f32 %v4204, %v4846
      %v4975 = vsub.f32 %v4205, %v4847
      %v4976 = vsub.f32 %v4206, %v4848
      %v4977 = vsub.f32 %v4207, %v4849
      %v4978 = vsub.f32 %v4208, %v4850
      %v4979 = vsub.f32 %v4209, %v4851
      %v4980 = vsub.f32 %v4210, %v4852
      %v4981 = vsub.f32 %v4211, %v4853
      %v4982 = vsub.f32 %v4212, %v4854
      %v4983 = vsub.f32 %v4213, %v4855
      %v4984 = vsub.f32 %v4214, %v4856
      %v4985 = vsub.f32 %v4215, %v4857
      %v4986 = vsub.f32 %v4216, %v4858
      %v4987 = vsub.f32 %v4217, %v4859
      %v4988 = vsub.f32 %v4218, %v4860
      %v4989 = vsub.f32 %v4219, %v4861
      %v4990 = vsub.f32 %v4220, %v4862
      %v4991 = vsub.f32 %v4221, %v4863
      %v4992 = vsub.f32 %v4222, %v4864
      %v4993 = vsub.f32 %v4223, %v4865
      %v4994 = vsub.f32 %v4224, %v4866
      %v4995 = vsub.f32 %v4225, %v4867
      %v4996 = vsub.f32 %v4226, %v4868
      %v4997 = vsub.f32 %v4227, %v4869
      %v4998 = vsub.f32 %v4228, %v4870
      %v4999 = vsub.f32 %v4229, %v4871
      %v5000 = vsub.f32 %v4230, %v4872
      %v5001 = vsub.f32 %v4231, %v4873
      %v5002 = vsub.f32 %v4232, %v4874
      %v5003 = vsub.f32 %v4233, %v4875
      %v5004 = vsub.f32 %v4234, %v4876
      %v5005 = vsub.f32 %v4235, %v4877
      %v5006 = vsub.f32 %v4236, %v4878
      %v5007 = vsub.f32 %v4237, %v4879
      %v5008 = vsub.f32 %v4238, %v4880
      %v5009 = vsub.f32 %v4239, %v4881
      %v5010 = vsub.f32 %v4240, %v4882
      %v5011 = vsub.f32 %v4241, %v4883
      %v5012 = vsub.f32 %v4242, %v4884
      %v5013 = vsub.f32 %v4243, %v4885
      %v5014 = vsub.f32 %v4244, %v4886
      %v5015 = vsub.f32 %v4245, %v4887
      %v5016 = vsub.f32 %v4246, %v4888
      %v5017 = vsub.f32 %v4247, %v4889
      %v5018 = vsub.f32 %v4248, %v4890
      %v5019 = vsub.f32 %v4249, %v4891
      %v5020 = vsub.f32 %v4250, %v4892
      %v5021 = vsub.f32 %v4251, %v4893
      %v5022 = vsub.f32 %v4252, %v4894
      %v5023 = vsub.f32 %v4253, %v4895
      %v5024 = vsub.f32 %v4254, %v4896
      %v5025 = vsub.f32 %v4255, %v4897
      %v5026 = vsub.f32 %v4256, %v4898
      %v5027 = vsub.f32 %v4257, %v4899
      %v5028 = vsub.f32 %v4258, %v4900
      %v5029 = vsub.f32 %v4259, %v4901
      %v5030 = vsub.f32 %v4260, %v4902
      %v5031 = vsub.f32 %v4261, %v4903
      %v5032 = vsub.f32 %v4262, %v4904
      %v5033 = vsub.f32 %v4263, %v4905
      %v5034 = vsub.f32 %v4264, %v4906
      %v5035 = vsub.f32 %v4265, %v4907
      %v5036 = vsub.f32 %v4266, %v4908
      %v5037 = vsub.f32 %v4267, %v4909
      %v5038 = vsub.f32 %v4268, %v4910
      %v5039 = vsub.f32 %v4269, %v4911
      %v5040 = vsub.f32 %v4270, %v4912
      %v5041 = vsub.f32 %v4271, %v4913
      %v5042 = vsub.f32 %v4272, %v4914
      %v5043 = vsub.f32 %v4273, %v4915
      %v5044 = vsub.f32 %v4274, %v4916
      %v5045 = vsub.f32 %v4275, %v4917
      %v5046 = vsub.f32 %v4276, %v4918
      %v5047 = vsub.f32 %v4277, %v4919
      %v5048 = vsub.f32 %v4278, %v4920
      %v5049 = vsub.f32 %v4279, %v4921
      %v5050 = vsub.f32 %v4280, %v4922
      %v5051 = vsub.f32 %v4281, %v4923
      %v5052 = vsub.f32 %v4282, %v4924
      %v5053 = vsub.f32 %v4283, %v4925
      %v5054 = vsub.f32 %v4284, %v4926
      %v5055 = vsub.f32 %v4285, %v4927
      %v5056 = vsub.f32 %v4286, %v4928
      %v5057 = vsub.f32 %v4287, %v4929
      %v5058 = vsub.f32 %v4288, %v4930
      %v5059 = vsub.f32 %v4289, %v4931
      %v5060 = vsub.f32 %v4290, %v4932
      %v5061 = vsub.f32 %v4291, %v4933
      %v5062 = vsub.f32 %v4292, %v4934
      %v5063 = vsub.f32 %v4293, %v4935
      %v5064 = vsub.f32 %v4294, %v4936
      %v5065 = vsub.f32 %v4295, %v4937
      %v5066 = vsub.f32 %v4296, %v4938
      %v5067 = vsub.f32 %v4297, %v4939
      %v5068 = vsub.f32 %v4298, %v4940
      %v5069 = vsub.f32 %v4299, %v4941
      %v5070 = vsub.f32 %v4300, %v4942
      %v5071 = vsub.f32 %v4301, %v4943
      %v5072 = vsub.f32 %v4302, %v4944
      %v5073 = vsub.f32 %v4303, %v4945
      %v5074 = vxor.u32 %v3478, 2147483648
      %v5075 = vxor.u32 %v3479, 2147483648
      %v5076 = vxor.u32 %v3480, 2147483648
      %v5077 = vxor.u32 %v3481, 2147483648
      %v5078 = vxor.u32 %v3482, 2147483648
      %v5079 = vxor.u32 %v3483, 2147483648
      %v5080 = vxor.u32 %v3484, 2147483648
      %v5081 = vxor.u32 %v3485, 2147483648
      %v5082 = vxor.u32 %v3486, 2147483648
      %v5083 = vxor.u32 %v3487, 2147483648
      %v5084 = vxor.u32 %v3488, 2147483648
      %v5085 = vxor.u32 %v3489, 2147483648
      %v5086 = vxor.u32 %v3490, 2147483648
      %v5087 = vxor.u32 %v3491, 2147483648
      %v5088 = vxor.u32 %v3492, 2147483648
      %v5089 = vxor.u32 %v3493, 2147483648
      %v5090 = vxor.u32 %v3494, 2147483648
      %v5091 = vxor.u32 %v3495, 2147483648
      %v5092 = vxor.u32 %v3496, 2147483648
      %v5093 = vxor.u32 %v3497, 2147483648
      %v5094 = vxor.u32 %v3498, 2147483648
      %v5095 = vxor.u32 %v3499, 2147483648
      %v5096 = vxor.u32 %v3500, 2147483648
      %v5097 = vxor.u32 %v3501, 2147483648
      %v5098 = vxor.u32 %v3502, 2147483648
      %v5099 = vxor.u32 %v3503, 2147483648
      %v5100 = vxor.u32 %v3504, 2147483648
      %v5101 = vxor.u32 %v3505, 2147483648
      %v5102 = vxor.u32 %v3506, 2147483648
      %v5103 = vxor.u32 %v3507, 2147483648
      %v5104 = vxor.u32 %v3508, 2147483648
      %v5105 = vxor.u32 %v3509, 2147483648
      %v5106 = vxor.u32 %v3510, 2147483648
      %v5107 = vxor.u32 %v3511, 2147483648
      %v5108 = vxor.u32 %v3512, 2147483648
      %v5109 = vxor.u32 %v3513, 2147483648
      %v5110 = vxor.u32 %v3514, 2147483648
      %v5111 = vxor.u32 %v3515, 2147483648
      %v5112 = vxor.u32 %v3516, 2147483648
      %v5113 = vxor.u32 %v3517, 2147483648
      %v5114 = vxor.u32 %v3518, 2147483648
      %v5115 = vxor.u32 %v3519, 2147483648
      %v5116 = vxor.u32 %v3520, 2147483648
      %v5117 = vxor.u32 %v3521, 2147483648
      %v5118 = vxor.u32 %v3522, 2147483648
      %v5119 = vxor.u32 %v3523, 2147483648
      %v5120 = vxor.u32 %v3524, 2147483648
      %v5121 = vxor.u32 %v3525, 2147483648
      %v5122 = vxor.u32 %v3526, 2147483648
      %v5123 = vxor.u32 %v3527, 2147483648
      %v5124 = vxor.u32 %v3528, 2147483648
      %v5125 = vxor.u32 %v3529, 2147483648
      %v5126 = vxor.u32 %v3530, 2147483648
      %v5127 = vxor.u32 %v3531, 2147483648
      %v5128 = vxor.u32 %v3532, 2147483648
      %v5129 = vxor.u32 %v3533, 2147483648
      %v5130 = vxor.u32 %v3534, 2147483648
      %v5131 = vxor.u32 %v3535, 2147483648
      %v5132 = vxor.u32 %v3536, 2147483648
      %v5133 = vxor.u32 %v3537, 2147483648
      %v5134 = vxor.u32 %v3538, 2147483648
      %v5135 = vxor.u32 %v3539, 2147483648
      %v5136 = vxor.u32 %v3540, 2147483648
      %v5137 = vxor.u32 %v3541, 2147483648
      %v5138 = vxor.u32 %v3542, 2147483648
      %v5139 = vxor.u32 %v3543, 2147483648
      %v5140 = vxor.u32 %v3544, 2147483648
      %v5141 = vxor.u32 %v3545, 2147483648
      %v5142 = vxor.u32 %v3546, 2147483648
      %v5143 = vxor.u32 %v3547, 2147483648
      %v5144 = vxor.u32 %v3548, 2147483648
      %v5145 = vxor.u32 %v3549, 2147483648
      %v5146 = vxor.u32 %v3550, 2147483648
      %v5147 = vxor.u32 %v3551, 2147483648
      %v5148 = vxor.u32 %v3552, 2147483648
      %v5149 = vxor.u32 %v3553, 2147483648
      %v5150 = vxor.u32 %v3554, 2147483648
      %v5151 = vxor.u32 %v3555, 2147483648
      %v5152 = vxor.u32 %v3556, 2147483648
      %v5153 = vxor.u32 %v3557, 2147483648
      %v5154 = vxor.u32 %v3558, 2147483648
      %v5155 = vxor.u32 %v3559, 2147483648
      %v5156 = vxor.u32 %v3560, 2147483648
      %v5157 = vxor.u32 %v3561, 2147483648
      %v5158 = vxor.u32 %v3562, 2147483648
      %v5159 = vxor.u32 %v3563, 2147483648
      %v5160 = vxor.u32 %v3564, 2147483648
      %v5161 = vxor.u32 %v3565, 2147483648
      %v5162 = vxor.u32 %v3566, 2147483648
      %v5163 = vxor.u32 %v3567, 2147483648
      %v5164 = vxor.u32 %v3568, 2147483648
      %v5165 = vxor.u32 %v3569, 2147483648
      %v5166 = vxor.u32 %v3570, 2147483648
      %v5167 = vxor.u32 %v3571, 2147483648
      %v5168 = vxor.u32 %v3572, 2147483648
      %v5169 = vxor.u32 %v3573, 2147483648
      %v5170 = vxor.u32 %v3574, 2147483648
      %v5171 = vxor.u32 %v3575, 2147483648
      %v5172 = vxor.u32 %v3576, 2147483648
      %v5173 = vxor.u32 %v3577, 2147483648
      %v5174 = vxor.u32 %v3578, 2147483648
      %v5175 = vxor.u32 %v3579, 2147483648
      %v5176 = vxor.u32 %v3580, 2147483648
      %v5177 = vxor.u32 %v3581, 2147483648
      %v5178 = vxor.u32 %v3582, 2147483648
      %v5179 = vxor.u32 %v3583, 2147483648
      %v5180 = vxor.u32 %v3584, 2147483648
      %v5181 = vxor.u32 %v3585, 2147483648
      %v5182 = vxor.u32 %v3586, 2147483648
      %v5183 = vxor.u32 %v3587, 2147483648
      %v5184 = vxor.u32 %v3588, 2147483648
      %v5185 = vxor.u32 %v3589, 2147483648
      %v5186 = vxor.u32 %v3590, 2147483648
      %v5187 = vxor.u32 %v3591, 2147483648
      %v5188 = vxor.u32 %v3592, 2147483648
      %v5189 = vxor.u32 %v3593, 2147483648
      %v5190 = vxor.u32 %v3594, 2147483648
      %v5191 = vxor.u32 %v3595, 2147483648
      %v5192 = vxor.u32 %v3596, 2147483648
      %v5193 = vxor.u32 %v3597, 2147483648
      %v5194 = vxor.u32 %v3598, 2147483648
      %v5195 = vxor.u32 %v3599, 2147483648
      %v5196 = vxor.u32 %v3600, 2147483648
      %v5197 = vxor.u32 %v3601, 2147483648
      %v5198 = vxor.u32 %v3602, 2147483648
      %v5199 = vxor.u32 %v3603, 2147483648
      %v5200 = vxor.u32 %v3604, 2147483648
      %v5201 = vxor.u32 %v3605, 2147483648
      %v5202 = vmul.f32 %v5074, 1.442695
      %v5203 = vpow.pop %v5202
      %v5204 = vmul.f32 %v5075, 1.442695
      %v5205 = vpow.pop %v5204
      %v5206 = vmul.f32 %v5076, 1.442695
      %v5207 = vpow.pop %v5206
      %v5208 = vmul.f32 %v5077, 1.442695
      %v5209 = vpow.pop %v5208
      %v5210 = vmul.f32 %v5078, 1.442695
      %v5211 = vpow.pop %v5210
      %v5212 = vmul.f32 %v5079, 1.442695
      %v5213 = vpow.pop %v5212
      %v5214 = vmul.f32 %v5080, 1.442695
      %v5215 = vpow.pop %v5214
      %v5216 = vmul.f32 %v5081, 1.442695
      %v5217 = vpow.pop %v5216
      %v5218 = vmul.f32 %v5082, 1.442695
      %v5219 = vpow.pop %v5218
      %v5220 = vmul.f32 %v5083, 1.442695
      %v5221 = vpow.pop %v5220
      %v5222 = vmul.f32 %v5084, 1.442695
      %v5223 = vpow.pop %v5222
      %v5224 = vmul.f32 %v5085, 1.442695
      %v5225 = vpow.pop %v5224
      %v5226 = vmul.f32 %v5086, 1.442695
      %v5227 = vpow.pop %v5226
      %v5228 = vmul.f32 %v5087, 1.442695
      %v5229 = vpow.pop %v5228
      %v5230 = vmul.f32 %v5088, 1.442695
      %v5231 = vpow.pop %v5230
      %v5232 = vmul.f32 %v5089, 1.442695
      %v5233 = vpow.pop %v5232
      %v5234 = vmul.f32 %v5090, 1.442695
      %v5235 = vpow.pop %v5234
      %v5236 = vmul.f32 %v5091, 1.442695
      %v5237 = vpow.pop %v5236
      %v5238 = vmul.f32 %v5092, 1.442695
      %v5239 = vpow.pop %v5238
      %v5240 = vmul.f32 %v5093, 1.442695
      %v5241 = vpow.pop %v5240
      %v5242 = vmul.f32 %v5094, 1.442695
      %v5243 = vpow.pop %v5242
      %v5244 = vmul.f32 %v5095, 1.442695
      %v5245 = vpow.pop %v5244
      %v5246 = vmul.f32 %v5096, 1.442695
      %v5247 = vpow.pop %v5246
      %v5248 = vmul.f32 %v5097, 1.442695
      %v5249 = vpow.pop %v5248
      %v5250 = vmul.f32 %v5098, 1.442695
      %v5251 = vpow.pop %v5250
      %v5252 = vmul.f32 %v5099, 1.442695
      %v5253 = vpow.pop %v5252
      %v5254 = vmul.f32 %v5100, 1.442695
      %v5255 = vpow.pop %v5254
      %v5256 = vmul.f32 %v5101, 1.442695
      %v5257 = vpow.pop %v5256
      %v5258 = vmul.f32 %v5102, 1.442695
      %v5259 = vpow.pop %v5258
      %v5260 = vmul.f32 %v5103, 1.442695
      %v5261 = vpow.pop %v5260
      %v5262 = vmul.f32 %v5104, 1.442695
      %v5263 = vpow.pop %v5262
      %v5264 = vmul.f32 %v5105, 1.442695
      %v5265 = vpow.pop %v5264
      %v5266 = vmul.f32 %v5106, 1.442695
      %v5267 = vpow.pop %v5266
      %v5268 = vmul.f32 %v5107, 1.442695
      %v5269 = vpow.pop %v5268
      %v5270 = vmul.f32 %v5108, 1.442695
      %v5271 = vpow.pop %v5270
      %v5272 = vmul.f32 %v5109, 1.442695
      %v5273 = vpow.pop %v5272
      %v5274 = vmul.f32 %v5110, 1.442695
      %v5275 = vpow.pop %v5274
      %v5276 = vmul.f32 %v5111, 1.442695
      %v5277 = vpow.pop %v5276
      %v5278 = vmul.f32 %v5112, 1.442695
      %v5279 = vpow.pop %v5278
      %v5280 = vmul.f32 %v5113, 1.442695
      %v5281 = vpow.pop %v5280
      %v5282 = vmul.f32 %v5114, 1.442695
      %v5283 = vpow.pop %v5282
      %v5284 = vmul.f32 %v5115, 1.442695
      %v5285 = vpow.pop %v5284
      %v5286 = vmul.f32 %v5116, 1.442695
      %v5287 = vpow.pop %v5286
      %v5288 = vmul.f32 %v5117, 1.442695
      %v5289 = vpow.pop %v5288
      %v5290 = vmul.f32 %v5118, 1.442695
      %v5291 = vpow.pop %v5290
      %v5292 = vmul.f32 %v5119, 1.442695
      %v5293 = vpow.pop %v5292
      %v5294 = vmul.f32 %v5120, 1.442695
      %v5295 = vpow.pop %v5294
      %v5296 = vmul.f32 %v5121, 1.442695
      %v5297 = vpow.pop %v5296
      %v5298 = vmul.f32 %v5122, 1.442695
      %v5299 = vpow.pop %v5298
      %v5300 = vmul.f32 %v5123, 1.442695
      %v5301 = vpow.pop %v5300
      %v5302 = vmul.f32 %v5124, 1.442695
      %v5303 = vpow.pop %v5302
      %v5304 = vmul.f32 %v5125, 1.442695
      %v5305 = vpow.pop %v5304
      %v5306 = vmul.f32 %v5126, 1.442695
      %v5307 = vpow.pop %v5306
      %v5308 = vmul.f32 %v5127, 1.442695
      %v5309 = vpow.pop %v5308
      %v5310 = vmul.f32 %v5128, 1.442695
      %v5311 = vpow.pop %v5310
      %v5312 = vmul.f32 %v5129, 1.442695
      %v5313 = vpow.pop %v5312
      %v5314 = vmul.f32 %v5130, 1.442695
      %v5315 = vpow.pop %v5314
      %v5316 = vmul.f32 %v5131, 1.442695
      %v5317 = vpow.pop %v5316
      %v5318 = vmul.f32 %v5132, 1.442695
      %v5319 = vpow.pop %v5318
      %v5320 = vmul.f32 %v5133, 1.442695
      %v5321 = vpow.pop %v5320
      %v5322 = vmul.f32 %v5134, 1.442695
      %v5323 = vpow.pop %v5322
      %v5324 = vmul.f32 %v5135, 1.442695
      %v5325 = vpow.pop %v5324
      %v5326 = vmul.f32 %v5136, 1.442695
      %v5327 = vpow.pop %v5326
      %v5328 = vmul.f32 %v5137, 1.442695
      %v5329 = vpow.pop %v5328
      %v5330 = vmul.f32 %v5138, 1.442695
      %v5331 = vpow.pop %v5330
      %v5332 = vmul.f32 %v5139, 1.442695
      %v5333 = vpow.pop %v5332
      %v5334 = vmul.f32 %v5140, 1.442695
      %v5335 = vpow.pop %v5334
      %v5336 = vmul.f32 %v5141, 1.442695
      %v5337 = vpow.pop %v5336
      %v5338 = vmul.f32 %v5142, 1.442695
      %v5339 = vpow.pop %v5338
      %v5340 = vmul.f32 %v5143, 1.442695
      %v5341 = vpow.pop %v5340
      %v5342 = vmul.f32 %v5144, 1.442695
      %v5343 = vpow.pop %v5342
      %v5344 = vmul.f32 %v5145, 1.442695
      %v5345 = vpow.pop %v5344
      %v5346 = vmul.f32 %v5146, 1.442695
      %v5347 = vpow.pop %v5346
      %v5348 = vmul.f32 %v5147, 1.442695
      %v5349 = vpow.pop %v5348
      %v5350 = vmul.f32 %v5148, 1.442695
      %v5351 = vpow.pop %v5350
      %v5352 = vmul.f32 %v5149, 1.442695
      %v5353 = vpow.pop %v5352
      %v5354 = vmul.f32 %v5150, 1.442695
      %v5355 = vpow.pop %v5354
      %v5356 = vmul.f32 %v5151, 1.442695
      %v5357 = vpow.pop %v5356
      %v5358 = vmul.f32 %v5152, 1.442695
      %v5359 = vpow.pop %v5358
      %v5360 = vmul.f32 %v5153, 1.442695
      %v5361 = vpow.pop %v5360
      %v5362 = vmul.f32 %v5154, 1.442695
      %v5363 = vpow.pop %v5362
      %v5364 = vmul.f32 %v5155, 1.442695
      %v5365 = vpow.pop %v5364
      %v5366 = vmul.f32 %v5156, 1.442695
      %v5367 = vpow.pop %v5366
      %v5368 = vmul.f32 %v5157, 1.442695
      %v5369 = vpow.pop %v5368
      %v5370 = vmul.f32 %v5158, 1.442695
      %v5371 = vpow.pop %v5370
      %v5372 = vmul.f32 %v5159, 1.442695
      %v5373 = vpow.pop %v5372
      %v5374 = vmul.f32 %v5160, 1.442695
      %v5375 = vpow.pop %v5374
      %v5376 = vmul.f32 %v5161, 1.442695
      %v5377 = vpow.pop %v5376
      %v5378 = vmul.f32 %v5162, 1.442695
      %v5379 = vpow.pop %v5378
      %v5380 = vmul.f32 %v5163, 1.442695
      %v5381 = vpow.pop %v5380
      %v5382 = vmul.f32 %v5164, 1.442695
      %v5383 = vpow.pop %v5382
      %v5384 = vmul.f32 %v5165, 1.442695
      %v5385 = vpow.pop %v5384
      %v5386 = vmul.f32 %v5166, 1.442695
      %v5387 = vpow.pop %v5386
      %v5388 = vmul.f32 %v5167, 1.442695
      %v5389 = vpow.pop %v5388
      %v5390 = vmul.f32 %v5168, 1.442695
      %v5391 = vpow.pop %v5390
      %v5392 = vmul.f32 %v5169, 1.442695
      %v5393 = vpow.pop %v5392
      %v5394 = vmul.f32 %v5170, 1.442695
      %v5395 = vpow.pop %v5394
      %v5396 = vmul.f32 %v5171, 1.442695
      %v5397 = vpow.pop %v5396
      %v5398 = vmul.f32 %v5172, 1.442695
      %v5399 = vpow.pop %v5398
      %v5400 = vmul.f32 %v5173, 1.442695
      %v5401 = vpow.pop %v5400
      %v5402 = vmul.f32 %v5174, 1.442695
      %v5403 = vpow.pop %v5402
      %v5404 = vmul.f32 %v5175, 1.442695
      %v5405 = vpow.pop %v5404
      %v5406 = vmul.f32 %v5176, 1.442695
      %v5407 = vpow.pop %v5406
      %v5408 = vmul.f32 %v5177, 1.442695
      %v5409 = vpow.pop %v5408
      %v5410 = vmul.f32 %v5178, 1.442695
      %v5411 = vpow.pop %v5410
      %v5412 = vmul.f32 %v5179, 1.442695
      %v5413 = vpow.pop %v5412
      %v5414 = vmul.f32 %v5180, 1.442695
      %v5415 = vpow.pop %v5414
      %v5416 = vmul.f32 %v5181, 1.442695
      %v5417 = vpow.pop %v5416
      %v5418 = vmul.f32 %v5182, 1.442695
      %v5419 = vpow.pop %v5418
      %v5420 = vmul.f32 %v5183, 1.442695
      %v5421 = vpow.pop %v5420
      %v5422 = vmul.f32 %v5184, 1.442695
      %v5423 = vpow.pop %v5422
      %v5424 = vmul.f32 %v5185, 1.442695
      %v5425 = vpow.pop %v5424
      %v5426 = vmul.f32 %v5186, 1.442695
      %v5427 = vpow.pop %v5426
      %v5428 = vmul.f32 %v5187, 1.442695
      %v5429 = vpow.pop %v5428
      %v5430 = vmul.f32 %v5188, 1.442695
      %v5431 = vpow.pop %v5430
      %v5432 = vmul.f32 %v5189, 1.442695
      %v5433 = vpow.pop %v5432
      %v5434 = vmul.f32 %v5190, 1.442695
      %v5435 = vpow.pop %v5434
      %v5436 = vmul.f32 %v5191, 1.442695
      %v5437 = vpow.pop %v5436
      %v5438 = vmul.f32 %v5192, 1.442695
      %v5439 = vpow.pop %v5438
      %v5440 = vmul.f32 %v5193, 1.442695
      %v5441 = vpow.pop %v5440
      %v5442 = vmul.f32 %v5194, 1.442695
      %v5443 = vpow.pop %v5442
      %v5444 = vmul.f32 %v5195, 1.442695
      %v5445 = vpow.pop %v5444
      %v5446 = vmul.f32 %v5196, 1.442695
      %v5447 = vpow.pop %v5446
      %v5448 = vmul.f32 %v5197, 1.442695
      %v5449 = vpow.pop %v5448
      %v5450 = vmul.f32 %v5198, 1.442695
      %v5451 = vpow.pop %v5450
      %v5452 = vmul.f32 %v5199, 1.442695
      %v5453 = vpow.pop %v5452
      %v5454 = vmul.f32 %v5200, 1.442695
      %v5455 = vpow.pop %v5454
      %v5456 = vmul.f32 %v5201, 1.442695
      %v5457 = vpow.pop %v5456
      %v5458 = vadd.f32 %v5203, 1.0
      %v5459 = vadd.f32 %v5205, 1.0
      %v5460 = vadd.f32 %v5207, 1.0
      %v5461 = vadd.f32 %v5209, 1.0
      %v5462 = vadd.f32 %v5211, 1.0
      %v5463 = vadd.f32 %v5213, 1.0
      %v5464 = vadd.f32 %v5215, 1.0
      %v5465 = vadd.f32 %v5217, 1.0
      %v5466 = vadd.f32 %v5219, 1.0
      %v5467 = vadd.f32 %v5221, 1.0
      %v5468 = vadd.f32 %v5223, 1.0
      %v5469 = vadd.f32 %v5225, 1.0
      %v5470 = vadd.f32 %v5227, 1.0
      %v5471 = vadd.f32 %v5229, 1.0
      %v5472 = vadd.f32 %v5231, 1.0
      %v5473 = vadd.f32 %v5233, 1.0
      %v5474 = vadd.f32 %v5235, 1.0
      %v5475 = vadd.f32 %v5237, 1.0
      %v5476 = vadd.f32 %v5239, 1.0
      %v5477 = vadd.f32 %v5241, 1.0
      %v5478 = vadd.f32 %v5243, 1.0
      %v5479 = vadd.f32 %v5245, 1.0
      %v5480 = vadd.f32 %v5247, 1.0
      %v5481 = vadd.f32 %v5249, 1.0
      %v5482 = vadd.f32 %v5251, 1.0
      %v5483 = vadd.f32 %v5253, 1.0
      %v5484 = vadd.f32 %v5255, 1.0
      %v5485 = vadd.f32 %v5257, 1.0
      %v5486 = vadd.f32 %v5259, 1.0
      %v5487 = vadd.f32 %v5261, 1.0
      %v5488 = vadd.f32 %v5263, 1.0
      %v5489 = vadd.f32 %v5265, 1.0
      %v5490 = vadd.f32 %v5267, 1.0
      %v5491 = vadd.f32 %v5269, 1.0
      %v5492 = vadd.f32 %v5271, 1.0
      %v5493 = vadd.f32 %v5273, 1.0
      %v5494 = vadd.f32 %v5275, 1.0
      %v5495 = vadd.f32 %v5277, 1.0
      %v5496 = vadd.f32 %v5279, 1.0
      %v5497 = vadd.f32 %v5281, 1.0
      %v5498 = vadd.f32 %v5283, 1.0
      %v5499 = vadd.f32 %v5285, 1.0
      %v5500 = vadd.f32 %v5287, 1.0
      %v5501 = vadd.f32 %v5289, 1.0
      %v5502 = vadd.f32 %v5291, 1.0
      %v5503 = vadd.f32 %v5293, 1.0
      %v5504 = vadd.f32 %v5295, 1.0
      %v5505 = vadd.f32 %v5297, 1.0
      %v5506 = vadd.f32 %v5299, 1.0
      %v5507 = vadd.f32 %v5301, 1.0
      %v5508 = vadd.f32 %v5303, 1.0
      %v5509 = vadd.f32 %v5305, 1.0
      %v5510 = vadd.f32 %v5307, 1.0
      %v5511 = vadd.f32 %v5309, 1.0
      %v5512 = vadd.f32 %v5311, 1.0
      %v5513 = vadd.f32 %v5313, 1.0
      %v5514 = vadd.f32 %v5315, 1.0
      %v5515 = vadd.f32 %v5317, 1.0
      %v5516 = vadd.f32 %v5319, 1.0
      %v5517 = vadd.f32 %v5321, 1.0
      %v5518 = vadd.f32 %v5323, 1.0
      %v5519 = vadd.f32 %v5325, 1.0
      %v5520 = vadd.f32 %v5327, 1.0
      %v5521 = vadd.f32 %v5329, 1.0
      %v5522 = vadd.f32 %v5331, 1.0
      %v5523 = vadd.f32 %v5333, 1.0
      %v5524 = vadd.f32 %v5335, 1.0
      %v5525 = vadd.f32 %v5337, 1.0
      %v5526 = vadd.f32 %v5339, 1.0
      %v5527 = vadd.f32 %v5341, 1.0
      %v5528 = vadd.f32 %v5343, 1.0
      %v5529 = vadd.f32 %v5345, 1.0
      %v5530 = vadd.f32 %v5347, 1.0
      %v5531 = vadd.f32 %v5349, 1.0
      %v5532 = vadd.f32 %v5351, 1.0
      %v5533 = vadd.f32 %v5353, 1.0
      %v5534 = vadd.f32 %v5355, 1.0
      %v5535 = vadd.f32 %v5357, 1.0
      %v5536 = vadd.f32 %v5359, 1.0
      %v5537 = vadd.f32 %v5361, 1.0
      %v5538 = vadd.f32 %v5363, 1.0
      %v5539 = vadd.f32 %v5365, 1.0
      %v5540 = vadd.f32 %v5367, 1.0
      %v5541 = vadd.f32 %v5369, 1.0
      %v5542 = vadd.f32 %v5371, 1.0
      %v5543 = vadd.f32 %v5373, 1.0
      %v5544 = vadd.f32 %v5375, 1.0
      %v5545 = vadd.f32 %v5377, 1.0
      %v5546 = vadd.f32 %v5379, 1.0
      %v5547 = vadd.f32 %v5381, 1.0
      %v5548 = vadd.f32 %v5383, 1.0
      %v5549 = vadd.f32 %v5385, 1.0
      %v5550 = vadd.f32 %v5387, 1.0
      %v5551 = vadd.f32 %v5389, 1.0
      %v5552 = vadd.f32 %v5391, 1.0
      %v5553 = vadd.f32 %v5393, 1.0
      %v5554 = vadd.f32 %v5395, 1.0
      %v5555 = vadd.f32 %v5397, 1.0
      %v5556 = vadd.f32 %v5399, 1.0
      %v5557 = vadd.f32 %v5401, 1.0
      %v5558 = vadd.f32 %v5403, 1.0
      %v5559 = vadd.f32 %v5405, 1.0
      %v5560 = vadd.f32 %v5407, 1.0
      %v5561 = vadd.f32 %v5409, 1.0
      %v5562 = vadd.f32 %v5411, 1.0
      %v5563 = vadd.f32 %v5413, 1.0
      %v5564 = vadd.f32 %v5415, 1.0
      %v5565 = vadd.f32 %v5417, 1.0
      %v5566 = vadd.f32 %v5419, 1.0
      %v5567 = vadd.f32 %v5421, 1.0
      %v5568 = vadd.f32 %v5423, 1.0
      %v5569 = vadd.f32 %v5425, 1.0
      %v5570 = vadd.f32 %v5427, 1.0
      %v5571 = vadd.f32 %v5429, 1.0
      %v5572 = vadd.f32 %v5431, 1.0
      %v5573 = vadd.f32 %v5433, 1.0
      %v5574 = vadd.f32 %v5435, 1.0
      %v5575 = vadd.f32 %v5437, 1.0
      %v5576 = vadd.f32 %v5439, 1.0
      %v5577 = vadd.f32 %v5441, 1.0
      %v5578 = vadd.f32 %v5443, 1.0
      %v5579 = vadd.f32 %v5445, 1.0
      %v5580 = vadd.f32 %v5447, 1.0
      %v5581 = vadd.f32 %v5449, 1.0
      %v5582 = vadd.f32 %v5451, 1.0
      %v5583 = vadd.f32 %v5453, 1.0
      %v5584 = vadd.f32 %v5455, 1.0
      %v5585 = vadd.f32 %v5457, 1.0
      %v5586 = vrcp.pop %v5458
      %v5587 = vmul.f32 1.0, %v5586
      %v5588 = vrcp.pop %v5459
      %v5589 = vmul.f32 1.0, %v5588
      %v5590 = vrcp.pop %v5460
      %v5591 = vmul.f32 1.0, %v5590
      %v5592 = vrcp.pop %v5461
      %v5593 = vmul.f32 1.0, %v5592
      %v5594 = vrcp.pop %v5462
      %v5595 = vmul.f32 1.0, %v5594
      %v5596 = vrcp.pop %v5463
      %v5597 = vmul.f32 1.0, %v5596
      %v5598 = vrcp.pop %v5464
      %v5599 = vmul.f32 1.0, %v5598
      %v5600 = vrcp.pop %v5465
      %v5601 = vmul.f32 1.0, %v5600
      %v5602 = vrcp.pop %v5466
      %v5603 = vmul.f32 1.0, %v5602
      %v5604 = vrcp.pop %v5467
      %v5605 = vmul.f32 1.0, %v5604
      %v5606 = vrcp.pop %v5468
      %v5607 = vmul.f32 1.0, %v5606
      %v5608 = vrcp.pop %v5469
      %v5609 = vmul.f32 1.0, %v5608
      %v5610 = vrcp.pop %v5470
      %v5611 = vmul.f32 1.0, %v5610
      %v5612 = vrcp.pop %v5471
      %v5613 = vmul.f32 1.0, %v5612
      %v5614 = vrcp.pop %v5472
      %v5615 = vmul.f32 1.0, %v5614
      %v5616 = vrcp.pop %v5473
      %v5617 = vmul.f32 1.0, %v5616
      %v5618 = vrcp.pop %v5474
      %v5619 = vmul.f32 1.0, %v5618
      %v5620 = vrcp.pop %v5475
      %v5621 = vmul.f32 1.0, %v5620
      %v5622 = vrcp.pop %v5476
      %v5623 = vmul.f32 1.0, %v5622
      %v5624 = vrcp.pop %v5477
      %v5625 = vmul.f32 1.0, %v5624
      %v5626 = vrcp.pop %v5478
      %v5627 = vmul.f32 1.0, %v5626
      %v5628 = vrcp.pop %v5479
      %v5629 = vmul.f32 1.0, %v5628
      %v5630 = vrcp.pop %v5480
      %v5631 = vmul.f32 1.0, %v5630
      %v5632 = vrcp.pop %v5481
      %v5633 = vmul.f32 1.0, %v5632
      %v5634 = vrcp.pop %v5482
      %v5635 = vmul.f32 1.0, %v5634
      %v5636 = vrcp.pop %v5483
      %v5637 = vmul.f32 1.0, %v5636
      %v5638 = vrcp.pop %v5484
      %v5639 = vmul.f32 1.0, %v5638
      %v5640 = vrcp.pop %v5485
      %v5641 = vmul.f32 1.0, %v5640
      %v5642 = vrcp.pop %v5486
      %v5643 = vmul.f32 1.0, %v5642
      %v5644 = vrcp.pop %v5487
      %v5645 = vmul.f32 1.0, %v5644
      %v5646 = vrcp.pop %v5488
      %v5647 = vmul.f32 1.0, %v5646
      %v5648 = vrcp.pop %v5489
      %v5649 = vmul.f32 1.0, %v5648
      %v5650 = vrcp.pop %v5490
      %v5651 = vmul.f32 1.0, %v5650
      %v5652 = vrcp.pop %v5491
      %v5653 = vmul.f32 1.0, %v5652
      %v5654 = vrcp.pop %v5492
      %v5655 = vmul.f32 1.0, %v5654
      %v5656 = vrcp.pop %v5493
      %v5657 = vmul.f32 1.0, %v5656
      %v5658 = vrcp.pop %v5494
      %v5659 = vmul.f32 1.0, %v5658
      %v5660 = vrcp.pop %v5495
      %v5661 = vmul.f32 1.0, %v5660
      %v5662 = vrcp.pop %v5496
      %v5663 = vmul.f32 1.0, %v5662
      %v5664 = vrcp.pop %v5497
      %v5665 = vmul.f32 1.0, %v5664
      %v5666 = vrcp.pop %v5498
      %v5667 = vmul.f32 1.0, %v5666
      %v5668 = vrcp.pop %v5499
      %v5669 = vmul.f32 1.0, %v5668
      %v5670 = vrcp.pop %v5500
      %v5671 = vmul.f32 1.0, %v5670
      %v5672 = vrcp.pop %v5501
      %v5673 = vmul.f32 1.0, %v5672
      %v5674 = vrcp.pop %v5502
      %v5675 = vmul.f32 1.0, %v5674
      %v5676 = vrcp.pop %v5503
      %v5677 = vmul.f32 1.0, %v5676
      %v5678 = vrcp.pop %v5504
      %v5679 = vmul.f32 1.0, %v5678
      %v5680 = vrcp.pop %v5505
      %v5681 = vmul.f32 1.0, %v5680
      %v5682 = vrcp.pop %v5506
      %v5683 = vmul.f32 1.0, %v5682
      %v5684 = vrcp.pop %v5507
      %v5685 = vmul.f32 1.0, %v5684
      %v5686 = vrcp.pop %v5508
      %v5687 = vmul.f32 1.0, %v5686
      %v5688 = vrcp.pop %v5509
      %v5689 = vmul.f32 1.0, %v5688
      %v5690 = vrcp.pop %v5510
      %v5691 = vmul.f32 1.0, %v5690
      %v5692 = vrcp.pop %v5511
      %v5693 = vmul.f32 1.0, %v5692
      %v5694 = vrcp.pop %v5512
      %v5695 = vmul.f32 1.0, %v5694
      %v5696 = vrcp.pop %v5513
      %v5697 = vmul.f32 1.0, %v5696
      %v5698 = vrcp.pop %v5514
      %v5699 = vmul.f32 1.0, %v5698
      %v5700 = vrcp.pop %v5515
      %v5701 = vmul.f32 1.0, %v5700
      %v5702 = vrcp.pop %v5516
      %v5703 = vmul.f32 1.0, %v5702
      %v5704 = vrcp.pop %v5517
      %v5705 = vmul.f32 1.0, %v5704
      %v5706 = vrcp.pop %v5518
      %v5707 = vmul.f32 1.0, %v5706
      %v5708 = vrcp.pop %v5519
      %v5709 = vmul.f32 1.0, %v5708
      %v5710 = vrcp.pop %v5520
      %v5711 = vmul.f32 1.0, %v5710
      %v5712 = vrcp.pop %v5521
      %v5713 = vmul.f32 1.0, %v5712
      %v5714 = vrcp.pop %v5522
      %v5715 = vmul.f32 1.0, %v5714
      %v5716 = vrcp.pop %v5523
      %v5717 = vmul.f32 1.0, %v5716
      %v5718 = vrcp.pop %v5524
      %v5719 = vmul.f32 1.0, %v5718
      %v5720 = vrcp.pop %v5525
      %v5721 = vmul.f32 1.0, %v5720
      %v5722 = vrcp.pop %v5526
      %v5723 = vmul.f32 1.0, %v5722
      %v5724 = vrcp.pop %v5527
      %v5725 = vmul.f32 1.0, %v5724
      %v5726 = vrcp.pop %v5528
      %v5727 = vmul.f32 1.0, %v5726
      %v5728 = vrcp.pop %v5529
      %v5729 = vmul.f32 1.0, %v5728
      %v5730 = vrcp.pop %v5530
      %v5731 = vmul.f32 1.0, %v5730
      %v5732 = vrcp.pop %v5531
      %v5733 = vmul.f32 1.0, %v5732
      %v5734 = vrcp.pop %v5532
      %v5735 = vmul.f32 1.0, %v5734
      %v5736 = vrcp.pop %v5533
      %v5737 = vmul.f32 1.0, %v5736
      %v5738 = vrcp.pop %v5534
      %v5739 = vmul.f32 1.0, %v5738
      %v5740 = vrcp.pop %v5535
      %v5741 = vmul.f32 1.0, %v5740
      %v5742 = vrcp.pop %v5536
      %v5743 = vmul.f32 1.0, %v5742
      %v5744 = vrcp.pop %v5537
      %v5745 = vmul.f32 1.0, %v5744
      %v5746 = vrcp.pop %v5538
      %v5747 = vmul.f32 1.0, %v5746
      %v5748 = vrcp.pop %v5539
      %v5749 = vmul.f32 1.0, %v5748
      %v5750 = vrcp.pop %v5540
      %v5751 = vmul.f32 1.0, %v5750
      %v5752 = vrcp.pop %v5541
      %v5753 = vmul.f32 1.0, %v5752
      %v5754 = vrcp.pop %v5542
      %v5755 = vmul.f32 1.0, %v5754
      %v5756 = vrcp.pop %v5543
      %v5757 = vmul.f32 1.0, %v5756
      %v5758 = vrcp.pop %v5544
      %v5759 = vmul.f32 1.0, %v5758
      %v5760 = vrcp.pop %v5545
      %v5761 = vmul.f32 1.0, %v5760
      %v5762 = vrcp.pop %v5546
      %v5763 = vmul.f32 1.0, %v5762
      %v5764 = vrcp.pop %v5547
      %v5765 = vmul.f32 1.0, %v5764
      %v5766 = vrcp.pop %v5548
      %v5767 = vmul.f32 1.0, %v5766
      %v5768 = vrcp.pop %v5549
      %v5769 = vmul.f32 1.0, %v5768
      %v5770 = vrcp.pop %v5550
      %v5771 = vmul.f32 1.0, %v5770
      %v5772 = vrcp.pop %v5551
      %v5773 = vmul.f32 1.0, %v5772
      %v5774 = vrcp.pop %v5552
      %v5775 = vmul.f32 1.0, %v5774
      %v5776 = vrcp.pop %v5553
      %v5777 = vmul.f32 1.0, %v5776
      %v5778 = vrcp.pop %v5554
      %v5779 = vmul.f32 1.0, %v5778
      %v5780 = vrcp.pop %v5555
      %v5781 = vmul.f32 1.0, %v5780
      %v5782 = vrcp.pop %v5556
      %v5783 = vmul.f32 1.0, %v5782
      %v5784 = vrcp.pop %v5557
      %v5785 = vmul.f32 1.0, %v5784
      %v5786 = vrcp.pop %v5558
      %v5787 = vmul.f32 1.0, %v5786
      %v5788 = vrcp.pop %v5559
      %v5789 = vmul.f32 1.0, %v5788
      %v5790 = vrcp.pop %v5560
      %v5791 = vmul.f32 1.0, %v5790
      %v5792 = vrcp.pop %v5561
      %v5793 = vmul.f32 1.0, %v5792
      %v5794 = vrcp.pop %v5562
      %v5795 = vmul.f32 1.0, %v5794
      %v5796 = vrcp.pop %v5563
      %v5797 = vmul.f32 1.0, %v5796
      %v5798 = vrcp.pop %v5564
      %v5799 = vmul.f32 1.0, %v5798
      %v5800 = vrcp.pop %v5565
      %v5801 = vmul.f32 1.0, %v5800
      %v5802 = vrcp.pop %v5566
      %v5803 = vmul.f32 1.0, %v5802
      %v5804 = vrcp.pop %v5567
      %v5805 = vmul.f32 1.0, %v5804
      %v5806 = vrcp.pop %v5568
      %v5807 = vmul.f32 1.0, %v5806
      %v5808 = vrcp.pop %v5569
      %v5809 = vmul.f32 1.0, %v5808
      %v5810 = vrcp.pop %v5570
      %v5811 = vmul.f32 1.0, %v5810
      %v5812 = vrcp.pop %v5571
      %v5813 = vmul.f32 1.0, %v5812
      %v5814 = vrcp.pop %v5572
      %v5815 = vmul.f32 1.0, %v5814
      %v5816 = vrcp.pop %v5573
      %v5817 = vmul.f32 1.0, %v5816
      %v5818 = vrcp.pop %v5574
      %v5819 = vmul.f32 1.0, %v5818
      %v5820 = vrcp.pop %v5575
      %v5821 = vmul.f32 1.0, %v5820
      %v5822 = vrcp.pop %v5576
      %v5823 = vmul.f32 1.0, %v5822
      %v5824 = vrcp.pop %v5577
      %v5825 = vmul.f32 1.0, %v5824
      %v5826 = vrcp.pop %v5578
      %v5827 = vmul.f32 1.0, %v5826
      %v5828 = vrcp.pop %v5579
      %v5829 = vmul.f32 1.0, %v5828
      %v5830 = vrcp.pop %v5580
      %v5831 = vmul.f32 1.0, %v5830
      %v5832 = vrcp.pop %v5581
      %v5833 = vmul.f32 1.0, %v5832
      %v5834 = vrcp.pop %v5582
      %v5835 = vmul.f32 1.0, %v5834
      %v5836 = vrcp.pop %v5583
      %v5837 = vmul.f32 1.0, %v5836
      %v5838 = vrcp.pop %v5584
      %v5839 = vmul.f32 1.0, %v5838
      %v5840 = vrcp.pop %v5585
      %v5841 = vmul.f32 1.0, %v5840
      %v5842 = vmul.f32 %v3478, %v3634
      %v5843 = vmul.f32 %v3479, %v3634
      %v5844 = vmul.f32 %v3480, %v3634
      %v5845 = vmul.f32 %v3481, %v3634
      %v5846 = vmul.f32 %v3482, %v3634
      %v5847 = vmul.f32 %v3483, %v3634
      %v5848 = vmul.f32 %v3484, %v3634
      %v5849 = vmul.f32 %v3485, %v3634
      %v5850 = vmul.f32 %v3486, %v3634
      %v5851 = vmul.f32 %v3487, %v3634
      %v5852 = vmul.f32 %v3488, %v3634
      %v5853 = vmul.f32 %v3489, %v3634
      %v5854 = vmul.f32 %v3490, %v3634
      %v5855 = vmul.f32 %v3491, %v3634
      %v5856 = vmul.f32 %v3492, %v3634
      %v5857 = vmul.f32 %v3493, %v3634
      %v5858 = vmul.f32 %v3494, %v3634
      %v5859 = vmul.f32 %v3495, %v3634
      %v5860 = vmul.f32 %v3496, %v3634
      %v5861 = vmul.f32 %v3497, %v3634
      %v5862 = vmul.f32 %v3498, %v3634
      %v5863 = vmul.f32 %v3499, %v3634
      %v5864 = vmul.f32 %v3500, %v3634
      %v5865 = vmul.f32 %v3501, %v3634
      %v5866 = vmul.f32 %v3502, %v3634
      %v5867 = vmul.f32 %v3503, %v3634
      %v5868 = vmul.f32 %v3504, %v3634
      %v5869 = vmul.f32 %v3505, %v3634
      %v5870 = vmul.f32 %v3506, %v3634
      %v5871 = vmul.f32 %v3507, %v3634
      %v5872 = vmul.f32 %v3508, %v3634
      %v5873 = vmul.f32 %v3509, %v3634
      %v5874 = vmul.f32 %v3510, %v3634
      %v5875 = vmul.f32 %v3511, %v3634
      %v5876 = vmul.f32 %v3512, %v3634
      %v5877 = vmul.f32 %v3513, %v3634
      %v5878 = vmul.f32 %v3514, %v3634
      %v5879 = vmul.f32 %v3515, %v3634
      %v5880 = vmul.f32 %v3516, %v3634
      %v5881 = vmul.f32 %v3517, %v3634
      %v5882 = vmul.f32 %v3518, %v3634
      %v5883 = vmul.f32 %v3519, %v3634
      %v5884 = vmul.f32 %v3520, %v3634
      %v5885 = vmul.f32 %v3521, %v3634
      %v5886 = vmul.f32 %v3522, %v3634
      %v5887 = vmul.f32 %v3523, %v3634
      %v5888 = vmul.f32 %v3524, %v3634
      %v5889 = vmul.f32 %v3525, %v3634
      %v5890 = vmul.f32 %v3526, %v3634
      %v5891 = vmul.f32 %v3527, %v3634
      %v5892 = vmul.f32 %v3528, %v3634
      %v5893 = vmul.f32 %v3529, %v3634
      %v5894 = vmul.f32 %v3530, %v3634
      %v5895 = vmul.f32 %v3531, %v3634
      %v5896 = vmul.f32 %v3532, %v3634
      %v5897 = vmul.f32 %v3533, %v3634
      %v5898 = vmul.f32 %v3534, %v3634
      %v5899 = vmul.f32 %v3535, %v3634
      %v5900 = vmul.f32 %v3536, %v3634
      %v5901 = vmul.f32 %v3537, %v3634
      %v5902 = vmul.f32 %v3538, %v3634
      %v5903 = vmul.f32 %v3539, %v3634
      %v5904 = vmul.f32 %v3540, %v3634
      %v5905 = vmul.f32 %v3541, %v3634
      %v5906 = vmul.f32 %v3542, %v3634
      %v5907 = vmul.f32 %v3543, %v3634
      %v5908 = vmul.f32 %v3544, %v3634
      %v5909 = vmul.f32 %v3545, %v3634
      %v5910 = vmul.f32 %v3546, %v3634
      %v5911 = vmul.f32 %v3547, %v3634
      %v5912 = vmul.f32 %v3548, %v3634
      %v5913 = vmul.f32 %v3549, %v3634
      %v5914 = vmul.f32 %v3550, %v3634
      %v5915 = vmul.f32 %v3551, %v3634
      %v5916 = vmul.f32 %v3552, %v3634
      %v5917 = vmul.f32 %v3553, %v3634
      %v5918 = vmul.f32 %v3554, %v3634
      %v5919 = vmul.f32 %v3555, %v3634
      %v5920 = vmul.f32 %v3556, %v3634
      %v5921 = vmul.f32 %v3557, %v3634
      %v5922 = vmul.f32 %v3558, %v3634
      %v5923 = vmul.f32 %v3559, %v3634
      %v5924 = vmul.f32 %v3560, %v3634
      %v5925 = vmul.f32 %v3561, %v3634
      %v5926 = vmul.f32 %v3562, %v3634
      %v5927 = vmul.f32 %v3563, %v3634
      %v5928 = vmul.f32 %v3564, %v3634
      %v5929 = vmul.f32 %v3565, %v3634
      %v5930 = vmul.f32 %v3566, %v3634
      %v5931 = vmul.f32 %v3567, %v3634
      %v5932 = vmul.f32 %v3568, %v3634
      %v5933 = vmul.f32 %v3569, %v3634
      %v5934 = vmul.f32 %v3570, %v3634
      %v5935 = vmul.f32 %v3571, %v3634
      %v5936 = vmul.f32 %v3572, %v3634
      %v5937 = vmul.f32 %v3573, %v3634
      %v5938 = vmul.f32 %v3574, %v3634
      %v5939 = vmul.f32 %v3575, %v3634
      %v5940 = vmul.f32 %v3576, %v3634
      %v5941 = vmul.f32 %v3577, %v3634
      %v5942 = vmul.f32 %v3578, %v3634
      %v5943 = vmul.f32 %v3579, %v3634
      %v5944 = vmul.f32 %v3580, %v3634
      %v5945 = vmul.f32 %v3581, %v3634
      %v5946 = vmul.f32 %v3582, %v3634
      %v5947 = vmul.f32 %v3583, %v3634
      %v5948 = vmul.f32 %v3584, %v3634
      %v5949 = vmul.f32 %v3585, %v3634
      %v5950 = vmul.f32 %v3586, %v3634
      %v5951 = vmul.f32 %v3587, %v3634
      %v5952 = vmul.f32 %v3588, %v3634
      %v5953 = vmul.f32 %v3589, %v3634
      %v5954 = vmul.f32 %v3590, %v3634
      %v5955 = vmul.f32 %v3591, %v3634
      %v5956 = vmul.f32 %v3592, %v3634
      %v5957 = vmul.f32 %v3593, %v3634
      %v5958 = vmul.f32 %v3594, %v3634
      %v5959 = vmul.f32 %v3595, %v3634
      %v5960 = vmul.f32 %v3596, %v3634
      %v5961 = vmul.f32 %v3597, %v3634
      %v5962 = vmul.f32 %v3598, %v3634
      %v5963 = vmul.f32 %v3599, %v3634
      %v5964 = vmul.f32 %v3600, %v3634
      %v5965 = vmul.f32 %v3601, %v3634
      %v5966 = vmul.f32 %v3602, %v3634
      %v5967 = vmul.f32 %v3603, %v3634
      %v5968 = vmul.f32 %v3604, %v3634
      %v5969 = vmul.f32 %v3605, %v3634
      %v5970 = vmul.f32 %v5842, 1.442695
      %v5971 = vpow.pop %v5970
      %v5972 = vmul.f32 %v5843, 1.442695
      %v5973 = vpow.pop %v5972
      %v5974 = vmul.f32 %v5844, 1.442695
      %v5975 = vpow.pop %v5974
      %v5976 = vmul.f32 %v5845, 1.442695
      %v5977 = vpow.pop %v5976
      %v5978 = vmul.f32 %v5846, 1.442695
      %v5979 = vpow.pop %v5978
      %v5980 = vmul.f32 %v5847, 1.442695
      %v5981 = vpow.pop %v5980
      %v5982 = vmul.f32 %v5848, 1.442695
      %v5983 = vpow.pop %v5982
      %v5984 = vmul.f32 %v5849, 1.442695
      %v5985 = vpow.pop %v5984
      %v5986 = vmul.f32 %v5850, 1.442695
      %v5987 = vpow.pop %v5986
      %v5988 = vmul.f32 %v5851, 1.442695
      %v5989 = vpow.pop %v5988
      %v5990 = vmul.f32 %v5852, 1.442695
      %v5991 = vpow.pop %v5990
      %v5992 = vmul.f32 %v5853, 1.442695
      %v5993 = vpow.pop %v5992
      %v5994 = vmul.f32 %v5854, 1.442695
      %v5995 = vpow.pop %v5994
      %v5996 = vmul.f32 %v5855, 1.442695
      %v5997 = vpow.pop %v5996
      %v5998 = vmul.f32 %v5856, 1.442695
      %v5999 = vpow.pop %v5998
      %v6000 = vmul.f32 %v5857, 1.442695
      %v6001 = vpow.pop %v6000
      %v6002 = vmul.f32 %v5858, 1.442695
      %v6003 = vpow.pop %v6002
      %v6004 = vmul.f32 %v5859, 1.442695
      %v6005 = vpow.pop %v6004
      %v6006 = vmul.f32 %v5860, 1.442695
      %v6007 = vpow.pop %v6006
      %v6008 = vmul.f32 %v5861, 1.442695
      %v6009 = vpow.pop %v6008
      %v6010 = vmul.f32 %v5862, 1.442695
      %v6011 = vpow.pop %v6010
      %v6012 = vmul.f32 %v5863, 1.442695
      %v6013 = vpow.pop %v6012
      %v6014 = vmul.f32 %v5864, 1.442695
      %v6015 = vpow.pop %v6014
      %v6016 = vmul.f32 %v5865, 1.442695
      %v6017 = vpow.pop %v6016
      %v6018 = vmul.f32 %v5866, 1.442695
      %v6019 = vpow.pop %v6018
      %v6020 = vmul.f32 %v5867, 1.442695
      %v6021 = vpow.pop %v6020
      %v6022 = vmul.f32 %v5868, 1.442695
      %v6023 = vpow.pop %v6022
      %v6024 = vmul.f32 %v5869, 1.442695
      %v6025 = vpow.pop %v6024
      %v6026 = vmul.f32 %v5870, 1.442695
      %v6027 = vpow.pop %v6026
      %v6028 = vmul.f32 %v5871, 1.442695
      %v6029 = vpow.pop %v6028
      %v6030 = vmul.f32 %v5872, 1.442695
      %v6031 = vpow.pop %v6030
      %v6032 = vmul.f32 %v5873, 1.442695
      %v6033 = vpow.pop %v6032
      %v6034 = vmul.f32 %v5874, 1.442695
      %v6035 = vpow.pop %v6034
      %v6036 = vmul.f32 %v5875, 1.442695
      %v6037 = vpow.pop %v6036
      %v6038 = vmul.f32 %v5876, 1.442695
      %v6039 = vpow.pop %v6038
      %v6040 = vmul.f32 %v5877, 1.442695
      %v6041 = vpow.pop %v6040
      %v6042 = vmul.f32 %v5878, 1.442695
      %v6043 = vpow.pop %v6042
      %v6044 = vmul.f32 %v5879, 1.442695
      %v6045 = vpow.pop %v6044
      %v6046 = vmul.f32 %v5880, 1.442695
      %v6047 = vpow.pop %v6046
      %v6048 = vmul.f32 %v5881, 1.442695
      %v6049 = vpow.pop %v6048
      %v6050 = vmul.f32 %v5882, 1.442695
      %v6051 = vpow.pop %v6050
      %v6052 = vmul.f32 %v5883, 1.442695
      %v6053 = vpow.pop %v6052
      %v6054 = vmul.f32 %v5884, 1.442695
      %v6055 = vpow.pop %v6054
      %v6056 = vmul.f32 %v5885, 1.442695
      %v6057 = vpow.pop %v6056
      %v6058 = vmul.f32 %v5886, 1.442695
      %v6059 = vpow.pop %v6058
      %v6060 = vmul.f32 %v5887, 1.442695
      %v6061 = vpow.pop %v6060
      %v6062 = vmul.f32 %v5888, 1.442695
      %v6063 = vpow.pop %v6062
      %v6064 = vmul.f32 %v5889, 1.442695
      %v6065 = vpow.pop %v6064
      %v6066 = vmul.f32 %v5890, 1.442695
      %v6067 = vpow.pop %v6066
      %v6068 = vmul.f32 %v5891, 1.442695
      %v6069 = vpow.pop %v6068
      %v6070 = vmul.f32 %v5892, 1.442695
      %v6071 = vpow.pop %v6070
      %v6072 = vmul.f32 %v5893, 1.442695
      %v6073 = vpow.pop %v6072
      %v6074 = vmul.f32 %v5894, 1.442695
      %v6075 = vpow.pop %v6074
      %v6076 = vmul.f32 %v5895, 1.442695
      %v6077 = vpow.pop %v6076
      %v6078 = vmul.f32 %v5896, 1.442695
      %v6079 = vpow.pop %v6078
      %v6080 = vmul.f32 %v5897, 1.442695
      %v6081 = vpow.pop %v6080
      %v6082 = vmul.f32 %v5898, 1.442695
      %v6083 = vpow.pop %v6082
      %v6084 = vmul.f32 %v5899, 1.442695
      %v6085 = vpow.pop %v6084
      %v6086 = vmul.f32 %v5900, 1.442695
      %v6087 = vpow.pop %v6086
      %v6088 = vmul.f32 %v5901, 1.442695
      %v6089 = vpow.pop %v6088
      %v6090 = vmul.f32 %v5902, 1.442695
      %v6091 = vpow.pop %v6090
      %v6092 = vmul.f32 %v5903, 1.442695
      %v6093 = vpow.pop %v6092
      %v6094 = vmul.f32 %v5904, 1.442695
      %v6095 = vpow.pop %v6094
      %v6096 = vmul.f32 %v5905, 1.442695
      %v6097 = vpow.pop %v6096
      %v6098 = vmul.f32 %v5906, 1.442695
      %v6099 = vpow.pop %v6098
      %v6100 = vmul.f32 %v5907, 1.442695
      %v6101 = vpow.pop %v6100
      %v6102 = vmul.f32 %v5908, 1.442695
      %v6103 = vpow.pop %v6102
      %v6104 = vmul.f32 %v5909, 1.442695
      %v6105 = vpow.pop %v6104
      %v6106 = vmul.f32 %v5910, 1.442695
      %v6107 = vpow.pop %v6106
      %v6108 = vmul.f32 %v5911, 1.442695
      %v6109 = vpow.pop %v6108
      %v6110 = vmul.f32 %v5912, 1.442695
      %v6111 = vpow.pop %v6110
      %v6112 = vmul.f32 %v5913, 1.442695
      %v6113 = vpow.pop %v6112
      %v6114 = vmul.f32 %v5914, 1.442695
      %v6115 = vpow.pop %v6114
      %v6116 = vmul.f32 %v5915, 1.442695
      %v6117 = vpow.pop %v6116
      %v6118 = vmul.f32 %v5916, 1.442695
      %v6119 = vpow.pop %v6118
      %v6120 = vmul.f32 %v5917, 1.442695
      %v6121 = vpow.pop %v6120
      %v6122 = vmul.f32 %v5918, 1.442695
      %v6123 = vpow.pop %v6122
      %v6124 = vmul.f32 %v5919, 1.442695
      %v6125 = vpow.pop %v6124
      %v6126 = vmul.f32 %v5920, 1.442695
      %v6127 = vpow.pop %v6126
      %v6128 = vmul.f32 %v5921, 1.442695
      %v6129 = vpow.pop %v6128
      %v6130 = vmul.f32 %v5922, 1.442695
      %v6131 = vpow.pop %v6130
      %v6132 = vmul.f32 %v5923, 1.442695
      %v6133 = vpow.pop %v6132
      %v6134 = vmul.f32 %v5924, 1.442695
      %v6135 = vpow.pop %v6134
      %v6136 = vmul.f32 %v5925, 1.442695
      %v6137 = vpow.pop %v6136
      %v6138 = vmul.f32 %v5926, 1.442695
      %v6139 = vpow.pop %v6138
      %v6140 = vmul.f32 %v5927, 1.442695
      %v6141 = vpow.pop %v6140
      %v6142 = vmul.f32 %v5928, 1.442695
      %v6143 = vpow.pop %v6142
      %v6144 = vmul.f32 %v5929, 1.442695
      %v6145 = vpow.pop %v6144
      %v6146 = vmul.f32 %v5930, 1.442695
      %v6147 = vpow.pop %v6146
      %v6148 = vmul.f32 %v5931, 1.442695
      %v6149 = vpow.pop %v6148
      %v6150 = vmul.f32 %v5932, 1.442695
      %v6151 = vpow.pop %v6150
      %v6152 = vmul.f32 %v5933, 1.442695
      %v6153 = vpow.pop %v6152
      %v6154 = vmul.f32 %v5934, 1.442695
      %v6155 = vpow.pop %v6154
      %v6156 = vmul.f32 %v5935, 1.442695
      %v6157 = vpow.pop %v6156
      %v6158 = vmul.f32 %v5936, 1.442695
      %v6159 = vpow.pop %v6158
      %v6160 = vmul.f32 %v5937, 1.442695
      %v6161 = vpow.pop %v6160
      %v6162 = vmul.f32 %v5938, 1.442695
      %v6163 = vpow.pop %v6162
      %v6164 = vmul.f32 %v5939, 1.442695
      %v6165 = vpow.pop %v6164
      %v6166 = vmul.f32 %v5940, 1.442695
      %v6167 = vpow.pop %v6166
      %v6168 = vmul.f32 %v5941, 1.442695
      %v6169 = vpow.pop %v6168
      %v6170 = vmul.f32 %v5942, 1.442695
      %v6171 = vpow.pop %v6170
      %v6172 = vmul.f32 %v5943, 1.442695
      %v6173 = vpow.pop %v6172
      %v6174 = vmul.f32 %v5944, 1.442695
      %v6175 = vpow.pop %v6174
      %v6176 = vmul.f32 %v5945, 1.442695
      %v6177 = vpow.pop %v6176
      %v6178 = vmul.f32 %v5946, 1.442695
      %v6179 = vpow.pop %v6178
      %v6180 = vmul.f32 %v5947, 1.442695
      %v6181 = vpow.pop %v6180
      %v6182 = vmul.f32 %v5948, 1.442695
      %v6183 = vpow.pop %v6182
      %v6184 = vmul.f32 %v5949, 1.442695
      %v6185 = vpow.pop %v6184
      %v6186 = vmul.f32 %v5950, 1.442695
      %v6187 = vpow.pop %v6186
      %v6188 = vmul.f32 %v5951, 1.442695
      %v6189 = vpow.pop %v6188
      %v6190 = vmul.f32 %v5952, 1.442695
      %v6191 = vpow.pop %v6190
      %v6192 = vmul.f32 %v5953, 1.442695
      %v6193 = vpow.pop %v6192
      %v6194 = vmul.f32 %v5954, 1.442695
      %v6195 = vpow.pop %v6194
      %v6196 = vmul.f32 %v5955, 1.442695
      %v6197 = vpow.pop %v6196
      %v6198 = vmul.f32 %v5956, 1.442695
      %v6199 = vpow.pop %v6198
      %v6200 = vmul.f32 %v5957, 1.442695
      %v6201 = vpow.pop %v6200
      %v6202 = vmul.f32 %v5958, 1.442695
      %v6203 = vpow.pop %v6202
      %v6204 = vmul.f32 %v5959, 1.442695
      %v6205 = vpow.pop %v6204
      %v6206 = vmul.f32 %v5960, 1.442695
      %v6207 = vpow.pop %v6206
      %v6208 = vmul.f32 %v5961, 1.442695
      %v6209 = vpow.pop %v6208
      %v6210 = vmul.f32 %v5962, 1.442695
      %v6211 = vpow.pop %v6210
      %v6212 = vmul.f32 %v5963, 1.442695
      %v6213 = vpow.pop %v6212
      %v6214 = vmul.f32 %v5964, 1.442695
      %v6215 = vpow.pop %v6214
      %v6216 = vmul.f32 %v5965, 1.442695
      %v6217 = vpow.pop %v6216
      %v6218 = vmul.f32 %v5966, 1.442695
      %v6219 = vpow.pop %v6218
      %v6220 = vmul.f32 %v5967, 1.442695
      %v6221 = vpow.pop %v6220
      %v6222 = vmul.f32 %v5968, 1.442695
      %v6223 = vpow.pop %v6222
      %v6224 = vmul.f32 %v5969, 1.442695
      %v6225 = vpow.pop %v6224
      %v6226 = vmul.f32 %v3623, %v4432
      %v6227 = vmul.f32 %v3623, %v4433
      %v6228 = vmul.f32 %v3623, %v4434
      %v6229 = vmul.f32 %v3623, %v4435
      %v6230 = vmul.f32 %v3623, %v4436
      %v6231 = vmul.f32 %v3623, %v4437
      %v6232 = vmul.f32 %v3623, %v4438
      %v6233 = vmul.f32 %v3623, %v4439
      %v6234 = vmul.f32 %v3623, %v4440
      %v6235 = vmul.f32 %v3623, %v4441
      %v6236 = vmul.f32 %v3623, %v4442
      %v6237 = vmul.f32 %v3623, %v4443
      %v6238 = vmul.f32 %v3623, %v4444
      %v6239 = vmul.f32 %v3623, %v4445
      %v6240 = vmul.f32 %v3623, %v4446
      %v6241 = vmul.f32 %v3623, %v4447
      %v6242 = vmul.f32 %v3623, %v4448
      %v6243 = vmul.f32 %v3623, %v4449
      %v6244 = vmul.f32 %v3623, %v4450
      %v6245 = vmul.f32 %v3623, %v4451
      %v6246 = vmul.f32 %v3623, %v4452
      %v6247 = vmul.f32 %v3623, %v4453
      %v6248 = vmul.f32 %v3623, %v4454
      %v6249 = vmul.f32 %v3623, %v4455
      %v6250 = vmul.f32 %v3623, %v4456
      %v6251 = vmul.f32 %v3623, %v4457
      %v6252 = vmul.f32 %v3623, %v4458
      %v6253 = vmul.f32 %v3623, %v4459
      %v6254 = vmul.f32 %v3623, %v4460
      %v6255 = vmul.f32 %v3623, %v4461
      %v6256 = vmul.f32 %v3623, %v4462
      %v6257 = vmul.f32 %v3623, %v4463
      %v6258 = vmul.f32 %v3623, %v4464
      %v6259 = vmul.f32 %v3623, %v4465
      %v6260 = vmul.f32 %v3623, %v4466
      %v6261 = vmul.f32 %v3623, %v4467
      %v6262 = vmul.f32 %v3623, %v4468
      %v6263 = vmul.f32 %v3623, %v4469
      %v6264 = vmul.f32 %v3623, %v4470
      %v6265 = vmul.f32 %v3623, %v4471
      %v6266 = vmul.f32 %v3623, %v4472
      %v6267 = vmul.f32 %v3623, %v4473
      %v6268 = vmul.f32 %v3623, %v4474
      %v6269 = vmul.f32 %v3623, %v4475
      %v6270 = vmul.f32 %v3623, %v4476
      %v6271 = vmul.f32 %v3623, %v4477
      %v6272 = vmul.f32 %v3623, %v4478
      %v6273 = vmul.f32 %v3623, %v4479
      %v6274 = vmul.f32 %v3623, %v4480
      %v6275 = vmul.f32 %v3623, %v4481
      %v6276 = vmul.f32 %v3623, %v4482
      %v6277 = vmul.f32 %v3623, %v4483
      %v6278 = vmul.f32 %v3623, %v4484
      %v6279 = vmul.f32 %v3623, %v4485
      %v6280 = vmul.f32 %v3623, %v4486
      %v6281 = vmul.f32 %v3623, %v4487
      %v6282 = vmul.f32 %v3623, %v4488
      %v6283 = vmul.f32 %v3623, %v4489
      %v6284 = vmul.f32 %v3623, %v4490
      %v6285 = vmul.f32 %v3623, %v4491
      %v6286 = vmul.f32 %v3623, %v4492
      %v6287 = vmul.f32 %v3623, %v4493
      %v6288 = vmul.f32 %v3623, %v4494
      %v6289 = vmul.f32 %v3623, %v4495
      %v6290 = vmul.f32 %v3623, %v4496
      %v6291 = vmul.f32 %v3623, %v4497
      %v6292 = vmul.f32 %v3623, %v4498
      %v6293 = vmul.f32 %v3623, %v4499
      %v6294 = vmul.f32 %v3623, %v4500
      %v6295 = vmul.f32 %v3623, %v4501
      %v6296 = vmul.f32 %v3623, %v4502
      %v6297 = vmul.f32 %v3623, %v4503
      %v6298 = vmul.f32 %v3623, %v4504
      %v6299 = vmul.f32 %v3623, %v4505
      %v6300 = vmul.f32 %v3623, %v4506
      %v6301 = vmul.f32 %v3623, %v4507
      %v6302 = vmul.f32 %v3623, %v4508
      %v6303 = vmul.f32 %v3623, %v4509
      %v6304 = vmul.f32 %v3623, %v4510
      %v6305 = vmul.f32 %v3623, %v4511
      %v6306 = vmul.f32 %v3623, %v4512
      %v6307 = vmul.f32 %v3623, %v4513
      %v6308 = vmul.f32 %v3623, %v4514
      %v6309 = vmul.f32 %v3623, %v4515
      %v6310 = vmul.f32 %v3623, %v4516
      %v6311 = vmul.f32 %v3623, %v4517
      %v6312 = vmul.f32 %v3623, %v4518
      %v6313 = vmul.f32 %v3623, %v4519
      %v6314 = vmul.f32 %v3623, %v4520
      %v6315 = vmul.f32 %v3623, %v4521
      %v6316 = vmul.f32 %v3623, %v4522
      %v6317 = vmul.f32 %v3623, %v4523
      %v6318 = vmul.f32 %v3623, %v4524
      %v6319 = vmul.f32 %v3623, %v4525
      %v6320 = vmul.f32 %v3623, %v4526
      %v6321 = vmul.f32 %v3623, %v4527
      %v6322 = vmul.f32 %v3623, %v4528
      %v6323 = vmul.f32 %v3623, %v4529
      %v6324 = vmul.f32 %v3623, %v4530
      %v6325 = vmul.f32 %v3623, %v4531
      %v6326 = vmul.f32 %v3623, %v4532
      %v6327 = vmul.f32 %v3623, %v4533
      %v6328 = vmul.f32 %v3623, %v4534
      %v6329 = vmul.f32 %v3623, %v4535
      %v6330 = vmul.f32 %v3623, %v4536
      %v6331 = vmul.f32 %v3623, %v4537
      %v6332 = vmul.f32 %v3623, %v4538
      %v6333 = vmul.f32 %v3623, %v4539
      %v6334 = vmul.f32 %v3623, %v4540
      %v6335 = vmul.f32 %v3623, %v4541
      %v6336 = vmul.f32 %v3623, %v4542
      %v6337 = vmul.f32 %v3623, %v4543
      %v6338 = vmul.f32 %v3623, %v4544
      %v6339 = vmul.f32 %v3623, %v4545
      %v6340 = vmul.f32 %v3623, %v4546
      %v6341 = vmul.f32 %v3623, %v4547
      %v6342 = vmul.f32 %v3623, %v4548
      %v6343 = vmul.f32 %v3623, %v4549
      %v6344 = vmul.f32 %v3623, %v4550
      %v6345 = vmul.f32 %v3623, %v4551
      %v6346 = vmul.f32 %v3623, %v4552
      %v6347 = vmul.f32 %v3623, %v4553
      %v6348 = vmul.f32 %v3623, %v4554
      %v6349 = vmul.f32 %v3623, %v4555
      %v6350 = vmul.f32 %v3623, %v4556
      %v6351 = vmul.f32 %v3623, %v4557
      %v6352 = vmul.f32 %v3623, %v4558
      %v6353 = vmul.f32 %v3623, %v4559
      %v6354 = vmul.f32 %v3627, %v4946
      %v6355 = vmul.f32 %v3627, %v4947
      %v6356 = vmul.f32 %v3627, %v4948
      %v6357 = vmul.f32 %v3627, %v4949
      %v6358 = vmul.f32 %v3627, %v4950
      %v6359 = vmul.f32 %v3627, %v4951
      %v6360 = vmul.f32 %v3627, %v4952
      %v6361 = vmul.f32 %v3627, %v4953
      %v6362 = vmul.f32 %v3627, %v4954
      %v6363 = vmul.f32 %v3627, %v4955
      %v6364 = vmul.f32 %v3627, %v4956
      %v6365 = vmul.f32 %v3627, %v4957
      %v6366 = vmul.f32 %v3627, %v4958
      %v6367 = vmul.f32 %v3627, %v4959
      %v6368 = vmul.f32 %v3627, %v4960
      %v6369 = vmul.f32 %v3627, %v4961
      %v6370 = vmul.f32 %v3627, %v4962
      %v6371 = vmul.f32 %v3627, %v4963
      %v6372 = vmul.f32 %v3627, %v4964
      %v6373 = vmul.f32 %v3627, %v4965
      %v6374 = vmul.f32 %v3627, %v4966
      %v6375 = vmul.f32 %v3627, %v4967
      %v6376 = vmul.f32 %v3627, %v4968
      %v6377 = vmul.f32 %v3627, %v4969
      %v6378 = vmul.f32 %v3627, %v4970
      %v6379 = vmul.f32 %v3627, %v4971
      %v6380 = vmul.f32 %v3627, %v4972
      %v6381 = vmul.f32 %v3627, %v4973
      %v6382 = vmul.f32 %v3627, %v4974
      %v6383 = vmul.f32 %v3627, %v4975
      %v6384 = vmul.f32 %v3627, %v4976
      %v6385 = vmul.f32 %v3627, %v4977
      %v6386 = vmul.f32 %v3627, %v4978
      %v6387 = vmul.f32 %v3627, %v4979
      %v6388 = vmul.f32 %v3627, %v4980
      %v6389 = vmul.f32 %v3627, %v4981
      %v6390 = vmul.f32 %v3627, %v4982
      %v6391 = vmul.f32 %v3627, %v4983
      %v6392 = vmul.f32 %v3627, %v4984
      %v6393 = vmul.f32 %v3627, %v4985
      %v6394 = vmul.f32 %v3627, %v4986
      %v6395 = vmul.f32 %v3627, %v4987
      %v6396 = vmul.f32 %v3627, %v4988
      %v6397 = vmul.f32 %v3627, %v4989
      %v6398 = vmul.f32 %v3627, %v4990
      %v6399 = vmul.f32 %v3627, %v4991
      %v6400 = vmul.f32 %v3627, %v4992
      %v6401 = vmul.f32 %v3627, %v4993
      %v6402 = vmul.f32 %v3627, %v4994
      %v6403 = vmul.f32 %v3627, %v4995
      %v6404 = vmul.f32 %v3627, %v4996
      %v6405 = vmul.f32 %v3627, %v4997
      %v6406 = vmul.f32 %v3627, %v4998
      %v6407 = vmul.f32 %v3627, %v4999
      %v6408 = vmul.f32 %v3627, %v5000
      %v6409 = vmul.f32 %v3627, %v5001
      %v6410 = vmul.f32 %v3627, %v5002
      %v6411 = vmul.f32 %v3627, %v5003
      %v6412 = vmul.f32 %v3627, %v5004
      %v6413 = vmul.f32 %v3627, %v5005
      %v6414 = vmul.f32 %v3627, %v5006
      %v6415 = vmul.f32 %v3627, %v5007
      %v6416 = vmul.f32 %v3627, %v5008
      %v6417 = vmul.f32 %v3627, %v5009
      %v6418 = vmul.f32 %v3627, %v5010
      %v6419 = vmul.f32 %v3627, %v5011
      %v6420 = vmul.f32 %v3627, %v5012
      %v6421 = vmul.f32 %v3627, %v5013
      %v6422 = vmul.f32 %v3627, %v5014
      %v6423 = vmul.f32 %v3627, %v5015
      %v6424 = vmul.f32 %v3627, %v5016
      %v6425 = vmul.f32 %v3627, %v5017
      %v6426 = vmul.f32 %v3627, %v5018
      %v6427 = vmul.f32 %v3627, %v5019
      %v6428 = vmul.f32 %v3627, %v5020
      %v6429 = vmul.f32 %v3627, %v5021
      %v6430 = vmul.f32 %v3627, %v5022
      %v6431 = vmul.f32 %v3627, %v5023
      %v6432 = vmul.f32 %v3627, %v5024
      %v6433 = vmul.f32 %v3627, %v5025
      %v6434 = vmul.f32 %v3627, %v5026
      %v6435 = vmul.f32 %v3627, %v5027
      %v6436 = vmul.f32 %v3627, %v5028
      %v6437 = vmul.f32 %v3627, %v5029
      %v6438 = vmul.f32 %v3627, %v5030
      %v6439 = vmul.f32 %v3627, %v5031
      %v6440 = vmul.f32 %v3627, %v5032
      %v6441 = vmul.f32 %v3627, %v5033
      %v6442 = vmul.f32 %v3627, %v5034
      %v6443 = vmul.f32 %v3627, %v5035
      %v6444 = vmul.f32 %v3627, %v5036
      %v6445 = vmul.f32 %v3627, %v5037
      %v6446 = vmul.f32 %v3627, %v5038
      %v6447 = vmul.f32 %v3627, %v5039
      %v6448 = vmul.f32 %v3627, %v5040
      %v6449 = vmul.f32 %v3627, %v5041
      %v6450 = vmul.f32 %v3627, %v5042
      %v6451 = vmul.f32 %v3627, %v5043
      %v6452 = vmul.f32 %v3627, %v5044
      %v6453 = vmul.f32 %v3627, %v5045
      %v6454 = vmul.f32 %v3627, %v5046
      %v6455 = vmul.f32 %v3627, %v5047
      %v6456 = vmul.f32 %v3627, %v5048
      %v6457 = vmul.f32 %v3627, %v5049
      %v6458 = vmul.f32 %v3627, %v5050
      %v6459 = vmul.f32 %v3627, %v5051
      %v6460 = vmul.f32 %v3627, %v5052
      %v6461 = vmul.f32 %v3627, %v5053
      %v6462 = vmul.f32 %v3627, %v5054
      %v6463 = vmul.f32 %v3627, %v5055
      %v6464 = vmul.f32 %v3627, %v5056
      %v6465 = vmul.f32 %v3627, %v5057
      %v6466 = vmul.f32 %v3627, %v5058
      %v6467 = vmul.f32 %v3627, %v5059
      %v6468 = vmul.f32 %v3627, %v5060
      %v6469 = vmul.f32 %v3627, %v5061
      %v6470 = vmul.f32 %v3627, %v5062
      %v6471 = vmul.f32 %v3627, %v5063
      %v6472 = vmul.f32 %v3627, %v5064
      %v6473 = vmul.f32 %v3627, %v5065
      %v6474 = vmul.f32 %v3627, %v5066
      %v6475 = vmul.f32 %v3627, %v5067
      %v6476 = vmul.f32 %v3627, %v5068
      %v6477 = vmul.f32 %v3627, %v5069
      %v6478 = vmul.f32 %v3627, %v5070
      %v6479 = vmul.f32 %v3627, %v5071
      %v6480 = vmul.f32 %v3627, %v5072
      %v6481 = vmul.f32 %v3627, %v5073
      %v6482 = vadd.f32 %v6226, %v6354
      %v6483 = vadd.f32 %v6227, %v6355
      %v6484 = vadd.f32 %v6228, %v6356
      %v6485 = vadd.f32 %v6229, %v6357
      %v6486 = vadd.f32 %v6230, %v6358
      %v6487 = vadd.f32 %v6231, %v6359
      %v6488 = vadd.f32 %v6232, %v6360
      %v6489 = vadd.f32 %v6233, %v6361
      %v6490 = vadd.f32 %v6234, %v6362
      %v6491 = vadd.f32 %v6235, %v6363
      %v6492 = vadd.f32 %v6236, %v6364
      %v6493 = vadd.f32 %v6237, %v6365
      %v6494 = vadd.f32 %v6238, %v6366
      %v6495 = vadd.f32 %v6239, %v6367
      %v6496 = vadd.f32 %v6240, %v6368
      %v6497 = vadd.f32 %v6241, %v6369
      %v6498 = vadd.f32 %v6242, %v6370
      %v6499 = vadd.f32 %v6243, %v6371
      %v6500 = vadd.f32 %v6244, %v6372
      %v6501 = vadd.f32 %v6245, %v6373
      %v6502 = vadd.f32 %v6246, %v6374
      %v6503 = vadd.f32 %v6247, %v6375
      %v6504 = vadd.f32 %v6248, %v6376
      %v6505 = vadd.f32 %v6249, %v6377
      %v6506 = vadd.f32 %v6250, %v6378
      %v6507 = vadd.f32 %v6251, %v6379
      %v6508 = vadd.f32 %v6252, %v6380
      %v6509 = vadd.f32 %v6253, %v6381
      %v6510 = vadd.f32 %v6254, %v6382
      %v6511 = vadd.f32 %v6255, %v6383
      %v6512 = vadd.f32 %v6256, %v6384
      %v6513 = vadd.f32 %v6257, %v6385
      %v6514 = vadd.f32 %v6258, %v6386
      %v6515 = vadd.f32 %v6259, %v6387
      %v6516 = vadd.f32 %v6260, %v6388
      %v6517 = vadd.f32 %v6261, %v6389
      %v6518 = vadd.f32 %v6262, %v6390
      %v6519 = vadd.f32 %v6263, %v6391
      %v6520 = vadd.f32 %v6264, %v6392
      %v6521 = vadd.f32 %v6265, %v6393
      %v6522 = vadd.f32 %v6266, %v6394
      %v6523 = vadd.f32 %v6267, %v6395
      %v6524 = vadd.f32 %v6268, %v6396
      %v6525 = vadd.f32 %v6269, %v6397
      %v6526 = vadd.f32 %v6270, %v6398
      %v6527 = vadd.f32 %v6271, %v6399
      %v6528 = vadd.f32 %v6272, %v6400
      %v6529 = vadd.f32 %v6273, %v6401
      %v6530 = vadd.f32 %v6274, %v6402
      %v6531 = vadd.f32 %v6275, %v6403
      %v6532 = vadd.f32 %v6276, %v6404
      %v6533 = vadd.f32 %v6277, %v6405
      %v6534 = vadd.f32 %v6278, %v6406
      %v6535 = vadd.f32 %v6279, %v6407
      %v6536 = vadd.f32 %v6280, %v6408
      %v6537 = vadd.f32 %v6281, %v6409
      %v6538 = vadd.f32 %v6282, %v6410
      %v6539 = vadd.f32 %v6283, %v6411
      %v6540 = vadd.f32 %v6284, %v6412
      %v6541 = vadd.f32 %v6285, %v6413
      %v6542 = vadd.f32 %v6286, %v6414
      %v6543 = vadd.f32 %v6287, %v6415
      %v6544 = vadd.f32 %v6288, %v6416
      %v6545 = vadd.f32 %v6289, %v6417
      %v6546 = vadd.f32 %v6290, %v6418
      %v6547 = vadd.f32 %v6291, %v6419
      %v6548 = vadd.f32 %v6292, %v6420
      %v6549 = vadd.f32 %v6293, %v6421
      %v6550 = vadd.f32 %v6294, %v6422
      %v6551 = vadd.f32 %v6295, %v6423
      %v6552 = vadd.f32 %v6296, %v6424
      %v6553 = vadd.f32 %v6297, %v6425
      %v6554 = vadd.f32 %v6298, %v6426
      %v6555 = vadd.f32 %v6299, %v6427
      %v6556 = vadd.f32 %v6300, %v6428
      %v6557 = vadd.f32 %v6301, %v6429
      %v6558 = vadd.f32 %v6302, %v6430
      %v6559 = vadd.f32 %v6303, %v6431
      %v6560 = vadd.f32 %v6304, %v6432
      %v6561 = vadd.f32 %v6305, %v6433
      %v6562 = vadd.f32 %v6306, %v6434
      %v6563 = vadd.f32 %v6307, %v6435
      %v6564 = vadd.f32 %v6308, %v6436
      %v6565 = vadd.f32 %v6309, %v6437
      %v6566 = vadd.f32 %v6310, %v6438
      %v6567 = vadd.f32 %v6311, %v6439
      %v6568 = vadd.f32 %v6312, %v6440
      %v6569 = vadd.f32 %v6313, %v6441
      %v6570 = vadd.f32 %v6314, %v6442
      %v6571 = vadd.f32 %v6315, %v6443
      %v6572 = vadd.f32 %v6316, %v6444
      %v6573 = vadd.f32 %v6317, %v6445
      %v6574 = vadd.f32 %v6318, %v6446
      %v6575 = vadd.f32 %v6319, %v6447
      %v6576 = vadd.f32 %v6320, %v6448
      %v6577 = vadd.f32 %v6321, %v6449
      %v6578 = vadd.f32 %v6322, %v6450
      %v6579 = vadd.f32 %v6323, %v6451
      %v6580 = vadd.f32 %v6324, %v6452
      %v6581 = vadd.f32 %v6325, %v6453
      %v6582 = vadd.f32 %v6326, %v6454
      %v6583 = vadd.f32 %v6327, %v6455
      %v6584 = vadd.f32 %v6328, %v6456
      %v6585 = vadd.f32 %v6329, %v6457
      %v6586 = vadd.f32 %v6330, %v6458
      %v6587 = vadd.f32 %v6331, %v6459
      %v6588 = vadd.f32 %v6332, %v6460
      %v6589 = vadd.f32 %v6333, %v6461
      %v6590 = vadd.f32 %v6334, %v6462
      %v6591 = vadd.f32 %v6335, %v6463
      %v6592 = vadd.f32 %v6336, %v6464
      %v6593 = vadd.f32 %v6337, %v6465
      %v6594 = vadd.f32 %v6338, %v6466
      %v6595 = vadd.f32 %v6339, %v6467
      %v6596 = vadd.f32 %v6340, %v6468
      %v6597 = vadd.f32 %v6341, %v6469
      %v6598 = vadd.f32 %v6342, %v6470
      %v6599 = vadd.f32 %v6343, %v6471
      %v6600 = vadd.f32 %v6344, %v6472
      %v6601 = vadd.f32 %v6345, %v6473
      %v6602 = vadd.f32 %v6346, %v6474
      %v6603 = vadd.f32 %v6347, %v6475
      %v6604 = vadd.f32 %v6348, %v6476
      %v6605 = vadd.f32 %v6349, %v6477
      %v6606 = vadd.f32 %v6350, %v6478
      %v6607 = vadd.f32 %v6351, %v6479
      %v6608 = vadd.f32 %v6352, %v6480
      %v6609 = vadd.f32 %v6353, %v6481
      %v6610 = vmul.f32 %v3628, %v3478
      %v6611 = vmul.f32 %v3628, %v3479
      %v6612 = vmul.f32 %v3628, %v3480
      %v6613 = vmul.f32 %v3628, %v3481
      %v6614 = vmul.f32 %v3628, %v3482
      %v6615 = vmul.f32 %v3628, %v3483
      %v6616 = vmul.f32 %v3628, %v3484
      %v6617 = vmul.f32 %v3628, %v3485
      %v6618 = vmul.f32 %v3628, %v3486
      %v6619 = vmul.f32 %v3628, %v3487
      %v6620 = vmul.f32 %v3628, %v3488
      %v6621 = vmul.f32 %v3628, %v3489
      %v6622 = vmul.f32 %v3628, %v3490
      %v6623 = vmul.f32 %v3628, %v3491
      %v6624 = vmul.f32 %v3628, %v3492
      %v6625 = vmul.f32 %v3628, %v3493
      %v6626 = vmul.f32 %v3628, %v3494
      %v6627 = vmul.f32 %v3628, %v3495
      %v6628 = vmul.f32 %v3628, %v3496
      %v6629 = vmul.f32 %v3628, %v3497
      %v6630 = vmul.f32 %v3628, %v3498
      %v6631 = vmul.f32 %v3628, %v3499
      %v6632 = vmul.f32 %v3628, %v3500
      %v6633 = vmul.f32 %v3628, %v3501
      %v6634 = vmul.f32 %v3628, %v3502
      %v6635 = vmul.f32 %v3628, %v3503
      %v6636 = vmul.f32 %v3628, %v3504
      %v6637 = vmul.f32 %v3628, %v3505
      %v6638 = vmul.f32 %v3628, %v3506
      %v6639 = vmul.f32 %v3628, %v3507
      %v6640 = vmul.f32 %v3628, %v3508
      %v6641 = vmul.f32 %v3628, %v3509
      %v6642 = vmul.f32 %v3628, %v3510
      %v6643 = vmul.f32 %v3628, %v3511
      %v6644 = vmul.f32 %v3628, %v3512
      %v6645 = vmul.f32 %v3628, %v3513
      %v6646 = vmul.f32 %v3628, %v3514
      %v6647 = vmul.f32 %v3628, %v3515
      %v6648 = vmul.f32 %v3628, %v3516
      %v6649 = vmul.f32 %v3628, %v3517
      %v6650 = vmul.f32 %v3628, %v3518
      %v6651 = vmul.f32 %v3628, %v3519
      %v6652 = vmul.f32 %v3628, %v3520
      %v6653 = vmul.f32 %v3628, %v3521
      %v6654 = vmul.f32 %v3628, %v3522
      %v6655 = vmul.f32 %v3628, %v3523
      %v6656 = vmul.f32 %v3628, %v3524
      %v6657 = vmul.f32 %v3628, %v3525
      %v6658 = vmul.f32 %v3628, %v3526
      %v6659 = vmul.f32 %v3628, %v3527
      %v6660 = vmul.f32 %v3628, %v3528
      %v6661 = vmul.f32 %v3628, %v3529
      %v6662 = vmul.f32 %v3628, %v3530
      %v6663 = vmul.f32 %v3628, %v3531
      %v6664 = vmul.f32 %v3628, %v3532
      %v6665 = vmul.f32 %v3628, %v3533
      %v6666 = vmul.f32 %v3628, %v3534
      %v6667 = vmul.f32 %v3628, %v3535
      %v6668 = vmul.f32 %v3628, %v3536
      %v6669 = vmul.f32 %v3628, %v3537
      %v6670 = vmul.f32 %v3628, %v3538
      %v6671 = vmul.f32 %v3628, %v3539
      %v6672 = vmul.f32 %v3628, %v3540
      %v6673 = vmul.f32 %v3628, %v3541
      %v6674 = vmul.f32 %v3628, %v3542
      %v6675 = vmul.f32 %v3628, %v3543
      %v6676 = vmul.f32 %v3628, %v3544
      %v6677 = vmul.f32 %v3628, %v3545
      %v6678 = vmul.f32 %v3628, %v3546
      %v6679 = vmul.f32 %v3628, %v3547
      %v6680 = vmul.f32 %v3628, %v3548
      %v6681 = vmul.f32 %v3628, %v3549
      %v6682 = vmul.f32 %v3628, %v3550
      %v6683 = vmul.f32 %v3628, %v3551
      %v6684 = vmul.f32 %v3628, %v3552
      %v6685 = vmul.f32 %v3628, %v3553
      %v6686 = vmul.f32 %v3628, %v3554
      %v6687 = vmul.f32 %v3628, %v3555
      %v6688 = vmul.f32 %v3628, %v3556
      %v6689 = vmul.f32 %v3628, %v3557
      %v6690 = vmul.f32 %v3628, %v3558
      %v6691 = vmul.f32 %v3628, %v3559
      %v6692 = vmul.f32 %v3628, %v3560
      %v6693 = vmul.f32 %v3628, %v3561
      %v6694 = vmul.f32 %v3628, %v3562
      %v6695 = vmul.f32 %v3628, %v3563
      %v6696 = vmul.f32 %v3628, %v3564
      %v6697 = vmul.f32 %v3628, %v3565
      %v6698 = vmul.f32 %v3628, %v3566
      %v6699 = vmul.f32 %v3628, %v3567
      %v6700 = vmul.f32 %v3628, %v3568
      %v6701 = vmul.f32 %v3628, %v3569
      %v6702 = vmul.f32 %v3628, %v3570
      %v6703 = vmul.f32 %v3628, %v3571
      %v6704 = vmul.f32 %v3628, %v3572
      %v6705 = vmul.f32 %v3628, %v3573
      %v6706 = vmul.f32 %v3628, %v3574
      %v6707 = vmul.f32 %v3628, %v3575
      %v6708 = vmul.f32 %v3628, %v3576
      %v6709 = vmul.f32 %v3628, %v3577
      %v6710 = vmul.f32 %v3628, %v3578
      %v6711 = vmul.f32 %v3628, %v3579
      %v6712 = vmul.f32 %v3628, %v3580
      %v6713 = vmul.f32 %v3628, %v3581
      %v6714 = vmul.f32 %v3628, %v3582
      %v6715 = vmul.f32 %v3628, %v3583
      %v6716 = vmul.f32 %v3628, %v3584
      %v6717 = vmul.f32 %v3628, %v3585
      %v6718 = vmul.f32 %v3628, %v3586
      %v6719 = vmul.f32 %v3628, %v3587
      %v6720 = vmul.f32 %v3628, %v3588
      %v6721 = vmul.f32 %v3628, %v3589
      %v6722 = vmul.f32 %v3628, %v3590
      %v6723 = vmul.f32 %v3628, %v3591
      %v6724 = vmul.f32 %v3628, %v3592
      %v6725 = vmul.f32 %v3628, %v3593
      %v6726 = vmul.f32 %v3628, %v3594
      %v6727 = vmul.f32 %v3628, %v3595
      %v6728 = vmul.f32 %v3628, %v3596
      %v6729 = vmul.f32 %v3628, %v3597
      %v6730 = vmul.f32 %v3628, %v3598
      %v6731 = vmul.f32 %v3628, %v3599
      %v6732 = vmul.f32 %v3628, %v3600
      %v6733 = vmul.f32 %v3628, %v3601
      %v6734 = vmul.f32 %v3628, %v3602
      %v6735 = vmul.f32 %v3628, %v3603
      %v6736 = vmul.f32 %v3628, %v3604
      %v6737 = vmul.f32 %v3628, %v3605
      %v6738 = vadd.f32 %v6482, %v6610
      %v6739 = vadd.f32 %v6483, %v6611
      %v6740 = vadd.f32 %v6484, %v6612
      %v6741 = vadd.f32 %v6485, %v6613
      %v6742 = vadd.f32 %v6486, %v6614
      %v6743 = vadd.f32 %v6487, %v6615
      %v6744 = vadd.f32 %v6488, %v6616
      %v6745 = vadd.f32 %v6489, %v6617
      %v6746 = vadd.f32 %v6490, %v6618
      %v6747 = vadd.f32 %v6491, %v6619
      %v6748 = vadd.f32 %v6492, %v6620
      %v6749 = vadd.f32 %v6493, %v6621
      %v6750 = vadd.f32 %v6494, %v6622
      %v6751 = vadd.f32 %v6495, %v6623
      %v6752 = vadd.f32 %v6496, %v6624
      %v6753 = vadd.f32 %v6497, %v6625
      %v6754 = vadd.f32 %v6498, %v6626
      %v6755 = vadd.f32 %v6499, %v6627
      %v6756 = vadd.f32 %v6500, %v6628
      %v6757 = vadd.f32 %v6501, %v6629
      %v6758 = vadd.f32 %v6502, %v6630
      %v6759 = vadd.f32 %v6503, %v6631
      %v6760 = vadd.f32 %v6504, %v6632
      %v6761 = vadd.f32 %v6505, %v6633
      %v6762 = vadd.f32 %v6506, %v6634
      %v6763 = vadd.f32 %v6507, %v6635
      %v6764 = vadd.f32 %v6508, %v6636
      %v6765 = vadd.f32 %v6509, %v6637
      %v6766 = vadd.f32 %v6510, %v6638
      %v6767 = vadd.f32 %v6511, %v6639
      %v6768 = vadd.f32 %v6512, %v6640
      %v6769 = vadd.f32 %v6513, %v6641
      %v6770 = vadd.f32 %v6514, %v6642
      %v6771 = vadd.f32 %v6515, %v6643
      %v6772 = vadd.f32 %v6516, %v6644
      %v6773 = vadd.f32 %v6517, %v6645
      %v6774 = vadd.f32 %v6518, %v6646
      %v6775 = vadd.f32 %v6519, %v6647
      %v6776 = vadd.f32 %v6520, %v6648
      %v6777 = vadd.f32 %v6521, %v6649
      %v6778 = vadd.f32 %v6522, %v6650
      %v6779 = vadd.f32 %v6523, %v6651
      %v6780 = vadd.f32 %v6524, %v6652
      %v6781 = vadd.f32 %v6525, %v6653
      %v6782 = vadd.f32 %v6526, %v6654
      %v6783 = vadd.f32 %v6527, %v6655
      %v6784 = vadd.f32 %v6528, %v6656
      %v6785 = vadd.f32 %v6529, %v6657
      %v6786 = vadd.f32 %v6530, %v6658
      %v6787 = vadd.f32 %v6531, %v6659
      %v6788 = vadd.f32 %v6532, %v6660
      %v6789 = vadd.f32 %v6533, %v6661
      %v6790 = vadd.f32 %v6534, %v6662
      %v6791 = vadd.f32 %v6535, %v6663
      %v6792 = vadd.f32 %v6536, %v6664
      %v6793 = vadd.f32 %v6537, %v6665
      %v6794 = vadd.f32 %v6538, %v6666
      %v6795 = vadd.f32 %v6539, %v6667
      %v6796 = vadd.f32 %v6540, %v6668
      %v6797 = vadd.f32 %v6541, %v6669
      %v6798 = vadd.f32 %v6542, %v6670
      %v6799 = vadd.f32 %v6543, %v6671
      %v6800 = vadd.f32 %v6544, %v6672
      %v6801 = vadd.f32 %v6545, %v6673
      %v6802 = vadd.f32 %v6546, %v6674
      %v6803 = vadd.f32 %v6547, %v6675
      %v6804 = vadd.f32 %v6548, %v6676
      %v6805 = vadd.f32 %v6549, %v6677
      %v6806 = vadd.f32 %v6550, %v6678
      %v6807 = vadd.f32 %v6551, %v6679
      %v6808 = vadd.f32 %v6552, %v6680
      %v6809 = vadd.f32 %v6553, %v6681
      %v6810 = vadd.f32 %v6554, %v6682
      %v6811 = vadd.f32 %v6555, %v6683
      %v6812 = vadd.f32 %v6556, %v6684
      %v6813 = vadd.f32 %v6557, %v6685
      %v6814 = vadd.f32 %v6558, %v6686
      %v6815 = vadd.f32 %v6559, %v6687
      %v6816 = vadd.f32 %v6560, %v6688
      %v6817 = vadd.f32 %v6561, %v6689
      %v6818 = vadd.f32 %v6562, %v6690
      %v6819 = vadd.f32 %v6563, %v6691
      %v6820 = vadd.f32 %v6564, %v6692
      %v6821 = vadd.f32 %v6565, %v6693
      %v6822 = vadd.f32 %v6566, %v6694
      %v6823 = vadd.f32 %v6567, %v6695
      %v6824 = vadd.f32 %v6568, %v6696
      %v6825 = vadd.f32 %v6569, %v6697
      %v6826 = vadd.f32 %v6570, %v6698
      %v6827 = vadd.f32 %v6571, %v6699
      %v6828 = vadd.f32 %v6572, %v6700
      %v6829 = vadd.f32 %v6573, %v6701
      %v6830 = vadd.f32 %v6574, %v6702
      %v6831 = vadd.f32 %v6575, %v6703
      %v6832 = vadd.f32 %v6576, %v6704
      %v6833 = vadd.f32 %v6577, %v6705
      %v6834 = vadd.f32 %v6578, %v6706
      %v6835 = vadd.f32 %v6579, %v6707
      %v6836 = vadd.f32 %v6580, %v6708
      %v6837 = vadd.f32 %v6581, %v6709
      %v6838 = vadd.f32 %v6582, %v6710
      %v6839 = vadd.f32 %v6583, %v6711
      %v6840 = vadd.f32 %v6584, %v6712
      %v6841 = vadd.f32 %v6585, %v6713
      %v6842 = vadd.f32 %v6586, %v6714
      %v6843 = vadd.f32 %v6587, %v6715
      %v6844 = vadd.f32 %v6588, %v6716
      %v6845 = vadd.f32 %v6589, %v6717
      %v6846 = vadd.f32 %v6590, %v6718
      %v6847 = vadd.f32 %v6591, %v6719
      %v6848 = vadd.f32 %v6592, %v6720
      %v6849 = vadd.f32 %v6593, %v6721
      %v6850 = vadd.f32 %v6594, %v6722
      %v6851 = vadd.f32 %v6595, %v6723
      %v6852 = vadd.f32 %v6596, %v6724
      %v6853 = vadd.f32 %v6597, %v6725
      %v6854 = vadd.f32 %v6598, %v6726
      %v6855 = vadd.f32 %v6599, %v6727
      %v6856 = vadd.f32 %v6600, %v6728
      %v6857 = vadd.f32 %v6601, %v6729
      %v6858 = vadd.f32 %v6602, %v6730
      %v6859 = vadd.f32 %v6603, %v6731
      %v6860 = vadd.f32 %v6604, %v6732
      %v6861 = vadd.f32 %v6605, %v6733
      %v6862 = vadd.f32 %v6606, %v6734
      %v6863 = vadd.f32 %v6607, %v6735
      %v6864 = vadd.f32 %v6608, %v6736
      %v6865 = vadd.f32 %v6609, %v6737
      %v6866 = vstv %s238
      %v6867 = vmul.f32 %v6738, %v6866
      %v6868 = vmul.f32 %v6739, %v6866
      %v6869 = vmul.f32 %v6740, %v6866
      %v6870 = vmul.f32 %v6741, %v6866
      %v6871 = vmul.f32 %v6742, %v6866
      %v6872 = vmul.f32 %v6743, %v6866
      %v6873 = vmul.f32 %v6744, %v6866
      %v6874 = vmul.f32 %v6745, %v6866
      %v6875 = vmul.f32 %v6746, %v6866
      %v6876 = vmul.f32 %v6747, %v6866
      %v6877 = vmul.f32 %v6748, %v6866
      %v6878 = vmul.f32 %v6749, %v6866
      %v6879 = vmul.f32 %v6750, %v6866
      %v6880 = vmul.f32 %v6751, %v6866
      %v6881 = vmul.f32 %v6752, %v6866
      %v6882 = vmul.f32 %v6753, %v6866
      %v6883 = vmul.f32 %v6754, %v6866
      %v6884 = vmul.f32 %v6755, %v6866
      %v6885 = vmul.f32 %v6756, %v6866
      %v6886 = vmul.f32 %v6757, %v6866
      %v6887 = vmul.f32 %v6758, %v6866
      %v6888 = vmul.f32 %v6759, %v6866
      %v6889 = vmul.f32 %v6760, %v6866
      %v6890 = vmul.f32 %v6761, %v6866
      %v6891 = vmul.f32 %v6762, %v6866
      %v6892 = vmul.f32 %v6763, %v6866
      %v6893 = vmul.f32 %v6764, %v6866
      %v6894 = vmul.f32 %v6765, %v6866
      %v6895 = vmul.f32 %v6766, %v6866
      %v6896 = vmul.f32 %v6767, %v6866
      %v6897 = vmul.f32 %v6768, %v6866
      %v6898 = vmul.f32 %v6769, %v6866
      %v6899 = vmul.f32 %v6770, %v6866
      %v6900 = vmul.f32 %v6771, %v6866
      %v6901 = vmul.f32 %v6772, %v6866
      %v6902 = vmul.f32 %v6773, %v6866
      %v6903 = vmul.f32 %v6774, %v6866
      %v6904 = vmul.f32 %v6775, %v6866
      %v6905 = vmul.f32 %v6776, %v6866
      %v6906 = vmul.f32 %v6777, %v6866
      %v6907 = vmul.f32 %v6778, %v6866
      %v6908 = vmul.f32 %v6779, %v6866
      %v6909 = vmul.f32 %v6780, %v6866
      %v6910 = vmul.f32 %v6781, %v6866
      %v6911 = vmul.f32 %v6782, %v6866
      %v6912 = vmul.f32 %v6783, %v6866
      %v6913 = vmul.f32 %v6784, %v6866
      %v6914 = vmul.f32 %v6785, %v6866
      %v6915 = vmul.f32 %v6786, %v6866
      %v6916 = vmul.f32 %v6787, %v6866
      %v6917 = vmul.f32 %v6788, %v6866
      %v6918 = vmul.f32 %v6789, %v6866
      %v6919 = vmul.f32 %v6790, %v6866
      %v6920 = vmul.f32 %v6791, %v6866
      %v6921 = vmul.f32 %v6792, %v6866
      %v6922 = vmul.f32 %v6793, %v6866
      %v6923 = vmul.f32 %v6794, %v6866
      %v6924 = vmul.f32 %v6795, %v6866
      %v6925 = vmul.f32 %v6796, %v6866
      %v6926 = vmul.f32 %v6797, %v6866
      %v6927 = vmul.f32 %v6798, %v6866
      %v6928 = vmul.f32 %v6799, %v6866
      %v6929 = vmul.f32 %v6800, %v6866
      %v6930 = vmul.f32 %v6801, %v6866
      %v6931 = vmul.f32 %v6802, %v6866
      %v6932 = vmul.f32 %v6803, %v6866
      %v6933 = vmul.f32 %v6804, %v6866
      %v6934 = vmul.f32 %v6805, %v6866
      %v6935 = vmul.f32 %v6806, %v6866
      %v6936 = vmul.f32 %v6807, %v6866
      %v6937 = vmul.f32 %v6808, %v6866
      %v6938 = vmul.f32 %v6809, %v6866
      %v6939 = vmul.f32 %v6810, %v6866
      %v6940 = vmul.f32 %v6811, %v6866
      %v6941 = vmul.f32 %v6812, %v6866
      %v6942 = vmul.f32 %v6813, %v6866
      %v6943 = vmul.f32 %v6814, %v6866
      %v6944 = vmul.f32 %v6815, %v6866
      %v6945 = vmul.f32 %v6816, %v6866
      %v6946 = vmul.f32 %v6817, %v6866
      %v6947 = vmul.f32 %v6818, %v6866
      %v6948 = vmul.f32 %v6819, %v6866
      %v6949 = vmul.f32 %v6820, %v6866
      %v6950 = vmul.f32 %v6821, %v6866
      %v6951 = vmul.f32 %v6822, %v6866
      %v6952 = vmul.f32 %v6823, %v6866
      %v6953 = vmul.f32 %v6824, %v6866
      %v6954 = vmul.f32 %v6825, %v6866
      %v6955 = vmul.f32 %v6826, %v6866
      %v6956 = vmul.f32 %v6827, %v6866
      %v6957 = vmul.f32 %v6828, %v6866
      %v6958 = vmul.f32 %v6829, %v6866
      %v6959 = vmul.f32 %v6830, %v6866
      %v6960 = vmul.f32 %v6831, %v6866
      %v6961 = vmul.f32 %v6832, %v6866
      %v6962 = vmul.f32 %v6833, %v6866
      %v6963 = vmul.f32 %v6834, %v6866
      %v6964 = vmul.f32 %v6835, %v6866
      %v6965 = vmul.f32 %v6836, %v6866
      %v6966 = vmul.f32 %v6837, %v6866
      %v6967 = vmul.f32 %v6838, %v6866
      %v6968 = vmul.f32 %v6839, %v6866
      %v6969 = vmul.f32 %v6840, %v6866
      %v6970 = vmul.f32 %v6841, %v6866
      %v6971 = vmul.f32 %v6842, %v6866
      %v6972 = vmul.f32 %v6843, %v6866
      %v6973 = vmul.f32 %v6844, %v6866
      %v6974 = vmul.f32 %v6845, %v6866
      %v6975 = vmul.f32 %v6846, %v6866
      %v6976 = vmul.f32 %v6847, %v6866
      %v6977 = vmul.f32 %v6848, %v6866
      %v6978 = vmul.f32 %v6849, %v6866
      %v6979 = vmul.f32 %v6850, %v6866
      %v6980 = vmul.f32 %v6851, %v6866
      %v6981 = vmul.f32 %v6852, %v6866
      %v6982 = vmul.f32 %v6853, %v6866
      %v6983 = vmul.f32 %v6854, %v6866
      %v6984 = vmul.f32 %v6855, %v6866
      %v6985 = vmul.f32 %v6856, %v6866
      %v6986 = vmul.f32 %v6857, %v6866
      %v6987 = vmul.f32 %v6858, %v6866
      %v6988 = vmul.f32 %v6859, %v6866
      %v6989 = vmul.f32 %v6860, %v6866
      %v6990 = vmul.f32 %v6861, %v6866
      %v6991 = vmul.f32 %v6862, %v6866
      %v6992 = vmul.f32 %v6863, %v6866
      %v6993 = vmul.f32 %v6864, %v6866
      %v6994 = vmul.f32 %v6865, %v6866
      %v6995 = vmul.f32 %v3619, %v5587
      %v6996 = vmul.f32 %v3619, %v5589
      %v6997 = vmul.f32 %v3619, %v5591
      %v6998 = vmul.f32 %v3619, %v5593
      %v6999 = vmul.f32 %v3619, %v5595
      %v7000 = vmul.f32 %v3619, %v5597
      %v7001 = vmul.f32 %v3619, %v5599
      %v7002 = vmul.f32 %v3619, %v5601
      %v7003 = vmul.f32 %v3619, %v5603
      %v7004 = vmul.f32 %v3619, %v5605
      %v7005 = vmul.f32 %v3619, %v5607
      %v7006 = vmul.f32 %v3619, %v5609
      %v7007 = vmul.f32 %v3619, %v5611
      %v7008 = vmul.f32 %v3619, %v5613
      %v7009 = vmul.f32 %v3619, %v5615
      %v7010 = vmul.f32 %v3619, %v5617
      %v7011 = vmul.f32 %v3619, %v5619
      %v7012 = vmul.f32 %v3619, %v5621
      %v7013 = vmul.f32 %v3619, %v5623
      %v7014 = vmul.f32 %v3619, %v5625
      %v7015 = vmul.f32 %v3619, %v5627
      %v7016 = vmul.f32 %v3619, %v5629
      %v7017 = vmul.f32 %v3619, %v5631
      %v7018 = vmul.f32 %v3619, %v5633
      %v7019 = vmul.f32 %v3619, %v5635
      %v7020 = vmul.f32 %v3619, %v5637
      %v7021 = vmul.f32 %v3619, %v5639
      %v7022 = vmul.f32 %v3619, %v5641
      %v7023 = vmul.f32 %v3619, %v5643
      %v7024 = vmul.f32 %v3619, %v5645
      %v7025 = vmul.f32 %v3619, %v5647
      %v7026 = vmul.f32 %v3619, %v5649
      %v7027 = vmul.f32 %v3619, %v5651
      %v7028 = vmul.f32 %v3619, %v5653
      %v7029 = vmul.f32 %v3619, %v5655
      %v7030 = vmul.f32 %v3619, %v5657
      %v7031 = vmul.f32 %v3619, %v5659
      %v7032 = vmul.f32 %v3619, %v5661
      %v7033 = vmul.f32 %v3619, %v5663
      %v7034 = vmul.f32 %v3619, %v5665
      %v7035 = vmul.f32 %v3619, %v5667
      %v7036 = vmul.f32 %v3619, %v5669
      %v7037 = vmul.f32 %v3619, %v5671
      %v7038 = vmul.f32 %v3619, %v5673
      %v7039 = vmul.f32 %v3619, %v5675
      %v7040 = vmul.f32 %v3619, %v5677
      %v7041 = vmul.f32 %v3619, %v5679
      %v7042 = vmul.f32 %v3619, %v5681
      %v7043 = vmul.f32 %v3619, %v5683
      %v7044 = vmul.f32 %v3619, %v5685
      %v7045 = vmul.f32 %v3619, %v5687
      %v7046 = vmul.f32 %v3619, %v5689
      %v7047 = vmul.f32 %v3619, %v5691
      %v7048 = vmul.f32 %v3619, %v5693
      %v7049 = vmul.f32 %v3619, %v5695
      %v7050 = vmul.f32 %v3619, %v5697
      %v7051 = vmul.f32 %v3619, %v5699
      %v7052 = vmul.f32 %v3619, %v5701
      %v7053 = vmul.f32 %v3619, %v5703
      %v7054 = vmul.f32 %v3619, %v5705
      %v7055 = vmul.f32 %v3619, %v5707
      %v7056 = vmul.f32 %v3619, %v5709
      %v7057 = vmul.f32 %v3619, %v5711
      %v7058 = vmul.f32 %v3619, %v5713
      %v7059 = vmul.f32 %v3619, %v5715
      %v7060 = vmul.f32 %v3619, %v5717
      %v7061 = vmul.f32 %v3619, %v5719
      %v7062 = vmul.f32 %v3619, %v5721
      %v7063 = vmul.f32 %v3619, %v5723
      %v7064 = vmul.f32 %v3619, %v5725
      %v7065 = vmul.f32 %v3619, %v5727
      %v7066 = vmul.f32 %v3619, %v5729
      %v7067 = vmul.f32 %v3619, %v5731
      %v7068 = vmul.f32 %v3619, %v5733
      %v7069 = vmul.f32 %v3619, %v5735
      %v7070 = vmul.f32 %v3619, %v5737
      %v7071 = vmul.f32 %v3619, %v5739
      %v7072 = vmul.f32 %v3619, %v5741
      %v7073 = vmul.f32 %v3619, %v5743
      %v7074 = vmul.f32 %v3619, %v5745
      %v7075 = vmul.f32 %v3619, %v5747
      %v7076 = vmul.f32 %v3619, %v5749
      %v7077 = vmul.f32 %v3619, %v5751
      %v7078 = vmul.f32 %v3619, %v5753
      %v7079 = vmul.f32 %v3619, %v5755
      %v7080 = vmul.f32 %v3619, %v5757
      %v7081 = vmul.f32 %v3619, %v5759
      %v7082 = vmul.f32 %v3619, %v5761
      %v7083 = vmul.f32 %v3619, %v5763
      %v7084 = vmul.f32 %v3619, %v5765
      %v7085 = vmul.f32 %v3619, %v5767
      %v7086 = vmul.f32 %v3619, %v5769
      %v7087 = vmul.f32 %v3619, %v5771
      %v7088 = vmul.f32 %v3619, %v5773
      %v7089 = vmul.f32 %v3619, %v5775
      %v7090 = vmul.f32 %v3619, %v5777
      %v7091 = vmul.f32 %v3619, %v5779
      %v7092 = vmul.f32 %v3619, %v5781
      %v7093 = vmul.f32 %v3619, %v5783
      %v7094 = vmul.f32 %v3619, %v5785
      %v7095 = vmul.f32 %v3619, %v5787
      %v7096 = vmul.f32 %v3619, %v5789
      %v7097 = vmul.f32 %v3619, %v5791
      %v7098 = vmul.f32 %v3619, %v5793
      %v7099 = vmul.f32 %v3619, %v5795
      %v7100 = vmul.f32 %v3619, %v5797
      %v7101 = vmul.f32 %v3619, %v5799
      %v7102 = vmul.f32 %v3619, %v5801
      %v7103 = vmul.f32 %v3619, %v5803
      %v7104 = vmul.f32 %v3619, %v5805
      %v7105 = vmul.f32 %v3619, %v5807
      %v7106 = vmul.f32 %v3619, %v5809
      %v7107 = vmul.f32 %v3619, %v5811
      %v7108 = vmul.f32 %v3619, %v5813
      %v7109 = vmul.f32 %v3619, %v5815
      %v7110 = vmul.f32 %v3619, %v5817
      %v7111 = vmul.f32 %v3619, %v5819
      %v7112 = vmul.f32 %v3619, %v5821
      %v7113 = vmul.f32 %v3619, %v5823
      %v7114 = vmul.f32 %v3619, %v5825
      %v7115 = vmul.f32 %v3619, %v5827
      %v7116 = vmul.f32 %v3619, %v5829
      %v7117 = vmul.f32 %v3619, %v5831
      %v7118 = vmul.f32 %v3619, %v5833
      %v7119 = vmul.f32 %v3619, %v5835
      %v7120 = vmul.f32 %v3619, %v5837
      %v7121 = vmul.f32 %v3619, %v5839
      %v7122 = vmul.f32 %v3619, %v5841
      %v7123 = vmul.f32 %v3659, %v5971
      %v7124 = vmul.f32 %v3659, %v5973
      %v7125 = vmul.f32 %v3659, %v5975
      %v7126 = vmul.f32 %v3659, %v5977
      %v7127 = vmul.f32 %v3659, %v5979
      %v7128 = vmul.f32 %v3659, %v5981
      %v7129 = vmul.f32 %v3659, %v5983
      %v7130 = vmul.f32 %v3659, %v5985
      %v7131 = vmul.f32 %v3659, %v5987
      %v7132 = vmul.f32 %v3659, %v5989
      %v7133 = vmul.f32 %v3659, %v5991
      %v7134 = vmul.f32 %v3659, %v5993
      %v7135 = vmul.f32 %v3659, %v5995
      %v7136 = vmul.f32 %v3659, %v5997
      %v7137 = vmul.f32 %v3659, %v5999
      %v7138 = vmul.f32 %v3659, %v6001
      %v7139 = vmul.f32 %v3659, %v6003
      %v7140 = vmul.f32 %v3659, %v6005
      %v7141 = vmul.f32 %v3659, %v6007
      %v7142 = vmul.f32 %v3659, %v6009
      %v7143 = vmul.f32 %v3659, %v6011
      %v7144 = vmul.f32 %v3659, %v6013
      %v7145 = vmul.f32 %v3659, %v6015
      %v7146 = vmul.f32 %v3659, %v6017
      %v7147 = vmul.f32 %v3659, %v6019
      %v7148 = vmul.f32 %v3659, %v6021
      %v7149 = vmul.f32 %v3659, %v6023
      %v7150 = vmul.f32 %v3659, %v6025
      %v7151 = vmul.f32 %v3659, %v6027
      %v7152 = vmul.f32 %v3659, %v6029
      %v7153 = vmul.f32 %v3659, %v6031
      %v7154 = vmul.f32 %v3659, %v6033
      %v7155 = vmul.f32 %v3659, %v6035
      %v7156 = vmul.f32 %v3659, %v6037
      %v7157 = vmul.f32 %v3659, %v6039
      %v7158 = vmul.f32 %v3659, %v6041
      %v7159 = vmul.f32 %v3659, %v6043
      %v7160 = vmul.f32 %v3659, %v6045
      %v7161 = vmul.f32 %v3659, %v6047
      %v7162 = vmul.f32 %v3659, %v6049
      %v7163 = vmul.f32 %v3659, %v6051
      %v7164 = vmul.f32 %v3659, %v6053
      %v7165 = vmul.f32 %v3659, %v6055
      %v7166 = vmul.f32 %v3659, %v6057
      %v7167 = vmul.f32 %v3659, %v6059
      %v7168 = vmul.f32 %v3659, %v6061
      %v7169 = vmul.f32 %v3659, %v6063
      %v7170 = vmul.f32 %v3659, %v6065
      %v7171 = vmul.f32 %v3659, %v6067
      %v7172 = vmul.f32 %v3659, %v6069
      %v7173 = vmul.f32 %v3659, %v6071
      %v7174 = vmul.f32 %v3659, %v6073
      %v7175 = vmul.f32 %v3659, %v6075
      %v7176 = vmul.f32 %v3659, %v6077
      %v7177 = vmul.f32 %v3659, %v6079
      %v7178 = vmul.f32 %v3659, %v6081
      %v7179 = vmul.f32 %v3659, %v6083
      %v7180 = vmul.f32 %v3659, %v6085
      %v7181 = vmul.f32 %v3659, %v6087
      %v7182 = vmul.f32 %v3659, %v6089
      %v7183 = vmul.f32 %v3659, %v6091
      %v7184 = vmul.f32 %v3659, %v6093
      %v7185 = vmul.f32 %v3659, %v6095
      %v7186 = vmul.f32 %v3659, %v6097
      %v7187 = vmul.f32 %v3659, %v6099
      %v7188 = vmul.f32 %v3659, %v6101
      %v7189 = vmul.f32 %v3659, %v6103
      %v7190 = vmul.f32 %v3659, %v6105
      %v7191 = vmul.f32 %v3659, %v6107
      %v7192 = vmul.f32 %v3659, %v6109
      %v7193 = vmul.f32 %v3659, %v6111
      %v7194 = vmul.f32 %v3659, %v6113
      %v7195 = vmul.f32 %v3659, %v6115
      %v7196 = vmul.f32 %v3659, %v6117
      %v7197 = vmul.f32 %v3659, %v6119
      %v7198 = vmul.f32 %v3659, %v6121
      %v7199 = vmul.f32 %v3659, %v6123
      %v7200 = vmul.f32 %v3659, %v6125
      %v7201 = vmul.f32 %v3659, %v6127
      %v7202 = vmul.f32 %v3659, %v6129
      %v7203 = vmul.f32 %v3659, %v6131
      %v7204 = vmul.f32 %v3659, %v6133
      %v7205 = vmul.f32 %v3659, %v6135
      %v7206 = vmul.f32 %v3659, %v6137
      %v7207 = vmul.f32 %v3659, %v6139
      %v7208 = vmul.f32 %v3659, %v6141
      %v7209 = vmul.f32 %v3659, %v6143
      %v7210 = vmul.f32 %v3659, %v6145
      %v7211 = vmul.f32 %v3659, %v6147
      %v7212 = vmul.f32 %v3659, %v6149
      %v7213 = vmul.f32 %v3659, %v6151
      %v7214 = vmul.f32 %v3659, %v6153
      %v7215 = vmul.f32 %v3659, %v6155
      %v7216 = vmul.f32 %v3659, %v6157
      %v7217 = vmul.f32 %v3659, %v6159
      %v7218 = vmul.f32 %v3659, %v6161
      %v7219 = vmul.f32 %v3659, %v6163
      %v7220 = vmul.f32 %v3659, %v6165
      %v7221 = vmul.f32 %v3659, %v6167
      %v7222 = vmul.f32 %v3659, %v6169
      %v7223 = vmul.f32 %v3659, %v6171
      %v7224 = vmul.f32 %v3659, %v6173
      %v7225 = vmul.f32 %v3659, %v6175
      %v7226 = vmul.f32 %v3659, %v6177
      %v7227 = vmul.f32 %v3659, %v6179
      %v7228 = vmul.f32 %v3659, %v6181
      %v7229 = vmul.f32 %v3659, %v6183
      %v7230 = vmul.f32 %v3659, %v6185
      %v7231 = vmul.f32 %v3659, %v6187
      %v7232 = vmul.f32 %v3659, %v6189
      %v7233 = vmul.f32 %v3659, %v6191
      %v7234 = vmul.f32 %v3659, %v6193
      %v7235 = vmul.f32 %v3659, %v6195
      %v7236 = vmul.f32 %v3659, %v6197
      %v7237 = vmul.f32 %v3659, %v6199
      %v7238 = vmul.f32 %v3659, %v6201
      %v7239 = vmul.f32 %v3659, %v6203
      %v7240 = vmul.f32 %v3659, %v6205
      %v7241 = vmul.f32 %v3659, %v6207
      %v7242 = vmul.f32 %v3659, %v6209
      %v7243 = vmul.f32 %v3659, %v6211
      %v7244 = vmul.f32 %v3659, %v6213
      %v7245 = vmul.f32 %v3659, %v6215
      %v7246 = vmul.f32 %v3659, %v6217
      %v7247 = vmul.f32 %v3659, %v6219
      %v7248 = vmul.f32 %v3659, %v6221
      %v7249 = vmul.f32 %v3659, %v6223
      %v7250 = vmul.f32 %v3659, %v6225
      %v7251 = vadd.f32 %v6995, %v7123
      %v7252 = vadd.f32 %v6996, %v7124
      %v7253 = vadd.f32 %v6997, %v7125
      %v7254 = vadd.f32 %v6998, %v7126
      %v7255 = vadd.f32 %v6999, %v7127
      %v7256 = vadd.f32 %v7000, %v7128
      %v7257 = vadd.f32 %v7001, %v7129
      %v7258 = vadd.f32 %v7002, %v7130
      %v7259 = vadd.f32 %v7003, %v7131
      %v7260 = vadd.f32 %v7004, %v7132
      %v7261 = vadd.f32 %v7005, %v7133
      %v7262 = vadd.f32 %v7006, %v7134
      %v7263 = vadd.f32 %v7007, %v7135
      %v7264 = vadd.f32 %v7008, %v7136
      %v7265 = vadd.f32 %v7009, %v7137
      %v7266 = vadd.f32 %v7010, %v7138
      %v7267 = vadd.f32 %v7011, %v7139
      %v7268 = vadd.f32 %v7012, %v7140
      %v7269 = vadd.f32 %v7013, %v7141
      %v7270 = vadd.f32 %v7014, %v7142
      %v7271 = vadd.f32 %v7015, %v7143
      %v7272 = vadd.f32 %v7016, %v7144
      %v7273 = vadd.f32 %v7017, %v7145
      %v7274 = vadd.f32 %v7018, %v7146
      %v7275 = vadd.f32 %v7019, %v7147
      %v7276 = vadd.f32 %v7020, %v7148
      %v7277 = vadd.f32 %v7021, %v7149
      %v7278 = vadd.f32 %v7022, %v7150
      %v7279 = vadd.f32 %v7023, %v7151
      %v7280 = vadd.f32 %v7024, %v7152
      %v7281 = vadd.f32 %v7025, %v7153
      %v7282 = vadd.f32 %v7026, %v7154
      %v7283 = vadd.f32 %v7027, %v7155
      %v7284 = vadd.f32 %v7028, %v7156
      %v7285 = vadd.f32 %v7029, %v7157
      %v7286 = vadd.f32 %v7030, %v7158
      %v7287 = vadd.f32 %v7031, %v7159
      %v7288 = vadd.f32 %v7032, %v7160
      %v7289 = vadd.f32 %v7033, %v7161
      %v7290 = vadd.f32 %v7034, %v7162
      %v7291 = vadd.f32 %v7035, %v7163
      %v7292 = vadd.f32 %v7036, %v7164
      %v7293 = vadd.f32 %v7037, %v7165
      %v7294 = vadd.f32 %v7038, %v7166
      %v7295 = vadd.f32 %v7039, %v7167
      %v7296 = vadd.f32 %v7040, %v7168
      %v7297 = vadd.f32 %v7041, %v7169
      %v7298 = vadd.f32 %v7042, %v7170
      %v7299 = vadd.f32 %v7043, %v7171
      %v7300 = vadd.f32 %v7044, %v7172
      %v7301 = vadd.f32 %v7045, %v7173
      %v7302 = vadd.f32 %v7046, %v7174
      %v7303 = vadd.f32 %v7047, %v7175
      %v7304 = vadd.f32 %v7048, %v7176
      %v7305 = vadd.f32 %v7049, %v7177
      %v7306 = vadd.f32 %v7050, %v7178
      %v7307 = vadd.f32 %v7051, %v7179
      %v7308 = vadd.f32 %v7052, %v7180
      %v7309 = vadd.f32 %v7053, %v7181
      %v7310 = vadd.f32 %v7054, %v7182
      %v7311 = vadd.f32 %v7055, %v7183
      %v7312 = vadd.f32 %v7056, %v7184
      %v7313 = vadd.f32 %v7057, %v7185
      %v7314 = vadd.f32 %v7058, %v7186
      %v7315 = vadd.f32 %v7059, %v7187
      %v7316 = vadd.f32 %v7060, %v7188
      %v7317 = vadd.f32 %v7061, %v7189
      %v7318 = vadd.f32 %v7062, %v7190
      %v7319 = vadd.f32 %v7063, %v7191
      %v7320 = vadd.f32 %v7064, %v7192
      %v7321 = vadd.f32 %v7065, %v7193
      %v7322 = vadd.f32 %v7066, %v7194
      %v7323 = vadd.f32 %v7067, %v7195
      %v7324 = vadd.f32 %v7068, %v7196
      %v7325 = vadd.f32 %v7069, %v7197
      %v7326 = vadd.f32 %v7070, %v7198
      %v7327 = vadd.f32 %v7071, %v7199
      %v7328 = vadd.f32 %v7072, %v7200
      %v7329 = vadd.f32 %v7073, %v7201
      %v7330 = vadd.f32 %v7074, %v7202
      %v7331 = vadd.f32 %v7075, %v7203
      %v7332 = vadd.f32 %v7076, %v7204
      %v7333 = vadd.f32 %v7077, %v7205
      %v7334 = vadd.f32 %v7078, %v7206
      %v7335 = vadd.f32 %v7079, %v7207
      %v7336 = vadd.f32 %v7080, %v7208
      %v7337 = vadd.f32 %v7081, %v7209
      %v7338 = vadd.f32 %v7082, %v7210
      %v7339 = vadd.f32 %v7083, %v7211
      %v7340 = vadd.f32 %v7084, %v7212
      %v7341 = vadd.f32 %v7085, %v7213
      %v7342 = vadd.f32 %v7086, %v7214
      %v7343 = vadd.f32 %v7087, %v7215
      %v7344 = vadd.f32 %v7088, %v7216
      %v7345 = vadd.f32 %v7089, %v7217
      %v7346 = vadd.f32 %v7090, %v7218
      %v7347 = vadd.f32 %v7091, %v7219
      %v7348 = vadd.f32 %v7092, %v7220
      %v7349 = vadd.f32 %v7093, %v7221
      %v7350 = vadd.f32 %v7094, %v7222
      %v7351 = vadd.f32 %v7095, %v7223
      %v7352 = vadd.f32 %v7096, %v7224
      %v7353 = vadd.f32 %v7097, %v7225
      %v7354 = vadd.f32 %v7098, %v7226
      %v7355 = vadd.f32 %v7099, %v7227
      %v7356 = vadd.f32 %v7100, %v7228
      %v7357 = vadd.f32 %v7101, %v7229
      %v7358 = vadd.f32 %v7102, %v7230
      %v7359 = vadd.f32 %v7103, %v7231
      %v7360 = vadd.f32 %v7104, %v7232
      %v7361 = vadd.f32 %v7105, %v7233
      %v7362 = vadd.f32 %v7106, %v7234
      %v7363 = vadd.f32 %v7107, %v7235
      %v7364 = vadd.f32 %v7108, %v7236
      %v7365 = vadd.f32 %v7109, %v7237
      %v7366 = vadd.f32 %v7110, %v7238
      %v7367 = vadd.f32 %v7111, %v7239
      %v7368 = vadd.f32 %v7112, %v7240
      %v7369 = vadd.f32 %v7113, %v7241
      %v7370 = vadd.f32 %v7114, %v7242
      %v7371 = vadd.f32 %v7115, %v7243
      %v7372 = vadd.f32 %v7116, %v7244
      %v7373 = vadd.f32 %v7117, %v7245
      %v7374 = vadd.f32 %v7118, %v7246
      %v7375 = vadd.f32 %v7119, %v7247
      %v7376 = vadd.f32 %v7120, %v7248
      %v7377 = vadd.f32 %v7121, %v7249
      %v7378 = vadd.f32 %v7122, %v7250
      %v7379 = vadd.f32 %v7251, %v6867
      %v7380 = vadd.f32 %v7252, %v6868
      %v7381 = vadd.f32 %v7253, %v6869
      %v7382 = vadd.f32 %v7254, %v6870
      %v7383 = vadd.f32 %v7255, %v6871
      %v7384 = vadd.f32 %v7256, %v6872
      %v7385 = vadd.f32 %v7257, %v6873
      %v7386 = vadd.f32 %v7258, %v6874
      %v7387 = vadd.f32 %v7259, %v6875
      %v7388 = vadd.f32 %v7260, %v6876
      %v7389 = vadd.f32 %v7261, %v6877
      %v7390 = vadd.f32 %v7262, %v6878
      %v7391 = vadd.f32 %v7263, %v6879
      %v7392 = vadd.f32 %v7264, %v6880
      %v7393 = vadd.f32 %v7265, %v6881
      %v7394 = vadd.f32 %v7266, %v6882
      %v7395 = vadd.f32 %v7267, %v6883
      %v7396 = vadd.f32 %v7268, %v6884
      %v7397 = vadd.f32 %v7269, %v6885
      %v7398 = vadd.f32 %v7270, %v6886
      %v7399 = vadd.f32 %v7271, %v6887
      %v7400 = vadd.f32 %v7272, %v6888
      %v7401 = vadd.f32 %v7273, %v6889
      %v7402 = vadd.f32 %v7274, %v6890
      %v7403 = vadd.f32 %v7275, %v6891
      %v7404 = vadd.f32 %v7276, %v6892
      %v7405 = vadd.f32 %v7277, %v6893
      %v7406 = vadd.f32 %v7278, %v6894
      %v7407 = vadd.f32 %v7279, %v6895
      %v7408 = vadd.f32 %v7280, %v6896
      %v7409 = vadd.f32 %v7281, %v6897
      %v7410 = vadd.f32 %v7282, %v6898
      %v7411 = vadd.f32 %v7283, %v6899
      %v7412 = vadd.f32 %v7284, %v6900
      %v7413 = vadd.f32 %v7285, %v6901
      %v7414 = vadd.f32 %v7286, %v6902
      %v7415 = vadd.f32 %v7287, %v6903
      %v7416 = vadd.f32 %v7288, %v6904
      %v7417 = vadd.f32 %v7289, %v6905
      %v7418 = vadd.f32 %v7290, %v6906
      %v7419 = vadd.f32 %v7291, %v6907
      %v7420 = vadd.f32 %v7292, %v6908
      %v7421 = vadd.f32 %v7293, %v6909
      %v7422 = vadd.f32 %v7294, %v6910
      %v7423 = vadd.f32 %v7295, %v6911
      %v7424 = vadd.f32 %v7296, %v6912
      %v7425 = vadd.f32 %v7297, %v6913
      %v7426 = vadd.f32 %v7298, %v6914
      %v7427 = vadd.f32 %v7299, %v6915
      %v7428 = vadd.f32 %v7300, %v6916
      %v7429 = vadd.f32 %v7301, %v6917
      %v7430 = vadd.f32 %v7302, %v6918
      %v7431 = vadd.f32 %v7303, %v6919
      %v7432 = vadd.f32 %v7304, %v6920
      %v7433 = vadd.f32 %v7305, %v6921
      %v7434 = vadd.f32 %v7306, %v6922
      %v7435 = vadd.f32 %v7307, %v6923
      %v7436 = vadd.f32 %v7308, %v6924
      %v7437 = vadd.f32 %v7309, %v6925
      %v7438 = vadd.f32 %v7310, %v6926
      %v7439 = vadd.f32 %v7311, %v6927
      %v7440 = vadd.f32 %v7312, %v6928
      %v7441 = vadd.f32 %v7313, %v6929
      %v7442 = vadd.f32 %v7314, %v6930
      %v7443 = vadd.f32 %v7315, %v6931
      %v7444 = vadd.f32 %v7316, %v6932
      %v7445 = vadd.f32 %v7317, %v6933
      %v7446 = vadd.f32 %v7318, %v6934
      %v7447 = vadd.f32 %v7319, %v6935
      %v7448 = vadd.f32 %v7320, %v6936
      %v7449 = vadd.f32 %v7321, %v6937
      %v7450 = vadd.f32 %v7322, %v6938
      %v7451 = vadd.f32 %v7323, %v6939
      %v7452 = vadd.f32 %v7324, %v6940
      %v7453 = vadd.f32 %v7325, %v6941
      %v7454 = vadd.f32 %v7326, %v6942
      %v7455 = vadd.f32 %v7327, %v6943
      %v7456 = vadd.f32 %v7328, %v6944
      %v7457 = vadd.f32 %v7329, %v6945
      %v7458 = vadd.f32 %v7330, %v6946
      %v7459 = vadd.f32 %v7331, %v6947
      %v7460 = vadd.f32 %v7332, %v6948
      %v7461 = vadd.f32 %v7333, %v6949
      %v7462 = vadd.f32 %v7334, %v6950
      %v7463 = vadd.f32 %v7335, %v6951
      %v7464 = vadd.f32 %v7336, %v6952
      %v7465 = vadd.f32 %v7337, %v6953
      %v7466 = vadd.f32 %v7338, %v6954
      %v7467 = vadd.f32 %v7339, %v6955
      %v7468 = vadd.f32 %v7340, %v6956
      %v7469 = vadd.f32 %v7341, %v6957
      %v7470 = vadd.f32 %v7342, %v6958
      %v7471 = vadd.f32 %v7343, %v6959
      %v7472 = vadd.f32 %v7344, %v6960
      %v7473 = vadd.f32 %v7345, %v6961
      %v7474 = vadd.f32 %v7346, %v6962
      %v7475 = vadd.f32 %v7347, %v6963
      %v7476 = vadd.f32 %v7348, %v6964
      %v7477 = vadd.f32 %v7349, %v6965
      %v7478 = vadd.f32 %v7350, %v6966
      %v7479 = vadd.f32 %v7351, %v6967
      %v7480 = vadd.f32 %v7352, %v6968
      %v7481 = vadd.f32 %v7353, %v6969
      %v7482 = vadd.f32 %v7354, %v6970
      %v7483 = vadd.f32 %v7355, %v6971
      %v7484 = vadd.f32 %v7356, %v6972
      %v7485 = vadd.f32 %v7357, %v6973
      %v7486 = vadd.f32 %v7358, %v6974
      %v7487 = vadd.f32 %v7359, %v6975
      %v7488 = vadd.f32 %v7360, %v6976
      %v7489 = vadd.f32 %v7361, %v6977
      %v7490 = vadd.f32 %v7362, %v6978
      %v7491 = vadd.f32 %v7363, %v6979
      %v7492 = vadd.f32 %v7364, %v6980
      %v7493 = vadd.f32 %v7365, %v6981
      %v7494 = vadd.f32 %v7366, %v6982
      %v7495 = vadd.f32 %v7367, %v6983
      %v7496 = vadd.f32 %v7368, %v6984
      %v7497 = vadd.f32 %v7369, %v6985
      %v7498 = vadd.f32 %v7370, %v6986
      %v7499 = vadd.f32 %v7371, %v6987
      %v7500 = vadd.f32 %v7372, %v6988
      %v7501 = vadd.f32 %v7373, %v6989
      %v7502 = vadd.f32 %v7374, %v6990
      %v7503 = vadd.f32 %v7375, %v6991
      %v7504 = vadd.f32 %v7376, %v6992
      %v7505 = vadd.f32 %v7377, %v6993
      %v7506 = vadd.f32 %v7378, %v6994
      %7507 = vrot.lane.b32.xlu0 %v3478, 127
      %v7508 = vpop.permute.xlu0 %7507
      %7509 = vrot.lane.b32.xlu0 %v3479, 127
      %v7510 = vpop.permute.xlu0 %7509
      %7511 = vrot.lane.b32.xlu0 %v3480, 127
      %v7512 = vpop.permute.xlu0 %7511
      %7513 = vrot.lane.b32.xlu0 %v3481, 127
      %v7514 = vpop.permute.xlu0 %7513
      %7515 = vrot.lane.b32.xlu0 %v3482, 127
      %v7516 = vpop.permute.xlu0 %7515
      %7517 = vrot.lane.b32.xlu0 %v3483, 127
      %v7518 = vpop.permute.xlu0 %7517
      %7519 = vrot.lane.b32.xlu0 %v3484, 127
      %v7520 = vpop.permute.xlu0 %7519
      %7521 = vrot.lane.b32.xlu0 %v3485, 127
      %v7522 = vpop.permute.xlu0 %7521
      %7523 = vrot.lane.b32.xlu0 %v3486, 127
      %v7524 = vpop.permute.xlu0 %7523
      %7525 = vrot.lane.b32.xlu0 %v3487, 127
      %v7526 = vpop.permute.xlu0 %7525
      %7527 = vrot.lane.b32.xlu0 %v3488, 127
      %v7528 = vpop.permute.xlu0 %7527
      %7529 = vrot.lane.b32.xlu0 %v3489, 127
      %v7530 = vpop.permute.xlu0 %7529
      %7531 = vrot.lane.b32.xlu0 %v3490, 127
      %v7532 = vpop.permute.xlu0 %7531
      %7533 = vrot.lane.b32.xlu0 %v3491, 127
      %v7534 = vpop.permute.xlu0 %7533
      %7535 = vrot.lane.b32.xlu0 %v3492, 127
      %v7536 = vpop.permute.xlu0 %7535
      %7537 = vrot.lane.b32.xlu0 %v3493, 127
      %v7538 = vpop.permute.xlu0 %7537
      %7539 = vrot.lane.b32.xlu0 %v3494, 127
      %v7540 = vpop.permute.xlu0 %7539
      %7541 = vrot.lane.b32.xlu0 %v3495, 127
      %v7542 = vpop.permute.xlu0 %7541
      %7543 = vrot.lane.b32.xlu0 %v3496, 127
      %v7544 = vpop.permute.xlu0 %7543
      %7545 = vrot.lane.b32.xlu0 %v3497, 127
      %v7546 = vpop.permute.xlu0 %7545
      %7547 = vrot.lane.b32.xlu0 %v3498, 127
      %v7548 = vpop.permute.xlu0 %7547
      %7549 = vrot.lane.b32.xlu0 %v3499, 127
      %v7550 = vpop.permute.xlu0 %7549
      %7551 = vrot.lane.b32.xlu0 %v3500, 127
      %v7552 = vpop.permute.xlu0 %7551
      %7553 = vrot.lane.b32.xlu0 %v3501, 127
      %v7554 = vpop.permute.xlu0 %7553
      %7555 = vrot.lane.b32.xlu0 %v3502, 127
      %v7556 = vpop.permute.xlu0 %7555
      %7557 = vrot.lane.b32.xlu0 %v3503, 127
      %v7558 = vpop.permute.xlu0 %7557
      %7559 = vrot.lane.b32.xlu0 %v3504, 127
      %v7560 = vpop.permute.xlu0 %7559
      %7561 = vrot.lane.b32.xlu0 %v3505, 127
      %v7562 = vpop.permute.xlu0 %7561
      %7563 = vrot.lane.b32.xlu0 %v3506, 127
      %v7564 = vpop.permute.xlu0 %7563
      %7565 = vrot.lane.b32.xlu0 %v3507, 127
      %v7566 = vpop.permute.xlu0 %7565
      %7567 = vrot.lane.b32.xlu0 %v3508, 127
      %v7568 = vpop.permute.xlu0 %7567
      %7569 = vrot.lane.b32.xlu0 %v3509, 127
      %v7570 = vpop.permute.xlu0 %7569
      %7571 = vrot.lane.b32.xlu0 %v3510, 127
      %v7572 = vpop.permute.xlu0 %7571
      %7573 = vrot.lane.b32.xlu0 %v3511, 127
      %v7574 = vpop.permute.xlu0 %7573
      %7575 = vrot.lane.b32.xlu0 %v3512, 127
      %v7576 = vpop.permute.xlu0 %7575
      %7577 = vrot.lane.b32.xlu0 %v3513, 127
      %v7578 = vpop.permute.xlu0 %7577
      %7579 = vrot.lane.b32.xlu0 %v3514, 127
      %v7580 = vpop.permute.xlu0 %7579
      %7581 = vrot.lane.b32.xlu0 %v3515, 127
      %v7582 = vpop.permute.xlu0 %7581
      %7583 = vrot.lane.b32.xlu0 %v3516, 127
      %v7584 = vpop.permute.xlu0 %7583
      %7585 = vrot.lane.b32.xlu0 %v3517, 127
      %v7586 = vpop.permute.xlu0 %7585
      %7587 = vrot.lane.b32.xlu0 %v3518, 127
      %v7588 = vpop.permute.xlu0 %7587
      %7589 = vrot.lane.b32.xlu0 %v3519, 127
      %v7590 = vpop.permute.xlu0 %7589
      %7591 = vrot.lane.b32.xlu0 %v3520, 127
      %v7592 = vpop.permute.xlu0 %7591
      %7593 = vrot.lane.b32.xlu0 %v3521, 127
      %v7594 = vpop.permute.xlu0 %7593
      %7595 = vrot.lane.b32.xlu0 %v3522, 127
      %v7596 = vpop.permute.xlu0 %7595
      %7597 = vrot.lane.b32.xlu0 %v3523, 127
      %v7598 = vpop.permute.xlu0 %7597
      %7599 = vrot.lane.b32.xlu0 %v3524, 127
      %v7600 = vpop.permute.xlu0 %7599
      %7601 = vrot.lane.b32.xlu0 %v3525, 127
      %v7602 = vpop.permute.xlu0 %7601
      %7603 = vrot.lane.b32.xlu0 %v3526, 127
      %v7604 = vpop.permute.xlu0 %7603
      %7605 = vrot.lane.b32.xlu0 %v3527, 127
      %v7606 = vpop.permute.xlu0 %7605
      %7607 = vrot.lane.b32.xlu0 %v3528, 127
      %v7608 = vpop.permute.xlu0 %7607
      %7609 = vrot.lane.b32.xlu0 %v3529, 127
      %v7610 = vpop.permute.xlu0 %7609
      %7611 = vrot.lane.b32.xlu0 %v3530, 127
      %v7612 = vpop.permute.xlu0 %7611
      %7613 = vrot.lane.b32.xlu0 %v3531, 127
      %v7614 = vpop.permute.xlu0 %7613
      %7615 = vrot.lane.b32.xlu0 %v3532, 127
      %v7616 = vpop.permute.xlu0 %7615
      %7617 = vrot.lane.b32.xlu0 %v3533, 127
      %v7618 = vpop.permute.xlu0 %7617
      %7619 = vrot.lane.b32.xlu0 %v3534, 127
      %v7620 = vpop.permute.xlu0 %7619
      %7621 = vrot.lane.b32.xlu0 %v3535, 127
      %v7622 = vpop.permute.xlu0 %7621
      %7623 = vrot.lane.b32.xlu0 %v3536, 127
      %v7624 = vpop.permute.xlu0 %7623
      %7625 = vrot.lane.b32.xlu0 %v3537, 127
      %v7626 = vpop.permute.xlu0 %7625
      %7627 = vrot.lane.b32.xlu0 %v3538, 127
      %v7628 = vpop.permute.xlu0 %7627
      %7629 = vrot.lane.b32.xlu0 %v3539, 127
      %v7630 = vpop.permute.xlu0 %7629
      %7631 = vrot.lane.b32.xlu0 %v3540, 127
      %v7632 = vpop.permute.xlu0 %7631
      %7633 = vrot.lane.b32.xlu0 %v3541, 127
      %v7634 = vpop.permute.xlu0 %7633
      %7635 = vrot.lane.b32.xlu0 %v3542, 127
      %v7636 = vpop.permute.xlu0 %7635
      %7637 = vrot.lane.b32.xlu0 %v3543, 127
      %v7638 = vpop.permute.xlu0 %7637
      %7639 = vrot.lane.b32.xlu0 %v3544, 127
      %v7640 = vpop.permute.xlu0 %7639
      %7641 = vrot.lane.b32.xlu0 %v3545, 127
      %v7642 = vpop.permute.xlu0 %7641
      %7643 = vrot.lane.b32.xlu0 %v3546, 127
      %v7644 = vpop.permute.xlu0 %7643
      %7645 = vrot.lane.b32.xlu0 %v3547, 127
      %v7646 = vpop.permute.xlu0 %7645
      %7647 = vrot.lane.b32.xlu0 %v3548, 127
      %v7648 = vpop.permute.xlu0 %7647
      %7649 = vrot.lane.b32.xlu0 %v3549, 127
      %v7650 = vpop.permute.xlu0 %7649
      %7651 = vrot.lane.b32.xlu0 %v3550, 127
      %v7652 = vpop.permute.xlu0 %7651
      %7653 = vrot.lane.b32.xlu0 %v3551, 127
      %v7654 = vpop.permute.xlu0 %7653
      %7655 = vrot.lane.b32.xlu0 %v3552, 127
      %v7656 = vpop.permute.xlu0 %7655
      %7657 = vrot.lane.b32.xlu0 %v3553, 127
      %v7658 = vpop.permute.xlu0 %7657
      %7659 = vrot.lane.b32.xlu0 %v3554, 127
      %v7660 = vpop.permute.xlu0 %7659
      %7661 = vrot.lane.b32.xlu0 %v3555, 127
      %v7662 = vpop.permute.xlu0 %7661
      %7663 = vrot.lane.b32.xlu0 %v3556, 127
      %v7664 = vpop.permute.xlu0 %7663
      %7665 = vrot.lane.b32.xlu0 %v3557, 127
      %v7666 = vpop.permute.xlu0 %7665
      %7667 = vrot.lane.b32.xlu0 %v3558, 127
      %v7668 = vpop.permute.xlu0 %7667
      %7669 = vrot.lane.b32.xlu0 %v3559, 127
      %v7670 = vpop.permute.xlu0 %7669
      %7671 = vrot.lane.b32.xlu0 %v3560, 127
      %v7672 = vpop.permute.xlu0 %7671
      %7673 = vrot.lane.b32.xlu0 %v3561, 127
      %v7674 = vpop.permute.xlu0 %7673
      %7675 = vrot.lane.b32.xlu0 %v3562, 127
      %v7676 = vpop.permute.xlu0 %7675
      %7677 = vrot.lane.b32.xlu0 %v3563, 127
      %v7678 = vpop.permute.xlu0 %7677
      %7679 = vrot.lane.b32.xlu0 %v3564, 127
      %v7680 = vpop.permute.xlu0 %7679
      %7681 = vrot.lane.b32.xlu0 %v3565, 127
      %v7682 = vpop.permute.xlu0 %7681
      %7683 = vrot.lane.b32.xlu0 %v3566, 127
      %v7684 = vpop.permute.xlu0 %7683
      %7685 = vrot.lane.b32.xlu0 %v3567, 127
      %v7686 = vpop.permute.xlu0 %7685
      %7687 = vrot.lane.b32.xlu0 %v3568, 127
      %v7688 = vpop.permute.xlu0 %7687
      %7689 = vrot.lane.b32.xlu0 %v3569, 127
      %v7690 = vpop.permute.xlu0 %7689
      %7691 = vrot.lane.b32.xlu0 %v3570, 127
      %v7692 = vpop.permute.xlu0 %7691
      %7693 = vrot.lane.b32.xlu0 %v3571, 127
      %v7694 = vpop.permute.xlu0 %7693
      %7695 = vrot.lane.b32.xlu0 %v3572, 127
      %v7696 = vpop.permute.xlu0 %7695
      %7697 = vrot.lane.b32.xlu0 %v3573, 127
      %v7698 = vpop.permute.xlu0 %7697
      %7699 = vrot.lane.b32.xlu0 %v3574, 127
      %v7700 = vpop.permute.xlu0 %7699
      %7701 = vrot.lane.b32.xlu0 %v3575, 127
      %v7702 = vpop.permute.xlu0 %7701
      %7703 = vrot.lane.b32.xlu0 %v3576, 127
      %v7704 = vpop.permute.xlu0 %7703
      %7705 = vrot.lane.b32.xlu0 %v3577, 127
      %v7706 = vpop.permute.xlu0 %7705
      %7707 = vrot.lane.b32.xlu0 %v3578, 127
      %v7708 = vpop.permute.xlu0 %7707
      %7709 = vrot.lane.b32.xlu0 %v3579, 127
      %v7710 = vpop.permute.xlu0 %7709
      %7711 = vrot.lane.b32.xlu0 %v3580, 127
      %v7712 = vpop.permute.xlu0 %7711
      %7713 = vrot.lane.b32.xlu0 %v3581, 127
      %v7714 = vpop.permute.xlu0 %7713
      %7715 = vrot.lane.b32.xlu0 %v3582, 127
      %v7716 = vpop.permute.xlu0 %7715
      %7717 = vrot.lane.b32.xlu0 %v3583, 127
      %v7718 = vpop.permute.xlu0 %7717
      %7719 = vrot.lane.b32.xlu0 %v3584, 127
      %v7720 = vpop.permute.xlu0 %7719
      %7721 = vrot.lane.b32.xlu0 %v3585, 127
      %v7722 = vpop.permute.xlu0 %7721
      %7723 = vrot.lane.b32.xlu0 %v3586, 127
      %v7724 = vpop.permute.xlu0 %7723
      %7725 = vrot.lane.b32.xlu0 %v3587, 127
      %v7726 = vpop.permute.xlu0 %7725
      %7727 = vrot.lane.b32.xlu0 %v3588, 127
      %v7728 = vpop.permute.xlu0 %7727
      %7729 = vrot.lane.b32.xlu0 %v3589, 127
      %v7730 = vpop.permute.xlu0 %7729
      %7731 = vrot.lane.b32.xlu0 %v3590, 127
      %v7732 = vpop.permute.xlu0 %7731
      %7733 = vrot.lane.b32.xlu0 %v3591, 127
      %v7734 = vpop.permute.xlu0 %7733
      %7735 = vrot.lane.b32.xlu0 %v3592, 127
      %v7736 = vpop.permute.xlu0 %7735
      %7737 = vrot.lane.b32.xlu0 %v3593, 127
      %v7738 = vpop.permute.xlu0 %7737
      %7739 = vrot.lane.b32.xlu0 %v3594, 127
      %v7740 = vpop.permute.xlu0 %7739
      %7741 = vrot.lane.b32.xlu0 %v3595, 127
      %v7742 = vpop.permute.xlu0 %7741
      %7743 = vrot.lane.b32.xlu0 %v3596, 127
      %v7744 = vpop.permute.xlu0 %7743
      %7745 = vrot.lane.b32.xlu0 %v3597, 127
      %v7746 = vpop.permute.xlu0 %7745
      %7747 = vrot.lane.b32.xlu0 %v3598, 127
      %v7748 = vpop.permute.xlu0 %7747
      %7749 = vrot.lane.b32.xlu0 %v3599, 127
      %v7750 = vpop.permute.xlu0 %7749
      %7751 = vrot.lane.b32.xlu0 %v3600, 127
      %v7752 = vpop.permute.xlu0 %7751
      %7753 = vrot.lane.b32.xlu0 %v3601, 127
      %v7754 = vpop.permute.xlu0 %7753
      %7755 = vrot.lane.b32.xlu0 %v3602, 127
      %v7756 = vpop.permute.xlu0 %7755
      %7757 = vrot.lane.b32.xlu0 %v3603, 127
      %v7758 = vpop.permute.xlu0 %7757
      %7759 = vrot.lane.b32.xlu0 %v3604, 127
      %v7760 = vpop.permute.xlu0 %7759
      %7761 = vrot.lane.b32.xlu0 %v3605, 127
      %v7762 = vpop.permute.xlu0 %7761
      %vm7763 = vcmp.gt.f32.partialorder %v7508, %v3478
      %vm7764 = vcmp.gt.f32.partialorder %v7510, %v3479
      %vm7765 = vcmp.gt.f32.partialorder %v7512, %v3480
      %vm7766 = vcmp.gt.f32.partialorder %v7514, %v3481
      %vm7767 = vcmp.gt.f32.partialorder %v7516, %v3482
      %vm7768 = vcmp.gt.f32.partialorder %v7518, %v3483
      %vm7769 = vcmp.gt.f32.partialorder %v7520, %v3484
      %vm7770 = vcmp.gt.f32.partialorder %v7522, %v3485
      %vm7771 = vcmp.gt.f32.partialorder %v7524, %v3486
      %vm7772 = vcmp.gt.f32.partialorder %v7526, %v3487
      %vm7773 = vcmp.gt.f32.partialorder %v7528, %v3488
      %vm7774 = vcmp.gt.f32.partialorder %v7530, %v3489
      %vm7775 = vcmp.gt.f32.partialorder %v7532, %v3490
      %vm7776 = vcmp.gt.f32.partialorder %v7534, %v3491
      %vm7777 = vcmp.gt.f32.partialorder %v7536, %v3492
      %vm7778 = vcmp.gt.f32.partialorder %v7538, %v3493
      %vm7779 = vcmp.gt.f32.partialorder %v7540, %v3494
      %vm7780 = vcmp.gt.f32.partialorder %v7542, %v3495
      %vm7781 = vcmp.gt.f32.partialorder %v7544, %v3496
      %vm7782 = vcmp.gt.f32.partialorder %v7546, %v3497
      %vm7783 = vcmp.gt.f32.partialorder %v7548, %v3498
      %vm7784 = vcmp.gt.f32.partialorder %v7550, %v3499
      %vm7785 = vcmp.gt.f32.partialorder %v7552, %v3500
      %vm7786 = vcmp.gt.f32.partialorder %v7554, %v3501
      %vm7787 = vcmp.gt.f32.partialorder %v7556, %v3502
      %vm7788 = vcmp.gt.f32.partialorder %v7558, %v3503
      %vm7789 = vcmp.gt.f32.partialorder %v7560, %v3504
      %vm7790 = vcmp.gt.f32.partialorder %v7562, %v3505
      %vm7791 = vcmp.gt.f32.partialorder %v7564, %v3506
      %vm7792 = vcmp.gt.f32.partialorder %v7566, %v3507
      %vm7793 = vcmp.gt.f32.partialorder %v7568, %v3508
      %vm7794 = vcmp.gt.f32.partialorder %v7570, %v3509
      %vm7795 = vcmp.gt.f32.partialorder %v7572, %v3510
      %vm7796 = vcmp.gt.f32.partialorder %v7574, %v3511
      %vm7797 = vcmp.gt.f32.partialorder %v7576, %v3512
      %vm7798 = vcmp.gt.f32.partialorder %v7578, %v3513
      %vm7799 = vcmp.gt.f32.partialorder %v7580, %v3514
      %vm7800 = vcmp.gt.f32.partialorder %v7582, %v3515
      %vm7801 = vcmp.gt.f32.partialorder %v7584, %v3516
      %vm7802 = vcmp.gt.f32.partialorder %v7586, %v3517
      %vm7803 = vcmp.gt.f32.partialorder %v7588, %v3518
      %vm7804 = vcmp.gt.f32.partialorder %v7590, %v3519
      %vm7805 = vcmp.gt.f32.partialorder %v7592, %v3520
      %vm7806 = vcmp.gt.f32.partialorder %v7594, %v3521
      %vm7807 = vcmp.gt.f32.partialorder %v7596, %v3522
      %vm7808 = vcmp.gt.f32.partialorder %v7598, %v3523
      %vm7809 = vcmp.gt.f32.partialorder %v7600, %v3524
      %vm7810 = vcmp.gt.f32.partialorder %v7602, %v3525
      %vm7811 = vcmp.gt.f32.partialorder %v7604, %v3526
      %vm7812 = vcmp.gt.f32.partialorder %v7606, %v3527
      %vm7813 = vcmp.gt.f32.partialorder %v7608, %v3528
      %vm7814 = vcmp.gt.f32.partialorder %v7610, %v3529
      %vm7815 = vcmp.gt.f32.partialorder %v7612, %v3530
      %vm7816 = vcmp.gt.f32.partialorder %v7614, %v3531
      %vm7817 = vcmp.gt.f32.partialorder %v7616, %v3532
      %vm7818 = vcmp.gt.f32.partialorder %v7618, %v3533
      %vm7819 = vcmp.gt.f32.partialorder %v7620, %v3534
      %vm7820 = vcmp.gt.f32.partialorder %v7622, %v3535
      %vm7821 = vcmp.gt.f32.partialorder %v7624, %v3536
      %vm7822 = vcmp.gt.f32.partialorder %v7626, %v3537
      %vm7823 = vcmp.gt.f32.partialorder %v7628, %v3538
      %vm7824 = vcmp.gt.f32.partialorder %v7630, %v3539
      %vm7825 = vcmp.gt.f32.partialorder %v7632, %v3540
      %vm7826 = vcmp.gt.f32.partialorder %v7634, %v3541
      %vm7827 = vcmp.gt.f32.partialorder %v7636, %v3542
      %vm7828 = vcmp.gt.f32.partialorder %v7638, %v3543
      %vm7829 = vcmp.gt.f32.partialorder %v7640, %v3544
      %vm7830 = vcmp.gt.f32.partialorder %v7642, %v3545
      %vm7831 = vcmp.gt.f32.partialorder %v7644, %v3546
      %vm7832 = vcmp.gt.f32.partialorder %v7646, %v3547
      %vm7833 = vcmp.gt.f32.partialorder %v7648, %v3548
      %vm7834 = vcmp.gt.f32.partialorder %v7650, %v3549
      %vm7835 = vcmp.gt.f32.partialorder %v7652, %v3550
      %vm7836 = vcmp.gt.f32.partialorder %v7654, %v3551
      %vm7837 = vcmp.gt.f32.partialorder %v7656, %v3552
      %vm7838 = vcmp.gt.f32.partialorder %v7658, %v3553
      %vm7839 = vcmp.gt.f32.partialorder %v7660, %v3554
      %vm7840 = vcmp.gt.f32.partialorder %v7662, %v3555
      %vm7841 = vcmp.gt.f32.partialorder %v7664, %v3556
      %vm7842 = vcmp.gt.f32.partialorder %v7666, %v3557
      %vm7843 = vcmp.gt.f32.partialorder %v7668, %v3558
      %vm7844 = vcmp.gt.f32.partialorder %v7670, %v3559
      %vm7845 = vcmp.gt.f32.partialorder %v7672, %v3560
      %vm7846 = vcmp.gt.f32.partialorder %v7674, %v3561
      %vm7847 = vcmp.gt.f32.partialorder %v7676, %v3562
      %vm7848 = vcmp.gt.f32.partialorder %v7678, %v3563
      %vm7849 = vcmp.gt.f32.partialorder %v7680, %v3564
      %vm7850 = vcmp.gt.f32.partialorder %v7682, %v3565
      %vm7851 = vcmp.gt.f32.partialorder %v7684, %v3566
      %vm7852 = vcmp.gt.f32.partialorder %v7686, %v3567
      %vm7853 = vcmp.gt.f32.partialorder %v7688, %v3568
      %vm7854 = vcmp.gt.f32.partialorder %v7690, %v3569
      %vm7855 = vcmp.gt.f32.partialorder %v7692, %v3570
      %vm7856 = vcmp.gt.f32.partialorder %v7694, %v3571
      %vm7857 = vcmp.gt.f32.partialorder %v7696, %v3572
      %vm7858 = vcmp.gt.f32.partialorder %v7698, %v3573
      %vm7859 = vcmp.gt.f32.partialorder %v7700, %v3574
      %vm7860 = vcmp.gt.f32.partialorder %v7702, %v3575
      %vm7861 = vcmp.gt.f32.partialorder %v7704, %v3576
      %vm7862 = vcmp.gt.f32.partialorder %v7706, %v3577
      %vm7863 = vcmp.gt.f32.partialorder %v7708, %v3578
      %vm7864 = vcmp.gt.f32.partialorder %v7710, %v3579
      %vm7865 = vcmp.gt.f32.partialorder %v7712, %v3580
      %vm7866 = vcmp.gt.f32.partialorder %v7714, %v3581
      %vm7867 = vcmp.gt.f32.partialorder %v7716, %v3582
      %vm7868 = vcmp.gt.f32.partialorder %v7718, %v3583
      %vm7869 = vcmp.gt.f32.partialorder %v7720, %v3584
      %vm7870 = vcmp.gt.f32.partialorder %v7722, %v3585
      %vm7871 = vcmp.gt.f32.partialorder %v7724, %v3586
      %vm7872 = vcmp.gt.f32.partialorder %v7726, %v3587
      %vm7873 = vcmp.gt.f32.partialorder %v7728, %v3588
      %vm7874 = vcmp.gt.f32.partialorder %v7730, %v3589
      %vm7875 = vcmp.gt.f32.partialorder %v7732, %v3590
      %vm7876 = vcmp.gt.f32.partialorder %v7734, %v3591
      %vm7877 = vcmp.gt.f32.partialorder %v7736, %v3592
      %vm7878 = vcmp.gt.f32.partialorder %v7738, %v3593
      %vm7879 = vcmp.gt.f32.partialorder %v7740, %v3594
      %vm7880 = vcmp.gt.f32.partialorder %v7742, %v3595
      %vm7881 = vcmp.gt.f32.partialorder %v7744, %v3596
      %vm7882 = vcmp.gt.f32.partialorder %v7746, %v3597
      %vm7883 = vcmp.gt.f32.partialorder %v7748, %v3598
      %vm7884 = vcmp.gt.f32.partialorder %v7750, %v3599
      %vm7885 = vcmp.gt.f32.partialorder %v7752, %v3600
      %vm7886 = vcmp.gt.f32.partialorder %v7754, %v3601
      %vm7887 = vcmp.gt.f32.partialorder %v7756, %v3602
      %vm7888 = vcmp.gt.f32.partialorder %v7758, %v3603
      %vm7889 = vcmp.gt.f32.partialorder %v7760, %v3604
      %vm7890 = vcmp.gt.f32.partialorder %v7762, %v3605
      %v7891 = vsel %vm7763, %v7508, %v3478
      %v7892 = vsel %vm7764, %v7510, %v3479
      %v7893 = vsel %vm7765, %v7512, %v3480
      %v7894 = vsel %vm7766, %v7514, %v3481
      %v7895 = vsel %vm7767, %v7516, %v3482
      %v7896 = vsel %vm7768, %v7518, %v3483
      %v7897 = vsel %vm7769, %v7520, %v3484
      %v7898 = vsel %vm7770, %v7522, %v3485
      %v7899 = vsel %vm7771, %v7524, %v3486
      %v7900 = vsel %vm7772, %v7526, %v3487
      %v7901 = vsel %vm7773, %v7528, %v3488
      %v7902 = vsel %vm7774, %v7530, %v3489
      %v7903 = vsel %vm7775, %v7532, %v3490
      %v7904 = vsel %vm7776, %v7534, %v3491
      %v7905 = vsel %vm7777, %v7536, %v3492
      %v7906 = vsel %vm7778, %v7538, %v3493
      %v7907 = vsel %vm7779, %v7540, %v3494
      %v7908 = vsel %vm7780, %v7542, %v3495
      %v7909 = vsel %vm7781, %v7544, %v3496
      %v7910 = vsel %vm7782, %v7546, %v3497
      %v7911 = vsel %vm7783, %v7548, %v3498
      %v7912 = vsel %vm7784, %v7550, %v3499
      %v7913 = vsel %vm7785, %v7552, %v3500
      %v7914 = vsel %vm7786, %v7554, %v3501
      %v7915 = vsel %vm7787, %v7556, %v3502
      %v7916 = vsel %vm7788, %v7558, %v3503
      %v7917 = vsel %vm7789, %v7560, %v3504
      %v7918 = vsel %vm7790, %v7562, %v3505
      %v7919 = vsel %vm7791, %v7564, %v3506
      %v7920 = vsel %vm7792, %v7566, %v3507
      %v7921 = vsel %vm7793, %v7568, %v3508
      %v7922 = vsel %vm7794, %v7570, %v3509
      %v7923 = vsel %vm7795, %v7572, %v3510
      %v7924 = vsel %vm7796, %v7574, %v3511
      %v7925 = vsel %vm7797, %v7576, %v3512
      %v7926 = vsel %vm7798, %v7578, %v3513
      %v7927 = vsel %vm7799, %v7580, %v3514
      %v7928 = vsel %vm7800, %v7582, %v3515
      %v7929 = vsel %vm7801, %v7584, %v3516
      %v7930 = vsel %vm7802, %v7586, %v3517
      %v7931 = vsel %vm7803, %v7588, %v3518
      %v7932 = vsel %vm7804, %v7590, %v3519
      %v7933 = vsel %vm7805, %v7592, %v3520
      %v7934 = vsel %vm7806, %v7594, %v3521
      %v7935 = vsel %vm7807, %v7596, %v3522
      %v7936 = vsel %vm7808, %v7598, %v3523
      %v7937 = vsel %vm7809, %v7600, %v3524
      %v7938 = vsel %vm7810, %v7602, %v3525
      %v7939 = vsel %vm7811, %v7604, %v3526
      %v7940 = vsel %vm7812, %v7606, %v3527
      %v7941 = vsel %vm7813, %v7608, %v3528
      %v7942 = vsel %vm7814, %v7610, %v3529
      %v7943 = vsel %vm7815, %v7612, %v3530
      %v7944 = vsel %vm7816, %v7614, %v3531
      %v7945 = vsel %vm7817, %v7616, %v3532
      %v7946 = vsel %vm7818, %v7618, %v3533
      %v7947 = vsel %vm7819, %v7620, %v3534
      %v7948 = vsel %vm7820, %v7622, %v3535
      %v7949 = vsel %vm7821, %v7624, %v3536
      %v7950 = vsel %vm7822, %v7626, %v3537
      %v7951 = vsel %vm7823, %v7628, %v3538
      %v7952 = vsel %vm7824, %v7630, %v3539
      %v7953 = vsel %vm7825, %v7632, %v3540
      %v7954 = vsel %vm7826, %v7634, %v3541
      %v7955 = vsel %vm7827, %v7636, %v3542
      %v7956 = vsel %vm7828, %v7638, %v3543
      %v7957 = vsel %vm7829, %v7640, %v3544
      %v7958 = vsel %vm7830, %v7642, %v3545
      %v7959 = vsel %vm7831, %v7644, %v3546
      %v7960 = vsel %vm7832, %v7646, %v3547
      %v7961 = vsel %vm7833, %v7648, %v3548
      %v7962 = vsel %vm7834, %v7650, %v3549
      %v7963 = vsel %vm7835, %v7652, %v3550
      %v7964 = vsel %vm7836, %v7654, %v3551
      %v7965 = vsel %vm7837, %v7656, %v3552
      %v7966 = vsel %vm7838, %v7658, %v3553
      %v7967 = vsel %vm7839, %v7660, %v3554
      %v7968 = vsel %vm7840, %v7662, %v3555
      %v7969 = vsel %vm7841, %v7664, %v3556
      %v7970 = vsel %vm7842, %v7666, %v3557
      %v7971 = vsel %vm7843, %v7668, %v3558
      %v7972 = vsel %vm7844, %v7670, %v3559
      %v7973 = vsel %vm7845, %v7672, %v3560
      %v7974 = vsel %vm7846, %v7674, %v3561
      %v7975 = vsel %vm7847, %v7676, %v3562
      %v7976 = vsel %vm7848, %v7678, %v3563
      %v7977 = vsel %vm7849, %v7680, %v3564
      %v7978 = vsel %vm7850, %v7682, %v3565
      %v7979 = vsel %vm7851, %v7684, %v3566
      %v7980 = vsel %vm7852, %v7686, %v3567
      %v7981 = vsel %vm7853, %v7688, %v3568
      %v7982 = vsel %vm7854, %v7690, %v3569
      %v7983 = vsel %vm7855, %v7692, %v3570
      %v7984 = vsel %vm7856, %v7694, %v3571
      %v7985 = vsel %vm7857, %v7696, %v3572
      %v7986 = vsel %vm7858, %v7698, %v3573
      %v7987 = vsel %vm7859, %v7700, %v3574
      %v7988 = vsel %vm7860, %v7702, %v3575
      %v7989 = vsel %vm7861, %v7704, %v3576
      %v7990 = vsel %vm7862, %v7706, %v3577
      %v7991 = vsel %vm7863, %v7708, %v3578
      %v7992 = vsel %vm7864, %v7710, %v3579
      %v7993 = vsel %vm7865, %v7712, %v3580
      %v7994 = vsel %vm7866, %v7714, %v3581
      %v7995 = vsel %vm7867, %v7716, %v3582
      %v7996 = vsel %vm7868, %v7718, %v3583
      %v7997 = vsel %vm7869, %v7720, %v3584
      %v7998 = vsel %vm7870, %v7722, %v3585
      %v7999 = vsel %vm7871, %v7724, %v3586
      %v8000 = vsel %vm7872, %v7726, %v3587
      %v8001 = vsel %vm7873, %v7728, %v3588
      %v8002 = vsel %vm7874, %v7730, %v3589
      %v8003 = vsel %vm7875, %v7732, %v3590
      %v8004 = vsel %vm7876, %v7734, %v3591
      %v8005 = vsel %vm7877, %v7736, %v3592
      %v8006 = vsel %vm7878, %v7738, %v3593
      %v8007 = vsel %vm7879, %v7740, %v3594
      %v8008 = vsel %vm7880, %v7742, %v3595
      %v8009 = vsel %vm7881, %v7744, %v3596
      %v8010 = vsel %vm7882, %v7746, %v3597
      %v8011 = vsel %vm7883, %v7748, %v3598
      %v8012 = vsel %vm7884, %v7750, %v3599
      %v8013 = vsel %vm7885, %v7752, %v3600
      %v8014 = vsel %vm7886, %v7754, %v3601
      %v8015 = vsel %vm7887, %v7756, %v3602
      %v8016 = vsel %vm7888, %v7758, %v3603
      %v8017 = vsel %vm7889, %v7760, %v3604
      %v8018 = vsel %vm7890, %v7762, %v3605
      %v8019 = vsel %vm7763, 1.0, 0.0
      %v8020 = vsel %vm7764, 1.0, 0.0
      %v8021 = vsel %vm7765, 1.0, 0.0
      %v8022 = vsel %vm7766, 1.0, 0.0
      %v8023 = vsel %vm7767, 1.0, 0.0
      %v8024 = vsel %vm7768, 1.0, 0.0
      %v8025 = vsel %vm7769, 1.0, 0.0
      %v8026 = vsel %vm7770, 1.0, 0.0
      %v8027 = vsel %vm7771, 1.0, 0.0
      %v8028 = vsel %vm7772, 1.0, 0.0
      %v8029 = vsel %vm7773, 1.0, 0.0
      %v8030 = vsel %vm7774, 1.0, 0.0
      %v8031 = vsel %vm7775, 1.0, 0.0
      %v8032 = vsel %vm7776, 1.0, 0.0
      %v8033 = vsel %vm7777, 1.0, 0.0
      %v8034 = vsel %vm7778, 1.0, 0.0
      %v8035 = vsel %vm7779, 1.0, 0.0
      %v8036 = vsel %vm7780, 1.0, 0.0
      %v8037 = vsel %vm7781, 1.0, 0.0
      %v8038 = vsel %vm7782, 1.0, 0.0
      %v8039 = vsel %vm7783, 1.0, 0.0
      %v8040 = vsel %vm7784, 1.0, 0.0
      %v8041 = vsel %vm7785, 1.0, 0.0
      %v8042 = vsel %vm7786, 1.0, 0.0
      %v8043 = vsel %vm7787, 1.0, 0.0
      %v8044 = vsel %vm7788, 1.0, 0.0
      %v8045 = vsel %vm7789, 1.0, 0.0
      %v8046 = vsel %vm7790, 1.0, 0.0
      %v8047 = vsel %vm7791, 1.0, 0.0
      %v8048 = vsel %vm7792, 1.0, 0.0
      %v8049 = vsel %vm7793, 1.0, 0.0
      %v8050 = vsel %vm7794, 1.0, 0.0
      %v8051 = vsel %vm7795, 1.0, 0.0
      %v8052 = vsel %vm7796, 1.0, 0.0
      %v8053 = vsel %vm7797, 1.0, 0.0
      %v8054 = vsel %vm7798, 1.0, 0.0
      %v8055 = vsel %vm7799, 1.0, 0.0
      %v8056 = vsel %vm7800, 1.0, 0.0
      %v8057 = vsel %vm7801, 1.0, 0.0
      %v8058 = vsel %vm7802, 1.0, 0.0
      %v8059 = vsel %vm7803, 1.0, 0.0
      %v8060 = vsel %vm7804, 1.0, 0.0
      %v8061 = vsel %vm7805, 1.0, 0.0
      %v8062 = vsel %vm7806, 1.0, 0.0
      %v8063 = vsel %vm7807, 1.0, 0.0
      %v8064 = vsel %vm7808, 1.0, 0.0
      %v8065 = vsel %vm7809, 1.0, 0.0
      %v8066 = vsel %vm7810, 1.0, 0.0
      %v8067 = vsel %vm7811, 1.0, 0.0
      %v8068 = vsel %vm7812, 1.0, 0.0
      %v8069 = vsel %vm7813, 1.0, 0.0
      %v8070 = vsel %vm7814, 1.0, 0.0
      %v8071 = vsel %vm7815, 1.0, 0.0
      %v8072 = vsel %vm7816, 1.0, 0.0
      %v8073 = vsel %vm7817, 1.0, 0.0
      %v8074 = vsel %vm7818, 1.0, 0.0
      %v8075 = vsel %vm7819, 1.0, 0.0
      %v8076 = vsel %vm7820, 1.0, 0.0
      %v8077 = vsel %vm7821, 1.0, 0.0
      %v8078 = vsel %vm7822, 1.0, 0.0
      %v8079 = vsel %vm7823, 1.0, 0.0
      %v8080 = vsel %vm7824, 1.0, 0.0
      %v8081 = vsel %vm7825, 1.0, 0.0
      %v8082 = vsel %vm7826, 1.0, 0.0
      %v8083 = vsel %vm7827, 1.0, 0.0
      %v8084 = vsel %vm7828, 1.0, 0.0
      %v8085 = vsel %vm7829, 1.0, 0.0
      %v8086 = vsel %vm7830, 1.0, 0.0
      %v8087 = vsel %vm7831, 1.0, 0.0
      %v8088 = vsel %vm7832, 1.0, 0.0
      %v8089 = vsel %vm7833, 1.0, 0.0
      %v8090 = vsel %vm7834, 1.0, 0.0
      %v8091 = vsel %vm7835, 1.0, 0.0
      %v8092 = vsel %vm7836, 1.0, 0.0
      %v8093 = vsel %vm7837, 1.0, 0.0
      %v8094 = vsel %vm7838, 1.0, 0.0
      %v8095 = vsel %vm7839, 1.0, 0.0
      %v8096 = vsel %vm7840, 1.0, 0.0
      %v8097 = vsel %vm7841, 1.0, 0.0
      %v8098 = vsel %vm7842, 1.0, 0.0
      %v8099 = vsel %vm7843, 1.0, 0.0
      %v8100 = vsel %vm7844, 1.0, 0.0
      %v8101 = vsel %vm7845, 1.0, 0.0
      %v8102 = vsel %vm7846, 1.0, 0.0
      %v8103 = vsel %vm7847, 1.0, 0.0
      %v8104 = vsel %vm7848, 1.0, 0.0
      %v8105 = vsel %vm7849, 1.0, 0.0
      %v8106 = vsel %vm7850, 1.0, 0.0
      %v8107 = vsel %vm7851, 1.0, 0.0
      %v8108 = vsel %vm7852, 1.0, 0.0
      %v8109 = vsel %vm7853, 1.0, 0.0
      %v8110 = vsel %vm7854, 1.0, 0.0
      %v8111 = vsel %vm7855, 1.0, 0.0
      %v8112 = vsel %vm7856, 1.0, 0.0
      %v8113 = vsel %vm7857, 1.0, 0.0
      %v8114 = vsel %vm7858, 1.0, 0.0
      %v8115 = vsel %vm7859, 1.0, 0.0
      %v8116 = vsel %vm7860, 1.0, 0.0
      %v8117 = vsel %vm7861, 1.0, 0.0
      %v8118 = vsel %vm7862, 1.0, 0.0
      %v8119 = vsel %vm7863, 1.0, 0.0
      %v8120 = vsel %vm7864, 1.0, 0.0
      %v8121 = vsel %vm7865, 1.0, 0.0
      %v8122 = vsel %vm7866, 1.0, 0.0
      %v8123 = vsel %vm7867, 1.0, 0.0
      %v8124 = vsel %vm7868, 1.0, 0.0
      %v8125 = vsel %vm7869, 1.0, 0.0
      %v8126 = vsel %vm7870, 1.0, 0.0
      %v8127 = vsel %vm7871, 1.0, 0.0
      %v8128 = vsel %vm7872, 1.0, 0.0
      %v8129 = vsel %vm7873, 1.0, 0.0
      %v8130 = vsel %vm7874, 1.0, 0.0
      %v8131 = vsel %vm7875, 1.0, 0.0
      %v8132 = vsel %vm7876, 1.0, 0.0
      %v8133 = vsel %vm7877, 1.0, 0.0
      %v8134 = vsel %vm7878, 1.0, 0.0
      %v8135 = vsel %vm7879, 1.0, 0.0
      %v8136 = vsel %vm7880, 1.0, 0.0
      %v8137 = vsel %vm7881, 1.0, 0.0
      %v8138 = vsel %vm7882, 1.0, 0.0
      %v8139 = vsel %vm7883, 1.0, 0.0
      %v8140 = vsel %vm7884, 1.0, 0.0
      %v8141 = vsel %vm7885, 1.0, 0.0
      %v8142 = vsel %vm7886, 1.0, 0.0
      %v8143 = vsel %vm7887, 1.0, 0.0
      %v8144 = vsel %vm7888, 1.0, 0.0
      %v8145 = vsel %vm7889, 1.0, 0.0
      %v8146 = vsel %vm7890, 1.0, 0.0
      %8147 = vrot.lane.b32.xlu0 %v3478, 126
      %v8148 = vpop.permute.xlu0 %8147
      %8149 = vrot.lane.b32.xlu0 %v3479, 126
      %v8150 = vpop.permute.xlu0 %8149
      %8151 = vrot.lane.b32.xlu0 %v3480, 126
      %v8152 = vpop.permute.xlu0 %8151
      %8153 = vrot.lane.b32.xlu0 %v3481, 126
      %v8154 = vpop.permute.xlu0 %8153
      %8155 = vrot.lane.b32.xlu0 %v3482, 126
      %v8156 = vpop.permute.xlu0 %8155
      %8157 = vrot.lane.b32.xlu0 %v3483, 126
      %v8158 = vpop.permute.xlu0 %8157
      %8159 = vrot.lane.b32.xlu0 %v3484, 126
      %v8160 = vpop.permute.xlu0 %8159
      %8161 = vrot.lane.b32.xlu0 %v3485, 126
      %v8162 = vpop.permute.xlu0 %8161
      %8163 = vrot.lane.b32.xlu0 %v3486, 126
      %v8164 = vpop.permute.xlu0 %8163
      %8165 = vrot.lane.b32.xlu0 %v3487, 126
      %v8166 = vpop.permute.xlu0 %8165
      %8167 = vrot.lane.b32.xlu0 %v3488, 126
      %v8168 = vpop.permute.xlu0 %8167
      %8169 = vrot.lane.b32.xlu0 %v3489, 126
      %v8170 = vpop.permute.xlu0 %8169
      %8171 = vrot.lane.b32.xlu0 %v3490, 126
      %v8172 = vpop.permute.xlu0 %8171
      %8173 = vrot.lane.b32.xlu0 %v3491, 126
      %v8174 = vpop.permute.xlu0 %8173
      %8175 = vrot.lane.b32.xlu0 %v3492, 126
      %v8176 = vpop.permute.xlu0 %8175
      %8177 = vrot.lane.b32.xlu0 %v3493, 126
      %v8178 = vpop.permute.xlu0 %8177
      %8179 = vrot.lane.b32.xlu0 %v3494, 126
      %v8180 = vpop.permute.xlu0 %8179
      %8181 = vrot.lane.b32.xlu0 %v3495, 126
      %v8182 = vpop.permute.xlu0 %8181
      %8183 = vrot.lane.b32.xlu0 %v3496, 126
      %v8184 = vpop.permute.xlu0 %8183
      %8185 = vrot.lane.b32.xlu0 %v3497, 126
      %v8186 = vpop.permute.xlu0 %8185
      %8187 = vrot.lane.b32.xlu0 %v3498, 126
      %v8188 = vpop.permute.xlu0 %8187
      %8189 = vrot.lane.b32.xlu0 %v3499, 126
      %v8190 = vpop.permute.xlu0 %8189
      %8191 = vrot.lane.b32.xlu0 %v3500, 126
      %v8192 = vpop.permute.xlu0 %8191
      %8193 = vrot.lane.b32.xlu0 %v3501, 126
      %v8194 = vpop.permute.xlu0 %8193
      %8195 = vrot.lane.b32.xlu0 %v3502, 126
      %v8196 = vpop.permute.xlu0 %8195
      %8197 = vrot.lane.b32.xlu0 %v3503, 126
      %v8198 = vpop.permute.xlu0 %8197
      %8199 = vrot.lane.b32.xlu0 %v3504, 126
      %v8200 = vpop.permute.xlu0 %8199
      %8201 = vrot.lane.b32.xlu0 %v3505, 126
      %v8202 = vpop.permute.xlu0 %8201
      %8203 = vrot.lane.b32.xlu0 %v3506, 126
      %v8204 = vpop.permute.xlu0 %8203
      %8205 = vrot.lane.b32.xlu0 %v3507, 126
      %v8206 = vpop.permute.xlu0 %8205
      %8207 = vrot.lane.b32.xlu0 %v3508, 126
      %v8208 = vpop.permute.xlu0 %8207
      %8209 = vrot.lane.b32.xlu0 %v3509, 126
      %v8210 = vpop.permute.xlu0 %8209
      %8211 = vrot.lane.b32.xlu0 %v3510, 126
      %v8212 = vpop.permute.xlu0 %8211
      %8213 = vrot.lane.b32.xlu0 %v3511, 126
      %v8214 = vpop.permute.xlu0 %8213
      %8215 = vrot.lane.b32.xlu0 %v3512, 126
      %v8216 = vpop.permute.xlu0 %8215
      %8217 = vrot.lane.b32.xlu0 %v3513, 126
      %v8218 = vpop.permute.xlu0 %8217
      %8219 = vrot.lane.b32.xlu0 %v3514, 126
      %v8220 = vpop.permute.xlu0 %8219
      %8221 = vrot.lane.b32.xlu0 %v3515, 126
      %v8222 = vpop.permute.xlu0 %8221
      %8223 = vrot.lane.b32.xlu0 %v3516, 126
      %v8224 = vpop.permute.xlu0 %8223
      %8225 = vrot.lane.b32.xlu0 %v3517, 126
      %v8226 = vpop.permute.xlu0 %8225
      %8227 = vrot.lane.b32.xlu0 %v3518, 126
      %v8228 = vpop.permute.xlu0 %8227
      %8229 = vrot.lane.b32.xlu0 %v3519, 126
      %v8230 = vpop.permute.xlu0 %8229
      %8231 = vrot.lane.b32.xlu0 %v3520, 126
      %v8232 = vpop.permute.xlu0 %8231
      %8233 = vrot.lane.b32.xlu0 %v3521, 126
      %v8234 = vpop.permute.xlu0 %8233
      %8235 = vrot.lane.b32.xlu0 %v3522, 126
      %v8236 = vpop.permute.xlu0 %8235
      %8237 = vrot.lane.b32.xlu0 %v3523, 126
      %v8238 = vpop.permute.xlu0 %8237
      %8239 = vrot.lane.b32.xlu0 %v3524, 126
      %v8240 = vpop.permute.xlu0 %8239
      %8241 = vrot.lane.b32.xlu0 %v3525, 126
      %v8242 = vpop.permute.xlu0 %8241
      %8243 = vrot.lane.b32.xlu0 %v3526, 126
      %v8244 = vpop.permute.xlu0 %8243
      %8245 = vrot.lane.b32.xlu0 %v3527, 126
      %v8246 = vpop.permute.xlu0 %8245
      %8247 = vrot.lane.b32.xlu0 %v3528, 126
      %v8248 = vpop.permute.xlu0 %8247
      %8249 = vrot.lane.b32.xlu0 %v3529, 126
      %v8250 = vpop.permute.xlu0 %8249
      %8251 = vrot.lane.b32.xlu0 %v3530, 126
      %v8252 = vpop.permute.xlu0 %8251
      %8253 = vrot.lane.b32.xlu0 %v3531, 126
      %v8254 = vpop.permute.xlu0 %8253
      %8255 = vrot.lane.b32.xlu0 %v3532, 126
      %v8256 = vpop.permute.xlu0 %8255
      %8257 = vrot.lane.b32.xlu0 %v3533, 126
      %v8258 = vpop.permute.xlu0 %8257
      %8259 = vrot.lane.b32.xlu0 %v3534, 126
      %v8260 = vpop.permute.xlu0 %8259
      %8261 = vrot.lane.b32.xlu0 %v3535, 126
      %v8262 = vpop.permute.xlu0 %8261
      %8263 = vrot.lane.b32.xlu0 %v3536, 126
      %v8264 = vpop.permute.xlu0 %8263
      %8265 = vrot.lane.b32.xlu0 %v3537, 126
      %v8266 = vpop.permute.xlu0 %8265
      %8267 = vrot.lane.b32.xlu0 %v3538, 126
      %v8268 = vpop.permute.xlu0 %8267
      %8269 = vrot.lane.b32.xlu0 %v3539, 126
      %v8270 = vpop.permute.xlu0 %8269
      %8271 = vrot.lane.b32.xlu0 %v3540, 126
      %v8272 = vpop.permute.xlu0 %8271
      %8273 = vrot.lane.b32.xlu0 %v3541, 126
      %v8274 = vpop.permute.xlu0 %8273
      %8275 = vrot.lane.b32.xlu0 %v3542, 126
      %v8276 = vpop.permute.xlu0 %8275
      %8277 = vrot.lane.b32.xlu0 %v3543, 126
      %v8278 = vpop.permute.xlu0 %8277
      %8279 = vrot.lane.b32.xlu0 %v3544, 126
      %v8280 = vpop.permute.xlu0 %8279
      %8281 = vrot.lane.b32.xlu0 %v3545, 126
      %v8282 = vpop.permute.xlu0 %8281
      %8283 = vrot.lane.b32.xlu0 %v3546, 126
      %v8284 = vpop.permute.xlu0 %8283
      %8285 = vrot.lane.b32.xlu0 %v3547, 126
      %v8286 = vpop.permute.xlu0 %8285
      %8287 = vrot.lane.b32.xlu0 %v3548, 126
      %v8288 = vpop.permute.xlu0 %8287
      %8289 = vrot.lane.b32.xlu0 %v3549, 126
      %v8290 = vpop.permute.xlu0 %8289
      %8291 = vrot.lane.b32.xlu0 %v3550, 126
      %v8292 = vpop.permute.xlu0 %8291
      %8293 = vrot.lane.b32.xlu0 %v3551, 126
      %v8294 = vpop.permute.xlu0 %8293
      %8295 = vrot.lane.b32.xlu0 %v3552, 126
      %v8296 = vpop.permute.xlu0 %8295
      %8297 = vrot.lane.b32.xlu0 %v3553, 126
      %v8298 = vpop.permute.xlu0 %8297
      %8299 = vrot.lane.b32.xlu0 %v3554, 126
      %v8300 = vpop.permute.xlu0 %8299
      %8301 = vrot.lane.b32.xlu0 %v3555, 126
      %v8302 = vpop.permute.xlu0 %8301
      %8303 = vrot.lane.b32.xlu0 %v3556, 126
      %v8304 = vpop.permute.xlu0 %8303
      %8305 = vrot.lane.b32.xlu0 %v3557, 126
      %v8306 = vpop.permute.xlu0 %8305
      %8307 = vrot.lane.b32.xlu0 %v3558, 126
      %v8308 = vpop.permute.xlu0 %8307
      %8309 = vrot.lane.b32.xlu0 %v3559, 126
      %v8310 = vpop.permute.xlu0 %8309
      %8311 = vrot.lane.b32.xlu0 %v3560, 126
      %v8312 = vpop.permute.xlu0 %8311
      %8313 = vrot.lane.b32.xlu0 %v3561, 126
      %v8314 = vpop.permute.xlu0 %8313
      %8315 = vrot.lane.b32.xlu0 %v3562, 126
      %v8316 = vpop.permute.xlu0 %8315
      %8317 = vrot.lane.b32.xlu0 %v3563, 126
      %v8318 = vpop.permute.xlu0 %8317
      %8319 = vrot.lane.b32.xlu0 %v3564, 126
      %v8320 = vpop.permute.xlu0 %8319
      %8321 = vrot.lane.b32.xlu0 %v3565, 126
      %v8322 = vpop.permute.xlu0 %8321
      %8323 = vrot.lane.b32.xlu0 %v3566, 126
      %v8324 = vpop.permute.xlu0 %8323
      %8325 = vrot.lane.b32.xlu0 %v3567, 126
      %v8326 = vpop.permute.xlu0 %8325
      %8327 = vrot.lane.b32.xlu0 %v3568, 126
      %v8328 = vpop.permute.xlu0 %8327
      %8329 = vrot.lane.b32.xlu0 %v3569, 126
      %v8330 = vpop.permute.xlu0 %8329
      %8331 = vrot.lane.b32.xlu0 %v3570, 126
      %v8332 = vpop.permute.xlu0 %8331
      %8333 = vrot.lane.b32.xlu0 %v3571, 126
      %v8334 = vpop.permute.xlu0 %8333
      %8335 = vrot.lane.b32.xlu0 %v3572, 126
      %v8336 = vpop.permute.xlu0 %8335
      %8337 = vrot.lane.b32.xlu0 %v3573, 126
      %v8338 = vpop.permute.xlu0 %8337
      %8339 = vrot.lane.b32.xlu0 %v3574, 126
      %v8340 = vpop.permute.xlu0 %8339
      %8341 = vrot.lane.b32.xlu0 %v3575, 126
      %v8342 = vpop.permute.xlu0 %8341
      %8343 = vrot.lane.b32.xlu0 %v3576, 126
      %v8344 = vpop.permute.xlu0 %8343
      %8345 = vrot.lane.b32.xlu0 %v3577, 126
      %v8346 = vpop.permute.xlu0 %8345
      %8347 = vrot.lane.b32.xlu0 %v3578, 126
      %v8348 = vpop.permute.xlu0 %8347
      %8349 = vrot.lane.b32.xlu0 %v3579, 126
      %v8350 = vpop.permute.xlu0 %8349
      %8351 = vrot.lane.b32.xlu0 %v3580, 126
      %v8352 = vpop.permute.xlu0 %8351
      %8353 = vrot.lane.b32.xlu0 %v3581, 126
      %v8354 = vpop.permute.xlu0 %8353
      %8355 = vrot.lane.b32.xlu0 %v3582, 126
      %v8356 = vpop.permute.xlu0 %8355
      %8357 = vrot.lane.b32.xlu0 %v3583, 126
      %v8358 = vpop.permute.xlu0 %8357
      %8359 = vrot.lane.b32.xlu0 %v3584, 126
      %v8360 = vpop.permute.xlu0 %8359
      %8361 = vrot.lane.b32.xlu0 %v3585, 126
      %v8362 = vpop.permute.xlu0 %8361
      %8363 = vrot.lane.b32.xlu0 %v3586, 126
      %v8364 = vpop.permute.xlu0 %8363
      %8365 = vrot.lane.b32.xlu0 %v3587, 126
      %v8366 = vpop.permute.xlu0 %8365
      %8367 = vrot.lane.b32.xlu0 %v3588, 126
      %v8368 = vpop.permute.xlu0 %8367
      %8369 = vrot.lane.b32.xlu0 %v3589, 126
      %v8370 = vpop.permute.xlu0 %8369
      %8371 = vrot.lane.b32.xlu0 %v3590, 126
      %v8372 = vpop.permute.xlu0 %8371
      %8373 = vrot.lane.b32.xlu0 %v3591, 126
      %v8374 = vpop.permute.xlu0 %8373
      %8375 = vrot.lane.b32.xlu0 %v3592, 126
      %v8376 = vpop.permute.xlu0 %8375
      %8377 = vrot.lane.b32.xlu0 %v3593, 126
      %v8378 = vpop.permute.xlu0 %8377
      %8379 = vrot.lane.b32.xlu0 %v3594, 126
      %v8380 = vpop.permute.xlu0 %8379
      %8381 = vrot.lane.b32.xlu0 %v3595, 126
      %v8382 = vpop.permute.xlu0 %8381
      %8383 = vrot.lane.b32.xlu0 %v3596, 126
      %v8384 = vpop.permute.xlu0 %8383
      %8385 = vrot.lane.b32.xlu0 %v3597, 126
      %v8386 = vpop.permute.xlu0 %8385
      %8387 = vrot.lane.b32.xlu0 %v3598, 126
      %v8388 = vpop.permute.xlu0 %8387
      %8389 = vrot.lane.b32.xlu0 %v3599, 126
      %v8390 = vpop.permute.xlu0 %8389
      %8391 = vrot.lane.b32.xlu0 %v3600, 126
      %v8392 = vpop.permute.xlu0 %8391
      %8393 = vrot.lane.b32.xlu0 %v3601, 126
      %v8394 = vpop.permute.xlu0 %8393
      %8395 = vrot.lane.b32.xlu0 %v3602, 126
      %v8396 = vpop.permute.xlu0 %8395
      %8397 = vrot.lane.b32.xlu0 %v3603, 126
      %v8398 = vpop.permute.xlu0 %8397
      %8399 = vrot.lane.b32.xlu0 %v3604, 126
      %v8400 = vpop.permute.xlu0 %8399
      %8401 = vrot.lane.b32.xlu0 %v3605, 126
      %v8402 = vpop.permute.xlu0 %8401
      %vm8403 = vcmp.gt.f32.partialorder %v8148, %v7891
      %vm8404 = vcmp.gt.f32.partialorder %v8150, %v7892
      %vm8405 = vcmp.gt.f32.partialorder %v8152, %v7893
      %vm8406 = vcmp.gt.f32.partialorder %v8154, %v7894
      %vm8407 = vcmp.gt.f32.partialorder %v8156, %v7895
      %vm8408 = vcmp.gt.f32.partialorder %v8158, %v7896
      %vm8409 = vcmp.gt.f32.partialorder %v8160, %v7897
      %vm8410 = vcmp.gt.f32.partialorder %v8162, %v7898
      %vm8411 = vcmp.gt.f32.partialorder %v8164, %v7899
      %vm8412 = vcmp.gt.f32.partialorder %v8166, %v7900
      %vm8413 = vcmp.gt.f32.partialorder %v8168, %v7901
      %vm8414 = vcmp.gt.f32.partialorder %v8170, %v7902
      %vm8415 = vcmp.gt.f32.partialorder %v8172, %v7903
      %vm8416 = vcmp.gt.f32.partialorder %v8174, %v7904
      %vm8417 = vcmp.gt.f32.partialorder %v8176, %v7905
      %vm8418 = vcmp.gt.f32.partialorder %v8178, %v7906
      %vm8419 = vcmp.gt.f32.partialorder %v8180, %v7907
      %vm8420 = vcmp.gt.f32.partialorder %v8182, %v7908
      %vm8421 = vcmp.gt.f32.partialorder %v8184, %v7909
      %vm8422 = vcmp.gt.f32.partialorder %v8186, %v7910
      %vm8423 = vcmp.gt.f32.partialorder %v8188, %v7911
      %vm8424 = vcmp.gt.f32.partialorder %v8190, %v7912
      %vm8425 = vcmp.gt.f32.partialorder %v8192, %v7913
      %vm8426 = vcmp.gt.f32.partialorder %v8194, %v7914
      %vm8427 = vcmp.gt.f32.partialorder %v8196, %v7915
      %vm8428 = vcmp.gt.f32.partialorder %v8198, %v7916
      %vm8429 = vcmp.gt.f32.partialorder %v8200, %v7917
      %vm8430 = vcmp.gt.f32.partialorder %v8202, %v7918
      %vm8431 = vcmp.gt.f32.partialorder %v8204, %v7919
      %vm8432 = vcmp.gt.f32.partialorder %v8206, %v7920
      %vm8433 = vcmp.gt.f32.partialorder %v8208, %v7921
      %vm8434 = vcmp.gt.f32.partialorder %v8210, %v7922
      %vm8435 = vcmp.gt.f32.partialorder %v8212, %v7923
      %vm8436 = vcmp.gt.f32.partialorder %v8214, %v7924
      %vm8437 = vcmp.gt.f32.partialorder %v8216, %v7925
      %vm8438 = vcmp.gt.f32.partialorder %v8218, %v7926
      %vm8439 = vcmp.gt.f32.partialorder %v8220, %v7927
      %vm8440 = vcmp.gt.f32.partialorder %v8222, %v7928
      %vm8441 = vcmp.gt.f32.partialorder %v8224, %v7929
      %vm8442 = vcmp.gt.f32.partialorder %v8226, %v7930
      %vm8443 = vcmp.gt.f32.partialorder %v8228, %v7931
      %vm8444 = vcmp.gt.f32.partialorder %v8230, %v7932
      %vm8445 = vcmp.gt.f32.partialorder %v8232, %v7933
      %vm8446 = vcmp.gt.f32.partialorder %v8234, %v7934
      %vm8447 = vcmp.gt.f32.partialorder %v8236, %v7935
      %vm8448 = vcmp.gt.f32.partialorder %v8238, %v7936
      %vm8449 = vcmp.gt.f32.partialorder %v8240, %v7937
      %vm8450 = vcmp.gt.f32.partialorder %v8242, %v7938
      %vm8451 = vcmp.gt.f32.partialorder %v8244, %v7939
      %vm8452 = vcmp.gt.f32.partialorder %v8246, %v7940
      %vm8453 = vcmp.gt.f32.partialorder %v8248, %v7941
      %vm8454 = vcmp.gt.f32.partialorder %v8250, %v7942
      %vm8455 = vcmp.gt.f32.partialorder %v8252, %v7943
      %vm8456 = vcmp.gt.f32.partialorder %v8254, %v7944
      %vm8457 = vcmp.gt.f32.partialorder %v8256, %v7945
      %vm8458 = vcmp.gt.f32.partialorder %v8258, %v7946
      %vm8459 = vcmp.gt.f32.partialorder %v8260, %v7947
      %vm8460 = vcmp.gt.f32.partialorder %v8262, %v7948
      %vm8461 = vcmp.gt.f32.partialorder %v8264, %v7949
      %vm8462 = vcmp.gt.f32.partialorder %v8266, %v7950
      %vm8463 = vcmp.gt.f32.partialorder %v8268, %v7951
      %vm8464 = vcmp.gt.f32.partialorder %v8270, %v7952
      %vm8465 = vcmp.gt.f32.partialorder %v8272, %v7953
      %vm8466 = vcmp.gt.f32.partialorder %v8274, %v7954
      %vm8467 = vcmp.gt.f32.partialorder %v8276, %v7955
      %vm8468 = vcmp.gt.f32.partialorder %v8278, %v7956
      %vm8469 = vcmp.gt.f32.partialorder %v8280, %v7957
      %vm8470 = vcmp.gt.f32.partialorder %v8282, %v7958
      %vm8471 = vcmp.gt.f32.partialorder %v8284, %v7959
      %vm8472 = vcmp.gt.f32.partialorder %v8286, %v7960
      %vm8473 = vcmp.gt.f32.partialorder %v8288, %v7961
      %vm8474 = vcmp.gt.f32.partialorder %v8290, %v7962
      %vm8475 = vcmp.gt.f32.partialorder %v8292, %v7963
      %vm8476 = vcmp.gt.f32.partialorder %v8294, %v7964
      %vm8477 = vcmp.gt.f32.partialorder %v8296, %v7965
      %vm8478 = vcmp.gt.f32.partialorder %v8298, %v7966
      %vm8479 = vcmp.gt.f32.partialorder %v8300, %v7967
      %vm8480 = vcmp.gt.f32.partialorder %v8302, %v7968
      %vm8481 = vcmp.gt.f32.partialorder %v8304, %v7969
      %vm8482 = vcmp.gt.f32.partialorder %v8306, %v7970
      %vm8483 = vcmp.gt.f32.partialorder %v8308, %v7971
      %vm8484 = vcmp.gt.f32.partialorder %v8310, %v7972
      %vm8485 = vcmp.gt.f32.partialorder %v8312, %v7973
      %vm8486 = vcmp.gt.f32.partialorder %v8314, %v7974
      %vm8487 = vcmp.gt.f32.partialorder %v8316, %v7975
      %vm8488 = vcmp.gt.f32.partialorder %v8318, %v7976
      %vm8489 = vcmp.gt.f32.partialorder %v8320, %v7977
      %vm8490 = vcmp.gt.f32.partialorder %v8322, %v7978
      %vm8491 = vcmp.gt.f32.partialorder %v8324, %v7979
      %vm8492 = vcmp.gt.f32.partialorder %v8326, %v7980
      %vm8493 = vcmp.gt.f32.partialorder %v8328, %v7981
      %vm8494 = vcmp.gt.f32.partialorder %v8330, %v7982
      %vm8495 = vcmp.gt.f32.partialorder %v8332, %v7983
      %vm8496 = vcmp.gt.f32.partialorder %v8334, %v7984
      %vm8497 = vcmp.gt.f32.partialorder %v8336, %v7985
      %vm8498 = vcmp.gt.f32.partialorder %v8338, %v7986
      %vm8499 = vcmp.gt.f32.partialorder %v8340, %v7987
      %vm8500 = vcmp.gt.f32.partialorder %v8342, %v7988
      %vm8501 = vcmp.gt.f32.partialorder %v8344, %v7989
      %vm8502 = vcmp.gt.f32.partialorder %v8346, %v7990
      %vm8503 = vcmp.gt.f32.partialorder %v8348, %v7991
      %vm8504 = vcmp.gt.f32.partialorder %v8350, %v7992
      %vm8505 = vcmp.gt.f32.partialorder %v8352, %v7993
      %vm8506 = vcmp.gt.f32.partialorder %v8354, %v7994
      %vm8507 = vcmp.gt.f32.partialorder %v8356, %v7995
      %vm8508 = vcmp.gt.f32.partialorder %v8358, %v7996
      %vm8509 = vcmp.gt.f32.partialorder %v8360, %v7997
      %vm8510 = vcmp.gt.f32.partialorder %v8362, %v7998
      %vm8511 = vcmp.gt.f32.partialorder %v8364, %v7999
      %vm8512 = vcmp.gt.f32.partialorder %v8366, %v8000
      %vm8513 = vcmp.gt.f32.partialorder %v8368, %v8001
      %vm8514 = vcmp.gt.f32.partialorder %v8370, %v8002
      %vm8515 = vcmp.gt.f32.partialorder %v8372, %v8003
      %vm8516 = vcmp.gt.f32.partialorder %v8374, %v8004
      %vm8517 = vcmp.gt.f32.partialorder %v8376, %v8005
      %vm8518 = vcmp.gt.f32.partialorder %v8378, %v8006
      %vm8519 = vcmp.gt.f32.partialorder %v8380, %v8007
      %vm8520 = vcmp.gt.f32.partialorder %v8382, %v8008
      %vm8521 = vcmp.gt.f32.partialorder %v8384, %v8009
      %vm8522 = vcmp.gt.f32.partialorder %v8386, %v8010
      %vm8523 = vcmp.gt.f32.partialorder %v8388, %v8011
      %vm8524 = vcmp.gt.f32.partialorder %v8390, %v8012
      %vm8525 = vcmp.gt.f32.partialorder %v8392, %v8013
      %vm8526 = vcmp.gt.f32.partialorder %v8394, %v8014
      %vm8527 = vcmp.gt.f32.partialorder %v8396, %v8015
      %vm8528 = vcmp.gt.f32.partialorder %v8398, %v8016
      %vm8529 = vcmp.gt.f32.partialorder %v8400, %v8017
      %vm8530 = vcmp.gt.f32.partialorder %v8402, %v8018
      %v8531 = vsel %vm8403, 2.0, %v8019
      %v8532 = vsel %vm8404, 2.0, %v8020
      %v8533 = vsel %vm8405, 2.0, %v8021
      %v8534 = vsel %vm8406, 2.0, %v8022
      %v8535 = vsel %vm8407, 2.0, %v8023
      %v8536 = vsel %vm8408, 2.0, %v8024
      %v8537 = vsel %vm8409, 2.0, %v8025
      %v8538 = vsel %vm8410, 2.0, %v8026
      %v8539 = vsel %vm8411, 2.0, %v8027
      %v8540 = vsel %vm8412, 2.0, %v8028
      %v8541 = vsel %vm8413, 2.0, %v8029
      %v8542 = vsel %vm8414, 2.0, %v8030
      %v8543 = vsel %vm8415, 2.0, %v8031
      %v8544 = vsel %vm8416, 2.0, %v8032
      %v8545 = vsel %vm8417, 2.0, %v8033
      %v8546 = vsel %vm8418, 2.0, %v8034
      %v8547 = vsel %vm8419, 2.0, %v8035
      %v8548 = vsel %vm8420, 2.0, %v8036
      %v8549 = vsel %vm8421, 2.0, %v8037
      %v8550 = vsel %vm8422, 2.0, %v8038
      %v8551 = vsel %vm8423, 2.0, %v8039
      %v8552 = vsel %vm8424, 2.0, %v8040
      %v8553 = vsel %vm8425, 2.0, %v8041
      %v8554 = vsel %vm8426, 2.0, %v8042
      %v8555 = vsel %vm8427, 2.0, %v8043
      %v8556 = vsel %vm8428, 2.0, %v8044
      %v8557 = vsel %vm8429, 2.0, %v8045
      %v8558 = vsel %vm8430, 2.0, %v8046
      %v8559 = vsel %vm8431, 2.0, %v8047
      %v8560 = vsel %vm8432, 2.0, %v8048
      %v8561 = vsel %vm8433, 2.0, %v8049
      %v8562 = vsel %vm8434, 2.0, %v8050
      %v8563 = vsel %vm8435, 2.0, %v8051
      %v8564 = vsel %vm8436, 2.0, %v8052
      %v8565 = vsel %vm8437, 2.0, %v8053
      %v8566 = vsel %vm8438, 2.0, %v8054
      %v8567 = vsel %vm8439, 2.0, %v8055
      %v8568 = vsel %vm8440, 2.0, %v8056
      %v8569 = vsel %vm8441, 2.0, %v8057
      %v8570 = vsel %vm8442, 2.0, %v8058
      %v8571 = vsel %vm8443, 2.0, %v8059
      %v8572 = vsel %vm8444, 2.0, %v8060
      %v8573 = vsel %vm8445, 2.0, %v8061
      %v8574 = vsel %vm8446, 2.0, %v8062
      %v8575 = vsel %vm8447, 2.0, %v8063
      %v8576 = vsel %vm8448, 2.0, %v8064
      %v8577 = vsel %vm8449, 2.0, %v8065
      %v8578 = vsel %vm8450, 2.0, %v8066
      %v8579 = vsel %vm8451, 2.0, %v8067
      %v8580 = vsel %vm8452, 2.0, %v8068
      %v8581 = vsel %vm8453, 2.0, %v8069
      %v8582 = vsel %vm8454, 2.0, %v8070
      %v8583 = vsel %vm8455, 2.0, %v8071
      %v8584 = vsel %vm8456, 2.0, %v8072
      %v8585 = vsel %vm8457, 2.0, %v8073
      %v8586 = vsel %vm8458, 2.0, %v8074
      %v8587 = vsel %vm8459, 2.0, %v8075
      %v8588 = vsel %vm8460, 2.0, %v8076
      %v8589 = vsel %vm8461, 2.0, %v8077
      %v8590 = vsel %vm8462, 2.0, %v8078
      %v8591 = vsel %vm8463, 2.0, %v8079
      %v8592 = vsel %vm8464, 2.0, %v8080
      %v8593 = vsel %vm8465, 2.0, %v8081
      %v8594 = vsel %vm8466, 2.0, %v8082
      %v8595 = vsel %vm8467, 2.0, %v8083
      %v8596 = vsel %vm8468, 2.0, %v8084
      %v8597 = vsel %vm8469, 2.0, %v8085
      %v8598 = vsel %vm8470, 2.0, %v8086
      %v8599 = vsel %vm8471, 2.0, %v8087
      %v8600 = vsel %vm8472, 2.0, %v8088
      %v8601 = vsel %vm8473, 2.0, %v8089
      %v8602 = vsel %vm8474, 2.0, %v8090
      %v8603 = vsel %vm8475, 2.0, %v8091
      %v8604 = vsel %vm8476, 2.0, %v8092
      %v8605 = vsel %vm8477, 2.0, %v8093
      %v8606 = vsel %vm8478, 2.0, %v8094
      %v8607 = vsel %vm8479, 2.0, %v8095
      %v8608 = vsel %vm8480, 2.0, %v8096
      %v8609 = vsel %vm8481, 2.0, %v8097
      %v8610 = vsel %vm8482, 2.0, %v8098
      %v8611 = vsel %vm8483, 2.0, %v8099
      %v8612 = vsel %vm8484, 2.0, %v8100
      %v8613 = vsel %vm8485, 2.0, %v8101
      %v8614 = vsel %vm8486, 2.0, %v8102
      %v8615 = vsel %vm8487, 2.0, %v8103
      %v8616 = vsel %vm8488, 2.0, %v8104
      %v8617 = vsel %vm8489, 2.0, %v8105
      %v8618 = vsel %vm8490, 2.0, %v8106
      %v8619 = vsel %vm8491, 2.0, %v8107
      %v8620 = vsel %vm8492, 2.0, %v8108
      %v8621 = vsel %vm8493, 2.0, %v8109
      %v8622 = vsel %vm8494, 2.0, %v8110
      %v8623 = vsel %vm8495, 2.0, %v8111
      %v8624 = vsel %vm8496, 2.0, %v8112
      %v8625 = vsel %vm8497, 2.0, %v8113
      %v8626 = vsel %vm8498, 2.0, %v8114
      %v8627 = vsel %vm8499, 2.0, %v8115
      %v8628 = vsel %vm8500, 2.0, %v8116
      %v8629 = vsel %vm8501, 2.0, %v8117
      %v8630 = vsel %vm8502, 2.0, %v8118
      %v8631 = vsel %vm8503, 2.0, %v8119
      %v8632 = vsel %vm8504, 2.0, %v8120
      %v8633 = vsel %vm8505, 2.0, %v8121
      %v8634 = vsel %vm8506, 2.0, %v8122
      %v8635 = vsel %vm8507, 2.0, %v8123
      %v8636 = vsel %vm8508, 2.0, %v8124
      %v8637 = vsel %vm8509, 2.0, %v8125
      %v8638 = vsel %vm8510, 2.0, %v8126
      %v8639 = vsel %vm8511, 2.0, %v8127
      %v8640 = vsel %vm8512, 2.0, %v8128
      %v8641 = vsel %vm8513, 2.0, %v8129
      %v8642 = vsel %vm8514, 2.0, %v8130
      %v8643 = vsel %vm8515, 2.0, %v8131
      %v8644 = vsel %vm8516, 2.0, %v8132
      %v8645 = vsel %vm8517, 2.0, %v8133
      %v8646 = vsel %vm8518, 2.0, %v8134
      %v8647 = vsel %vm8519, 2.0, %v8135
      %v8648 = vsel %vm8520, 2.0, %v8136
      %v8649 = vsel %vm8521, 2.0, %v8137
      %v8650 = vsel %vm8522, 2.0, %v8138
      %v8651 = vsel %vm8523, 2.0, %v8139
      %v8652 = vsel %vm8524, 2.0, %v8140
      %v8653 = vsel %vm8525, 2.0, %v8141
      %v8654 = vsel %vm8526, 2.0, %v8142
      %v8655 = vsel %vm8527, 2.0, %v8143
      %v8656 = vsel %vm8528, 2.0, %v8144
      %v8657 = vsel %vm8529, 2.0, %v8145
      %v8658 = vsel %vm8530, 2.0, %v8146
      %v8659 = vmul.f32 %v3638, %v8531
      %v8660 = vmul.f32 %v3638, %v8532
      %v8661 = vmul.f32 %v3638, %v8533
      %v8662 = vmul.f32 %v3638, %v8534
      %v8663 = vmul.f32 %v3638, %v8535
      %v8664 = vmul.f32 %v3638, %v8536
      %v8665 = vmul.f32 %v3638, %v8537
      %v8666 = vmul.f32 %v3638, %v8538
      %v8667 = vmul.f32 %v3638, %v8539
      %v8668 = vmul.f32 %v3638, %v8540
      %v8669 = vmul.f32 %v3638, %v8541
      %v8670 = vmul.f32 %v3638, %v8542
      %v8671 = vmul.f32 %v3638, %v8543
      %v8672 = vmul.f32 %v3638, %v8544
      %v8673 = vmul.f32 %v3638, %v8545
      %v8674 = vmul.f32 %v3638, %v8546
      %v8675 = vmul.f32 %v3638, %v8547
      %v8676 = vmul.f32 %v3638, %v8548
      %v8677 = vmul.f32 %v3638, %v8549
      %v8678 = vmul.f32 %v3638, %v8550
      %v8679 = vmul.f32 %v3638, %v8551
      %v8680 = vmul.f32 %v3638, %v8552
      %v8681 = vmul.f32 %v3638, %v8553
      %v8682 = vmul.f32 %v3638, %v8554
      %v8683 = vmul.f32 %v3638, %v8555
      %v8684 = vmul.f32 %v3638, %v8556
      %v8685 = vmul.f32 %v3638, %v8557
      %v8686 = vmul.f32 %v3638, %v8558
      %v8687 = vmul.f32 %v3638, %v8559
      %v8688 = vmul.f32 %v3638, %v8560
      %v8689 = vmul.f32 %v3638, %v8561
      %v8690 = vmul.f32 %v3638, %v8562
      %v8691 = vmul.f32 %v3638, %v8563
      %v8692 = vmul.f32 %v3638, %v8564
      %v8693 = vmul.f32 %v3638, %v8565
      %v8694 = vmul.f32 %v3638, %v8566
      %v8695 = vmul.f32 %v3638, %v8567
      %v8696 = vmul.f32 %v3638, %v8568
      %v8697 = vmul.f32 %v3638, %v8569
      %v8698 = vmul.f32 %v3638, %v8570
      %v8699 = vmul.f32 %v3638, %v8571
      %v8700 = vmul.f32 %v3638, %v8572
      %v8701 = vmul.f32 %v3638, %v8573
      %v8702 = vmul.f32 %v3638, %v8574
      %v8703 = vmul.f32 %v3638, %v8575
      %v8704 = vmul.f32 %v3638, %v8576
      %v8705 = vmul.f32 %v3638, %v8577
      %v8706 = vmul.f32 %v3638, %v8578
      %v8707 = vmul.f32 %v3638, %v8579
      %v8708 = vmul.f32 %v3638, %v8580
      %v8709 = vmul.f32 %v3638, %v8581
      %v8710 = vmul.f32 %v3638, %v8582
      %v8711 = vmul.f32 %v3638, %v8583
      %v8712 = vmul.f32 %v3638, %v8584
      %v8713 = vmul.f32 %v3638, %v8585
      %v8714 = vmul.f32 %v3638, %v8586
      %v8715 = vmul.f32 %v3638, %v8587
      %v8716 = vmul.f32 %v3638, %v8588
      %v8717 = vmul.f32 %v3638, %v8589
      %v8718 = vmul.f32 %v3638, %v8590
      %v8719 = vmul.f32 %v3638, %v8591
      %v8720 = vmul.f32 %v3638, %v8592
      %v8721 = vmul.f32 %v3638, %v8593
      %v8722 = vmul.f32 %v3638, %v8594
      %v8723 = vmul.f32 %v3638, %v8595
      %v8724 = vmul.f32 %v3638, %v8596
      %v8725 = vmul.f32 %v3638, %v8597
      %v8726 = vmul.f32 %v3638, %v8598
      %v8727 = vmul.f32 %v3638, %v8599
      %v8728 = vmul.f32 %v3638, %v8600
      %v8729 = vmul.f32 %v3638, %v8601
      %v8730 = vmul.f32 %v3638, %v8602
      %v8731 = vmul.f32 %v3638, %v8603
      %v8732 = vmul.f32 %v3638, %v8604
      %v8733 = vmul.f32 %v3638, %v8605
      %v8734 = vmul.f32 %v3638, %v8606
      %v8735 = vmul.f32 %v3638, %v8607
      %v8736 = vmul.f32 %v3638, %v8608
      %v8737 = vmul.f32 %v3638, %v8609
      %v8738 = vmul.f32 %v3638, %v8610
      %v8739 = vmul.f32 %v3638, %v8611
      %v8740 = vmul.f32 %v3638, %v8612
      %v8741 = vmul.f32 %v3638, %v8613
      %v8742 = vmul.f32 %v3638, %v8614
      %v8743 = vmul.f32 %v3638, %v8615
      %v8744 = vmul.f32 %v3638, %v8616
      %v8745 = vmul.f32 %v3638, %v8617
      %v8746 = vmul.f32 %v3638, %v8618
      %v8747 = vmul.f32 %v3638, %v8619
      %v8748 = vmul.f32 %v3638, %v8620
      %v8749 = vmul.f32 %v3638, %v8621
      %v8750 = vmul.f32 %v3638, %v8622
      %v8751 = vmul.f32 %v3638, %v8623
      %v8752 = vmul.f32 %v3638, %v8624
      %v8753 = vmul.f32 %v3638, %v8625
      %v8754 = vmul.f32 %v3638, %v8626
      %v8755 = vmul.f32 %v3638, %v8627
      %v8756 = vmul.f32 %v3638, %v8628
      %v8757 = vmul.f32 %v3638, %v8629
      %v8758 = vmul.f32 %v3638, %v8630
      %v8759 = vmul.f32 %v3638, %v8631
      %v8760 = vmul.f32 %v3638, %v8632
      %v8761 = vmul.f32 %v3638, %v8633
      %v8762 = vmul.f32 %v3638, %v8634
      %v8763 = vmul.f32 %v3638, %v8635
      %v8764 = vmul.f32 %v3638, %v8636
      %v8765 = vmul.f32 %v3638, %v8637
      %v8766 = vmul.f32 %v3638, %v8638
      %v8767 = vmul.f32 %v3638, %v8639
      %v8768 = vmul.f32 %v3638, %v8640
      %v8769 = vmul.f32 %v3638, %v8641
      %v8770 = vmul.f32 %v3638, %v8642
      %v8771 = vmul.f32 %v3638, %v8643
      %v8772 = vmul.f32 %v3638, %v8644
      %v8773 = vmul.f32 %v3638, %v8645
      %v8774 = vmul.f32 %v3638, %v8646
      %v8775 = vmul.f32 %v3638, %v8647
      %v8776 = vmul.f32 %v3638, %v8648
      %v8777 = vmul.f32 %v3638, %v8649
      %v8778 = vmul.f32 %v3638, %v8650
      %v8779 = vmul.f32 %v3638, %v8651
      %v8780 = vmul.f32 %v3638, %v8652
      %v8781 = vmul.f32 %v3638, %v8653
      %v8782 = vmul.f32 %v3638, %v8654
      %v8783 = vmul.f32 %v3638, %v8655
      %v8784 = vmul.f32 %v3638, %v8656
      %v8785 = vmul.f32 %v3638, %v8657
      %v8786 = vmul.f32 %v3638, %v8658
      %v8787 = vadd.f32 %v7379, %v8659
      %v8788 = vadd.f32 %v7380, %v8660
      %v8789 = vadd.f32 %v7381, %v8661
      %v8790 = vadd.f32 %v7382, %v8662
      %v8791 = vadd.f32 %v7383, %v8663
      %v8792 = vadd.f32 %v7384, %v8664
      %v8793 = vadd.f32 %v7385, %v8665
      %v8794 = vadd.f32 %v7386, %v8666
      %v8795 = vadd.f32 %v7387, %v8667
      %v8796 = vadd.f32 %v7388, %v8668
      %v8797 = vadd.f32 %v7389, %v8669
      %v8798 = vadd.f32 %v7390, %v8670
      %v8799 = vadd.f32 %v7391, %v8671
      %v8800 = vadd.f32 %v7392, %v8672
      %v8801 = vadd.f32 %v7393, %v8673
      %v8802 = vadd.f32 %v7394, %v8674
      %v8803 = vadd.f32 %v7395, %v8675
      %v8804 = vadd.f32 %v7396, %v8676
      %v8805 = vadd.f32 %v7397, %v8677
      %v8806 = vadd.f32 %v7398, %v8678
      %v8807 = vadd.f32 %v7399, %v8679
      %v8808 = vadd.f32 %v7400, %v8680
      %v8809 = vadd.f32 %v7401, %v8681
      %v8810 = vadd.f32 %v7402, %v8682
      %v8811 = vadd.f32 %v7403, %v8683
      %v8812 = vadd.f32 %v7404, %v8684
      %v8813 = vadd.f32 %v7405, %v8685
      %v8814 = vadd.f32 %v7406, %v8686
      %v8815 = vadd.f32 %v7407, %v8687
      %v8816 = vadd.f32 %v7408, %v8688
      %v8817 = vadd.f32 %v7409, %v8689
      %v8818 = vadd.f32 %v7410, %v8690
      %v8819 = vadd.f32 %v7411, %v8691
      %v8820 = vadd.f32 %v7412, %v8692
      %v8821 = vadd.f32 %v7413, %v8693
      %v8822 = vadd.f32 %v7414, %v8694
      %v8823 = vadd.f32 %v7415, %v8695
      %v8824 = vadd.f32 %v7416, %v8696
      %v8825 = vadd.f32 %v7417, %v8697
      %v8826 = vadd.f32 %v7418, %v8698
      %v8827 = vadd.f32 %v7419, %v8699
      %v8828 = vadd.f32 %v7420, %v8700
      %v8829 = vadd.f32 %v7421, %v8701
      %v8830 = vadd.f32 %v7422, %v8702
      %v8831 = vadd.f32 %v7423, %v8703
      %v8832 = vadd.f32 %v7424, %v8704
      %v8833 = vadd.f32 %v7425, %v8705
      %v8834 = vadd.f32 %v7426, %v8706
      %v8835 = vadd.f32 %v7427, %v8707
      %v8836 = vadd.f32 %v7428, %v8708
      %v8837 = vadd.f32 %v7429, %v8709
      %v8838 = vadd.f32 %v7430, %v8710
      %v8839 = vadd.f32 %v7431, %v8711
      %v8840 = vadd.f32 %v7432, %v8712
      %v8841 = vadd.f32 %v7433, %v8713
      %v8842 = vadd.f32 %v7434, %v8714
      %v8843 = vadd.f32 %v7435, %v8715
      %v8844 = vadd.f32 %v7436, %v8716
      %v8845 = vadd.f32 %v7437, %v8717
      %v8846 = vadd.f32 %v7438, %v8718
      %v8847 = vadd.f32 %v7439, %v8719
      %v8848 = vadd.f32 %v7440, %v8720
      %v8849 = vadd.f32 %v7441, %v8721
      %v8850 = vadd.f32 %v7442, %v8722
      %v8851 = vadd.f32 %v7443, %v8723
      %v8852 = vadd.f32 %v7444, %v8724
      %v8853 = vadd.f32 %v7445, %v8725
      %v8854 = vadd.f32 %v7446, %v8726
      %v8855 = vadd.f32 %v7447, %v8727
      %v8856 = vadd.f32 %v7448, %v8728
      %v8857 = vadd.f32 %v7449, %v8729
      %v8858 = vadd.f32 %v7450, %v8730
      %v8859 = vadd.f32 %v7451, %v8731
      %v8860 = vadd.f32 %v7452, %v8732
      %v8861 = vadd.f32 %v7453, %v8733
      %v8862 = vadd.f32 %v7454, %v8734
      %v8863 = vadd.f32 %v7455, %v8735
      %v8864 = vadd.f32 %v7456, %v8736
      %v8865 = vadd.f32 %v7457, %v8737
      %v8866 = vadd.f32 %v7458, %v8738
      %v8867 = vadd.f32 %v7459, %v8739
      %v8868 = vadd.f32 %v7460, %v8740
      %v8869 = vadd.f32 %v7461, %v8741
      %v8870 = vadd.f32 %v7462, %v8742
      %v8871 = vadd.f32 %v7463, %v8743
      %v8872 = vadd.f32 %v7464, %v8744
      %v8873 = vadd.f32 %v7465, %v8745
      %v8874 = vadd.f32 %v7466, %v8746
      %v8875 = vadd.f32 %v7467, %v8747
      %v8876 = vadd.f32 %v7468, %v8748
      %v8877 = vadd.f32 %v7469, %v8749
      %v8878 = vadd.f32 %v7470, %v8750
      %v8879 = vadd.f32 %v7471, %v8751
      %v8880 = vadd.f32 %v7472, %v8752
      %v8881 = vadd.f32 %v7473, %v8753
      %v8882 = vadd.f32 %v7474, %v8754
      %v8883 = vadd.f32 %v7475, %v8755
      %v8884 = vadd.f32 %v7476, %v8756
      %v8885 = vadd.f32 %v7477, %v8757
      %v8886 = vadd.f32 %v7478, %v8758
      %v8887 = vadd.f32 %v7479, %v8759
      %v8888 = vadd.f32 %v7480, %v8760
      %v8889 = vadd.f32 %v7481, %v8761
      %v8890 = vadd.f32 %v7482, %v8762
      %v8891 = vadd.f32 %v7483, %v8763
      %v8892 = vadd.f32 %v7484, %v8764
      %v8893 = vadd.f32 %v7485, %v8765
      %v8894 = vadd.f32 %v7486, %v8766
      %v8895 = vadd.f32 %v7487, %v8767
      %v8896 = vadd.f32 %v7488, %v8768
      %v8897 = vadd.f32 %v7489, %v8769
      %v8898 = vadd.f32 %v7490, %v8770
      %v8899 = vadd.f32 %v7491, %v8771
      %v8900 = vadd.f32 %v7492, %v8772
      %v8901 = vadd.f32 %v7493, %v8773
      %v8902 = vadd.f32 %v7494, %v8774
      %v8903 = vadd.f32 %v7495, %v8775
      %v8904 = vadd.f32 %v7496, %v8776
      %v8905 = vadd.f32 %v7497, %v8777
      %v8906 = vadd.f32 %v7498, %v8778
      %v8907 = vadd.f32 %v7499, %v8779
      %v8908 = vadd.f32 %v7500, %v8780
      %v8909 = vadd.f32 %v7501, %v8781
      %v8910 = vadd.f32 %v7502, %v8782
      %v8911 = vadd.f32 %v7503, %v8783
      %v8912 = vadd.f32 %v7504, %v8784
      %v8913 = vadd.f32 %v7505, %v8785
      %v8914 = vadd.f32 %v7506, %v8786
      %8915 = vst [vmem:[%s229] sm:$0xff] %v8787
      %8916 = vst [vmem:[%s229 + $0x8] sm:$0xff] %v8788
      %8917 = vst [vmem:[%s229 + $0x10] sm:$0xff] %v8789
      %8918 = vst [vmem:[%s229 + $0x18] sm:$0xff] %v8790
      %8919 = vst [vmem:[%s229 + $0x20] sm:$0xff] %v8791
      %8920 = vst [vmem:[%s229 + $0x28] sm:$0xff] %v8792
      %8921 = vst [vmem:[%s229 + $0x30] sm:$0xff] %v8793
      %8922 = vst [vmem:[%s229 + $0x38] sm:$0xff] %v8794
      %8923 = vst [vmem:[%s229 + $0x40] sm:$0xff] %v8795
      %8924 = vst [vmem:[%s229 + $0x48] sm:$0xff] %v8796
      %8925 = vst [vmem:[%s229 + $0x50] sm:$0xff] %v8797
      %8926 = vst [vmem:[%s229 + $0x58] sm:$0xff] %v8798
      %8927 = vst [vmem:[%s229 + $0x60] sm:$0xff] %v8799
      %8928 = vst [vmem:[%s229 + $0x68] sm:$0xff] %v8800
      %8929 = vst [vmem:[%s229 + $0x70] sm:$0xff] %v8801
      %8930 = vst [vmem:[%s229 + $0x78] sm:$0xff] %v8802
      %8931 = vst [vmem:[%s229 + $0x80] sm:$0xff] %v8803
      %8932 = vst [vmem:[%s229 + $0x88] sm:$0xff] %v8804
      %8933 = vst [vmem:[%s229 + $0x90] sm:$0xff] %v8805
      %8934 = vst [vmem:[%s229 + $0x98] sm:$0xff] %v8806
      %8935 = vst [vmem:[%s229 + $0xa0] sm:$0xff] %v8807
      %8936 = vst [vmem:[%s229 + $0xa8] sm:$0xff] %v8808
      %8937 = vst [vmem:[%s229 + $0xb0] sm:$0xff] %v8809
      %8938 = vst [vmem:[%s229 + $0xb8] sm:$0xff] %v8810
      %8939 = vst [vmem:[%s229 + $0xc0] sm:$0xff] %v8811
      %8940 = vst [vmem:[%s229 + $0xc8] sm:$0xff] %v8812
      %8941 = vst [vmem:[%s229 + $0xd0] sm:$0xff] %v8813
      %8942 = vst [vmem:[%s229 + $0xd8] sm:$0xff] %v8814
      %8943 = vst [vmem:[%s229 + $0xe0] sm:$0xff] %v8815
      %8944 = vst [vmem:[%s229 + $0xe8] sm:$0xff] %v8816
      %8945 = vst [vmem:[%s229 + $0xf0] sm:$0xff] %v8817
      %8946 = vst [vmem:[%s229 + $0xf8] sm:$0xff] %v8818
      %8947 = vst [vmem:[%s229 + $0x100] sm:$0xff] %v8819
      %8948 = vst [vmem:[%s229 + $0x108] sm:$0xff] %v8820
      %8949 = vst [vmem:[%s229 + $0x110] sm:$0xff] %v8821
      %8950 = vst [vmem:[%s229 + $0x118] sm:$0xff] %v8822
      %8951 = vst [vmem:[%s229 + $0x120] sm:$0xff] %v8823
      %8952 = vst [vmem:[%s229 + $0x128] sm:$0xff] %v8824
      %8953 = vst [vmem:[%s229 + $0x130] sm:$0xff] %v8825
      %8954 = vst [vmem:[%s229 + $0x138] sm:$0xff] %v8826
      %8955 = vst [vmem:[%s229 + $0x140] sm:$0xff] %v8827
      %8956 = vst [vmem:[%s229 + $0x148] sm:$0xff] %v8828
      %8957 = vst [vmem:[%s229 + $0x150] sm:$0xff] %v8829
      %8958 = vst [vmem:[%s229 + $0x158] sm:$0xff] %v8830
      %8959 = vst [vmem:[%s229 + $0x160] sm:$0xff] %v8831
      %8960 = vst [vmem:[%s229 + $0x168] sm:$0xff] %v8832
      %8961 = vst [vmem:[%s229 + $0x170] sm:$0xff] %v8833
      %8962 = vst [vmem:[%s229 + $0x178] sm:$0xff] %v8834
      %8963 = vst [vmem:[%s229 + $0x180] sm:$0xff] %v8835
      %8964 = vst [vmem:[%s229 + $0x188] sm:$0xff] %v8836
      %8965 = vst [vmem:[%s229 + $0x190] sm:$0xff] %v8837
      %8966 = vst [vmem:[%s229 + $0x198] sm:$0xff] %v8838
      %8967 = vst [vmem:[%s229 + $0x1a0] sm:$0xff] %v8839
      %8968 = vst [vmem:[%s229 + $0x1a8] sm:$0xff] %v8840
      %8969 = vst [vmem:[%s229 + $0x1b0] sm:$0xff] %v8841
      %8970 = vst [vmem:[%s229 + $0x1b8] sm:$0xff] %v8842
      %8971 = vst [vmem:[%s229 + $0x1c0] sm:$0xff] %v8843
      %8972 = vst [vmem:[%s229 + $0x1c8] sm:$0xff] %v8844
      %8973 = vst [vmem:[%s229 + $0x1d0] sm:$0xff] %v8845
      %8974 = vst [vmem:[%s229 + $0x1d8] sm:$0xff] %v8846
      %8975 = vst [vmem:[%s229 + $0x1e0] sm:$0xff] %v8847
      %8976 = vst [vmem:[%s229 + $0x1e8] sm:$0xff] %v8848
      %8977 = vst [vmem:[%s229 + $0x1f0] sm:$0xff] %v8849
      %8978 = vst [vmem:[%s229 + $0x1f8] sm:$0xff] %v8850
      %8979 = vst [vmem:[%s229 + $0x200] sm:$0xff] %v8851
      %8980 = vst [vmem:[%s229 + $0x208] sm:$0xff] %v8852
      %8981 = vst [vmem:[%s229 + $0x210] sm:$0xff] %v8853
      %8982 = vst [vmem:[%s229 + $0x218] sm:$0xff] %v8854
      %8983 = vst [vmem:[%s229 + $0x220] sm:$0xff] %v8855
      %8984 = vst [vmem:[%s229 + $0x228] sm:$0xff] %v8856
      %8985 = vst [vmem:[%s229 + $0x230] sm:$0xff] %v8857
      %8986 = vst [vmem:[%s229 + $0x238] sm:$0xff] %v8858
      %8987 = vst [vmem:[%s229 + $0x240] sm:$0xff] %v8859
      %8988 = vst [vmem:[%s229 + $0x248] sm:$0xff] %v8860
      %8989 = vst [vmem:[%s229 + $0x250] sm:$0xff] %v8861
      %8990 = vst [vmem:[%s229 + $0x258] sm:$0xff] %v8862
      %8991 = vst [vmem:[%s229 + $0x260] sm:$0xff] %v8863
      %8992 = vst [vmem:[%s229 + $0x268] sm:$0xff] %v8864
      %8993 = vst [vmem:[%s229 + $0x270] sm:$0xff] %v8865
      %8994 = vst [vmem:[%s229 + $0x278] sm:$0xff] %v8866
      %8995 = vst [vmem:[%s229 + $0x280] sm:$0xff] %v8867
      %8996 = vst [vmem:[%s229 + $0x288] sm:$0xff] %v8868
      %8997 = vst [vmem:[%s229 + $0x290] sm:$0xff] %v8869
      %8998 = vst [vmem:[%s229 + $0x298] sm:$0xff] %v8870
      %8999 = vst [vmem:[%s229 + $0x2a0] sm:$0xff] %v8871
      %9000 = vst [vmem:[%s229 + $0x2a8] sm:$0xff] %v8872
      %9001 = vst [vmem:[%s229 + $0x2b0] sm:$0xff] %v8873
      %9002 = vst [vmem:[%s229 + $0x2b8] sm:$0xff] %v8874
      %9003 = vst [vmem:[%s229 + $0x2c0] sm:$0xff] %v8875
      %9004 = vst [vmem:[%s229 + $0x2c8] sm:$0xff] %v8876
      %9005 = vst [vmem:[%s229 + $0x2d0] sm:$0xff] %v8877
      %9006 = vst [vmem:[%s229 + $0x2d8] sm:$0xff] %v8878
      %9007 = vst [vmem:[%s229 + $0x2e0] sm:$0xff] %v8879
      %9008 = vst [vmem:[%s229 + $0x2e8] sm:$0xff] %v8880
      %9009 = vst [vmem:[%s229 + $0x2f0] sm:$0xff] %v8881
      %9010 = vst [vmem:[%s229 + $0x2f8] sm:$0xff] %v8882
      %9011 = vst [vmem:[%s229 + $0x300] sm:$0xff] %v8883
      %9012 = vst [vmem:[%s229 + $0x308] sm:$0xff] %v8884
      %9013 = vst [vmem:[%s229 + $0x310] sm:$0xff] %v8885
      %9014 = vst [vmem:[%s229 + $0x318] sm:$0xff] %v8886
      %9015 = vst [vmem:[%s229 + $0x320] sm:$0xff] %v8887
      %9016 = vst [vmem:[%s229 + $0x328] sm:$0xff] %v8888
      %9017 = vst [vmem:[%s229 + $0x330] sm:$0xff] %v8889
      %9018 = vst [vmem:[%s229 + $0x338] sm:$0xff] %v8890
      %9019 = vst [vmem:[%s229 + $0x340] sm:$0xff] %v8891
      %9020 = vst [vmem:[%s229 + $0x348] sm:$0xff] %v8892
      %9021 = vst [vmem:[%s229 + $0x350] sm:$0xff] %v8893
      %9022 = vst [vmem:[%s229 + $0x358] sm:$0xff] %v8894
      %9023 = vst [vmem:[%s229 + $0x360] sm:$0xff] %v8895
      %9024 = vst [vmem:[%s229 + $0x368] sm:$0xff] %v8896
      %9025 = vst [vmem:[%s229 + $0x370] sm:$0xff] %v8897
      %9026 = vst [vmem:[%s229 + $0x378] sm:$0xff] %v8898
      %9027 = vst [vmem:[%s229 + $0x380] sm:$0xff] %v8899
      %9028 = vst [vmem:[%s229 + $0x388] sm:$0xff] %v8900
      %9029 = vst [vmem:[%s229 + $0x390] sm:$0xff] %v8901
      %9030 = vst [vmem:[%s229 + $0x398] sm:$0xff] %v8902
      %9031 = vst [vmem:[%s229 + $0x3a0] sm:$0xff] %v8903
      %9032 = vst [vmem:[%s229 + $0x3a8] sm:$0xff] %v8904
      %9033 = vst [vmem:[%s229 + $0x3b0] sm:$0xff] %v8905
      %9034 = vst [vmem:[%s229 + $0x3b8] sm:$0xff] %v8906
      %9035 = vst [vmem:[%s229 + $0x3c0] sm:$0xff] %v8907
      %9036 = vst [vmem:[%s229 + $0x3c8] sm:$0xff] %v8908
      %9037 = vst [vmem:[%s229 + $0x3d0] sm:$0xff] %v8909
      %9038 = vst [vmem:[%s229 + $0x3d8] sm:$0xff] %v8910
      %9039 = vst [vmem:[%s229 + $0x3e0] sm:$0xff] %v8911
      %9040 = vst [vmem:[%s229 + $0x3e8] sm:$0xff] %v8912
      %9041 = vst [vmem:[%s229 + $0x3f0] sm:$0xff] %v8913
      %9042 = vst [vmem:[%s229 + $0x3f8] sm:$0xff] %v8914
      %s9043 = smul.u32 128, %s26
      %p9044 = scmp.lt.s32.totalorder %s9043, 1151
      %s9045 = scalar_select %p9044, %s9043, 1151
      %s9046 = smul.addr %s9045, 8
      %s9047 = scalar_lea.vmem %s5, %s9046
      // Predicated region
      $region33: #{_detector_device.1} parent=31 // pred_check
        %p9048 = pneg %p126
      $region34: #{_detector_device.1} parent=31 // pred_check_branch
        %9050 = sbr.rel (%p9048) target = $region36
      $region35: #{_detector_device.1} parent=31 // pred_region
        %s9051 = smul.u32 128, %s26
      $region36: #{_detector_device.1} parent=31 // pred_fallthru
        _
    $region32: #{_detector_device.1} parent=5 // pred_fallthru
      _
    %p9052 = scmp.le.s32.totalorder 2, %s21
    // Predicated region
    $region37: #{_detector_device.1} parent=5 // pred_check
      %p9053 = pneg %p9052
    $region38: #{_detector_device.1} parent=5 // pred_check_branch
      %9055 = sbr.rel (%p9053) target = $region40
    $region39: #{_detector_device.1} parent=5 // pred_region
      %s9056 = ssub.s32 %s21, 2
      // Predicated region
      $region41: #{_detector_device.1} parent=39 // pred_check
        %p9057 = pneg %p132
      $region42: #{_detector_device.1} parent=39 // pred_check_branch
        %9059 = sbr.rel (%p9057) target = $region44
      $region43: #{_detector_device.1} parent=39 // pred_region
        %s9060 = smul.u32 128, %s27
        %p9061 = scmp.lt.s32.totalorder %s9060, 1151
        %s9062 = scalar_select %p9061, %s9060, 1151
        %s9063 = smul.addr %s9062, 8
        %s9064 = scalar_lea.vmem %s5, %s9063
      $region44: #{_detector_device.1} parent=39 // pred_fallthru
        _
    $region40: #{_detector_device.1} parent=5 // pred_fallthru
      _
  $region6: #{_detector_device.1} parent=0 // loop_footer
    %s25 = sadd.s32 1, %s21
  $region7: #{_detector_device.1} parent=0 // loop_footer_branch
    %20 = sbr.rel target = $region3
  $region8: #{_detector_device.1} parent=0 // loop_exit
    _

</llo_original>
